<compile_context>
chip_gen: v7x
topology: tpu7x:2x2x1
jax: 0.10.0
libtpu: 0.0.40
codegen_flags: <defaults>
</compile_context>

<pallas_src>
import math

import jax
import jax.numpy as jnp
from jax.experimental import pallas as pl
from jax.experimental.pallas import tpu as pltpu


# ---------------------------------------------------------------------------
# BlockSpec helpers
# ---------------------------------------------------------------------------
def _full_spec(shape):
    n = len(shape)
    return pl.BlockSpec(tuple(shape), lambda b: (0,) * n)


def _batch_spec(shape):
    # one batch element per grid step, batch dim squeezed away inside the kernel
    n = len(shape)
    return pl.BlockSpec((pl.Squeezed(),) + tuple(shape[1:]),
                        lambda b: (b,) + (0,) * (n - 1))


# ---------------------------------------------------------------------------
# Fully fused Wavenet2D kernel
# ---------------------------------------------------------------------------
def _make_wavenet_kernel(H, W, L, Cr, Cg, Cs, Ccin, dil_h, dil_w):
    scale = math.sqrt(0.5)
    maxdh, maxdw = max(dil_h), max(dil_w)
    Hpad, Wpad = H + 2 * maxdh, W + 2 * maxdw
    HW = H * W
    K9 = 9 * Cr  # im2col columns used by the 3x3 taps
    # taps per 128-lane-aligned col_ref store (4 when Cr == 32)
    tps = 128 // Cr if (Cr <= 128 and 128 % Cr == 0) else 1

    def kernel(x_ref, c_ref, fw_ref, fb_ref,
               wgate_ref, bgate_ref, wout_ref, bout_ref,
               ow_ref, ob_ref,
               out_ref,
               hpad_ref, col_ref):
        # Zero ONLY the padding border of the bf16 activation scratch (the
        # interior is fully rewritten every layer).  Per grid step on purpose.
        zrow = jnp.zeros((2 * maxdh, Wpad, Cr), jnp.bfloat16)
        zcol = jnp.zeros((Hpad, maxdw, Cr), jnp.bfloat16)
        hpad_ref[0:2 * maxdh, :, :] = zrow
        hpad_ref[:, 0:maxdw, :] = zcol
        hpad_ref[:, maxdw + W:Wpad, :] = zcol

        # front 1x1 conv: (H*W, Cin) x (Cin, Cr); bf16 MXU inputs, f32 accum.
        h = jnp.dot(x_ref[...], fw_ref[...],
                    preferred_element_type=jnp.float32) + fb_ref[...]

        # Conditioning block of the im2col matrix is constant across layers:
        # write it once (columns [9*Cr : 9*Cr + Ccin]).  Already bf16.
        col_ref[:, K9:] = c_ref[...]

        skip = jnp.zeros((HW, Cs), jnp.float32)

        for l in range(L):
            dh, dw = dil_h[l], dil_w[l]
            r0 = 2 * maxdh - 2 * dh     # causal-H: out row i reads i-2dh, i-dh, i
            c0 = maxdw - dw             # same-W:   out col j reads j-dw, j, j+dw

            # current residual activation into the padded scratch interior
            # (single f32->bf16 cast per layer)
            hpad_ref[2 * maxdh:2 * maxdh + H, maxdw:maxdw + W, :] = (
                h.astype(jnp.bfloat16).reshape(H, W, Cr))

            # im2col, kw-major tap order (t = kw*3 + kh, matches weight packing):
            #   * 3 sublane-crossing W-slices per layer (not 9);
            #   * H-shifts are cheap leading-dim slices of the sliced value;
            #   * taps are grouped `tps` at a time (4*Cr = 128 lanes) and stored
            #     with ONE lane-dense 128-aligned store per group.
            wins, base = [], 0
            for kw in range(3):
                wsl = hpad_ref[:, c0 + kw * dw:c0 + kw * dw + W, :]  # (Hpad, W, Cr)
                for kh in range(3):
                    wins.append(
                        wsl[r0 + kh * dh:r0 + kh * dh + H].reshape(HW, Cr))
                    if len(wins) == tps:
                        col_ref[:, base * Cr:(base + tps) * Cr] = (
                            jnp.concatenate(wins, axis=-1) if tps > 1 else wins[0])
                        base += tps
                        wins = []
            if wins:  # trailing taps (tap 8 when Cr == 32): single narrow store
                col_ref[:, base * Cr:(base + len(wins)) * Cr] = (
                    jnp.concatenate(wins, axis=-1) if len(wins) > 1 else wins[0])

            # fused [filter||gate] dilated conv + conditioning 1x1 + folded
            # biases: ONE (HW, 9*Cr+Ccin) x (9*Cr+Ccin, 2*Cg) MXU dot
            # (single MXU-result pop — preferred on v5e/v6e MRF).
            gates = jnp.dot(col_ref[...], wgate_ref[l],
                            preferred_element_type=jnp.float32) + bgate_ref[l]
            gated = jnp.tanh(gates[:, :Cg]) * jax.nn.sigmoid(gates[:, Cg:])

            # fused [res||skip] 1x1 convs: one (HW, Cg) x (Cg, Cr+Cs) dot.
            rs = jnp.dot(gated.astype(jnp.bfloat16), wout_ref[l],
                         preferred_element_type=jnp.float32) + bout_ref[l]
            h = (h + rs[:, :Cr]) * scale
            skip = skip + rs[:, Cr:]

        # final: ReLU -> 1x1 -> ReLU, computed transposed so the output block is
        # (out_ch, H*W): lane-dense stores / writeback DMA, already NCHW order.
        y = jnp.einsum("oc,mc->om", ow_ref[...],
                       jnp.maximum(skip, 0.0).astype(jnp.bfloat16),
                       preferred_element_type=jnp.float32)
        out_ref[...] = jnp.maximum(y + ob_ref[...], 0.0)

    return kernel


def wavenet2d_forward(params, x_nchw, c_nchw, dilation_h, dilation_w):
    N, Cin, H, W = x_nchw.shape
    Ccin = c_nchw.shape[1]
    Cr = params["front_w"].shape[1]
    Cg = params["bgate"].shape[-1] // 2
    Cs = params["wout"].shape[-1] - Cr
    out_ch = params["final_w"].shape[0]
    L = params["wgate"].shape[0]
    maxdh, maxdw = max(dilation_h), max(dilation_w)

    # NCHW -> channels-last, flattened spatial; bf16 halves the per-step
    # HBM->VMEM DMA bytes and removes all in-kernel input casts.
    x = jnp.transpose(x_nchw, (0, 2, 3, 1)).reshape(N, H * W, Cin).astype(jnp.bfloat16)
    c = jnp.transpose(c_nchw, (0, 2, 3, 1)).reshape(N, H * W, Ccin).astype(jnp.bfloat16)

    kernel = _make_wavenet_kernel(H, W, L, Cr, Cg, Cs, Ccin,
                                  tuple(dilation_h), tuple(dilation_w))

    args = (x, c,
            params["front_w"], params["front_b"],
            params["wgate"], params["bgate"],
            params["wout"], params["bout"],
            params["final_w"], params["final_b"])
    in_specs = [_batch_spec(x.shape), _batch_spec(c.shape)]
    # TODO(synk): at production sizes, give these constant weight specs
    # pipeline_mode=pl.Buffered(1) to avoid double-buffered VMEM copies.
    in_specs += [_full_spec(a.shape) for a in args[2:]]

    out = pl.pallas_call(
        kernel,
        grid=(N,),
        in_specs=in_specs,
        out_specs=_batch_spec((N, out_ch, H * W)),
        out_shape=jax.ShapeDtypeStruct((N, out_ch, H * W), jnp.float32),
        scratch_shapes=[
            pltpu.VMEM((H + 2 * maxdh, W + 2 * maxdw, Cr), jnp.bfloat16),  # padded h
            pltpu.VMEM((H * W, 9 * Cr + Ccin), jnp.bfloat16),              # im2col
        ],
        compiler_params=pltpu.CompilerParams(
            dimension_semantics=("parallel",),
            vmem_limit_bytes=64 * 1024 * 1024),
    )(*args)

    # (N, out_ch, H*W) is already channel-major: just unflatten the spatial dim.
    return out.reshape(N, out_ch, H, W)


# ---------------------------------------------------------------------------
# Deterministic parameter init (kaiming-normal, synthetic) + fused packing
# ---------------------------------------------------------------------------
def init_params(key, in_ch, out_ch, num_layers, Cr, Cg, Cs, Ccin):
    keys = iter(jax.random.split(key, 4 + num_layers * 12))

    def kaiming(shape, fan_in):
        return jax.random.normal(next(keys), shape, jnp.float32) * math.sqrt(2.0 / fan_in)

    def bias(cout):
        return jax.random.normal(next(keys), (1, cout), jnp.float32) * 0.01

    front_w, front_b = kaiming((in_ch, Cr), in_ch), bias(Cr)
    final_w, final_b = kaiming((Cs, out_ch), Cs), bias(out_ch)

    def pack_taps(w):   # (kh, kw, Cr, Cg) -> (9*Cr, Cg), kw-major (t = kw*3 + kh)
        return jnp.transpose(w, (1, 0, 2, 3)).reshape(9 * Cr, Cg)

    wgate, bgate, wout, bout = [], [], [], []
    for _ in range(num_layers):
        wf, bf = kaiming((3, 3, Cr, Cg), Cr * 9), bias(Cg)      # filter 3x3
        wg, bg = kaiming((3, 3, Cr, Cg), Cr * 9), bias(Cg)      # gate   3x3
        wfc, bfc = kaiming((Ccin, Cg), Ccin), bias(Cg)          # filter cond 1x1
        wgc, bgc = kaiming((Ccin, Cg), Ccin), bias(Cg)          # gate   cond 1x1
        wres, bres = kaiming((Cg, Cr), Cg), bias(Cr)
        wskip, bskip = kaiming((Cg, Cs), Cg), bias(Cs)

        # rows = [9 taps (kw-major) x Cr | Ccin], cols = [filter Cg | gate Cg]
        wg_conv = jnp.concatenate(
            [jnp.concatenate([pack_taps(wf), pack_taps(wg)], axis=1),
             jnp.concatenate([wfc, wgc], axis=1)], axis=0)
        wgate.append(wg_conv)
        bgate.append(jnp.concatenate([bf + bfc, bg + bgc], axis=1))   # folded biases
        wout.append(jnp.concatenate([wres, wskip], axis=1))           # [res | skip]
        bout.append(jnp.concatenate([bres, bskip], axis=1))

    return {
        "front_w": front_w.astype(jnp.bfloat16),                 # (Cin, Cr)
        "front_b": front_b,                                      # (1, Cr)   f32
        "final_w": final_w.T.astype(jnp.bfloat16),               # (out_ch, Cs)
        "final_b": final_b.T,                                    # (out_ch, 1) f32
        "wgate": jnp.stack(wgate).astype(jnp.bfloat16),          # (L, 9*Cr+Ccin, 2*Cg)
        "bgate": jnp.stack(bgate),                               # (L, 1, 2*Cg)  f32
        "wout": jnp.stack(wout).astype(jnp.bfloat16),            # (L, Cg, Cr+Cs)
        "bout": jnp.stack(bout),                                 # (L, 1, Cr+Cs) f32
    }


if __name__ == "__main__":
    N, H, W = 2, 16, 16
    in_ch, out_ch = 4, 4
    Cr = Cg = Cs = 32
    Ccin = 16
    num_layers = 3
    dilation_h = (1, 2, 4)
    dilation_w = (1, 2, 4)

    key = jax.random.PRNGKey(0)
    kp, kx, kc = jax.random.split(key, 3)
    params = init_params(kp, in_ch, out_ch, num_layers, Cr, Cg, Cs, Ccin)

    x = jax.random.normal(kx, (N, in_ch, H, W), jnp.float32)   # NCHW like PyTorch
    c = jax.random.normal(kc, (N, Ccin, H, W), jnp.float32)    # local conditioning

    fwd = jax.jit(wavenet2d_forward, static_argnums=(3, 4))
    out = fwd(params, x, c, dilation_h, dilation_w)
    out = jax.block_until_ready(out)
    assert out.shape == (N, out_ch, H, W)
    assert bool(jnp.all(jnp.isfinite(out)))
    print("KERNEL_OK")
</pallas_src>

<mosaic_0001>
module attributes {stable_mosaic.version = 11 : i64} {
  func.func @kernel(%arg0: i32, %arg1: memref<1x256x4xbf16, #tpu.memory_space<vmem>>, %arg2: memref<1x256x16xbf16, #tpu.memory_space<vmem>>, %arg3: memref<4x32xbf16, #tpu.memory_space<vmem>>, %arg4: memref<1x32xf32, #tpu.memory_space<vmem>>, %arg5: memref<3x304x64xbf16, #tpu.memory_space<vmem>>, %arg6: memref<3x1x64xf32, #tpu.memory_space<vmem>>, %arg7: memref<3x32x64xbf16, #tpu.memory_space<vmem>>, %arg8: memref<3x1x64xf32, #tpu.memory_space<vmem>>, %arg9: memref<4x32xbf16, #tpu.memory_space<vmem>>, %arg10: memref<4x1xf32, #tpu.memory_space<vmem>>, %arg11: memref<1x4x256xf32, #tpu.memory_space<vmem>>, %arg12: memref<24x24x32xbf16, #tpu.memory_space<vmem>>, %arg13: memref<256x304xbf16, #tpu.memory_space<vmem>>) attributes {dimension_semantics = [#tpu.dimension_semantics<parallel>], iteration_bounds = array<i64: 2>, scalar_prefetch = 0 : i64, scratch_operands = 2 : i64, tpu.core_type = #tpu.core_type<tc>, window_params = [{transform_indices = @transform_0, window_bounds = array<i64: 1, 256, 4>}, {transform_indices = @transform_1, window_bounds = array<i64: 1, 256, 16>}, {pipeline_mode = #tpu.pipeline_mode<synchronous>, transform_indices = @transform_2, window_bounds = array<i64: 4, 32>}, {pipeline_mode = #tpu.pipeline_mode<synchronous>, transform_indices = @transform_3, window_bounds = array<i64: 1, 32>}, {pipeline_mode = #tpu.pipeline_mode<synchronous>, transform_indices = @transform_4, window_bounds = array<i64: 3, 304, 64>}, {pipeline_mode = #tpu.pipeline_mode<synchronous>, transform_indices = @transform_5, window_bounds = array<i64: 3, 1, 64>}, {pipeline_mode = #tpu.pipeline_mode<synchronous>, transform_indices = @transform_6, window_bounds = array<i64: 3, 32, 64>}, {pipeline_mode = #tpu.pipeline_mode<synchronous>, transform_indices = @transform_7, window_bounds = array<i64: 3, 1, 64>}, {pipeline_mode = #tpu.pipeline_mode<synchronous>, transform_indices = @transform_8, window_bounds = array<i64: 4, 32>}, {pipeline_mode = #tpu.pipeline_mode<synchronous>, transform_indices = @transform_9, window_bounds = array<i64: 4, 1>}, {transform_indices = @transform_10, window_bounds = array<i64: 1, 4, 256>}]} {
    %cst = arith.constant 0.000000e+00 : bf16
    %0 = vector.broadcast %cst : bf16 to vector<8x24x32xbf16>
    %cst_0 = arith.constant 0.000000e+00 : bf16
    %1 = vector.broadcast %cst_0 : bf16 to vector<24x4x32xbf16>
    %c0 = arith.constant 0 : index
    %c0_1 = arith.constant 0 : index
    %c0_2 = arith.constant 0 : index
    %2 = vector.load %arg12[%c0, %c0_1, %c0_2] : memref<24x24x32xbf16, #tpu.memory_space<vmem>>, vector<8x24x32xbf16>
    tpu.vector_store %arg12[%c0, %c0_1, %c0_2], %0 {strides = array<i32>} : memref<24x24x32xbf16, #tpu.memory_space<vmem>>, vector<8x24x32xbf16>,
    %c0_3 = arith.constant 0 : index
    %c0_4 = arith.constant 0 : index
    %c0_5 = arith.constant 0 : index
    %3 = vector.load %arg12[%c0_3, %c0_4, %c0_5] : memref<24x24x32xbf16, #tpu.memory_space<vmem>>, vector<24x4x32xbf16>
    tpu.vector_store %arg12[%c0_3, %c0_4, %c0_5], %1 {strides = array<i32>} : memref<24x24x32xbf16, #tpu.memory_space<vmem>>, vector<24x4x32xbf16>,
    %c0_6 = arith.constant 0 : index
    %c20 = arith.constant 20 : index
    %c0_7 = arith.constant 0 : index
    %4 = vector.load %arg12[%c0_6, %c20, %c0_7] : memref<24x24x32xbf16, #tpu.memory_space<vmem>>, vector<24x4x32xbf16>
    tpu.vector_store %arg12[%c0_6, %c20, %c0_7], %1 {strides = array<i32>} : memref<24x24x32xbf16, #tpu.memory_space<vmem>>, vector<24x4x32xbf16>,
    %c0_8 = arith.constant 0 : index
    %c0_9 = arith.constant 0 : index
    %c0_10 = arith.constant 0 : index
    %5 = vector.load %arg1[%c0_8, %c0_9, %c0_10] : memref<1x256x4xbf16, #tpu.memory_space<vmem>>, vector<1x256x4xbf16>
    %6 = vector.shape_cast %5 : vector<1x256x4xbf16> to vector<256x4xbf16>
    %c0_11 = arith.constant 0 : index
    %c0_12 = arith.constant 0 : index
    %7 = vector.load %arg3[%c0_11, %c0_12] : memref<4x32xbf16, #tpu.memory_space<vmem>>, vector<4x32xbf16>
    %cst_13 = arith.constant dense<0.000000e+00> : vector<256x32xf32>
    %8 = tpu.matmul %6, %7, %cst_13 {dimension_numbers = #tpu.dot_dimension_numbers<[1], [0], [0], [1], [0, 0, 1, 1], [], []>} : vector<256x4xbf16>, vector<4x32xbf16>, vector<256x32xf32> -> vector<256x32xf32>
    %c0_14 = arith.constant 0 : index
    %c0_15 = arith.constant 0 : index
    %9 = vector.load %arg4[%c0_14, %c0_15] : memref<1x32xf32, #tpu.memory_space<vmem>>, vector<1x32xf32>
    %10 = vector.broadcast %9 : vector<1x32xf32> to vector<256x32xf32>
    %11 = arith.addf %8, %10 : vector<256x32xf32>
    %c0_16 = arith.constant 0 : index
    %c0_17 = arith.constant 0 : index
    %c0_18 = arith.constant 0 : index
    %12 = vector.load %arg2[%c0_16, %c0_17, %c0_18] : memref<1x256x16xbf16, #tpu.memory_space<vmem>>, vector<1x256x16xbf16>
    %13 = vector.shape_cast %12 : vector<1x256x16xbf16> to vector<256x16xbf16>
    %c0_19 = arith.constant 0 : index
    %c288 = arith.constant 288 : index
    %14 = vector.load %arg13[%c0_19, %c288] : memref<256x304xbf16, #tpu.memory_space<vmem>>, vector<256x16xbf16>
    tpu.vector_store %arg13[%c0_19, %c288], %13 {strides = array<i32>} : memref<256x304xbf16, #tpu.memory_space<vmem>>, vector<256x16xbf16>,
    %cst_20 = arith.constant 0.000000e+00 : f32
    %15 = vector.broadcast %cst_20 : f32 to vector<256x32xf32>
    %16 = arith.truncf %11 : vector<256x32xf32> to vector<256x32xbf16>
    %17 = vector.shape_cast %16 : vector<256x32xbf16> to vector<16x16x32xbf16>
    %c8 = arith.constant 8 : index
    %c4 = arith.constant 4 : index
    %c0_21 = arith.constant 0 : index
    %18 = vector.load %arg12[%c8, %c4, %c0_21] : memref<24x24x32xbf16, #tpu.memory_space<vmem>>, vector<16x16x32xbf16>
    tpu.vector_store %arg12[%c8, %c4, %c0_21], %17 {strides = array<i32>} : memref<24x24x32xbf16, #tpu.memory_space<vmem>>, vector<16x16x32xbf16>,
    %c0_22 = arith.constant 0 : index
    %c3 = arith.constant 3 : index
    %c0_23 = arith.constant 0 : index
    %19 = vector.load %arg12[%c0_22, %c3, %c0_23] : memref<24x24x32xbf16, #tpu.memory_space<vmem>>, vector<24x16x32xbf16>
    %20 = vector.extract_strided_slice %19 {offsets = [6, 0, 0], sizes = [16, 16, 32], strides = [1, 1, 1]} : vector<24x16x32xbf16> to vector<16x16x32xbf16>
    %21 = vector.shape_cast %20 : vector<16x16x32xbf16> to vector<256x32xbf16>
    %22 = vector.extract_strided_slice %19 {offsets = [7, 0, 0], sizes = [16, 16, 32], strides = [1, 1, 1]} : vector<24x16x32xbf16> to vector<16x16x32xbf16>
    %23 = vector.shape_cast %22 : vector<16x16x32xbf16> to vector<256x32xbf16>
    %24 = vector.extract_strided_slice %19 {offsets = [8, 0, 0], sizes = [16, 16, 32], strides = [1, 1, 1]} : vector<24x16x32xbf16> to vector<16x16x32xbf16>
    %25 = vector.shape_cast %24 : vector<16x16x32xbf16> to vector<256x32xbf16>
    %c0_24 = arith.constant 0 : index
    %c4_25 = arith.constant 4 : index
    %c0_26 = arith.constant 0 : index
    %26 = vector.load %arg12[%c0_24, %c4_25, %c0_26] : memref<24x24x32xbf16, #tpu.memory_space<vmem>>, vector<24x16x32xbf16>
    %27 = vector.extract_strided_slice %26 {offsets = [6, 0, 0], sizes = [16, 16, 32], strides = [1, 1, 1]} : vector<24x16x32xbf16> to vector<16x16x32xbf16>
    %28 = vector.shape_cast %27 : vector<16x16x32xbf16> to vector<256x32xbf16>
    %29 = tpu.concatenate %21, %23, %25, %28 in 1 : vector<256x32xbf16>, vector<256x32xbf16>, vector<256x32xbf16>, vector<256x32xbf16> -> vector<256x128xbf16>
    %c0_27 = arith.constant 0 : index
    %c0_28 = arith.constant 0 : index
    %30 = vector.load %arg13[%c0_27, %c0_28] : memref<256x304xbf16, #tpu.memory_space<vmem>>, vector<256x128xbf16>
    tpu.vector_store %arg13[%c0_27, %c0_28], %29 {strides = array<i32>} : memref<256x304xbf16, #tpu.memory_space<vmem>>, vector<256x128xbf16>,
    %31 = vector.extract_strided_slice %26 {offsets = [7, 0, 0], sizes = [16, 16, 32], strides = [1, 1, 1]} : vector<24x16x32xbf16> to vector<16x16x32xbf16>
    %32 = vector.shape_cast %31 : vector<16x16x32xbf16> to vector<256x32xbf16>
    %33 = vector.extract_strided_slice %26 {offsets = [8, 0, 0], sizes = [16, 16, 32], strides = [1, 1, 1]} : vector<24x16x32xbf16> to vector<16x16x32xbf16>
    %34 = vector.shape_cast %33 : vector<16x16x32xbf16> to vector<256x32xbf16>
    %c0_29 = arith.constant 0 : index
    %c5 = arith.constant 5 : index
    %c0_30 = arith.constant 0 : index
    %35 = vector.load %arg12[%c0_29, %c5, %c0_30] : memref<24x24x32xbf16, #tpu.memory_space<vmem>>, vector<24x16x32xbf16>
    %36 = vector.extract_strided_slice %35 {offsets = [6, 0, 0], sizes = [16, 16, 32], strides = [1, 1, 1]} : vector<24x16x32xbf16> to vector<16x16x32xbf16>
    %37 = vector.shape_cast %36 : vector<16x16x32xbf16> to vector<256x32xbf16>
    %38 = vector.extract_strided_slice %35 {offsets = [7, 0, 0], sizes = [16, 16, 32], strides = [1, 1, 1]} : vector<24x16x32xbf16> to vector<16x16x32xbf16>
    %39 = vector.shape_cast %38 : vector<16x16x32xbf16> to vector<256x32xbf16>
    %40 = tpu.concatenate %32, %34, %37, %39 in 1 : vector<256x32xbf16>, vector<256x32xbf16>, vector<256x32xbf16>, vector<256x32xbf16> -> vector<256x128xbf16>
    %c0_31 = arith.constant 0 : index
    %c128 = arith.constant 128 : index
    %41 = vector.load %arg13[%c0_31, %c128] : memref<256x304xbf16, #tpu.memory_space<vmem>>, vector<256x128xbf16>
    tpu.vector_store %arg13[%c0_31, %c128], %40 {strides = array<i32>} : memref<256x304xbf16, #tpu.memory_space<vmem>>, vector<256x128xbf16>,
    %42 = vector.extract_strided_slice %35 {offsets = [8, 0, 0], sizes = [16, 16, 32], strides = [1, 1, 1]} : vector<24x16x32xbf16> to vector<16x16x32xbf16>
    %43 = vector.shape_cast %42 : vector<16x16x32xbf16> to vector<256x32xbf16>
    %c0_32 = arith.constant 0 : index
    %c256 = arith.constant 256 : index
    %44 = vector.load %arg13[%c0_32, %c256] : memref<256x304xbf16, #tpu.memory_space<vmem>>, vector<256x32xbf16>
    tpu.vector_store %arg13[%c0_32, %c256], %43 {strides = array<i32>} : memref<256x304xbf16, #tpu.memory_space<vmem>>, vector<256x32xbf16>,
    %c0_33 = arith.constant 0 : index
    %c0_34 = arith.constant 0 : index
    %45 = vector.load %arg13[%c0_33, %c0_34] : memref<256x304xbf16, #tpu.memory_space<vmem>>, vector<256x304xbf16>
    %c0_35 = arith.constant 0 : index
    %c0_36 = arith.constant 0 : index
    %c0_37 = arith.constant 0 : index
    %46 = vector.load %arg5[%c0_35, %c0_36, %c0_37] : memref<3x304x64xbf16, #tpu.memory_space<vmem>>, vector<1x304x64xbf16>
    %47 = vector.shape_cast %46 : vector<1x304x64xbf16> to vector<304x64xbf16>
    %cst_38 = arith.constant dense<0.000000e+00> : vector<256x64xf32>
    %48 = tpu.matmul %45, %47, %cst_38 {dimension_numbers = #tpu.dot_dimension_numbers<[1], [0], [0], [1], [0, 0, 1, 1], [], []>} : vector<256x304xbf16>, vector<304x64xbf16>, vector<256x64xf32> -> vector<256x64xf32>
    %c0_39 = arith.constant 0 : index
    %c0_40 = arith.constant 0 : index
    %c0_41 = arith.constant 0 : index
    %49 = vector.load %arg6[%c0_39, %c0_40, %c0_41] : memref<3x1x64xf32, #tpu.memory_space<vmem>>, vector<1x1x64xf32>
    %50 = vector.shape_cast %49 : vector<1x1x64xf32> to vector<1x64xf32>
    %51 = vector.broadcast %50 : vector<1x64xf32> to vector<256x64xf32>
    %52 = arith.addf %48, %51 : vector<256x64xf32>
    %53 = vector.extract_strided_slice %52 {offsets = [0, 0], sizes = [256, 32], strides = [1, 1]} : vector<256x64xf32> to vector<256x32xf32>
    %54 = math.tanh %53 : vector<256x32xf32>
    %55 = vector.extract_strided_slice %52 {offsets = [0, 32], sizes = [256, 32], strides = [1, 1]} : vector<256x64xf32> to vector<256x32xf32>
    %56 = arith.negf %55 : vector<256x32xf32>
    %57 = math.exp %56 : vector<256x32xf32>
    %cst_42 = arith.constant 1.000000e+00 : f32
    %58 = vector.broadcast %cst_42 : f32 to vector<256x32xf32>
    %59 = arith.addf %58, %57 : vector<256x32xf32>
    %60 = arith.divf %58, %59 : vector<256x32xf32>
    %61 = arith.mulf %54, %60 : vector<256x32xf32>
    %62 = arith.truncf %61 : vector<256x32xf32> to vector<256x32xbf16>
    %c0_43 = arith.constant 0 : index
    %c0_44 = arith.constant 0 : index
    %c0_45 = arith.constant 0 : index
    %63 = vector.load %arg7[%c0_43, %c0_44, %c0_45] : memref<3x32x64xbf16, #tpu.memory_space<vmem>>, vector<1x32x64xbf16>
    %64 = vector.shape_cast %63 : vector<1x32x64xbf16> to vector<32x64xbf16>
    %cst_46 = arith.constant dense<0.000000e+00> : vector<256x64xf32>
    %65 = tpu.matmul %62, %64, %cst_46 {dimension_numbers = #tpu.dot_dimension_numbers<[1], [0], [0], [1], [0, 0, 1, 1], [], []>} : vector<256x32xbf16>, vector<32x64xbf16>, vector<256x64xf32> -> vector<256x64xf32>
    %c0_47 = arith.constant 0 : index
    %c0_48 = arith.constant 0 : index
    %c0_49 = arith.constant 0 : index
    %66 = vector.load %arg8[%c0_47, %c0_48, %c0_49] : memref<3x1x64xf32, #tpu.memory_space<vmem>>, vector<1x1x64xf32>
    %67 = vector.shape_cast %66 : vector<1x1x64xf32> to vector<1x64xf32>
    %68 = vector.broadcast %67 : vector<1x64xf32> to vector<256x64xf32>
    %69 = arith.addf %65, %68 : vector<256x64xf32>
    %70 = vector.extract_strided_slice %69 {offsets = [0, 0], sizes = [256, 32], strides = [1, 1]} : vector<256x64xf32> to vector<256x32xf32>
    %71 = arith.addf %11, %70 : vector<256x32xf32>
    %cst_50 = arith.constant 0.707106769 : f32
    %72 = vector.broadcast %cst_50 : f32 to vector<256x32xf32>
    %73 = arith.mulf %71, %72 : vector<256x32xf32>
    %74 = vector.extract_strided_slice %69 {offsets = [0, 32], sizes = [256, 32], strides = [1, 1]} : vector<256x64xf32> to vector<256x32xf32>
    %75 = arith.addf %15, %74 : vector<256x32xf32>
    %76 = arith.truncf %73 : vector<256x32xf32> to vector<256x32xbf16>
    %77 = vector.shape_cast %76 : vector<256x32xbf16> to vector<16x16x32xbf16>
    %c8_51 = arith.constant 8 : index
    %c4_52 = arith.constant 4 : index
    %c0_53 = arith.constant 0 : index
    %78 = vector.load %arg12[%c8_51, %c4_52, %c0_53] : memref<24x24x32xbf16, #tpu.memory_space<vmem>>, vector<16x16x32xbf16>
    tpu.vector_store %arg12[%c8_51, %c4_52, %c0_53], %77 {strides = array<i32>} : memref<24x24x32xbf16, #tpu.memory_space<vmem>>, vector<16x16x32xbf16>,
    %c0_54 = arith.constant 0 : index
    %c2 = arith.constant 2 : index
    %c0_55 = arith.constant 0 : index
    %79 = vector.load %arg12[%c0_54, %c2, %c0_55] : memref<24x24x32xbf16, #tpu.memory_space<vmem>>, vector<24x16x32xbf16>
    %80 = vector.extract_strided_slice %79 {offsets = [4, 0, 0], sizes = [16, 16, 32], strides = [1, 1, 1]} : vector<24x16x32xbf16> to vector<16x16x32xbf16>
    %81 = vector.shape_cast %80 : vector<16x16x32xbf16> to vector<256x32xbf16>
    %82 = vector.extract_strided_slice %79 {offsets = [6, 0, 0], sizes = [16, 16, 32], strides = [1, 1, 1]} : vector<24x16x32xbf16> to vector<16x16x32xbf16>
    %83 = vector.shape_cast %82 : vector<16x16x32xbf16> to vector<256x32xbf16>
    %84 = vector.extract_strided_slice %79 {offsets = [8, 0, 0], sizes = [16, 16, 32], strides = [1, 1, 1]} : vector<24x16x32xbf16> to vector<16x16x32xbf16>
    %85 = vector.shape_cast %84 : vector<16x16x32xbf16> to vector<256x32xbf16>
    %c0_56 = arith.constant 0 : index
    %c4_57 = arith.constant 4 : index
    %c0_58 = arith.constant 0 : index
    %86 = vector.load %arg12[%c0_56, %c4_57, %c0_58] : memref<24x24x32xbf16, #tpu.memory_space<vmem>>, vector<24x16x32xbf16>
    %87 = vector.extract_strided_slice %86 {offsets = [4, 0, 0], sizes = [16, 16, 32], strides = [1, 1, 1]} : vector<24x16x32xbf16> to vector<16x16x32xbf16>
    %88 = vector.shape_cast %87 : vector<16x16x32xbf16> to vector<256x32xbf16>
    %89 = tpu.concatenate %81, %83, %85, %88 in 1 : vector<256x32xbf16>, vector<256x32xbf16>, vector<256x32xbf16>, vector<256x32xbf16> -> vector<256x128xbf16>
    %c0_59 = arith.constant 0 : index
    %c0_60 = arith.constant 0 : index
    %90 = vector.load %arg13[%c0_59, %c0_60] : memref<256x304xbf16, #tpu.memory_space<vmem>>, vector<256x128xbf16>
    tpu.vector_store %arg13[%c0_59, %c0_60], %89 {strides = array<i32>} : memref<256x304xbf16, #tpu.memory_space<vmem>>, vector<256x128xbf16>,
    %91 = vector.extract_strided_slice %86 {offsets = [6, 0, 0], sizes = [16, 16, 32], strides = [1, 1, 1]} : vector<24x16x32xbf16> to vector<16x16x32xbf16>
    %92 = vector.shape_cast %91 : vector<16x16x32xbf16> to vector<256x32xbf16>
    %93 = vector.extract_strided_slice %86 {offsets = [8, 0, 0], sizes = [16, 16, 32], strides = [1, 1, 1]} : vector<24x16x32xbf16> to vector<16x16x32xbf16>
    %94 = vector.shape_cast %93 : vector<16x16x32xbf16> to vector<256x32xbf16>
    %c0_61 = arith.constant 0 : index
    %c6 = arith.constant 6 : index
    %c0_62 = arith.constant 0 : index
    %95 = vector.load %arg12[%c0_61, %c6, %c0_62] : memref<24x24x32xbf16, #tpu.memory_space<vmem>>, vector<24x16x32xbf16>
    %96 = vector.extract_strided_slice %95 {offsets = [4, 0, 0], sizes = [16, 16, 32], strides = [1, 1, 1]} : vector<24x16x32xbf16> to vector<16x16x32xbf16>
    %97 = vector.shape_cast %96 : vector<16x16x32xbf16> to vector<256x32xbf16>
    %98 = vector.extract_strided_slice %95 {offsets = [6, 0, 0], sizes = [16, 16, 32], strides = [1, 1, 1]} : vector<24x16x32xbf16> to vector<16x16x32xbf16>
    %99 = vector.shape_cast %98 : vector<16x16x32xbf16> to vector<256x32xbf16>
    %100 = tpu.concatenate %92, %94, %97, %99 in 1 : vector<256x32xbf16>, vector<256x32xbf16>, vector<256x32xbf16>, vector<256x32xbf16> -> vector<256x128xbf16>
    %c0_63 = arith.constant 0 : index
    %c128_64 = arith.constant 128 : index
    %101 = vector.load %arg13[%c0_63, %c128_64] : memref<256x304xbf16, #tpu.memory_space<vmem>>, vector<256x128xbf16>
    tpu.vector_store %arg13[%c0_63, %c128_64], %100 {strides = array<i32>} : memref<256x304xbf16, #tpu.memory_space<vmem>>, vector<256x128xbf16>,
    %102 = vector.extract_strided_slice %95 {offsets = [8, 0, 0], sizes = [16, 16, 32], strides = [1, 1, 1]} : vector<24x16x32xbf16> to vector<16x16x32xbf16>
    %103 = vector.shape_cast %102 : vector<16x16x32xbf16> to vector<256x32xbf16>
    %c0_65 = arith.constant 0 : index
    %c256_66 = arith.constant 256 : index
    %104 = vector.load %arg13[%c0_65, %c256_66] : memref<256x304xbf16, #tpu.memory_space<vmem>>, vector<256x32xbf16>
    tpu.vector_store %arg13[%c0_65, %c256_66], %103 {strides = array<i32>} : memref<256x304xbf16, #tpu.memory_space<vmem>>, vector<256x32xbf16>,
    %c0_67 = arith.constant 0 : index
    %c0_68 = arith.constant 0 : index
    %105 = vector.load %arg13[%c0_67, %c0_68] : memref<256x304xbf16, #tpu.memory_space<vmem>>, vector<256x304xbf16>
    %c1 = arith.constant 1 : index
    %c0_69 = arith.constant 0 : index
    %c0_70 = arith.constant 0 : index
    %106 = vector.load %arg5[%c1, %c0_69, %c0_70] : memref<3x304x64xbf16, #tpu.memory_space<vmem>>, vector<1x304x64xbf16>
    %107 = vector.shape_cast %106 : vector<1x304x64xbf16> to vector<304x64xbf16>
    %cst_71 = arith.constant dense<0.000000e+00> : vector<256x64xf32>
    %108 = tpu.matmul %105, %107, %cst_71 {dimension_numbers = #tpu.dot_dimension_numbers<[1], [0], [0], [1], [0, 0, 1, 1], [], []>} : vector<256x304xbf16>, vector<304x64xbf16>, vector<256x64xf32> -> vector<256x64xf32>
    %c1_72 = arith.constant 1 : index
    %c0_73 = arith.constant 0 : index
    %c0_74 = arith.constant 0 : index
    %109 = vector.load %arg6[%c1_72, %c0_73, %c0_74] : memref<3x1x64xf32, #tpu.memory_space<vmem>>, vector<1x1x64xf32>
    %110 = vector.shape_cast %109 : vector<1x1x64xf32> to vector<1x64xf32>
    %111 = vector.broadcast %110 : vector<1x64xf32> to vector<256x64xf32>
    %112 = arith.addf %108, %111 : vector<256x64xf32>
    %113 = vector.extract_strided_slice %112 {offsets = [0, 0], sizes = [256, 32], strides = [1, 1]} : vector<256x64xf32> to vector<256x32xf32>
    %114 = math.tanh %113 : vector<256x32xf32>
    %115 = vector.extract_strided_slice %112 {offsets = [0, 32], sizes = [256, 32], strides = [1, 1]} : vector<256x64xf32> to vector<256x32xf32>
    %116 = arith.negf %115 : vector<256x32xf32>
    %117 = math.exp %116 : vector<256x32xf32>
    %cst_75 = arith.constant 1.000000e+00 : f32
    %118 = vector.broadcast %cst_75 : f32 to vector<256x32xf32>
    %119 = arith.addf %118, %117 : vector<256x32xf32>
    %120 = arith.divf %118, %119 : vector<256x32xf32>
    %121 = arith.mulf %114, %120 : vector<256x32xf32>
    %122 = arith.truncf %121 : vector<256x32xf32> to vector<256x32xbf16>
    %c1_76 = arith.constant 1 : index
    %c0_77 = arith.constant 0 : index
    %c0_78 = arith.constant 0 : index
    %123 = vector.load %arg7[%c1_76, %c0_77, %c0_78] : memref<3x32x64xbf16, #tpu.memory_space<vmem>>, vector<1x32x64xbf16>
    %124 = vector.shape_cast %123 : vector<1x32x64xbf16> to vector<32x64xbf16>
    %cst_79 = arith.constant dense<0.000000e+00> : vector<256x64xf32>
    %125 = tpu.matmul %122, %124, %cst_79 {dimension_numbers = #tpu.dot_dimension_numbers<[1], [0], [0], [1], [0, 0, 1, 1], [], []>} : vector<256x32xbf16>, vector<32x64xbf16>, vector<256x64xf32> -> vector<256x64xf32>
    %c1_80 = arith.constant 1 : index
    %c0_81 = arith.constant 0 : index
    %c0_82 = arith.constant 0 : index
    %126 = vector.load %arg8[%c1_80, %c0_81, %c0_82] : memref<3x1x64xf32, #tpu.memory_space<vmem>>, vector<1x1x64xf32>
    %127 = vector.shape_cast %126 : vector<1x1x64xf32> to vector<1x64xf32>
    %128 = vector.broadcast %127 : vector<1x64xf32> to vector<256x64xf32>
    %129 = arith.addf %125, %128 : vector<256x64xf32>
    %130 = vector.extract_strided_slice %129 {offsets = [0, 0], sizes = [256, 32], strides = [1, 1]} : vector<256x64xf32> to vector<256x32xf32>
    %131 = arith.addf %73, %130 : vector<256x32xf32>
    %cst_83 = arith.constant 0.707106769 : f32
    %132 = vector.broadcast %cst_83 : f32 to vector<256x32xf32>
    %133 = arith.mulf %131, %132 : vector<256x32xf32>
    %134 = vector.extract_strided_slice %129 {offsets = [0, 32], sizes = [256, 32], strides = [1, 1]} : vector<256x64xf32> to vector<256x32xf32>
    %135 = arith.addf %75, %134 : vector<256x32xf32>
    %136 = arith.truncf %133 : vector<256x32xf32> to vector<256x32xbf16>
    %137 = vector.shape_cast %136 : vector<256x32xbf16> to vector<16x16x32xbf16>
    %c8_84 = arith.constant 8 : index
    %c4_85 = arith.constant 4 : index
    %c0_86 = arith.constant 0 : index
    %138 = vector.load %arg12[%c8_84, %c4_85, %c0_86] : memref<24x24x32xbf16, #tpu.memory_space<vmem>>, vector<16x16x32xbf16>
    tpu.vector_store %arg12[%c8_84, %c4_85, %c0_86], %137 {strides = array<i32>} : memref<24x24x32xbf16, #tpu.memory_space<vmem>>, vector<16x16x32xbf16>,
    %c0_87 = arith.constant 0 : index
    %c0_88 = arith.constant 0 : index
    %c0_89 = arith.constant 0 : index
    %139 = vector.load %arg12[%c0_87, %c0_88, %c0_89] : memref<24x24x32xbf16, #tpu.memory_space<vmem>>, vector<24x16x32xbf16>
    %140 = vector.extract_strided_slice %139 {offsets = [0, 0, 0], sizes = [16, 16, 32], strides = [1, 1, 1]} : vector<24x16x32xbf16> to vector<16x16x32xbf16>
    %141 = vector.shape_cast %140 : vector<16x16x32xbf16> to vector<256x32xbf16>
    %142 = vector.extract_strided_slice %139 {offsets = [4, 0, 0], sizes = [16, 16, 32], strides = [1, 1, 1]} : vector<24x16x32xbf16> to vector<16x16x32xbf16>
    %143 = vector.shape_cast %142 : vector<16x16x32xbf16> to vector<256x32xbf16>
    %144 = vector.extract_strided_slice %139 {offsets = [8, 0, 0], sizes = [16, 16, 32], strides = [1, 1, 1]} : vector<24x16x32xbf16> to vector<16x16x32xbf16>
    %145 = vector.shape_cast %144 : vector<16x16x32xbf16> to vector<256x32xbf16>
    %c0_90 = arith.constant 0 : index
    %c4_91 = arith.constant 4 : index
    %c0_92 = arith.constant 0 : index
    %146 = vector.load %arg12[%c0_90, %c4_91, %c0_92] : memref<24x24x32xbf16, #tpu.memory_space<vmem>>, vector<24x16x32xbf16>
    %147 = vector.extract_strided_slice %146 {offsets = [0, 0, 0], sizes = [16, 16, 32], strides = [1, 1, 1]} : vector<24x16x32xbf16> to vector<16x16x32xbf16>
    %148 = vector.shape_cast %147 : vector<16x16x32xbf16> to vector<256x32xbf16>
    %149 = tpu.concatenate %141, %143, %145, %148 in 1 : vector<256x32xbf16>, vector<256x32xbf16>, vector<256x32xbf16>, vector<256x32xbf16> -> vector<256x128xbf16>
    %c0_93 = arith.constant 0 : index
    %c0_94 = arith.constant 0 : index
    %150 = vector.load %arg13[%c0_93, %c0_94] : memref<256x304xbf16, #tpu.memory_space<vmem>>, vector<256x128xbf16>
    tpu.vector_store %arg13[%c0_93, %c0_94], %149 {strides = array<i32>} : memref<256x304xbf16, #tpu.memory_space<vmem>>, vector<256x128xbf16>,
    %151 = vector.extract_strided_slice %146 {offsets = [4, 0, 0], sizes = [16, 16, 32], strides = [1, 1, 1]} : vector<24x16x32xbf16> to vector<16x16x32xbf16>
    %152 = vector.shape_cast %151 : vector<16x16x32xbf16> to vector<256x32xbf16>
    %153 = vector.extract_strided_slice %146 {offsets = [8, 0, 0], sizes = [16, 16, 32], strides = [1, 1, 1]} : vector<24x16x32xbf16> to vector<16x16x32xbf16>
    %154 = vector.shape_cast %153 : vector<16x16x32xbf16> to vector<256x32xbf16>
    %c0_95 = arith.constant 0 : index
    %c8_96 = arith.constant 8 : index
    %c0_97 = arith.constant 0 : index
    %155 = vector.load %arg12[%c0_95, %c8_96, %c0_97] : memref<24x24x32xbf16, #tpu.memory_space<vmem>>, vector<24x16x32xbf16>
    %156 = vector.extract_strided_slice %155 {offsets = [0, 0, 0], sizes = [16, 16, 32], strides = [1, 1, 1]} : vector<24x16x32xbf16> to vector<16x16x32xbf16>
    %157 = vector.shape_cast %156 : vector<16x16x32xbf16> to vector<256x32xbf16>
    %158 = vector.extract_strided_slice %155 {offsets = [4, 0, 0], sizes = [16, 16, 32], strides = [1, 1, 1]} : vector<24x16x32xbf16> to vector<16x16x32xbf16>
    %159 = vector.shape_cast %158 : vector<16x16x32xbf16> to vector<256x32xbf16>
    %160 = tpu.concatenate %152, %154, %157, %159 in 1 : vector<256x32xbf16>, vector<256x32xbf16>, vector<256x32xbf16>, vector<256x32xbf16> -> vector<256x128xbf16>
    %c0_98 = arith.constant 0 : index
    %c128_99 = arith.constant 128 : index
    %161 = vector.load %arg13[%c0_98, %c128_99] : memref<256x304xbf16, #tpu.memory_space<vmem>>, vector<256x128xbf16>
    tpu.vector_store %arg13[%c0_98, %c128_99], %160 {strides = array<i32>} : memref<256x304xbf16, #tpu.memory_space<vmem>>, vector<256x128xbf16>,
    %162 = vector.extract_strided_slice %155 {offsets = [8, 0, 0], sizes = [16, 16, 32], strides = [1, 1, 1]} : vector<24x16x32xbf16> to vector<16x16x32xbf16>
    %163 = vector.shape_cast %162 : vector<16x16x32xbf16> to vector<256x32xbf16>
    %c0_100 = arith.constant 0 : index
    %c256_101 = arith.constant 256 : index
    %164 = vector.load %arg13[%c0_100, %c256_101] : memref<256x304xbf16, #tpu.memory_space<vmem>>, vector<256x32xbf16>
    tpu.vector_store %arg13[%c0_100, %c256_101], %163 {strides = array<i32>} : memref<256x304xbf16, #tpu.memory_space<vmem>>, vector<256x32xbf16>,
    %c0_102 = arith.constant 0 : index
    %c0_103 = arith.constant 0 : index
    %165 = vector.load %arg13[%c0_102, %c0_103] : memref<256x304xbf16, #tpu.memory_space<vmem>>, vector<256x304xbf16>
    %c2_104 = arith.constant 2 : index
    %c0_105 = arith.constant 0 : index
    %c0_106 = arith.constant 0 : index
    %166 = vector.load %arg5[%c2_104, %c0_105, %c0_106] : memref<3x304x64xbf16, #tpu.memory_space<vmem>>, vector<1x304x64xbf16>
    %167 = vector.shape_cast %166 : vector<1x304x64xbf16> to vector<304x64xbf16>
    %cst_107 = arith.constant dense<0.000000e+00> : vector<256x64xf32>
    %168 = tpu.matmul %165, %167, %cst_107 {dimension_numbers = #tpu.dot_dimension_numbers<[1], [0], [0], [1], [0, 0, 1, 1], [], []>} : vector<256x304xbf16>, vector<304x64xbf16>, vector<256x64xf32> -> vector<256x64xf32>
    %c2_108 = arith.constant 2 : index
    %c0_109 = arith.constant 0 : index
    %c0_110 = arith.constant 0 : index
    %169 = vector.load %arg6[%c2_108, %c0_109, %c0_110] : memref<3x1x64xf32, #tpu.memory_space<vmem>>, vector<1x1x64xf32>
    %170 = vector.shape_cast %169 : vector<1x1x64xf32> to vector<1x64xf32>
    %171 = vector.broadcast %170 : vector<1x64xf32> to vector<256x64xf32>
    %172 = arith.addf %168, %171 : vector<256x64xf32>
    %173 = vector.extract_strided_slice %172 {offsets = [0, 0], sizes = [256, 32], strides = [1, 1]} : vector<256x64xf32> to vector<256x32xf32>
    %174 = math.tanh %173 : vector<256x32xf32>
    %175 = vector.extract_strided_slice %172 {offsets = [0, 32], sizes = [256, 32], strides = [1, 1]} : vector<256x64xf32> to vector<256x32xf32>
    %176 = arith.negf %175 : vector<256x32xf32>
    %177 = math.exp %176 : vector<256x32xf32>
    %cst_111 = arith.constant 1.000000e+00 : f32
    %178 = vector.broadcast %cst_111 : f32 to vector<256x32xf32>
    %179 = arith.addf %178, %177 : vector<256x32xf32>
    %180 = arith.divf %178, %179 : vector<256x32xf32>
    %181 = arith.mulf %174, %180 : vector<256x32xf32>
    %182 = arith.truncf %181 : vector<256x32xf32> to vector<256x32xbf16>
    %c2_112 = arith.constant 2 : index
    %c0_113 = arith.constant 0 : index
    %c0_114 = arith.constant 0 : index
    %183 = vector.load %arg7[%c2_112, %c0_113, %c0_114] : memref<3x32x64xbf16, #tpu.memory_space<vmem>>, vector<1x32x64xbf16>
    %184 = vector.shape_cast %183 : vector<1x32x64xbf16> to vector<32x64xbf16>
    %cst_115 = arith.constant dense<0.000000e+00> : vector<256x64xf32>
    %185 = tpu.matmul %182, %184, %cst_115 {dimension_numbers = #tpu.dot_dimension_numbers<[1], [0], [0], [1], [0, 0, 1, 1], [], []>} : vector<256x32xbf16>, vector<32x64xbf16>, vector<256x64xf32> -> vector<256x64xf32>
    %c2_116 = arith.constant 2 : index
    %c0_117 = arith.constant 0 : index
    %c0_118 = arith.constant 0 : index
    %186 = vector.load %arg8[%c2_116, %c0_117, %c0_118] : memref<3x1x64xf32, #tpu.memory_space<vmem>>, vector<1x1x64xf32>
    %187 = vector.shape_cast %186 : vector<1x1x64xf32> to vector<1x64xf32>
    %188 = vector.broadcast %187 : vector<1x64xf32> to vector<256x64xf32>
    %189 = arith.addf %185, %188 : vector<256x64xf32>
    %190 = vector.extract_strided_slice %189 {offsets = [0, 32], sizes = [256, 32], strides = [1, 1]} : vector<256x64xf32> to vector<256x32xf32>
    %191 = arith.addf %135, %190 : vector<256x32xf32>
    %c0_119 = arith.constant 0 : index
    %c0_120 = arith.constant 0 : index
    %192 = vector.load %arg9[%c0_119, %c0_120] : memref<4x32xbf16, #tpu.memory_space<vmem>>, vector<4x32xbf16>
    %cst_121 = arith.constant 0.000000e+00 : f32
    %193 = vector.broadcast %cst_121 : f32 to vector<256x32xf32>
    %194 = arith.maximumf %191, %193 : vector<256x32xf32>
    %195 = arith.truncf %194 : vector<256x32xf32> to vector<256x32xbf16>
    "tpu.trace_start"() <{level = 10 : i32, message = "oc,mc->om"}> : () -> ()
    %cst_122 = arith.constant dense<0.000000e+00> : vector<4x256xf32>
    %196 = tpu.matmul %192, %195, %cst_122 {dimension_numbers = #tpu.dot_dimension_numbers<[1], [1], [0], [0], [0, 0, 1, 0], [], []>} : vector<4x32xbf16>, vector<256x32xbf16>, vector<4x256xf32> -> vector<4x256xf32>
    "tpu.trace_stop"() : () -> ()
    %c0_123 = arith.constant 0 : index
    %c0_124 = arith.constant 0 : index
    %197 = vector.load %arg10[%c0_123, %c0_124] : memref<4x1xf32, #tpu.memory_space<vmem>>, vector<4x1xf32>
    %198 = vector.broadcast %197 : vector<4x1xf32> to vector<4x256xf32>
    %199 = arith.addf %196, %198 : vector<4x256xf32>
    %cst_125 = arith.constant 0.000000e+00 : f32
    %200 = vector.broadcast %cst_125 : f32 to vector<4x256xf32>
    %201 = arith.maximumf %199, %200 : vector<4x256xf32>
    %c0_126 = arith.constant 0 : index
    %c0_127 = arith.constant 0 : index
    %c0_128 = arith.constant 0 : index
    %202 = vector.load %arg11[%c0_126, %c0_127, %c0_128] : memref<1x4x256xf32, #tpu.memory_space<vmem>>, vector<1x4x256xf32>
    %203 = vector.shape_cast %202 : vector<1x4x256xf32> to vector<4x256xf32>
    %204 = vector.shape_cast %201 : vector<4x256xf32> to vector<1x4x256xf32>
    tpu.vector_store %arg11[%c0_126, %c0_127, %c0_128], %204 {strides = array<i32>} : memref<1x4x256xf32, #tpu.memory_space<vmem>>, vector<1x4x256xf32>,
    return
  }
  func.func @transform_0(%arg0: i32) -> (i32, i32, i32) {
    %c0_i32 = arith.constant 0 : i32
    %c0_i32_0 = arith.constant 0 : i32
    %c0_i32_1 = arith.constant 0 : i32
    return %arg0, %c0_i32, %c0_i32_0 : i32, i32, i32
  }
  func.func @transform_1(%arg0: i32) -> (i32, i32, i32) {
    %c0_i32 = arith.constant 0 : i32
    %c0_i32_0 = arith.constant 0 : i32
    %c0_i32_1 = arith.constant 0 : i32
    return %arg0, %c0_i32, %c0_i32_0 : i32, i32, i32
  }
  func.func @transform_2(%arg0: i32) -> (i32, i32) {
    %c0_i32 = arith.constant 0 : i32
    %c0_i32_0 = arith.constant 0 : i32
    %c0_i32_1 = arith.constant 0 : i32
    return %c0_i32, %c0_i32_0 : i32, i32
  }
  func.func @transform_3(%arg0: i32) -> (i32, i32) {
    %c0_i32 = arith.constant 0 : i32
    %c0_i32_0 = arith.constant 0 : i32
    %c0_i32_1 = arith.constant 0 : i32
    return %c0_i32, %c0_i32_0 : i32, i32
  }
  func.func @transform_4(%arg0: i32) -> (i32, i32, i32) {
    %c0_i32 = arith.constant 0 : i32
    %c0_i32_0 = arith.constant 0 : i32
    %c0_i32_1 = arith.constant 0 : i32
    %c0_i32_2 = arith.constant 0 : i32
    return %c0_i32, %c0_i32_0, %c0_i32_1 : i32, i32, i32
  }
  func.func @transform_5(%arg0: i32) -> (i32, i32, i32) {
    %c0_i32 = arith.constant 0 : i32
    %c0_i32_0 = arith.constant 0 : i32
    %c0_i32_1 = arith.constant 0 : i32
    %c0_i32_2 = arith.constant 0 : i32
    return %c0_i32, %c0_i32_0, %c0_i32_1 : i32, i32, i32
  }
  func.func @transform_6(%arg0: i32) -> (i32, i32, i32) {
    %c0_i32 = arith.constant 0 : i32
    %c0_i32_0 = arith.constant 0 : i32
    %c0_i32_1 = arith.constant 0 : i32
    %c0_i32_2 = arith.constant 0 : i32
    return %c0_i32, %c0_i32_0, %c0_i32_1 : i32, i32, i32
  }
  func.func @transform_7(%arg0: i32) -> (i32, i32, i32) {
    %c0_i32 = arith.constant 0 : i32
    %c0_i32_0 = arith.constant 0 : i32
    %c0_i32_1 = arith.constant 0 : i32
    %c0_i32_2 = arith.constant 0 : i32
    return %c0_i32, %c0_i32_0, %c0_i32_1 : i32, i32, i32
  }
  func.func @transform_8(%arg0: i32) -> (i32, i32) {
    %c0_i32 = arith.constant 0 : i32
    %c0_i32_0 = arith.constant 0 : i32
    %c0_i32_1 = arith.constant 0 : i32
    return %c0_i32, %c0_i32_0 : i32, i32
  }
  func.func @transform_9(%arg0: i32) -> (i32, i32) {
    %c0_i32 = arith.constant 0 : i32
    %c0_i32_0 = arith.constant 0 : i32
    %c0_i32_1 = arith.constant 0 : i32
    return %c0_i32, %c0_i32_0 : i32, i32
  }
  func.func @transform_10(%arg0: i32) -> (i32, i32, i32) {
    %c0_i32 = arith.constant 0 : i32
    %c0_i32_0 = arith.constant 0 : i32
    %c0_i32_1 = arith.constant 0 : i32
    return %arg0, %c0_i32, %c0_i32_0 : i32, i32, i32
  }
}

</mosaic_0001>

<llo_original>
// kernel: wavenet2d_forward.1
$region0: #{wavenet2d_forward.1}
  #allocation0 [shape = 'u32[]', space=smem, size = 0x4, offset = 0x4, fixed_abs, tag = 'smem constant byte address 0x4 - core index']
  #allocation1 [shape = 'u32[144,128]{1,0:T(1,128)}', space=vmem, size = 0x12000, scoped, tag = 'internal scratch']
  #allocation2 [shape = 'bf16[24,24,32]{2,1,0:T(8,128)(2,1)}', space=vmem, size = 0x24000, scoped, tag = 'scratch operand']
  #allocation3 [shape = 'bf16[256,304]{1,0:T(16,128)(2,1)}', space=vmem, size = 0x30000, scoped, tag = 'scratch operand']
  %s0 = inlined_call_operand.hbm [shape: bf16[2,256,4], index: 0, kind: input, shape index: {}]
  %s1 = inlined_call_operand.hbm [shape: bf16[2,256,16], index: 1, kind: input, shape index: {}]
  %s2 = inlined_call_operand.hbm [shape: bf16[4,32], index: 2, kind: input, shape index: {}]
  %s3 = inlined_call_operand.hbm [shape: f32[1,32], index: 3, kind: input, shape index: {}]
  %s4 = inlined_call_operand.hbm [shape: bf16[3,304,64], index: 4, kind: input, shape index: {}]
  %s5 = inlined_call_operand.hbm [shape: f32[3,1,64], index: 5, kind: input, shape index: {}]
  %s6 = inlined_call_operand.hbm [shape: bf16[3,32,64], index: 6, kind: input, shape index: {}]
  %s7 = inlined_call_operand.hbm [shape: f32[3,1,64], index: 7, kind: input, shape index: {}]
  %s8 = inlined_call_operand.hbm [shape: bf16[4,32], index: 8, kind: input, shape index: {}]
  %s9 = inlined_call_operand.hbm [shape: f32[4,1], index: 9, kind: input, shape index: {}]
  %s10 = inlined_call_operand.hbm [shape: f32[2,4,256], index: 10, kind: output, shape index: {}]
  %s11 = sld [smem:[#allocation0]]
  $region113: #{wavenet2d_forward.1} parent=0
    _
  %s13 = ssub.s32 1, %s11
  %s14 = scalar_select 0, %s13, %s11
  $region1: #{wavenet2d_forward.1} parent=0
    #allocation4 [shape = 'u8[131072]{0}', space=vmem, size = 0x20000, scoped, tag = 'input window, operand 0']
    #allocation5 [shape = 's32[2]{0}', space=sflag, size = 0x8, scoped, tag = 'scoped memory for wavenet2d_forward.1']
    #allocation6 [shape = 's32[2]{0}', space=sflag, size = 0x8, scoped, tag = 'scoped memory for wavenet2d_forward.1']
    #allocation7 [shape = 'u8[131072]{0}', space=vmem, size = 0x20000, scoped, tag = 'input window, operand 1']
    #allocation8 [shape = 's32[2]{0}', space=sflag, size = 0x8, scoped, tag = 'scoped memory for wavenet2d_forward.1']
    #allocation9 [shape = 'u8[1024]{0}', space=vmem, size = 0x400, scoped, tag = 'input window, operand 2, single buffered']
    #allocation10 [shape = 'u8[512]{0}', space=vmem, size = 0x400, scoped, tag = 'input window, operand 3, single buffered']
    #allocation11 [shape = 's32[1]{0}', space=sflag, size = 0x4, scoped, tag = 'scoped memory for wavenet2d_forward.1']
    #allocation12 [shape = 'u8[233472]{0}', space=vmem, size = 0x39000, scoped, tag = 'input window, operand 4, single buffered']
    #allocation13 [shape = 'u8[1536]{0}', space=vmem, size = 0x800, scoped, tag = 'input window, operand 5, single buffered']
    #allocation14 [shape = 's32[1]{0}', space=sflag, size = 0x4, scoped, tag = 'scoped memory for wavenet2d_forward.1']
    #allocation15 [shape = 'u8[24576]{0}', space=vmem, size = 0x6000, scoped, tag = 'input window, operand 6, single buffered']
    #allocation16 [shape = 'u8[1536]{0}', space=vmem, size = 0x800, scoped, tag = 'input window, operand 7, single buffered']
    #allocation17 [shape = 's32[1]{0}', space=sflag, size = 0x4, scoped, tag = 'scoped memory for wavenet2d_forward.1']
    #allocation18 [shape = 'u8[1024]{0}', space=vmem, size = 0x400, scoped, tag = 'input window, operand 8, single buffered']
    #allocation19 [shape = 'u8[2048]{0}', space=vmem, size = 0x800, scoped, tag = 'input window, operand 9, single buffered']
    #allocation20 [shape = 's32[1]{0}', space=sflag, size = 0x4, scoped, tag = 'scoped memory for wavenet2d_forward.1']
    #allocation21 [shape = 'u8[8192]{0}', space=vmem, size = 0x2000, scoped, tag = 'output window, operand 0']
    %15 = vsyncpa [#allocation5], 0
    %s16 = scalar_lea.sflag [#allocation5], 1
    %17 = vsyncpa %s16, 0
    %18 = vsyncpa [#allocation8], 0
    %s19 = scalar_lea.sflag [#allocation8], 1
    %20 = vsyncpa %s19, 0
    %21 = vsyncpa [#allocation11], 0
    %22 = vsyncpa [#allocation14], 0
    %23 = vsyncpa [#allocation17], 0
    %24 = vsyncpa [#allocation20], 0
    %25 = vsyncpa [#allocation6], 0
    %s26 = scalar_lea.sflag [#allocation6], 1
    %27 = vsyncpa %s26, 0
    loop: start=0, step=1, limit=4
    $region2: #{wavenet2d_forward.1} parent=1 // loop_pre_header
      _
    $region3: #{wavenet2d_forward.1} parent=1 // loop_header
      %s29 = sphi 0, %s33
      %p30 = scmp.ge.s32.totalorder %s29, 4
      %s39 = sphi 0, %s41
      %s42 = sphi 0, %s39
      %s43 = sphi 0, %s42
      %s59 = sphi 0, %s43
      %s65 = sphi 0, %s67
      %s68 = sphi 0, %s65
      %s69 = sphi 0, %s68
      %s85 = sphi 0, %s69
      %s89 = sphi 0, %s89
      %s91 = sphi 0, %s89
      %s92 = sphi 0, %s91
      %s106 = sphi 0, %s92
      %s110 = sphi 0, %s110
      %s112 = sphi 0, %s110
      %s113 = sphi 0, %s112
      %s127 = sphi 0, %s113
      %s131 = sphi 0, %s131
      %s133 = sphi 0, %s131
      %s134 = sphi 0, %s133
      %s148 = sphi 0, %s134
      %s152 = sphi 0, %s152
      %s154 = sphi 0, %s152
      %s155 = sphi 0, %s154
      %s169 = sphi 0, %s155
      %s173 = sphi 0, %s173
      %s175 = sphi 0, %s173
      %s176 = sphi 0, %s175
      %s190 = sphi 0, %s176
      %s194 = sphi 0, %s194
      %s196 = sphi 0, %s194
      %s197 = sphi 0, %s196
      %s211 = sphi 0, %s197
      %s215 = sphi 0, %s215
      %s217 = sphi 0, %s215
      %s218 = sphi 0, %s217
      %s232 = sphi 0, %s218
      %s236 = sphi 0, %s236
      %s238 = sphi 0, %s236
      %s239 = sphi 0, %s238
      %s253 = sphi 0, %s239
      %s259 = sphi 0, %s261
      %s262 = sphi 0, %s259
      %s263 = sphi 0, %s262
      %s279 = sphi 0, %s263
    $region4: #{wavenet2d_forward.1} parent=1 // loop_header_branch
      %32 = sbr.rel (%p30) target = $region8
    $region5: #{wavenet2d_forward.1} parent=1 // loop_body
      %s34 = ssub.s32 %s29, 1
      %s35 = ssub.s32 %s29, 2
      %s36 = sadd.s32 %s29, 1
      %s37 = ssub.s32 %s29, %s36
      %p38 = scmp.eq.s32.totalorder %s37, 0
      %s40 = sadd.s32 %s39, 1
      %s41 = scalar_select %p38, %s39, %s40
      %p44 = pneg %p38
      %p45 = scmp.eq.s32.totalorder %s29, 1
      %p46 = por %p44, %p45
      %p47 = scmp.ne.s32.totalorder %s39, %s42
      %p48 = scmp.eq.s32.totalorder %s29, 0
      %p49 = por %p47, %p48
      %p50 = scmp.ne.s32.totalorder %s39, %s42
      %p51 = scmp.eq.s32.totalorder %s34, 1
      %p52 = por %p50, %p51
      %p53 = scmp.ne.s32.totalorder %s42, %s43
      %p54 = scmp.eq.s32.totalorder %s34, 0
      %p55 = por %p53, %p54
      %p56 = scmp.ne.s32.totalorder %s42, %s43
      %p57 = scmp.eq.s32.totalorder %s35, 1
      %p58 = por %p56, %p57
      %p60 = scmp.ne.s32.totalorder %s43, %s59
      %p61 = scmp.eq.s32.totalorder %s35, 0
      %p62 = por %p60, %p61
      %s63 = ssub.s32 %s29, %s36
      %p64 = scmp.eq.s32.totalorder %s63, 0
      %s66 = sadd.s32 %s65, 1
      %s67 = scalar_select %p64, %s65, %s66
      %p70 = pneg %p64
      %p71 = scmp.eq.s32.totalorder %s29, 1
      %p72 = por %p70, %p71
      %p73 = scmp.ne.s32.totalorder %s65, %s68
      %p74 = scmp.eq.s32.totalorder %s29, 0
      %p75 = por %p73, %p74
      %p76 = scmp.ne.s32.totalorder %s65, %s68
      %p77 = scmp.eq.s32.totalorder %s34, 1
      %p78 = por %p76, %p77
      %p79 = scmp.ne.s32.totalorder %s68, %s69
      %p80 = scmp.eq.s32.totalorder %s34, 0
      %p81 = por %p79, %p80
      %p82 = scmp.ne.s32.totalorder %s68, %s69
      %p83 = scmp.eq.s32.totalorder %s35, 1
      %p84 = por %p82, %p83
      %p86 = scmp.ne.s32.totalorder %s69, %s85
      %p87 = scmp.eq.s32.totalorder %s35, 0
      %p88 = por %p86, %p87
      %s90 = sadd.s32 %s89, 1
      %p93 = scmp.eq.s32.totalorder %s29, 1
      %p94 = scmp.ne.s32.totalorder %s89, %s91
      %p95 = scmp.eq.s32.totalorder %s29, 0
      %p96 = por %p94, %p95
      %p97 = scmp.ne.s32.totalorder %s89, %s91
      %p98 = scmp.eq.s32.totalorder %s34, 1
      %p99 = por %p97, %p98
      %p100 = scmp.ne.s32.totalorder %s91, %s92
      %p101 = scmp.eq.s32.totalorder %s34, 0
      %p102 = por %p100, %p101
      %p103 = scmp.ne.s32.totalorder %s91, %s92
      %p104 = scmp.eq.s32.totalorder %s35, 1
      %p105 = por %p103, %p104
      %p107 = scmp.ne.s32.totalorder %s92, %s106
      %p108 = scmp.eq.s32.totalorder %s35, 0
      %p109 = por %p107, %p108
      %s111 = sadd.s32 %s110, 1
      %p114 = scmp.eq.s32.totalorder %s29, 1
      %p115 = scmp.ne.s32.totalorder %s110, %s112
      %p116 = scmp.eq.s32.totalorder %s29, 0
      %p117 = por %p115, %p116
      %p118 = scmp.ne.s32.totalorder %s110, %s112
      %p119 = scmp.eq.s32.totalorder %s34, 1
      %p120 = por %p118, %p119
      %p121 = scmp.ne.s32.totalorder %s112, %s113
      %p122 = scmp.eq.s32.totalorder %s34, 0
      %p123 = por %p121, %p122
      %p124 = scmp.ne.s32.totalorder %s112, %s113
      %p125 = scmp.eq.s32.totalorder %s35, 1
      %p126 = por %p124, %p125
      %p128 = scmp.ne.s32.totalorder %s113, %s127
      %p129 = scmp.eq.s32.totalorder %s35, 0
      %p130 = por %p128, %p129
      %s132 = sadd.s32 %s131, 1
      %p135 = scmp.eq.s32.totalorder %s29, 1
      %p136 = scmp.ne.s32.totalorder %s131, %s133
      %p137 = scmp.eq.s32.totalorder %s29, 0
      %p138 = por %p136, %p137
      %p139 = scmp.ne.s32.totalorder %s131, %s133
      %p140 = scmp.eq.s32.totalorder %s34, 1
      %p141 = por %p139, %p140
      %p142 = scmp.ne.s32.totalorder %s133, %s134
      %p143 = scmp.eq.s32.totalorder %s34, 0
      %p144 = por %p142, %p143
      %p145 = scmp.ne.s32.totalorder %s133, %s134
      %p146 = scmp.eq.s32.totalorder %s35, 1
      %p147 = por %p145, %p146
      %p149 = scmp.ne.s32.totalorder %s134, %s148
      %p150 = scmp.eq.s32.totalorder %s35, 0
      %p151 = por %p149, %p150
      %s153 = sadd.s32 %s152, 1
      %p156 = scmp.eq.s32.totalorder %s29, 1
      %p157 = scmp.ne.s32.totalorder %s152, %s154
      %p158 = scmp.eq.s32.totalorder %s29, 0
      %p159 = por %p157, %p158
      %p160 = scmp.ne.s32.totalorder %s152, %s154
      %p161 = scmp.eq.s32.totalorder %s34, 1
      %p162 = por %p160, %p161
      %p163 = scmp.ne.s32.totalorder %s154, %s155
      %p164 = scmp.eq.s32.totalorder %s34, 0
      %p165 = por %p163, %p164
      %p166 = scmp.ne.s32.totalorder %s154, %s155
      %p167 = scmp.eq.s32.totalorder %s35, 1
      %p168 = por %p166, %p167
      %p170 = scmp.ne.s32.totalorder %s155, %s169
      %p171 = scmp.eq.s32.totalorder %s35, 0
      %p172 = por %p170, %p171
      %s174 = sadd.s32 %s173, 1
      %p177 = scmp.eq.s32.totalorder %s29, 1
      %p178 = scmp.ne.s32.totalorder %s173, %s175
      %p179 = scmp.eq.s32.totalorder %s29, 0
      %p180 = por %p178, %p179
      %p181 = scmp.ne.s32.totalorder %s173, %s175
      %p182 = scmp.eq.s32.totalorder %s34, 1
      %p183 = por %p181, %p182
      %p184 = scmp.ne.s32.totalorder %s175, %s176
      %p185 = scmp.eq.s32.totalorder %s34, 0
      %p186 = por %p184, %p185
      %p187 = scmp.ne.s32.totalorder %s175, %s176
      %p188 = scmp.eq.s32.totalorder %s35, 1
      %p189 = por %p187, %p188
      %p191 = scmp.ne.s32.totalorder %s176, %s190
      %p192 = scmp.eq.s32.totalorder %s35, 0
      %p193 = por %p191, %p192
      %s195 = sadd.s32 %s194, 1
      %p198 = scmp.eq.s32.totalorder %s29, 1
      %p199 = scmp.ne.s32.totalorder %s194, %s196
      %p200 = scmp.eq.s32.totalorder %s29, 0
      %p201 = por %p199, %p200
      %p202 = scmp.ne.s32.totalorder %s194, %s196
      %p203 = scmp.eq.s32.totalorder %s34, 1
      %p204 = por %p202, %p203
      %p205 = scmp.ne.s32.totalorder %s196, %s197
      %p206 = scmp.eq.s32.totalorder %s34, 0
      %p207 = por %p205, %p206
      %p208 = scmp.ne.s32.totalorder %s196, %s197
      %p209 = scmp.eq.s32.totalorder %s35, 1
      %p210 = por %p208, %p209
      %p212 = scmp.ne.s32.totalorder %s197, %s211
      %p213 = scmp.eq.s32.totalorder %s35, 0
      %p214 = por %p212, %p213
      %s216 = sadd.s32 %s215, 1
      %p219 = scmp.eq.s32.totalorder %s29, 1
      %p220 = scmp.ne.s32.totalorder %s215, %s217
      %p221 = scmp.eq.s32.totalorder %s29, 0
      %p222 = por %p220, %p221
      %p223 = scmp.ne.s32.totalorder %s215, %s217
      %p224 = scmp.eq.s32.totalorder %s34, 1
      %p225 = por %p223, %p224
      %p226 = scmp.ne.s32.totalorder %s217, %s218
      %p227 = scmp.eq.s32.totalorder %s34, 0
      %p228 = por %p226, %p227
      %p229 = scmp.ne.s32.totalorder %s217, %s218
      %p230 = scmp.eq.s32.totalorder %s35, 1
      %p231 = por %p229, %p230
      %p233 = scmp.ne.s32.totalorder %s218, %s232
      %p234 = scmp.eq.s32.totalorder %s35, 0
      %p235 = por %p233, %p234
      %s237 = sadd.s32 %s236, 1
      %p240 = scmp.eq.s32.totalorder %s29, 1
      %p241 = scmp.ne.s32.totalorder %s236, %s238
      %p242 = scmp.eq.s32.totalorder %s29, 0
      %p243 = por %p241, %p242
      %p244 = scmp.ne.s32.totalorder %s236, %s238
      %p245 = scmp.eq.s32.totalorder %s34, 1
      %p246 = por %p244, %p245
      %p247 = scmp.ne.s32.totalorder %s238, %s239
      %p248 = scmp.eq.s32.totalorder %s34, 0
      %p249 = por %p247, %p248
      %p250 = scmp.ne.s32.totalorder %s238, %s239
      %p251 = scmp.eq.s32.totalorder %s35, 1
      %p252 = por %p250, %p251
      %p254 = scmp.ne.s32.totalorder %s239, %s253
      %p255 = scmp.eq.s32.totalorder %s35, 0
      %p256 = por %p254, %p255
      %s257 = ssub.s32 %s29, %s36
      %p258 = scmp.eq.s32.totalorder %s257, 0
      %s260 = sadd.s32 %s259, 1
      %s261 = scalar_select %p258, %s259, %s260
      %p264 = pneg %p258
      %p265 = scmp.eq.s32.totalorder %s29, 1
      %p266 = por %p264, %p265
      %p267 = scmp.ne.s32.totalorder %s259, %s262
      %p268 = scmp.eq.s32.totalorder %s29, 0
      %p269 = por %p267, %p268
      %p270 = scmp.ne.s32.totalorder %s259, %s262
      %p271 = scmp.eq.s32.totalorder %s34, 1
      %p272 = por %p270, %p271
      %p273 = scmp.ne.s32.totalorder %s262, %s263
      %p274 = scmp.eq.s32.totalorder %s34, 0
      %p275 = por %p273, %p274
      %p276 = scmp.ne.s32.totalorder %s262, %s263
      %p277 = scmp.eq.s32.totalorder %s35, 1
      %p278 = por %p276, %p277
      %p280 = scmp.ne.s32.totalorder %s263, %s279
      %p281 = scmp.eq.s32.totalorder %s35, 0
      %p282 = por %p280, %p281
      %p283 = scmp.le.s32.totalorder 1, %s29
      %p284 = scmp.lt.s32.totalorder %s29, 3
      %p285 = pnand %p283, %p284
      %p286 = pneg %p285
      // Predicated region
      $region9: #{wavenet2d_forward.1} parent=5 // pred_check
        _
      $region10: #{wavenet2d_forward.1} parent=5 // pred_check_branch
        %288 = sbr.rel (%p285) target = $region12
      $region11: #{wavenet2d_forward.1} parent=5 // pred_region
        %s289 = ssub.s32 %s29, 1
        // Predicated region
        $region13: #{wavenet2d_forward.1} parent=11 // pred_check
          %p290 = pneg %p102
        $region14: #{wavenet2d_forward.1} parent=11 // pred_check_branch
          %292 = sbr.rel (%p290) target = $region16
        $region15: #{wavenet2d_forward.1} parent=11 // pred_region
          %s294 = ssub.s32 32, 32
          %295 = vsyncadd [#allocation8], %s294
          %s297 = sshll.u32 [#allocation9], 4
          %s298 = int_to_ptr.vmem [resolvable:$true] %s297
          %300 = dma.hbm_to_vmem [thread:$0]  %s2, 32, %s298, [#allocation8]
        $region16: #{wavenet2d_forward.1} parent=11 // pred_fallthru
          _
        // Predicated region
        $region17: #{wavenet2d_forward.1} parent=11 // pred_check
          %p301 = pneg %p123
        $region18: #{wavenet2d_forward.1} parent=11 // pred_check_branch
          %303 = sbr.rel (%p301) target = $region20
        $region19: #{wavenet2d_forward.1} parent=11 // pred_region
          %s305 = ssub.s32 16, 16
          %306 = vsyncadd [#allocation11], %s305
          %s308 = sshll.u32 [#allocation10], 4
          %s309 = int_to_ptr.vmem [resolvable:$true] %s308
          %311 = dma.hbm_to_vmem [thread:$0]  %s3, 16, %s309, [#allocation11]
        $region20: #{wavenet2d_forward.1} parent=11 // pred_fallthru
          _
        // Predicated region
        $region21: #{wavenet2d_forward.1} parent=11 // pred_check
          %p312 = pneg %p144
        $region22: #{wavenet2d_forward.1} parent=11 // pred_check_branch
          %314 = sbr.rel (%p312) target = $region24
        $region23: #{wavenet2d_forward.1} parent=11 // pred_region
          %s316 = ssub.s32 7296, 7296
          %317 = vsyncadd [#allocation11], %s316
          %s318 = sshll.u32 [#allocation12], 4
          %s319 = int_to_ptr.vmem [resolvable:$true] %s318
          %324 = dma.hbm_to_vmem [thread:$0]  %s4, 7296, %s319, [#allocation11], 64, 64, 4
        $region24: #{wavenet2d_forward.1} parent=11 // pred_fallthru
          _
        // Predicated region
        $region25: #{wavenet2d_forward.1} parent=11 // pred_check
          %p325 = pneg %p165
        $region26: #{wavenet2d_forward.1} parent=11 // pred_check_branch
          %327 = sbr.rel (%p325) target = $region28
        $region27: #{wavenet2d_forward.1} parent=11 // pred_region
          %s329 = ssub.s32 48, 48
          %330 = vsyncadd [#allocation14], %s329
          %s331 = sshll.u32 [#allocation13], 4
          %s332 = int_to_ptr.vmem [resolvable:$true] %s331
          %337 = dma.hbm_to_vmem [thread:$0]  %s5, 48, %s332, [#allocation14], 16, 16, 1
        $region28: #{wavenet2d_forward.1} parent=11 // pred_fallthru
          _
        // Predicated region
        $region29: #{wavenet2d_forward.1} parent=11 // pred_check
          %p338 = pneg %p186
        $region30: #{wavenet2d_forward.1} parent=11 // pred_check_branch
          %340 = sbr.rel (%p338) target = $region32
        $region31: #{wavenet2d_forward.1} parent=11 // pred_region
          %s342 = ssub.s32 768, 768
          %343 = vsyncadd [#allocation14], %s342
          %s344 = sshll.u32 [#allocation15], 4
          %s345 = int_to_ptr.vmem [resolvable:$true] %s344
          %350 = dma.hbm_to_vmem [thread:$0]  %s6, 768, %s345, [#allocation14], 64, 64, 4
        $region32: #{wavenet2d_forward.1} parent=11 // pred_fallthru
          _
        // Predicated region
        $region33: #{wavenet2d_forward.1} parent=11 // pred_check
          %p351 = pneg %p207
        $region34: #{wavenet2d_forward.1} parent=11 // pred_check_branch
          %353 = sbr.rel (%p351) target = $region36
        $region35: #{wavenet2d_forward.1} parent=11 // pred_region
          %s355 = ssub.s32 48, 48
          %356 = vsyncadd [#allocation17], %s355
          %s357 = sshll.u32 [#allocation16], 4
          %s358 = int_to_ptr.vmem [resolvable:$true] %s357
          %363 = dma.hbm_to_vmem [thread:$0]  %s7, 48, %s358, [#allocation17], 16, 16, 1
        $region36: #{wavenet2d_forward.1} parent=11 // pred_fallthru
          _
        // Predicated region
        $region37: #{wavenet2d_forward.1} parent=11 // pred_check
          %p364 = pneg %p228
        $region38: #{wavenet2d_forward.1} parent=11 // pred_check_branch
          %366 = sbr.rel (%p364) target = $region40
        $region39: #{wavenet2d_forward.1} parent=11 // pred_region
          %s368 = ssub.s32 32, 32
          %369 = vsyncadd [#allocation17], %s368
          %s371 = sshll.u32 [#allocation18], 4
          %s372 = int_to_ptr.vmem [resolvable:$true] %s371
          %374 = dma.hbm_to_vmem [thread:$0]  %s8, 32, %s372, [#allocation17]
        $region40: #{wavenet2d_forward.1} parent=11 // pred_fallthru
          _
        // Predicated region
        $region41: #{wavenet2d_forward.1} parent=11 // pred_check
          %p375 = pneg %p249
        $region42: #{wavenet2d_forward.1} parent=11 // pred_check_branch
          %377 = sbr.rel (%p375) target = $region44
        $region43: #{wavenet2d_forward.1} parent=11 // pred_region
          %s379 = ssub.s32 64, 64
          %380 = vsyncadd [#allocation20], %s379
          %s382 = sshll.u32 [#allocation19], 4
          %s383 = int_to_ptr.vmem [resolvable:$true] %s382
          %385 = dma.hbm_to_vmem [thread:$0]  %s9, 64, %s383, [#allocation20]
        $region44: #{wavenet2d_forward.1} parent=11 // pred_fallthru
          _
      $region12: #{wavenet2d_forward.1} parent=5 // pred_fallthru
        _
      %p386 = scmp.lt.s32.totalorder %s29, 2
      // Predicated region
      $region45: #{wavenet2d_forward.1} parent=5 // pred_check
        %p387 = pneg %p386
      $region46: #{wavenet2d_forward.1} parent=5 // pred_check_branch
        %389 = sbr.rel (%p387) target = $region48
      $region47: #{wavenet2d_forward.1} parent=5 // pred_region
        // Predicated region
        $region49: #{wavenet2d_forward.1} parent=47 // pred_check
          %p390 = pneg %p49
        $region50: #{wavenet2d_forward.1} parent=47 // pred_check_branch
          %392 = sbr.rel (%p390) target = $region52
        $region51: #{wavenet2d_forward.1} parent=47 // pred_region
          %s393 = sand.u32 %s39, 1
          %s394 = scalar_lea.sflag [#allocation5], %s393
          %s395 = sand.u32 %s39, 1
          %s396 = smul.addr %s395, 128
          %s397 = scalar_lea.vmem [#allocation4], %s396
          %s399 = ssub.s32 2048, 2048
          %400 = vsyncadd %s394, %s399
          %s401 = smul.addr %s29, 32
          %s402 = smul.addr %s401, 64
          %s403 = scalar_lea.hbm %s0, %s402
          %s404 = sshll.u32 %s397, 4
          %s405 = int_to_ptr.vmem [resolvable:$true] %s404
          %410 = dma.hbm_to_vmem [thread:$0]  %s403, 2048, %s405, %s394, 64, 64, 4
        $region52: #{wavenet2d_forward.1} parent=47 // pred_fallthru
          _
        // Predicated region
        $region53: #{wavenet2d_forward.1} parent=47 // pred_check
          %p411 = pneg %p75
        $region54: #{wavenet2d_forward.1} parent=47 // pred_check_branch
          %413 = sbr.rel (%p411) target = $region56
        $region55: #{wavenet2d_forward.1} parent=47 // pred_region
          %s414 = sand.u32 %s29, 1
          %s415 = scalar_lea.sflag [#allocation8], %s414
          %s416 = sand.u32 %s65, 1
          %s417 = smul.addr %s416, 128
          %s418 = scalar_lea.vmem [#allocation7], %s417
          %s420 = ssub.s32 2048, 2048
          %421 = vsyncadd %s415, %s420
          %s422 = smul.addr %s29, 32
          %s423 = smul.addr %s422, 64
          %s424 = scalar_lea.hbm %s1, %s423
          %s425 = sshll.u32 %s418, 4
          %s426 = int_to_ptr.vmem [resolvable:$true] %s425
          %431 = dma.hbm_to_vmem [thread:$0]  %s424, 2048, %s426, %s415, 64, 64, 4
        $region56: #{wavenet2d_forward.1} parent=47 // pred_fallthru
          _
      $region48: #{wavenet2d_forward.1} parent=5 // pred_fallthru
        _
      %p432 = scmp.le.s32.totalorder 1, %s29
      %p433 = scmp.lt.s32.totalorder %s29, 3
      %p434 = pnand %p432, %p433
      %p435 = pneg %p434
      // Predicated region
      $region57: #{wavenet2d_forward.1} parent=5 // pred_check
        _
      $region58: #{wavenet2d_forward.1} parent=5 // pred_check_branch
        %437 = sbr.rel (%p434) target = $region60
      $region59: #{wavenet2d_forward.1} parent=5 // pred_region
        %s438 = ssub.s32 %s29, 1
        %s439 = sand.u32 %s42, 1
        %s440 = scalar_lea.sflag [#allocation5], %s439
        %s441 = sand.u32 %s42, 1
        %s442 = smul.addr %s441, 128
        %s443 = scalar_lea.vmem [#allocation4], %s442
        // Predicated region
        $region61: #{wavenet2d_forward.1} parent=59 // pred_check
          %p444 = pneg %p55
        $region62: #{wavenet2d_forward.1} parent=59 // pred_check_branch
          %446 = sbr.rel (%p444) target = $region64
        $region63: #{wavenet2d_forward.1} parent=59 // pred_region
          %447 = dma.done %s440, 2048
        $region64: #{wavenet2d_forward.1} parent=59 // pred_fallthru
          _
        %s448 = sand.u32 %s34, 1
        %s449 = scalar_lea.sflag [#allocation8], %s448
        %s450 = sand.u32 %s68, 1
        %s451 = smul.addr %s450, 128
        %s452 = scalar_lea.vmem [#allocation7], %s451
        // Predicated region
        $region65: #{wavenet2d_forward.1} parent=59 // pred_check
          %p453 = pneg %p81
        $region66: #{wavenet2d_forward.1} parent=59 // pred_check_branch
          %455 = sbr.rel (%p453) target = $region68
        $region67: #{wavenet2d_forward.1} parent=59 // pred_region
          %456 = dma.done %s449, 2048
        $region68: #{wavenet2d_forward.1} parent=59 // pred_fallthru
          _
        // Predicated region
        $region69: #{wavenet2d_forward.1} parent=59 // pred_check
          %p457 = pneg %p102
        $region70: #{wavenet2d_forward.1} parent=59 // pred_check_branch
          %459 = sbr.rel (%p457) target = $region72
        $region71: #{wavenet2d_forward.1} parent=59 // pred_region
          %460 = dma.done [#allocation8], 32
        $region72: #{wavenet2d_forward.1} parent=59 // pred_fallthru
          _
        // Predicated region
        $region73: #{wavenet2d_forward.1} parent=59 // pred_check
          %p461 = pneg %p123
        $region74: #{wavenet2d_forward.1} parent=59 // pred_check_branch
          %463 = sbr.rel (%p461) target = $region76
        $region75: #{wavenet2d_forward.1} parent=59 // pred_region
          %464 = dma.done [#allocation11], 16
        $region76: #{wavenet2d_forward.1} parent=59 // pred_fallthru
          _
        // Predicated region
        $region77: #{wavenet2d_forward.1} parent=59 // pred_check
          %p465 = pneg %p144
        $region78: #{wavenet2d_forward.1} parent=59 // pred_check_branch
          %467 = sbr.rel (%p465) target = $region80
        $region79: #{wavenet2d_forward.1} parent=59 // pred_region
          %468 = dma.done [#allocation11], 7296
        $region80: #{wavenet2d_forward.1} parent=59 // pred_fallthru
          _
        // Predicated region
        $region81: #{wavenet2d_forward.1} parent=59 // pred_check
          %p469 = pneg %p165
        $region82: #{wavenet2d_forward.1} parent=59 // pred_check_branch
          %471 = sbr.rel (%p469) target = $region84
        $region83: #{wavenet2d_forward.1} parent=59 // pred_region
          %472 = dma.done [#allocation14], 48
        $region84: #{wavenet2d_forward.1} parent=59 // pred_fallthru
          _
        // Predicated region
        $region85: #{wavenet2d_forward.1} parent=59 // pred_check
          %p473 = pneg %p186
        $region86: #{wavenet2d_forward.1} parent=59 // pred_check_branch
          %475 = sbr.rel (%p473) target = $region88
        $region87: #{wavenet2d_forward.1} parent=59 // pred_region
          %476 = dma.done [#allocation14], 768
        $region88: #{wavenet2d_forward.1} parent=59 // pred_fallthru
          _
        // Predicated region
        $region89: #{wavenet2d_forward.1} parent=59 // pred_check
          %p477 = pneg %p207
        $region90: #{wavenet2d_forward.1} parent=59 // pred_check_branch
          %479 = sbr.rel (%p477) target = $region92
        $region91: #{wavenet2d_forward.1} parent=59 // pred_region
          %480 = dma.done [#allocation17], 48
        $region92: #{wavenet2d_forward.1} parent=59 // pred_fallthru
          _
        // Predicated region
        $region93: #{wavenet2d_forward.1} parent=59 // pred_check
          %p481 = pneg %p228
        $region94: #{wavenet2d_forward.1} parent=59 // pred_check_branch
          %483 = sbr.rel (%p481) target = $region96
        $region95: #{wavenet2d_forward.1} parent=59 // pred_region
          %484 = dma.done [#allocation17], 32
        $region96: #{wavenet2d_forward.1} parent=59 // pred_fallthru
          _
        // Predicated region
        $region97: #{wavenet2d_forward.1} parent=59 // pred_check
          %p485 = pneg %p249
        $region98: #{wavenet2d_forward.1} parent=59 // pred_check_branch
          %487 = sbr.rel (%p485) target = $region100
        $region99: #{wavenet2d_forward.1} parent=59 // pred_region
          %488 = dma.done [#allocation20], 64
        $region100: #{wavenet2d_forward.1} parent=59 // pred_fallthru
          _
        %s489 = sand.u32 %s42, 1
        %s490 = scalar_lea.sflag [#allocation5], %s489
        %s491 = sand.u32 %s42, 1
        %s492 = smul.addr %s491, 128
        %s493 = scalar_lea.vmem [#allocation4], %s492
        %p494 = pneg %p55
        %p495 = pneg %p52
        %s496 = sand.u32 %s34, 1
        %s497 = scalar_lea.sflag [#allocation8], %s496
        %s498 = sand.u32 %s68, 1
        %s499 = smul.addr %s498, 128
        %s500 = scalar_lea.vmem [#allocation7], %s499
        %p501 = pneg %p81
        %p502 = pneg %p78
        %p503 = pneg %p102
        %p504 = pneg %p99
        %p505 = pneg %p123
        %p506 = pneg %p120
        %p507 = pneg %p144
        %p508 = pneg %p141
        %p509 = pneg %p165
        %p510 = pneg %p162
        %p511 = pneg %p186
        %p512 = pneg %p183
        %p513 = pneg %p207
        %p514 = pneg %p204
        %p515 = pneg %p228
        %p516 = pneg %p225
        %p517 = pneg %p249
        %p518 = pneg %p246
        %p519 = pneg %p275
        %p520 = pneg %p272
        %s521 = sand.u32 %s262, 1
        %s522 = scalar_lea.sflag [#allocation6], %s521
        %s523 = sand.u32 %s262, 1
        %s524 = smul.addr %s523, 8
        %s525 = scalar_lea.vmem [#allocation21], %s524
        %vm527 = vcmask 257024
        %528 = vst.msk [vmem:[#allocation2] sm:$0xf] %vm527, 0
        %529 = vst.msk [vmem:[#allocation2 + $0x4] sm:$0xf] %vm527, 0
        %530 = vst.msk [vmem:[#allocation2 + $0x8] sm:$0xf] %vm527, 0
        %531 = vst.msk [vmem:[#allocation2 + $0xc] sm:$0xf] %vm527, 0
        %532 = vst.msk [vmem:[#allocation2 + $0x10] sm:$0xf] %vm527, 0
        %533 = vst.msk [vmem:[#allocation2 + $0x14] sm:$0xf] %vm527, 0
        %534 = vst.msk [vmem:[#allocation2 + $0x18] sm:$0xf] %vm527, 0
        %535 = vst.msk [vmem:[#allocation2 + $0x1c] sm:$0xf] %vm527, 0
        %536 = vst.msk [vmem:[#allocation2 + $0x20] sm:$0xf] %vm527, 0
        %537 = vst.msk [vmem:[#allocation2 + $0x24] sm:$0xf] %vm527, 0
        %538 = vst.msk [vmem:[#allocation2 + $0x28] sm:$0xf] %vm527, 0
        %539 = vst.msk [vmem:[#allocation2 + $0x2c] sm:$0xf] %vm527, 0
        %540 = vst.msk [vmem:[#allocation2 + $0x30] sm:$0xf] %vm527, 0
        %541 = vst.msk [vmem:[#allocation2 + $0x34] sm:$0xf] %vm527, 0
        %542 = vst.msk [vmem:[#allocation2 + $0x38] sm:$0xf] %vm527, 0
        %543 = vst.msk [vmem:[#allocation2 + $0x3c] sm:$0xf] %vm527, 0
        %544 = vst.msk [vmem:[#allocation2 + $0x40] sm:$0xf] %vm527, 0
        %545 = vst.msk [vmem:[#allocation2 + $0x44] sm:$0xf] %vm527, 0
        %546 = vst.msk [vmem:[#allocation2 + $0x48] sm:$0xf] %vm527, 0
        %547 = vst.msk [vmem:[#allocation2 + $0x4c] sm:$0xf] %vm527, 0
        %548 = vst.msk [vmem:[#allocation2 + $0x50] sm:$0xf] %vm527, 0
        %549 = vst.msk [vmem:[#allocation2 + $0x54] sm:$0xf] %vm527, 0
        %550 = vst.msk [vmem:[#allocation2 + $0x58] sm:$0xf] %vm527, 0
        %551 = vst.msk [vmem:[#allocation2 + $0x5c] sm:$0xf] %vm527, 0
        %vm552 = vcmask 254976
        %553 = vst.msk [vmem:[#allocation2] sm:$0x3] %vm552, 0
        %554 = vst.msk [vmem:[#allocation2 + $0xc] sm:$0x3] %vm552, 0
        %555 = vst.msk [vmem:[#allocation2 + $0x18] sm:$0x3] %vm552, 0
        %556 = vst.msk [vmem:[#allocation2 + $0x24] sm:$0x3] %vm552, 0
        %557 = vst.msk [vmem:[#allocation2 + $0x30] sm:$0x3] %vm552, 0
        %558 = vst.msk [vmem:[#allocation2 + $0x3c] sm:$0x3] %vm552, 0
        %559 = vst.msk [vmem:[#allocation2 + $0x48] sm:$0x3] %vm552, 0
        %560 = vst.msk [vmem:[#allocation2 + $0x54] sm:$0x3] %vm552, 0
        %561 = vst.msk [vmem:[#allocation2 + $0x60] sm:$0x3] %vm552, 0
        %562 = vst.msk [vmem:[#allocation2 + $0x6c] sm:$0x3] %vm552, 0
        %563 = vst.msk [vmem:[#allocation2 + $0x78] sm:$0x3] %vm552, 0
        %564 = vst.msk [vmem:[#allocation2 + $0x84] sm:$0x3] %vm552, 0
        %565 = vst.msk [vmem:[#allocation2 + $0x90] sm:$0x3] %vm552, 0
        %566 = vst.msk [vmem:[#allocation2 + $0x9c] sm:$0x3] %vm552, 0
        %567 = vst.msk [vmem:[#allocation2 + $0xa8] sm:$0x3] %vm552, 0
        %568 = vst.msk [vmem:[#allocation2 + $0xb4] sm:$0x3] %vm552, 0
        %569 = vst.msk [vmem:[#allocation2 + $0xc0] sm:$0x3] %vm552, 0
        %570 = vst.msk [vmem:[#allocation2 + $0xcc] sm:$0x3] %vm552, 0
        %571 = vst.msk [vmem:[#allocation2 + $0xd8] sm:$0x3] %vm552, 0
        %572 = vst.msk [vmem:[#allocation2 + $0xe4] sm:$0x3] %vm552, 0
        %573 = vst.msk [vmem:[#allocation2 + $0xf0] sm:$0x3] %vm552, 0
        %574 = vst.msk [vmem:[#allocation2 + $0xfc] sm:$0x3] %vm552, 0
        %575 = vst.msk [vmem:[#allocation2 + $0x108] sm:$0x3] %vm552, 0
        %576 = vst.msk [vmem:[#allocation2 + $0x114] sm:$0x3] %vm552, 0
        %vm577 = vcmask 257026
        %578 = vst.msk [vmem:[#allocation2 + $0x8] sm:$0xc] %vm577, 0
        %579 = vst.msk [vmem:[#allocation2 + $0x14] sm:$0xc] %vm577, 0
        %580 = vst.msk [vmem:[#allocation2 + $0x20] sm:$0xc] %vm577, 0
        %581 = vst.msk [vmem:[#allocation2 + $0x2c] sm:$0xc] %vm577, 0
        %582 = vst.msk [vmem:[#allocation2 + $0x38] sm:$0xc] %vm577, 0
        %583 = vst.msk [vmem:[#allocation2 + $0x44] sm:$0xc] %vm577, 0
        %584 = vst.msk [vmem:[#allocation2 + $0x50] sm:$0xc] %vm577, 0
        %585 = vst.msk [vmem:[#allocation2 + $0x5c] sm:$0xc] %vm577, 0
        %586 = vst.msk [vmem:[#allocation2 + $0x68] sm:$0xc] %vm577, 0
        %587 = vst.msk [vmem:[#allocation2 + $0x74] sm:$0xc] %vm577, 0
        %588 = vst.msk [vmem:[#allocation2 + $0x80] sm:$0xc] %vm577, 0
        %589 = vst.msk [vmem:[#allocation2 + $0x8c] sm:$0xc] %vm577, 0
        %590 = vst.msk [vmem:[#allocation2 + $0x98] sm:$0xc] %vm577, 0
        %591 = vst.msk [vmem:[#allocation2 + $0xa4] sm:$0xc] %vm577, 0
        %592 = vst.msk [vmem:[#allocation2 + $0xb0] sm:$0xc] %vm577, 0
        %593 = vst.msk [vmem:[#allocation2 + $0xbc] sm:$0xc] %vm577, 0
        %594 = vst.msk [vmem:[#allocation2 + $0xc8] sm:$0xc] %vm577, 0
        %595 = vst.msk [vmem:[#allocation2 + $0xd4] sm:$0xc] %vm577, 0
        %596 = vst.msk [vmem:[#allocation2 + $0xe0] sm:$0xc] %vm577, 0
        %597 = vst.msk [vmem:[#allocation2 + $0xec] sm:$0xc] %vm577, 0
        %598 = vst.msk [vmem:[#allocation2 + $0xf8] sm:$0xc] %vm577, 0
        %599 = vst.msk [vmem:[#allocation2 + $0x104] sm:$0xc] %vm577, 0
        %600 = vst.msk [vmem:[#allocation2 + $0x110] sm:$0xc] %vm577, 0
        %601 = vst.msk [vmem:[#allocation2 + $0x11c] sm:$0xc] %vm577, 0
        %v602 = vld [vmem:[%s443] sm:$0xf]
        %v603 = vld [vmem:[%s443 + $0x4] sm:$0xf]
        %v604 = vld [vmem:[%s443 + $0x8] sm:$0xf]
        %v605 = vld [vmem:[%s443 + $0xc] sm:$0xf]
        %v606 = vld [vmem:[%s443 + $0x10] sm:$0xf]
        %v607 = vld [vmem:[%s443 + $0x14] sm:$0xf]
        %v608 = vld [vmem:[%s443 + $0x18] sm:$0xf]
        %v609 = vld [vmem:[%s443 + $0x1c] sm:$0xf]
        %v610 = vld [vmem:[%s443 + $0x20] sm:$0xf]
        %v611 = vld [vmem:[%s443 + $0x24] sm:$0xf]
        %v612 = vld [vmem:[%s443 + $0x28] sm:$0xf]
        %v613 = vld [vmem:[%s443 + $0x2c] sm:$0xf]
        %v614 = vld [vmem:[%s443 + $0x30] sm:$0xf]
        %v615 = vld [vmem:[%s443 + $0x34] sm:$0xf]
        %v616 = vld [vmem:[%s443 + $0x38] sm:$0xf]
        %v617 = vld [vmem:[%s443 + $0x3c] sm:$0xf]
        %v618 = vld [vmem:[%s443 + $0x40] sm:$0xf]
        %v619 = vld [vmem:[%s443 + $0x44] sm:$0xf]
        %v620 = vld [vmem:[%s443 + $0x48] sm:$0xf]
        %v621 = vld [vmem:[%s443 + $0x4c] sm:$0xf]
        %v622 = vld [vmem:[%s443 + $0x50] sm:$0xf]
        %v623 = vld [vmem:[%s443 + $0x54] sm:$0xf]
        %v624 = vld [vmem:[%s443 + $0x58] sm:$0xf]
        %v625 = vld [vmem:[%s443 + $0x5c] sm:$0xf]
        %v626 = vld [vmem:[%s443 + $0x60] sm:$0xf]
        %v627 = vld [vmem:[%s443 + $0x64] sm:$0xf]
        %v628 = vld [vmem:[%s443 + $0x68] sm:$0xf]
        %v629 = vld [vmem:[%s443 + $0x6c] sm:$0xf]
        %v630 = vld [vmem:[%s443 + $0x70] sm:$0xf]
        %v631 = vld [vmem:[%s443 + $0x74] sm:$0xf]
        %v632 = vld [vmem:[%s443 + $0x78] sm:$0xf]
        %v633 = vld [vmem:[%s443 + $0x7c] sm:$0xf]
        %v634 = vld [vmem:[#allocation9] sm:$0x3]
        %v635 = vld [vmem:[#allocation10] sm:$0x1]
        %v637 = vlaneseq
        %v638 = vshrl.u32 %v637, 7
        %v639 = vsub.s32 0, %v638
        %v640 = vrot.slane %v635, %v639
        %v674 = vunpack.c.l.b16 %v602
        %v675 = vunpack.c.l.b16 %v603
        %v676 = vunpack.c.l.b16 %v604
        %v677 = vunpack.c.l.b16 %v605
        %v678 = vunpack.c.l.b16 %v606
        %v679 = vunpack.c.l.b16 %v607
        %v680 = vunpack.c.l.b16 %v608
        %v681 = vunpack.c.l.b16 %v609
        %v682 = vunpack.c.l.b16 %v610
        %v683 = vunpack.c.l.b16 %v611
        %v684 = vunpack.c.l.b16 %v612
        %v685 = vunpack.c.l.b16 %v613
        %v686 = vunpack.c.l.b16 %v614
        %v687 = vunpack.c.l.b16 %v615
        %v688 = vunpack.c.l.b16 %v616
        %v689 = vunpack.c.l.b16 %v617
        %v690 = vunpack.c.l.b16 %v618
        %v691 = vunpack.c.l.b16 %v619
        %v692 = vunpack.c.l.b16 %v620
        %v693 = vunpack.c.l.b16 %v621
        %v694 = vunpack.c.l.b16 %v622
        %v695 = vunpack.c.l.b16 %v623
        %v696 = vunpack.c.l.b16 %v624
        %v697 = vunpack.c.l.b16 %v625
        %v698 = vunpack.c.l.b16 %v626
        %v699 = vunpack.c.l.b16 %v627
        %v700 = vunpack.c.l.b16 %v628
        %v701 = vunpack.c.l.b16 %v629
        %v702 = vunpack.c.l.b16 %v630
        %v703 = vunpack.c.l.b16 %v631
        %v704 = vunpack.c.l.b16 %v632
        %v705 = vunpack.c.l.b16 %v633
        %v706 = vpack.c.b16 %v675, %v674
        %v707 = vpack.c.b16 %v677, %v676
        %v708 = vpack.c.b16 %v679, %v678
        %v709 = vpack.c.b16 %v681, %v680
        %v710 = vpack.c.b16 %v683, %v682
        %v711 = vpack.c.b16 %v685, %v684
        %v712 = vpack.c.b16 %v687, %v686
        %v713 = vpack.c.b16 %v689, %v688
        %v714 = vpack.c.b16 %v691, %v690
        %v715 = vpack.c.b16 %v693, %v692
        %v716 = vpack.c.b16 %v695, %v694
        %v717 = vpack.c.b16 %v697, %v696
        %v718 = vpack.c.b16 %v699, %v698
        %v719 = vpack.c.b16 %v701, %v700
        %v720 = vpack.c.b16 %v703, %v702
        %v721 = vpack.c.b16 %v705, %v704
        %vm722 = vcmask 31744
        %v724 = vsel %vm722, %v706, 0
        %v727 = vsel %vm722, %v707, 0
        %v730 = vsel %vm722, %v708, 0
        %v733 = vsel %vm722, %v709, 0
        %v736 = vsel %vm722, %v710, 0
        %v739 = vsel %vm722, %v711, 0
        %v742 = vsel %vm722, %v712, 0
        %v745 = vsel %vm722, %v713, 0
        %v748 = vsel %vm722, %v714, 0
        %v751 = vsel %vm722, %v715, 0
        %v754 = vsel %vm722, %v716, 0
        %v757 = vsel %vm722, %v717, 0
        %v760 = vsel %vm722, %v718, 0
        %v763 = vsel %vm722, %v719, 0
        %v766 = vsel %vm722, %v720, 0
        %v769 = vsel %vm722, %v721, 0
        %vm771 = vcmask 1041408
        %v773 = vsel %vm771, %v634, 0
        %775 = vmatprep.subr.bf16.mxu0 0
        %776 = vmatpush1.bf16.msra.mxu0 %v773
        %777 = vmatprep.subr.bf16.mxu0 0
        %778 = vmatpush1.bf16.msra.mxu0 0
        %779 = vmatprep.subr.bf16.mxu0 0
        %780 = vmatpush1.bf16.msra.mxu0 0
        %781 = vmatprep.subr.bf16.mxu0 0
        %782 = vmatpush1.bf16.msra.mxu0 0
        %783 = vmatprep.subr.bf16.mxu0 0
        %784 = vmatpush1.bf16.msra.mxu0 0
        %785 = vmatprep.subr.bf16.mxu0 0
        %786 = vmatpush1.bf16.msra.mxu0 0
        %787 = vmatprep.subr.bf16.mxu0 0
        %788 = vmatpush1.bf16.msra.mxu0 0
        %789 = vmatprep.subr.bf16.mxu0 0
        %790 = vmatpush1.bf16.msra.mxu0 0
        %791 = vmatprep.subr.bf16.mxu0 0
        %792 = vmatpush1.bf16.msra.mxu0 0
        %793 = vmatprep.subr.bf16.mxu0 0
        %794 = vmatpush1.bf16.msra.mxu0 0
        %795 = vmatprep.subr.bf16.mxu0 0
        %796 = vmatpush1.bf16.msra.mxu0 0
        %797 = vmatprep.subr.bf16.mxu0 0
        %798 = vmatpush1.bf16.msra.mxu0 0
        %799 = vmatprep.subr.bf16.mxu0 0
        %800 = vmatpush1.bf16.msra.mxu0 0
        %801 = vmatprep.subr.bf16.mxu0 0
        %802 = vmatpush1.bf16.msra.mxu0 0
        %803 = vmatprep.subr.bf16.mxu0 0
        %804 = vmatpush1.bf16.msra.mxu0 0
        %805 = vmatprep.subr.bf16.mxu0 0
        %806 = vmatpush1.bf16.msra.mxu0 0
        %807 = vmatprep.mubr.bf16.mxu0 0
        %808 = vmatmul.mubr.bf16.gmra.mrb[0].mxu0 %v724
        %v809 = vpop.f32.mrb[0].mxu0
        %v810 = vadd.f32 %v640, %v809
        %v811 = vpop.f32.mrb[0].mxu0
        %v812 = vpop.f32.mrb[0].mxu0
        %v813 = vadd.f32 %v640, %v812
        %v814 = vpop.f32.mrb[0].mxu0
        %815 = vmatprep.mubr.bf16.mxu0 0
        %816 = vmatmul.mubr.bf16.gmra.mrb[0].mxu0 %v727
        %v817 = vpop.f32.mrb[0].mxu0
        %v818 = vadd.f32 %v640, %v817
        %v819 = vpop.f32.mrb[0].mxu0
        %v820 = vpop.f32.mrb[0].mxu0
        %v821 = vadd.f32 %v640, %v820
        %v822 = vpop.f32.mrb[0].mxu0
        %823 = vmatprep.mubr.bf16.mxu0 0
        %824 = vmatmul.mubr.bf16.gmra.mrb[0].mxu0 %v730
        %v825 = vpop.f32.mrb[0].mxu0
        %v826 = vadd.f32 %v640, %v825
        %v827 = vpop.f32.mrb[0].mxu0
        %v828 = vpop.f32.mrb[0].mxu0
        %v829 = vadd.f32 %v640, %v828
        %v830 = vpop.f32.mrb[0].mxu0
        %831 = vmatprep.mubr.bf16.mxu0 0
        %832 = vmatmul.mubr.bf16.gmra.mrb[0].mxu0 %v733
        %v833 = vpop.f32.mrb[0].mxu0
        %v834 = vadd.f32 %v640, %v833
        %v835 = vpop.f32.mrb[0].mxu0
        %v836 = vpop.f32.mrb[0].mxu0
        %v837 = vadd.f32 %v640, %v836
        %v838 = vpop.f32.mrb[0].mxu0
        %839 = vmatprep.mubr.bf16.mxu0 0
        %840 = vmatmul.mubr.bf16.gmra.mrb[0].mxu0 %v736
        %v841 = vpop.f32.mrb[0].mxu0
        %v842 = vadd.f32 %v640, %v841
        %v843 = vpop.f32.mrb[0].mxu0
        %v844 = vpop.f32.mrb[0].mxu0
        %v845 = vadd.f32 %v640, %v844
        %v846 = vpop.f32.mrb[0].mxu0
        %847 = vmatprep.mubr.bf16.mxu0 0
        %848 = vmatmul.mubr.bf16.gmra.mrb[0].mxu0 %v739
        %v849 = vpop.f32.mrb[0].mxu0
        %v850 = vadd.f32 %v640, %v849
        %v851 = vpop.f32.mrb[0].mxu0
        %v852 = vpop.f32.mrb[0].mxu0
        %v853 = vadd.f32 %v640, %v852
        %v854 = vpop.f32.mrb[0].mxu0
        %855 = vmatprep.mubr.bf16.mxu0 0
        %856 = vmatmul.mubr.bf16.gmra.mrb[0].mxu0 %v742
        %v857 = vpop.f32.mrb[0].mxu0
        %v858 = vadd.f32 %v640, %v857
        %v859 = vpop.f32.mrb[0].mxu0
        %v860 = vpop.f32.mrb[0].mxu0
        %v861 = vadd.f32 %v640, %v860
        %v862 = vpop.f32.mrb[0].mxu0
        %863 = vmatprep.mubr.bf16.mxu0 0
        %864 = vmatmul.mubr.bf16.gmra.mrb[0].mxu0 %v745
        %v865 = vpop.f32.mrb[0].mxu0
        %v866 = vadd.f32 %v640, %v865
        %v867 = vpop.f32.mrb[0].mxu0
        %v868 = vpop.f32.mrb[0].mxu0
        %v869 = vadd.f32 %v640, %v868
        %v870 = vpop.f32.mrb[0].mxu0
        %871 = vmatprep.mubr.bf16.mxu0 0
        %872 = vmatmul.mubr.bf16.gmra.mrb[0].mxu0 %v748
        %v873 = vpop.f32.mrb[0].mxu0
        %v874 = vadd.f32 %v640, %v873
        %v875 = vpop.f32.mrb[0].mxu0
        %v876 = vpop.f32.mrb[0].mxu0
        %v877 = vadd.f32 %v640, %v876
        %v878 = vpop.f32.mrb[0].mxu0
        %879 = vmatprep.mubr.bf16.mxu0 0
        %880 = vmatmul.mubr.bf16.gmra.mrb[0].mxu0 %v751
        %v881 = vpop.f32.mrb[0].mxu0
        %v882 = vadd.f32 %v640, %v881
        %v883 = vpop.f32.mrb[0].mxu0
        %v884 = vpop.f32.mrb[0].mxu0
        %v885 = vadd.f32 %v640, %v884
        %v886 = vpop.f32.mrb[0].mxu0
        %887 = vmatprep.mubr.bf16.mxu0 0
        %888 = vmatmul.mubr.bf16.gmra.mrb[0].mxu0 %v754
        %v889 = vpop.f32.mrb[0].mxu0
        %v890 = vadd.f32 %v640, %v889
        %v891 = vpop.f32.mrb[0].mxu0
        %v892 = vpop.f32.mrb[0].mxu0
        %v893 = vadd.f32 %v640, %v892
        %v894 = vpop.f32.mrb[0].mxu0
        %895 = vmatprep.mubr.bf16.mxu0 0
        %896 = vmatmul.mubr.bf16.gmra.mrb[0].mxu0 %v757
        %v897 = vpop.f32.mrb[0].mxu0
        %v898 = vadd.f32 %v640, %v897
        %v899 = vpop.f32.mrb[0].mxu0
        %v900 = vpop.f32.mrb[0].mxu0
        %v901 = vadd.f32 %v640, %v900
        %v902 = vpop.f32.mrb[0].mxu0
        %903 = vmatprep.mubr.bf16.mxu0 0
        %904 = vmatmul.mubr.bf16.gmra.mrb[0].mxu0 %v760
        %v905 = vpop.f32.mrb[0].mxu0
        %v906 = vadd.f32 %v640, %v905
        %v907 = vpop.f32.mrb[0].mxu0
        %v908 = vpop.f32.mrb[0].mxu0
        %v909 = vadd.f32 %v640, %v908
        %v910 = vpop.f32.mrb[0].mxu0
        %911 = vmatprep.mubr.bf16.mxu0 0
        %912 = vmatmul.mubr.bf16.gmra.mrb[0].mxu0 %v763
        %v913 = vpop.f32.mrb[0].mxu0
        %v914 = vadd.f32 %v640, %v913
        %v915 = vpop.f32.mrb[0].mxu0
        %v916 = vpop.f32.mrb[0].mxu0
        %v917 = vadd.f32 %v640, %v916
        %v918 = vpop.f32.mrb[0].mxu0
        %919 = vmatprep.mubr.bf16.mxu0 0
        %920 = vmatmul.mubr.bf16.gmra.mrb[0].mxu0 %v766
        %v921 = vpop.f32.mrb[0].mxu0
        %v922 = vadd.f32 %v640, %v921
        %v923 = vpop.f32.mrb[0].mxu0
        %v924 = vpop.f32.mrb[0].mxu0
        %v925 = vadd.f32 %v640, %v924
        %v926 = vpop.f32.mrb[0].mxu0
        %927 = vmatprep.mubr.bf16.mxu0 0
        %928 = vmatmul.mubr.bf16.gmra.mrb[0].mxu0 %v769
        %v929 = vpop.f32.mrb[0].mxu0
        %v930 = vadd.f32 %v640, %v929
        %v931 = vpop.f32.mrb[0].mxu0
        %v932 = vpop.f32.mrb[0].mxu0
        %v933 = vadd.f32 %v640, %v932
        %v934 = vpop.f32.mrb[0].mxu0
        %935 = vdwg.mxu0
        %v936 = vld [vmem:[%s452] sm:$0xf]
        %v937 = vld [vmem:[%s452 + $0x4] sm:$0xf]
        %v938 = vld [vmem:[%s452 + $0x8] sm:$0xf]
        %v939 = vld [vmem:[%s452 + $0xc] sm:$0xf]
        %v940 = vld [vmem:[%s452 + $0x10] sm:$0xf]
        %v941 = vld [vmem:[%s452 + $0x14] sm:$0xf]
        %v942 = vld [vmem:[%s452 + $0x18] sm:$0xf]
        %v943 = vld [vmem:[%s452 + $0x1c] sm:$0xf]
        %v944 = vld [vmem:[%s452 + $0x20] sm:$0xf]
        %v945 = vld [vmem:[%s452 + $0x24] sm:$0xf]
        %v946 = vld [vmem:[%s452 + $0x28] sm:$0xf]
        %v947 = vld [vmem:[%s452 + $0x2c] sm:$0xf]
        %v948 = vld [vmem:[%s452 + $0x30] sm:$0xf]
        %v949 = vld [vmem:[%s452 + $0x34] sm:$0xf]
        %v950 = vld [vmem:[%s452 + $0x38] sm:$0xf]
        %v951 = vld [vmem:[%s452 + $0x3c] sm:$0xf]
        %v952 = vld [vmem:[%s452 + $0x40] sm:$0xf]
        %v953 = vld [vmem:[%s452 + $0x44] sm:$0xf]
        %v954 = vld [vmem:[%s452 + $0x48] sm:$0xf]
        %v955 = vld [vmem:[%s452 + $0x4c] sm:$0xf]
        %v956 = vld [vmem:[%s452 + $0x50] sm:$0xf]
        %v957 = vld [vmem:[%s452 + $0x54] sm:$0xf]
        %v958 = vld [vmem:[%s452 + $0x58] sm:$0xf]
        %v959 = vld [vmem:[%s452 + $0x5c] sm:$0xf]
        %v960 = vld [vmem:[%s452 + $0x60] sm:$0xf]
        %v961 = vld [vmem:[%s452 + $0x64] sm:$0xf]
        %v962 = vld [vmem:[%s452 + $0x68] sm:$0xf]
        %v963 = vld [vmem:[%s452 + $0x6c] sm:$0xf]
        %v964 = vld [vmem:[%s452 + $0x70] sm:$0xf]
        %v965 = vld [vmem:[%s452 + $0x74] sm:$0xf]
        %v966 = vld [vmem:[%s452 + $0x78] sm:$0xf]
        %v967 = vld [vmem:[%s452 + $0x7c] sm:$0xf]
        %v1000 = vunpack.c.l.b16 %v936
        %v1001 = vunpack.c.l.b16 %v937
        %v1002 = vunpack.c.l.b16 %v938
        %v1003 = vunpack.c.l.b16 %v939
        %v1004 = vunpack.c.l.b16 %v940
        %v1005 = vunpack.c.l.b16 %v941
        %v1006 = vunpack.c.l.b16 %v942
        %v1007 = vunpack.c.l.b16 %v943
        %v1008 = vunpack.c.l.b16 %v944
        %v1009 = vunpack.c.l.b16 %v945
        %v1010 = vunpack.c.l.b16 %v946
        %v1011 = vunpack.c.l.b16 %v947
        %v1012 = vunpack.c.l.b16 %v948
        %v1013 = vunpack.c.l.b16 %v949
        %v1014 = vunpack.c.l.b16 %v950
        %v1015 = vunpack.c.l.b16 %v951
        %v1016 = vunpack.c.l.b16 %v952
        %v1017 = vunpack.c.l.b16 %v953
        %v1018 = vunpack.c.l.b16 %v954
        %v1019 = vunpack.c.l.b16 %v955
        %v1020 = vunpack.c.l.b16 %v956
        %v1021 = vunpack.c.l.b16 %v957
        %v1022 = vunpack.c.l.b16 %v958
        %v1023 = vunpack.c.l.b16 %v959
        %v1024 = vunpack.c.l.b16 %v960
        %v1025 = vunpack.c.l.b16 %v961
        %v1026 = vunpack.c.l.b16 %v962
        %v1027 = vunpack.c.l.b16 %v963
        %v1028 = vunpack.c.l.b16 %v964
        %v1029 = vunpack.c.l.b16 %v965
        %v1030 = vunpack.c.l.b16 %v966
        %v1031 = vunpack.c.l.b16 %v967
        %v1032 = vpack.c.b16 %v1001, %v1000
        %v1033 = vpack.c.b16 %v1003, %v1002
        %v1034 = vpack.c.b16 %v1005, %v1004
        %v1035 = vpack.c.b16 %v1007, %v1006
        %v1036 = vpack.c.b16 %v1009, %v1008
        %v1037 = vpack.c.b16 %v1011, %v1010
        %v1038 = vpack.c.b16 %v1013, %v1012
        %v1039 = vpack.c.b16 %v1015, %v1014
        %v1040 = vpack.c.b16 %v1017, %v1016
        %v1041 = vpack.c.b16 %v1019, %v1018
        %v1042 = vpack.c.b16 %v1021, %v1020
        %v1043 = vpack.c.b16 %v1023, %v1022
        %v1044 = vpack.c.b16 %v1025, %v1024
        %v1045 = vpack.c.b16 %v1027, %v1026
        %v1046 = vpack.c.b16 %v1029, %v1028
        %v1047 = vpack.c.b16 %v1031, %v1030
        %1048 = vrot.lane.b32.xlu0 %v1032, 32
        %v1049 = vpop.permute.xlu0 %1048
        %1050 = vrot.lane.b32.xlu0 %v1033, 32
        %v1051 = vpop.permute.xlu0 %1050
        %1052 = vrot.lane.b32.xlu0 %v1034, 32
        %v1053 = vpop.permute.xlu0 %1052
        %1054 = vrot.lane.b32.xlu0 %v1035, 32
        %v1055 = vpop.permute.xlu0 %1054
        %1056 = vrot.lane.b32.xlu0 %v1036, 32
        %v1057 = vpop.permute.xlu0 %1056
        %1058 = vrot.lane.b32.xlu0 %v1037, 32
        %v1059 = vpop.permute.xlu0 %1058
        %1060 = vrot.lane.b32.xlu0 %v1038, 32
        %v1061 = vpop.permute.xlu0 %1060
        %1062 = vrot.lane.b32.xlu0 %v1039, 32
        %v1063 = vpop.permute.xlu0 %1062
        %1064 = vrot.lane.b32.xlu0 %v1040, 32
        %v1065 = vpop.permute.xlu0 %1064
        %1066 = vrot.lane.b32.xlu0 %v1041, 32
        %v1067 = vpop.permute.xlu0 %1066
        %1068 = vrot.lane.b32.xlu0 %v1042, 32
        %v1069 = vpop.permute.xlu0 %1068
        %1070 = vrot.lane.b32.xlu0 %v1043, 32
        %v1071 = vpop.permute.xlu0 %1070
        %1072 = vrot.lane.b32.xlu0 %v1044, 32
        %v1073 = vpop.permute.xlu0 %1072
        %1074 = vrot.lane.b32.xlu0 %v1045, 32
        %v1075 = vpop.permute.xlu0 %1074
        %1076 = vrot.lane.b32.xlu0 %v1046, 32
        %v1077 = vpop.permute.xlu0 %1076
        %1078 = vrot.lane.b32.xlu0 %v1047, 32
        %v1079 = vpop.permute.xlu0 %1078
        %vm1096 = vcmask 392448
        %1097 = vst.msk [vmem:[#allocation3 + $0x10] sm:$0xff] %vm1096, %v1049
        %1098 = vst.msk [vmem:[#allocation3 + $0x28] sm:$0xff] %vm1096, %v1051
        %1099 = vst.msk [vmem:[#allocation3 + $0x40] sm:$0xff] %vm1096, %v1053
        %1100 = vst.msk [vmem:[#allocation3 + $0x58] sm:$0xff] %vm1096, %v1055
        %1101 = vst.msk [vmem:[#allocation3 + $0x70] sm:$0xff] %vm1096, %v1057
        %1102 = vst.msk [vmem:[#allocation3 + $0x88] sm:$0xff] %vm1096, %v1059
        %1103 = vst.msk [vmem:[#allocation3 + $0xa0] sm:$0xff] %vm1096, %v1061
        %1104 = vst.msk [vmem:[#allocation3 + $0xb8] sm:$0xff] %vm1096, %v1063
        %1105 = vst.msk [vmem:[#allocation3 + $0xd0] sm:$0xff] %vm1096, %v1065
        %1106 = vst.msk [vmem:[#allocation3 + $0xe8] sm:$0xff] %vm1096, %v1067
        %1107 = vst.msk [vmem:[#allocation3 + $0x100] sm:$0xff] %vm1096, %v1069
        %1108 = vst.msk [vmem:[#allocation3 + $0x118] sm:$0xff] %vm1096, %v1071
        %1109 = vst.msk [vmem:[#allocation3 + $0x130] sm:$0xff] %vm1096, %v1073
        %1110 = vst.msk [vmem:[#allocation3 + $0x148] sm:$0xff] %vm1096, %v1075
        %1111 = vst.msk [vmem:[#allocation3 + $0x160] sm:$0xff] %vm1096, %v1077
        %1112 = vst.msk [vmem:[#allocation3 + $0x178] sm:$0xff] %vm1096, %v1079
        %v1113 = vpack.c.bf16 %v813, %v810
        %v1114 = vpack.c.bf16 %v821, %v818
        %v1115 = vpack.c.bf16 %v829, %v826
        %v1116 = vpack.c.bf16 %v837, %v834
        %v1117 = vpack.c.bf16 %v845, %v842
        %v1118 = vpack.c.bf16 %v853, %v850
        %v1119 = vpack.c.bf16 %v861, %v858
        %v1120 = vpack.c.bf16 %v869, %v866
        %v1121 = vpack.c.bf16 %v877, %v874
        %v1122 = vpack.c.bf16 %v885, %v882
        %v1123 = vpack.c.bf16 %v893, %v890
        %v1124 = vpack.c.bf16 %v901, %v898
        %v1125 = vpack.c.bf16 %v909, %v906
        %v1126 = vpack.c.bf16 %v917, %v914
        %v1127 = vpack.c.bf16 %v925, %v922
        %v1128 = vpack.c.bf16 %v933, %v930
        %v1145 = vunpack.c.l.b16 %v1113
        %v1146 = vunpack.c.h.b16 %v1113
        %v1147 = vunpack.c.l.b16 %v1114
        %v1148 = vunpack.c.h.b16 %v1114
        %v1149 = vunpack.c.l.b16 %v1115
        %v1150 = vunpack.c.h.b16 %v1115
        %v1151 = vunpack.c.l.b16 %v1116
        %v1152 = vunpack.c.h.b16 %v1116
        %v1153 = vunpack.c.l.b16 %v1117
        %v1154 = vunpack.c.h.b16 %v1117
        %v1155 = vunpack.c.l.b16 %v1118
        %v1156 = vunpack.c.h.b16 %v1118
        %v1157 = vunpack.c.l.b16 %v1119
        %v1158 = vunpack.c.h.b16 %v1119
        %v1159 = vunpack.c.l.b16 %v1120
        %v1160 = vunpack.c.h.b16 %v1120
        %v1161 = vunpack.c.l.b16 %v1121
        %v1162 = vunpack.c.h.b16 %v1121
        %v1163 = vunpack.c.l.b16 %v1122
        %v1164 = vunpack.c.h.b16 %v1122
        %v1165 = vunpack.c.l.b16 %v1123
        %v1166 = vunpack.c.h.b16 %v1123
        %v1167 = vunpack.c.l.b16 %v1124
        %v1168 = vunpack.c.h.b16 %v1124
        %v1169 = vunpack.c.l.b16 %v1125
        %v1170 = vunpack.c.h.b16 %v1125
        %v1171 = vunpack.c.l.b16 %v1126
        %v1172 = vunpack.c.h.b16 %v1126
        %v1173 = vunpack.c.l.b16 %v1127
        %v1174 = vunpack.c.h.b16 %v1127
        %v1175 = vunpack.c.l.b16 %v1128
        %v1176 = vunpack.c.h.b16 %v1128
        %v1177 = vpack.c.b16 %v1145, %v1145
        %v1178 = vpack.c.b16 %v1146, %v1146
        %v1179 = vpack.c.b16 %v1147, %v1147
        %v1180 = vpack.c.b16 %v1148, %v1148
        %v1181 = vpack.c.b16 %v1149, %v1149
        %v1182 = vpack.c.b16 %v1150, %v1150
        %v1183 = vpack.c.b16 %v1151, %v1151
        %v1184 = vpack.c.b16 %v1152, %v1152
        %v1185 = vpack.c.b16 %v1153, %v1153
        %v1186 = vpack.c.b16 %v1154, %v1154
        %v1187 = vpack.c.b16 %v1155, %v1155
        %v1188 = vpack.c.b16 %v1156, %v1156
        %v1189 = vpack.c.b16 %v1157, %v1157
        %v1190 = vpack.c.b16 %v1158, %v1158
        %v1191 = vpack.c.b16 %v1159, %v1159
        %v1192 = vpack.c.b16 %v1160, %v1160
        %v1193 = vpack.c.b16 %v1161, %v1161
        %v1194 = vpack.c.b16 %v1162, %v1162
        %v1195 = vpack.c.b16 %v1163, %v1163
        %v1196 = vpack.c.b16 %v1164, %v1164
        %v1197 = vpack.c.b16 %v1165, %v1165
        %v1198 = vpack.c.b16 %v1166, %v1166
        %v1199 = vpack.c.b16 %v1167, %v1167
        %v1200 = vpack.c.b16 %v1168, %v1168
        %v1201 = vpack.c.b16 %v1169, %v1169
        %v1202 = vpack.c.b16 %v1170, %v1170
        %v1203 = vpack.c.b16 %v1171, %v1171
        %v1204 = vpack.c.b16 %v1172, %v1172
        %v1205 = vpack.c.b16 %v1173, %v1173
        %v1206 = vpack.c.b16 %v1174, %v1174
        %v1207 = vpack.c.b16 %v1175, %v1175
        %v1208 = vpack.c.b16 %v1176, %v1176
        %vm1209 = vcmask 1041408
        %vm1210 = vcmask 1045508
        %vm1211 = vmor %vm1209, %vm1210
        %v1212 = vrot.slane %v1177, 6
        %v1213 = vrot.slane %v1212, 4
        %v1214 = vrot.slane %v1178, 6
        %v1215 = vsel %vm1211, %v1213, %v1214
        %v1216 = vrot.slane %v1214, 4
        %v1217 = vrot.slane %v1179, 6
        %v1218 = vrot.slane %v1217, 4
        %v1219 = vrot.slane %v1180, 6
        %v1220 = vsel %vm1211, %v1218, %v1219
        %v1221 = vrot.slane %v1219, 4
        %v1222 = vrot.slane %v1181, 6
        %v1223 = vrot.slane %v1222, 4
        %v1224 = vrot.slane %v1182, 6
        %v1225 = vsel %vm1211, %v1223, %v1224
        %v1226 = vrot.slane %v1224, 4
        %v1227 = vrot.slane %v1183, 6
        %v1228 = vrot.slane %v1227, 4
        %v1229 = vrot.slane %v1184, 6
        %v1230 = vsel %vm1211, %v1228, %v1229
        %v1231 = vrot.slane %v1229, 4
        %v1232 = vrot.slane %v1185, 6
        %v1233 = vrot.slane %v1232, 4
        %v1234 = vrot.slane %v1186, 6
        %v1235 = vsel %vm1211, %v1233, %v1234
        %v1236 = vrot.slane %v1234, 4
        %v1237 = vrot.slane %v1187, 6
        %v1238 = vrot.slane %v1237, 4
        %v1239 = vrot.slane %v1188, 6
        %v1240 = vsel %vm1211, %v1238, %v1239
        %v1241 = vrot.slane %v1239, 4
        %v1242 = vrot.slane %v1189, 6
        %v1243 = vrot.slane %v1242, 4
        %v1244 = vrot.slane %v1190, 6
        %v1245 = vsel %vm1211, %v1243, %v1244
        %v1246 = vrot.slane %v1244, 4
        %v1247 = vrot.slane %v1191, 6
        %v1248 = vrot.slane %v1247, 4
        %v1249 = vrot.slane %v1192, 6
        %v1250 = vsel %vm1211, %v1248, %v1249
        %v1251 = vrot.slane %v1249, 4
        %v1252 = vrot.slane %v1193, 6
        %v1253 = vrot.slane %v1252, 4
        %v1254 = vrot.slane %v1194, 6
        %v1255 = vsel %vm1211, %v1253, %v1254
        %v1256 = vrot.slane %v1254, 4
        %v1257 = vrot.slane %v1195, 6
        %v1258 = vrot.slane %v1257, 4
        %v1259 = vrot.slane %v1196, 6
        %v1260 = vsel %vm1211, %v1258, %v1259
        %v1261 = vrot.slane %v1259, 4
        %v1262 = vrot.slane %v1197, 6
        %v1263 = vrot.slane %v1262, 4
        %v1264 = vrot.slane %v1198, 6
        %v1265 = vsel %vm1211, %v1263, %v1264
        %v1266 = vrot.slane %v1264, 4
        %v1267 = vrot.slane %v1199, 6
        %v1268 = vrot.slane %v1267, 4
        %v1269 = vrot.slane %v1200, 6
        %v1270 = vsel %vm1211, %v1268, %v1269
        %v1271 = vrot.slane %v1269, 4
        %v1272 = vrot.slane %v1201, 6
        %v1273 = vrot.slane %v1272, 4
        %v1274 = vrot.slane %v1202, 6
        %v1275 = vsel %vm1211, %v1273, %v1274
        %v1276 = vrot.slane %v1274, 4
        %v1277 = vrot.slane %v1203, 6
        %v1278 = vrot.slane %v1277, 4
        %v1279 = vrot.slane %v1204, 6
        %v1280 = vsel %vm1211, %v1278, %v1279
        %v1281 = vrot.slane %v1279, 4
        %v1282 = vrot.slane %v1205, 6
        %v1283 = vrot.slane %v1282, 4
        %v1284 = vrot.slane %v1206, 6
        %v1285 = vsel %vm1211, %v1283, %v1284
        %v1286 = vrot.slane %v1284, 4
        %v1287 = vrot.slane %v1207, 6
        %v1288 = vrot.slane %v1287, 4
        %v1289 = vrot.slane %v1208, 6
        %v1290 = vsel %vm1211, %v1288, %v1289
        %v1291 = vrot.slane %v1289, 4
        %s1340 = scalar_lea.vmem [#allocation2], 96
        %1341 = vst.msk [vmem:[%s1340] sm:$0xc] %vm577, %v1212
        %1342 = vst.msk [vmem:[%s1340 + $0x4] sm:$0xf] %vm527, %v1215
        %1343 = vst.msk [vmem:[%s1340 + $0x8] sm:$0x3] %vm552, %v1216
        %1344 = vst.msk [vmem:[%s1340 + $0xc] sm:$0xc] %vm577, %v1217
        %1345 = vst.msk [vmem:[%s1340 + $0x10] sm:$0xf] %vm527, %v1220
        %1346 = vst.msk [vmem:[%s1340 + $0x14] sm:$0x3] %vm552, %v1221
        %1347 = vst.msk [vmem:[%s1340 + $0x18] sm:$0xc] %vm577, %v1222
        %1348 = vst.msk [vmem:[%s1340 + $0x1c] sm:$0xf] %vm527, %v1225
        %1349 = vst.msk [vmem:[%s1340 + $0x20] sm:$0x3] %vm552, %v1226
        %1350 = vst.msk [vmem:[%s1340 + $0x24] sm:$0xc] %vm577, %v1227
        %1351 = vst.msk [vmem:[%s1340 + $0x28] sm:$0xf] %vm527, %v1230
        %1352 = vst.msk [vmem:[%s1340 + $0x2c] sm:$0x3] %vm552, %v1231
        %1353 = vst.msk [vmem:[%s1340 + $0x30] sm:$0xc] %vm577, %v1232
        %1354 = vst.msk [vmem:[%s1340 + $0x34] sm:$0xf] %vm527, %v1235
        %1355 = vst.msk [vmem:[%s1340 + $0x38] sm:$0x3] %vm552, %v1236
        %1356 = vst.msk [vmem:[%s1340 + $0x3c] sm:$0xc] %vm577, %v1237
        %1357 = vst.msk [vmem:[%s1340 + $0x40] sm:$0xf] %vm527, %v1240
        %1358 = vst.msk [vmem:[%s1340 + $0x44] sm:$0x3] %vm552, %v1241
        %1359 = vst.msk [vmem:[%s1340 + $0x48] sm:$0xc] %vm577, %v1242
        %1360 = vst.msk [vmem:[%s1340 + $0x4c] sm:$0xf] %vm527, %v1245
        %1361 = vst.msk [vmem:[%s1340 + $0x50] sm:$0x3] %vm552, %v1246
        %1362 = vst.msk [vmem:[%s1340 + $0x54] sm:$0xc] %vm577, %v1247
        %1363 = vst.msk [vmem:[%s1340 + $0x58] sm:$0xf] %vm527, %v1250
        %1364 = vst.msk [vmem:[%s1340 + $0x5c] sm:$0x3] %vm552, %v1251
        %1365 = vst.msk [vmem:[%s1340 + $0x60] sm:$0xc] %vm577, %v1252
        %1366 = vst.msk [vmem:[%s1340 + $0x64] sm:$0xf] %vm527, %v1255
        %1367 = vst.msk [vmem:[%s1340 + $0x68] sm:$0x3] %vm552, %v1256
        %1368 = vst.msk [vmem:[%s1340 + $0x6c] sm:$0xc] %vm577, %v1257
        %1369 = vst.msk [vmem:[%s1340 + $0x70] sm:$0xf] %vm527, %v1260
        %1370 = vst.msk [vmem:[%s1340 + $0x74] sm:$0x3] %vm552, %v1261
        %1371 = vst.msk [vmem:[%s1340 + $0x78] sm:$0xc] %vm577, %v1262
        %1372 = vst.msk [vmem:[%s1340 + $0x7c] sm:$0xf] %vm527, %v1265
        %1373 = vst.msk [vmem:[%s1340 + $0x80] sm:$0x3] %vm552, %v1266
        %1374 = vst.msk [vmem:[%s1340 + $0x84] sm:$0xc] %vm577, %v1267
        %1375 = vst.msk [vmem:[%s1340 + $0x88] sm:$0xf] %vm527, %v1270
        %1376 = vst.msk [vmem:[%s1340 + $0x8c] sm:$0x3] %vm552, %v1271
        %1377 = vst.msk [vmem:[%s1340 + $0x90] sm:$0xc] %vm577, %v1272
        %1378 = vst.msk [vmem:[%s1340 + $0x94] sm:$0xf] %vm527, %v1275
        %1379 = vst.msk [vmem:[%s1340 + $0x98] sm:$0x3] %vm552, %v1276
        %1380 = vst.msk [vmem:[%s1340 + $0x9c] sm:$0xc] %vm577, %v1277
        %1381 = vst.msk [vmem:[%s1340 + $0xa0] sm:$0xf] %vm527, %v1280
        %1382 = vst.msk [vmem:[%s1340 + $0xa4] sm:$0x3] %vm552, %v1281
        %1383 = vst.msk [vmem:[%s1340 + $0xa8] sm:$0xc] %vm577, %v1282
        %1384 = vst.msk [vmem:[%s1340 + $0xac] sm:$0xf] %vm527, %v1285
        %1385 = vst.msk [vmem:[%s1340 + $0xb0] sm:$0x3] %vm552, %v1286
        %1386 = vst.msk [vmem:[%s1340 + $0xb4] sm:$0xc] %vm577, %v1287
        %1387 = vst.msk [vmem:[%s1340 + $0xb8] sm:$0xf] %vm527, %v1290
        %1388 = vst.msk [vmem:[%s1340 + $0xbc] sm:$0x3] %vm552, %v1291
        %v1389 = vld [vmem:[#allocation2 + $0x48] sm:$0xe]
        %v1390 = vld [vmem:[#allocation2 + $0x4c] sm:$0xf]
        %v1391 = vld [vmem:[#allocation2 + $0x50] sm:$0x3]
        %v1392 = vld [vmem:[#allocation2 + $0x54] sm:$0xe]
        %v1393 = vld [vmem:[#allocation2 + $0x58] sm:$0xf]
        %v1394 = vld [vmem:[#allocation2 + $0x5c] sm:$0x3]
        %v1395 = vld [vmem:[#allocation2 + $0x60] sm:$0xe]
        %v1396 = vld [vmem:[#allocation2 + $0x64] sm:$0xf]
        %v1397 = vld [vmem:[#allocation2 + $0x68] sm:$0x3]
        %v1398 = vld [vmem:[#allocation2 + $0x6c] sm:$0xe]
        %v1399 = vld [vmem:[#allocation2 + $0x70] sm:$0xf]
        %v1400 = vld [vmem:[#allocation2 + $0x74] sm:$0x3]
        %v1401 = vld [vmem:[#allocation2 + $0x78] sm:$0xe]
        %v1402 = vld [vmem:[#allocation2 + $0x7c] sm:$0xf]
        %v1403 = vld [vmem:[#allocation2 + $0x80] sm:$0x3]
        %v1404 = vld [vmem:[#allocation2 + $0x84] sm:$0xe]
        %v1405 = vld [vmem:[#allocation2 + $0x88] sm:$0xf]
        %v1406 = vld [vmem:[#allocation2 + $0x8c] sm:$0x3]
        %v1407 = vld [vmem:[#allocation2 + $0x90] sm:$0xe]
        %v1408 = vld [vmem:[#allocation2 + $0x94] sm:$0xf]
        %v1409 = vld [vmem:[#allocation2 + $0x98] sm:$0x3]
        %v1410 = vld [vmem:[#allocation2 + $0x9c] sm:$0xe]
        %v1411 = vld [vmem:[#allocation2 + $0xa0] sm:$0xf]
        %v1412 = vld [vmem:[#allocation2 + $0xa4] sm:$0x3]
        %v1413 = vld [vmem:[#allocation2 + $0xa8] sm:$0xe]
        %v1414 = vld [vmem:[#allocation2 + $0xac] sm:$0xf]
        %v1415 = vld [vmem:[#allocation2 + $0xb0] sm:$0x3]
        %v1416 = vld [vmem:[#allocation2 + $0xb4] sm:$0xe]
        %v1417 = vld [vmem:[#allocation2 + $0xb8] sm:$0xf]
        %v1418 = vld [vmem:[#allocation2 + $0xbc] sm:$0x3]
        %v1419 = vld [vmem:[#allocation2 + $0xc0] sm:$0xe]
        %v1420 = vld [vmem:[#allocation2 + $0xc4] sm:$0xf]
        %v1421 = vld [vmem:[#allocation2 + $0xc8] sm:$0x3]
        %v1422 = vld [vmem:[#allocation2 + $0xcc] sm:$0xe]
        %v1423 = vld [vmem:[#allocation2 + $0xd0] sm:$0xf]
        %v1424 = vld [vmem:[#allocation2 + $0xd4] sm:$0x3]
        %v1425 = vld [vmem:[#allocation2 + $0xd8] sm:$0xe]
        %v1426 = vld [vmem:[#allocation2 + $0xdc] sm:$0xf]
        %v1427 = vld [vmem:[#allocation2 + $0xe0] sm:$0x3]
        %v1428 = vld [vmem:[#allocation2 + $0xe4] sm:$0xe]
        %v1429 = vld [vmem:[#allocation2 + $0xe8] sm:$0xf]
        %v1430 = vld [vmem:[#allocation2 + $0xec] sm:$0x3]
        %v1431 = vld [vmem:[#allocation2 + $0xf0] sm:$0xe]
        %v1432 = vld [vmem:[#allocation2 + $0xf4] sm:$0xf]
        %v1433 = vld [vmem:[#allocation2 + $0xf8] sm:$0x3]
        %v1434 = vld [vmem:[#allocation2 + $0xfc] sm:$0xe]
        %v1435 = vld [vmem:[#allocation2 + $0x100] sm:$0xf]
        %v1436 = vld [vmem:[#allocation2 + $0x104] sm:$0x3]
        %v1437 = vld [vmem:[#allocation2 + $0x108] sm:$0xe]
        %v1438 = vld [vmem:[#allocation2 + $0x10c] sm:$0xf]
        %v1439 = vld [vmem:[#allocation2 + $0x110] sm:$0x3]
        %v1440 = vld [vmem:[#allocation2 + $0x114] sm:$0xe]
        %v1441 = vld [vmem:[#allocation2 + $0x118] sm:$0xf]
        %v1442 = vld [vmem:[#allocation2 + $0x11c] sm:$0x3]
        %vm1443 = vsmask.f32 2304
        %vm1444 = vsmask.f32 6416
        %vm1445 = vmor %vm1443, %vm1444
        %v1447 = vshrl.u32 %v1389, 16
        %v1449 = vrot.slane %v1447, 5
        %v1450 = vshll.u32 %v1389, 16
        %v1452 = vrot.slane %v1450, 6
        %v1453 = vor.u32 %v1449, %v1452
        %v1454 = vrot.slane %v1453, 4
        %v1456 = vshrl.u32 %v1390, 16
        %v1458 = vrot.slane %v1456, 5
        %v1459 = vshll.u32 %v1390, 16
        %v1461 = vrot.slane %v1459, 6
        %v1462 = vor.u32 %v1458, %v1461
        %v1463 = vsel %vm1445, %v1454, %v1462
        %v1464 = vrot.slane %v1462, 4
        %v1466 = vshrl.u32 %v1391, 16
        %v1468 = vrot.slane %v1466, 5
        %v1469 = vshll.u32 %v1391, 16
        %v1471 = vrot.slane %v1469, 6
        %v1472 = vor.u32 %v1468, %v1471
        %v1473 = vsel %vm1445, %v1464, %v1472
        %v1475 = vshrl.u32 %v1392, 16
        %v1477 = vrot.slane %v1475, 5
        %v1478 = vshll.u32 %v1392, 16
        %v1480 = vrot.slane %v1478, 6
        %v1481 = vor.u32 %v1477, %v1480
        %v1482 = vrot.slane %v1481, 4
        %v1484 = vshrl.u32 %v1393, 16
        %v1486 = vrot.slane %v1484, 5
        %v1487 = vshll.u32 %v1393, 16
        %v1489 = vrot.slane %v1487, 6
        %v1490 = vor.u32 %v1486, %v1489
        %v1491 = vsel %vm1445, %v1482, %v1490
        %v1492 = vrot.slane %v1490, 4
        %v1494 = vshrl.u32 %v1394, 16
        %v1496 = vrot.slane %v1494, 5
        %v1497 = vshll.u32 %v1394, 16
        %v1499 = vrot.slane %v1497, 6
        %v1500 = vor.u32 %v1496, %v1499
        %v1501 = vsel %vm1445, %v1492, %v1500
        %v1503 = vshrl.u32 %v1395, 16
        %v1505 = vrot.slane %v1503, 5
        %v1506 = vshll.u32 %v1395, 16
        %v1508 = vrot.slane %v1506, 6
        %v1509 = vor.u32 %v1505, %v1508
        %v1510 = vrot.slane %v1509, 4
        %v1512 = vshrl.u32 %v1396, 16
        %v1514 = vrot.slane %v1512, 5
        %v1515 = vshll.u32 %v1396, 16
        %v1517 = vrot.slane %v1515, 6
        %v1518 = vor.u32 %v1514, %v1517
        %v1519 = vsel %vm1445, %v1510, %v1518
        %v1520 = vrot.slane %v1518, 4
        %v1522 = vshrl.u32 %v1397, 16
        %v1524 = vrot.slane %v1522, 5
        %v1525 = vshll.u32 %v1397, 16
        %v1527 = vrot.slane %v1525, 6
        %v1528 = vor.u32 %v1524, %v1527
        %v1529 = vsel %vm1445, %v1520, %v1528
        %v1531 = vshrl.u32 %v1398, 16
        %v1533 = vrot.slane %v1531, 5
        %v1534 = vshll.u32 %v1398, 16
        %v1536 = vrot.slane %v1534, 6
        %v1537 = vor.u32 %v1533, %v1536
        %v1538 = vrot.slane %v1537, 4
        %v1540 = vshrl.u32 %v1399, 16
        %v1542 = vrot.slane %v1540, 5
        %v1543 = vshll.u32 %v1399, 16
        %v1545 = vrot.slane %v1543, 6
        %v1546 = vor.u32 %v1542, %v1545
        %v1547 = vsel %vm1445, %v1538, %v1546
        %v1548 = vrot.slane %v1546, 4
        %v1550 = vshrl.u32 %v1400, 16
        %v1552 = vrot.slane %v1550, 5
        %v1553 = vshll.u32 %v1400, 16
        %v1555 = vrot.slane %v1553, 6
        %v1556 = vor.u32 %v1552, %v1555
        %v1557 = vsel %vm1445, %v1548, %v1556
        %v1559 = vshrl.u32 %v1401, 16
        %v1561 = vrot.slane %v1559, 5
        %v1562 = vshll.u32 %v1401, 16
        %v1564 = vrot.slane %v1562, 6
        %v1565 = vor.u32 %v1561, %v1564
        %v1566 = vrot.slane %v1565, 4
        %v1568 = vshrl.u32 %v1402, 16
        %v1570 = vrot.slane %v1568, 5
        %v1571 = vshll.u32 %v1402, 16
        %v1573 = vrot.slane %v1571, 6
        %v1574 = vor.u32 %v1570, %v1573
        %v1575 = vsel %vm1445, %v1566, %v1574
        %v1576 = vrot.slane %v1574, 4
        %v1578 = vshrl.u32 %v1403, 16
        %v1580 = vrot.slane %v1578, 5
        %v1581 = vshll.u32 %v1403, 16
        %v1583 = vrot.slane %v1581, 6
        %v1584 = vor.u32 %v1580, %v1583
        %v1585 = vsel %vm1445, %v1576, %v1584
        %v1587 = vshrl.u32 %v1404, 16
        %v1589 = vrot.slane %v1587, 5
        %v1590 = vshll.u32 %v1404, 16
        %v1592 = vrot.slane %v1590, 6
        %v1593 = vor.u32 %v1589, %v1592
        %v1594 = vrot.slane %v1593, 4
        %v1596 = vshrl.u32 %v1405, 16
        %v1598 = vrot.slane %v1596, 5
        %v1599 = vshll.u32 %v1405, 16
        %v1601 = vrot.slane %v1599, 6
        %v1602 = vor.u32 %v1598, %v1601
        %v1603 = vsel %vm1445, %v1594, %v1602
        %v1604 = vrot.slane %v1602, 4
        %v1606 = vshrl.u32 %v1406, 16
        %v1608 = vrot.slane %v1606, 5
        %v1609 = vshll.u32 %v1406, 16
        %v1611 = vrot.slane %v1609, 6
        %v1612 = vor.u32 %v1608, %v1611
        %v1613 = vsel %vm1445, %v1604, %v1612
        %v1615 = vshrl.u32 %v1407, 16
        %v1617 = vrot.slane %v1615, 5
        %v1618 = vshll.u32 %v1407, 16
        %v1620 = vrot.slane %v1618, 6
        %v1621 = vor.u32 %v1617, %v1620
        %v1622 = vrot.slane %v1621, 4
        %v1624 = vshrl.u32 %v1408, 16
        %v1626 = vrot.slane %v1624, 5
        %v1627 = vshll.u32 %v1408, 16
        %v1629 = vrot.slane %v1627, 6
        %v1630 = vor.u32 %v1626, %v1629
        %v1631 = vsel %vm1445, %v1622, %v1630
        %v1632 = vrot.slane %v1630, 4
        %v1634 = vshrl.u32 %v1409, 16
        %v1636 = vrot.slane %v1634, 5
        %v1637 = vshll.u32 %v1409, 16
        %v1639 = vrot.slane %v1637, 6
        %v1640 = vor.u32 %v1636, %v1639
        %v1641 = vsel %vm1445, %v1632, %v1640
        %v1643 = vshrl.u32 %v1410, 16
        %v1645 = vrot.slane %v1643, 5
        %v1646 = vshll.u32 %v1410, 16
        %v1648 = vrot.slane %v1646, 6
        %v1649 = vor.u32 %v1645, %v1648
        %v1650 = vrot.slane %v1649, 4
        %v1652 = vshrl.u32 %v1411, 16
        %v1654 = vrot.slane %v1652, 5
        %v1655 = vshll.u32 %v1411, 16
        %v1657 = vrot.slane %v1655, 6
        %v1658 = vor.u32 %v1654, %v1657
        %v1659 = vsel %vm1445, %v1650, %v1658
        %v1660 = vrot.slane %v1658, 4
        %v1662 = vshrl.u32 %v1412, 16
        %v1664 = vrot.slane %v1662, 5
        %v1665 = vshll.u32 %v1412, 16
        %v1667 = vrot.slane %v1665, 6
        %v1668 = vor.u32 %v1664, %v1667
        %v1669 = vsel %vm1445, %v1660, %v1668
        %v1671 = vshrl.u32 %v1413, 16
        %v1673 = vrot.slane %v1671, 5
        %v1674 = vshll.u32 %v1413, 16
        %v1676 = vrot.slane %v1674, 6
        %v1677 = vor.u32 %v1673, %v1676
        %v1678 = vrot.slane %v1677, 4
        %v1680 = vshrl.u32 %v1414, 16
        %v1682 = vrot.slane %v1680, 5
        %v1683 = vshll.u32 %v1414, 16
        %v1685 = vrot.slane %v1683, 6
        %v1686 = vor.u32 %v1682, %v1685
        %v1687 = vsel %vm1445, %v1678, %v1686
        %v1688 = vrot.slane %v1686, 4
        %v1690 = vshrl.u32 %v1415, 16
        %v1692 = vrot.slane %v1690, 5
        %v1693 = vshll.u32 %v1415, 16
        %v1695 = vrot.slane %v1693, 6
        %v1696 = vor.u32 %v1692, %v1695
        %v1697 = vsel %vm1445, %v1688, %v1696
        %v1699 = vshrl.u32 %v1416, 16
        %v1701 = vrot.slane %v1699, 5
        %v1702 = vshll.u32 %v1416, 16
        %v1704 = vrot.slane %v1702, 6
        %v1705 = vor.u32 %v1701, %v1704
        %v1706 = vrot.slane %v1705, 4
        %v1708 = vshrl.u32 %v1417, 16
        %v1710 = vrot.slane %v1708, 5
        %v1711 = vshll.u32 %v1417, 16
        %v1713 = vrot.slane %v1711, 6
        %v1714 = vor.u32 %v1710, %v1713
        %v1715 = vsel %vm1445, %v1706, %v1714
        %v1716 = vrot.slane %v1714, 4
        %v1718 = vshrl.u32 %v1418, 16
        %v1720 = vrot.slane %v1718, 5
        %v1721 = vshll.u32 %v1418, 16
        %v1723 = vrot.slane %v1721, 6
        %v1724 = vor.u32 %v1720, %v1723
        %v1725 = vsel %vm1445, %v1716, %v1724
        %v1727 = vshrl.u32 %v1419, 16
        %v1729 = vrot.slane %v1727, 5
        %v1730 = vshll.u32 %v1419, 16
        %v1732 = vrot.slane %v1730, 6
        %v1733 = vor.u32 %v1729, %v1732
        %v1734 = vrot.slane %v1733, 4
        %v1736 = vshrl.u32 %v1420, 16
        %v1738 = vrot.slane %v1736, 5
        %v1739 = vshll.u32 %v1420, 16
        %v1741 = vrot.slane %v1739, 6
        %v1742 = vor.u32 %v1738, %v1741
        %v1743 = vsel %vm1445, %v1734, %v1742
        %v1744 = vrot.slane %v1742, 4
        %v1746 = vshrl.u32 %v1421, 16
        %v1748 = vrot.slane %v1746, 5
        %v1749 = vshll.u32 %v1421, 16
        %v1751 = vrot.slane %v1749, 6
        %v1752 = vor.u32 %v1748, %v1751
        %v1753 = vsel %vm1445, %v1744, %v1752
        %v1755 = vshrl.u32 %v1422, 16
        %v1757 = vrot.slane %v1755, 5
        %v1758 = vshll.u32 %v1422, 16
        %v1760 = vrot.slane %v1758, 6
        %v1761 = vor.u32 %v1757, %v1760
        %v1762 = vrot.slane %v1761, 4
        %v1764 = vshrl.u32 %v1423, 16
        %v1766 = vrot.slane %v1764, 5
        %v1767 = vshll.u32 %v1423, 16
        %v1769 = vrot.slane %v1767, 6
        %v1770 = vor.u32 %v1766, %v1769
        %v1771 = vsel %vm1445, %v1762, %v1770
        %v1772 = vrot.slane %v1770, 4
        %v1774 = vshrl.u32 %v1424, 16
        %v1776 = vrot.slane %v1774, 5
        %v1777 = vshll.u32 %v1424, 16
        %v1779 = vrot.slane %v1777, 6
        %v1780 = vor.u32 %v1776, %v1779
        %v1781 = vsel %vm1445, %v1772, %v1780
        %v1783 = vshrl.u32 %v1425, 16
        %v1785 = vrot.slane %v1783, 5
        %v1786 = vshll.u32 %v1425, 16
        %v1788 = vrot.slane %v1786, 6
        %v1789 = vor.u32 %v1785, %v1788
        %v1790 = vrot.slane %v1789, 4
        %v1792 = vshrl.u32 %v1426, 16
        %v1794 = vrot.slane %v1792, 5
        %v1795 = vshll.u32 %v1426, 16
        %v1797 = vrot.slane %v1795, 6
        %v1798 = vor.u32 %v1794, %v1797
        %v1799 = vsel %vm1445, %v1790, %v1798
        %v1800 = vrot.slane %v1798, 4
        %v1802 = vshrl.u32 %v1427, 16
        %v1804 = vrot.slane %v1802, 5
        %v1805 = vshll.u32 %v1427, 16
        %v1807 = vrot.slane %v1805, 6
        %v1808 = vor.u32 %v1804, %v1807
        %v1809 = vsel %vm1445, %v1800, %v1808
        %v1811 = vshrl.u32 %v1428, 16
        %v1813 = vrot.slane %v1811, 5
        %v1814 = vshll.u32 %v1428, 16
        %v1816 = vrot.slane %v1814, 6
        %v1817 = vor.u32 %v1813, %v1816
        %v1818 = vrot.slane %v1817, 4
        %v1820 = vshrl.u32 %v1429, 16
        %v1822 = vrot.slane %v1820, 5
        %v1823 = vshll.u32 %v1429, 16
        %v1825 = vrot.slane %v1823, 6
        %v1826 = vor.u32 %v1822, %v1825
        %v1827 = vsel %vm1445, %v1818, %v1826
        %v1828 = vrot.slane %v1826, 4
        %v1830 = vshrl.u32 %v1430, 16
        %v1832 = vrot.slane %v1830, 5
        %v1833 = vshll.u32 %v1430, 16
        %v1835 = vrot.slane %v1833, 6
        %v1836 = vor.u32 %v1832, %v1835
        %v1837 = vsel %vm1445, %v1828, %v1836
        %v1839 = vshrl.u32 %v1431, 16
        %v1841 = vrot.slane %v1839, 5
        %v1842 = vshll.u32 %v1431, 16
        %v1844 = vrot.slane %v1842, 6
        %v1845 = vor.u32 %v1841, %v1844
        %v1846 = vrot.slane %v1845, 4
        %v1848 = vshrl.u32 %v1432, 16
        %v1850 = vrot.slane %v1848, 5
        %v1851 = vshll.u32 %v1432, 16
        %v1853 = vrot.slane %v1851, 6
        %v1854 = vor.u32 %v1850, %v1853
        %v1855 = vsel %vm1445, %v1846, %v1854
        %v1856 = vrot.slane %v1854, 4
        %v1858 = vshrl.u32 %v1433, 16
        %v1860 = vrot.slane %v1858, 5
        %v1861 = vshll.u32 %v1433, 16
        %v1863 = vrot.slane %v1861, 6
        %v1864 = vor.u32 %v1860, %v1863
        %v1865 = vsel %vm1445, %v1856, %v1864
        %v1867 = vshrl.u32 %v1434, 16
        %v1869 = vrot.slane %v1867, 5
        %v1870 = vshll.u32 %v1434, 16
        %v1872 = vrot.slane %v1870, 6
        %v1873 = vor.u32 %v1869, %v1872
        %v1874 = vrot.slane %v1873, 4
        %v1876 = vshrl.u32 %v1435, 16
        %v1878 = vrot.slane %v1876, 5
        %v1879 = vshll.u32 %v1435, 16
        %v1881 = vrot.slane %v1879, 6
        %v1882 = vor.u32 %v1878, %v1881
        %v1883 = vsel %vm1445, %v1874, %v1882
        %v1884 = vrot.slane %v1882, 4
        %v1886 = vshrl.u32 %v1436, 16
        %v1888 = vrot.slane %v1886, 5
        %v1889 = vshll.u32 %v1436, 16
        %v1891 = vrot.slane %v1889, 6
        %v1892 = vor.u32 %v1888, %v1891
        %v1893 = vsel %vm1445, %v1884, %v1892
        %v1895 = vshrl.u32 %v1437, 16
        %v1897 = vrot.slane %v1895, 5
        %v1898 = vshll.u32 %v1437, 16
        %v1900 = vrot.slane %v1898, 6
        %v1901 = vor.u32 %v1897, %v1900
        %v1902 = vrot.slane %v1901, 4
        %v1904 = vshrl.u32 %v1438, 16
        %v1906 = vrot.slane %v1904, 5
        %v1907 = vshll.u32 %v1438, 16
        %v1909 = vrot.slane %v1907, 6
        %v1910 = vor.u32 %v1906, %v1909
        %v1911 = vsel %vm1445, %v1902, %v1910
        %v1912 = vrot.slane %v1910, 4
        %v1914 = vshrl.u32 %v1439, 16
        %v1916 = vrot.slane %v1914, 5
        %v1917 = vshll.u32 %v1439, 16
        %v1919 = vrot.slane %v1917, 6
        %v1920 = vor.u32 %v1916, %v1919
        %v1921 = vsel %vm1445, %v1912, %v1920
        %v1923 = vshrl.u32 %v1440, 16
        %v1925 = vrot.slane %v1923, 5
        %v1926 = vshll.u32 %v1440, 16
        %v1928 = vrot.slane %v1926, 6
        %v1929 = vor.u32 %v1925, %v1928
        %v1930 = vrot.slane %v1929, 4
        %v1932 = vshrl.u32 %v1441, 16
        %v1934 = vrot.slane %v1932, 5
        %v1935 = vshll.u32 %v1441, 16
        %v1937 = vrot.slane %v1935, 6
        %v1938 = vor.u32 %v1934, %v1937
        %v1939 = vsel %vm1445, %v1930, %v1938
        %v1940 = vrot.slane %v1938, 4
        %v1942 = vshrl.u32 %v1442, 16
        %v1944 = vrot.slane %v1942, 5
        %v1945 = vshll.u32 %v1442, 16
        %v1947 = vrot.slane %v1945, 6
        %v1948 = vor.u32 %v1944, %v1947
        %v1949 = vsel %vm1445, %v1940, %v1948
        %v1950 = vld [vmem:[#allocation2 + $0x48] sm:$0xc]
        %v1951 = vld [vmem:[#allocation2 + $0x54] sm:$0xc]
        %v1952 = vld [vmem:[#allocation2 + $0x60] sm:$0xc]
        %v1953 = vld [vmem:[#allocation2 + $0x6c] sm:$0xc]
        %v1954 = vld [vmem:[#allocation2 + $0x78] sm:$0xc]
        %v1955 = vld [vmem:[#allocation2 + $0x84] sm:$0xc]
        %v1956 = vld [vmem:[#allocation2 + $0x90] sm:$0xc]
        %v1957 = vld [vmem:[#allocation2 + $0x9c] sm:$0xc]
        %v1958 = vld [vmem:[#allocation2 + $0xa8] sm:$0xc]
        %v1959 = vld [vmem:[#allocation2 + $0xb4] sm:$0xc]
        %v1960 = vld [vmem:[#allocation2 + $0xc0] sm:$0xc]
        %v1961 = vld [vmem:[#allocation2 + $0xcc] sm:$0xc]
        %v1962 = vld [vmem:[#allocation2 + $0xd8] sm:$0xc]
        %v1963 = vld [vmem:[#allocation2 + $0xe4] sm:$0xc]
        %v1964 = vld [vmem:[#allocation2 + $0xf0] sm:$0xc]
        %v1965 = vld [vmem:[#allocation2 + $0xfc] sm:$0xc]
        %v1966 = vld [vmem:[#allocation2 + $0x108] sm:$0xc]
        %v1967 = vld [vmem:[#allocation2 + $0x114] sm:$0xc]
        %v2016 = vrot.slane %v1950, 6
        %v2017 = vrot.slane %v2016, 4
        %v2018 = vrot.slane %v1390, 6
        %v2019 = vsel %vm1211, %v2017, %v2018
        %v2020 = vrot.slane %v2018, 4
        %v2021 = vrot.slane %v1391, 6
        %v2022 = vsel %vm1211, %v2020, %v2021
        %v2023 = vrot.slane %v1951, 6
        %v2024 = vrot.slane %v2023, 4
        %v2025 = vrot.slane %v1393, 6
        %v2026 = vsel %vm1211, %v2024, %v2025
        %v2027 = vrot.slane %v2025, 4
        %v2028 = vrot.slane %v1394, 6
        %v2029 = vsel %vm1211, %v2027, %v2028
        %v2030 = vrot.slane %v1952, 6
        %v2031 = vrot.slane %v2030, 4
        %v2032 = vrot.slane %v1396, 6
        %v2033 = vsel %vm1211, %v2031, %v2032
        %v2034 = vrot.slane %v2032, 4
        %v2035 = vrot.slane %v1397, 6
        %v2036 = vsel %vm1211, %v2034, %v2035
        %v2037 = vrot.slane %v1953, 6
        %v2038 = vrot.slane %v2037, 4
        %v2039 = vrot.slane %v1399, 6
        %v2040 = vsel %vm1211, %v2038, %v2039
        %v2041 = vrot.slane %v2039, 4
        %v2042 = vrot.slane %v1400, 6
        %v2043 = vsel %vm1211, %v2041, %v2042
        %v2044 = vrot.slane %v1954, 6
        %v2045 = vrot.slane %v2044, 4
        %v2046 = vrot.slane %v1402, 6
        %v2047 = vsel %vm1211, %v2045, %v2046
        %v2048 = vrot.slane %v2046, 4
        %v2049 = vrot.slane %v1403, 6
        %v2050 = vsel %vm1211, %v2048, %v2049
        %v2051 = vrot.slane %v1955, 6
        %v2052 = vrot.slane %v2051, 4
        %v2053 = vrot.slane %v1405, 6
        %v2054 = vsel %vm1211, %v2052, %v2053
        %v2055 = vrot.slane %v2053, 4
        %v2056 = vrot.slane %v1406, 6
        %v2057 = vsel %vm1211, %v2055, %v2056
        %v2058 = vrot.slane %v1956, 6
        %v2059 = vrot.slane %v2058, 4
        %v2060 = vrot.slane %v1408, 6
        %v2061 = vsel %vm1211, %v2059, %v2060
        %v2062 = vrot.slane %v2060, 4
        %v2063 = vrot.slane %v1409, 6
        %v2064 = vsel %vm1211, %v2062, %v2063
        %v2065 = vrot.slane %v1957, 6
        %v2066 = vrot.slane %v2065, 4
        %v2067 = vrot.slane %v1411, 6
        %v2068 = vsel %vm1211, %v2066, %v2067
        %v2069 = vrot.slane %v2067, 4
        %v2070 = vrot.slane %v1412, 6
        %v2071 = vsel %vm1211, %v2069, %v2070
        %v2072 = vrot.slane %v1958, 6
        %v2073 = vrot.slane %v2072, 4
        %v2074 = vrot.slane %v1414, 6
        %v2075 = vsel %vm1211, %v2073, %v2074
        %v2076 = vrot.slane %v2074, 4
        %v2077 = vrot.slane %v1415, 6
        %v2078 = vsel %vm1211, %v2076, %v2077
        %v2079 = vrot.slane %v1959, 6
        %v2080 = vrot.slane %v2079, 4
        %v2081 = vrot.slane %v1417, 6
        %v2082 = vsel %vm1211, %v2080, %v2081
        %v2083 = vrot.slane %v2081, 4
        %v2084 = vrot.slane %v1418, 6
        %v2085 = vsel %vm1211, %v2083, %v2084
        %v2086 = vrot.slane %v1960, 6
        %v2087 = vrot.slane %v2086, 4
        %v2088 = vrot.slane %v1420, 6
        %v2089 = vsel %vm1211, %v2087, %v2088
        %v2090 = vrot.slane %v2088, 4
        %v2091 = vrot.slane %v1421, 6
        %v2092 = vsel %vm1211, %v2090, %v2091
        %v2093 = vrot.slane %v1961, 6
        %v2094 = vrot.slane %v2093, 4
        %v2095 = vrot.slane %v1423, 6
        %v2096 = vsel %vm1211, %v2094, %v2095
        %v2097 = vrot.slane %v2095, 4
        %v2098 = vrot.slane %v1424, 6
        %v2099 = vsel %vm1211, %v2097, %v2098
        %v2100 = vrot.slane %v1962, 6
        %v2101 = vrot.slane %v2100, 4
        %v2102 = vrot.slane %v1426, 6
        %v2103 = vsel %vm1211, %v2101, %v2102
        %v2104 = vrot.slane %v2102, 4
        %v2105 = vrot.slane %v1427, 6
        %v2106 = vsel %vm1211, %v2104, %v2105
        %v2107 = vrot.slane %v1963, 6
        %v2108 = vrot.slane %v2107, 4
        %v2109 = vrot.slane %v1429, 6
        %v2110 = vsel %vm1211, %v2108, %v2109
        %v2111 = vrot.slane %v2109, 4
        %v2112 = vrot.slane %v1430, 6
        %v2113 = vsel %vm1211, %v2111, %v2112
        %v2114 = vrot.slane %v1964, 6
        %v2115 = vrot.slane %v2114, 4
        %v2116 = vrot.slane %v1432, 6
        %v2117 = vsel %vm1211, %v2115, %v2116
        %v2118 = vrot.slane %v2116, 4
        %v2119 = vrot.slane %v1433, 6
        %v2120 = vsel %vm1211, %v2118, %v2119
        %v2121 = vrot.slane %v1965, 6
        %v2122 = vrot.slane %v2121, 4
        %v2123 = vrot.slane %v1435, 6
        %v2124 = vsel %vm1211, %v2122, %v2123
        %v2125 = vrot.slane %v2123, 4
        %v2126 = vrot.slane %v1436, 6
        %v2127 = vsel %vm1211, %v2125, %v2126
        %v2128 = vunpack.c.l.b16 %v1463
        %v2129 = vunpack.c.l.b16 %v1473
        %v2130 = vunpack.c.l.b16 %v1491
        %v2131 = vunpack.c.l.b16 %v1501
        %v2132 = vunpack.c.l.b16 %v1519
        %v2133 = vunpack.c.l.b16 %v1529
        %v2134 = vunpack.c.l.b16 %v1547
        %v2135 = vunpack.c.l.b16 %v1557
        %v2136 = vunpack.c.l.b16 %v1575
        %v2137 = vunpack.c.l.b16 %v1585
        %v2138 = vunpack.c.l.b16 %v1603
        %v2139 = vunpack.c.l.b16 %v1613
        %v2140 = vunpack.c.l.b16 %v1631
        %v2141 = vunpack.c.l.b16 %v1641
        %v2142 = vunpack.c.l.b16 %v1659
        %v2143 = vunpack.c.l.b16 %v1669
        %v2144 = vunpack.c.l.b16 %v1687
        %v2145 = vunpack.c.l.b16 %v1697
        %v2146 = vunpack.c.l.b16 %v1715
        %v2147 = vunpack.c.l.b16 %v1725
        %v2148 = vunpack.c.l.b16 %v1743
        %v2149 = vunpack.c.l.b16 %v1753
        %v2150 = vunpack.c.l.b16 %v1771
        %v2151 = vunpack.c.l.b16 %v1781
        %v2152 = vunpack.c.l.b16 %v1799
        %v2153 = vunpack.c.l.b16 %v1809
        %v2154 = vunpack.c.l.b16 %v1827
        %v2155 = vunpack.c.l.b16 %v1837
        %v2156 = vunpack.c.l.b16 %v1855
        %v2157 = vunpack.c.l.b16 %v1865
        %v2158 = vunpack.c.l.b16 %v1883
        %v2159 = vunpack.c.l.b16 %v1893
        %v2160 = vpack.c.b16 %v2129, %v2128
        %v2161 = vpack.c.b16 %v2131, %v2130
        %v2162 = vpack.c.b16 %v2133, %v2132
        %v2163 = vpack.c.b16 %v2135, %v2134
        %v2164 = vpack.c.b16 %v2137, %v2136
        %v2165 = vpack.c.b16 %v2139, %v2138
        %v2166 = vpack.c.b16 %v2141, %v2140
        %v2167 = vpack.c.b16 %v2143, %v2142
        %v2168 = vpack.c.b16 %v2145, %v2144
        %v2169 = vpack.c.b16 %v2147, %v2146
        %v2170 = vpack.c.b16 %v2149, %v2148
        %v2171 = vpack.c.b16 %v2151, %v2150
        %v2172 = vpack.c.b16 %v2153, %v2152
        %v2173 = vpack.c.b16 %v2155, %v2154
        %v2174 = vpack.c.b16 %v2157, %v2156
        %v2175 = vpack.c.b16 %v2159, %v2158
        %v2176 = vunpack.c.l.b16 %v1911
        %v2177 = vunpack.c.l.b16 %v1921
        %v2178 = vpack.c.b16 %v2177, %v2176
        %2179 = vrot.lane.b32.xlu0 %v2161, 32
        %v2180 = vpop.permute.xlu0 %2179
        %2181 = vrot.lane.b32.xlu0 %v2162, 32
        %v2182 = vpop.permute.xlu0 %2181
        %2183 = vrot.lane.b32.xlu0 %v2163, 32
        %v2184 = vpop.permute.xlu0 %2183
        %2185 = vrot.lane.b32.xlu0 %v2164, 32
        %v2186 = vpop.permute.xlu0 %2185
        %2187 = vrot.lane.b32.xlu0 %v2165, 32
        %v2188 = vpop.permute.xlu0 %2187
        %2189 = vrot.lane.b32.xlu0 %v2166, 32
        %v2190 = vpop.permute.xlu0 %2189
        %2191 = vrot.lane.b32.xlu0 %v2167, 32
        %v2192 = vpop.permute.xlu0 %2191
        %2193 = vrot.lane.b32.xlu0 %v2168, 32
        %v2194 = vpop.permute.xlu0 %2193
        %2195 = vrot.lane.b32.xlu0 %v2169, 32
        %v2196 = vpop.permute.xlu0 %2195
        %2197 = vrot.lane.b32.xlu0 %v2170, 32
        %v2198 = vpop.permute.xlu0 %2197
        %2199 = vrot.lane.b32.xlu0 %v2171, 32
        %v2200 = vpop.permute.xlu0 %2199
        %2201 = vrot.lane.b32.xlu0 %v2172, 32
        %v2202 = vpop.permute.xlu0 %2201
        %2203 = vrot.lane.b32.xlu0 %v2173, 32
        %v2204 = vpop.permute.xlu0 %2203
        %2205 = vrot.lane.b32.xlu0 %v2174, 32
        %v2206 = vpop.permute.xlu0 %2205
        %2207 = vrot.lane.b32.xlu0 %v2175, 32
        %v2208 = vpop.permute.xlu0 %2207
        %2209 = vrot.lane.b32.xlu0 %v2178, 32
        %v2210 = vpop.permute.xlu0 %2209
        %v2211 = vunpack.c.l.b16 %v1939
        %v2212 = vunpack.c.l.b16 %v1949
        %v2213 = vpack.c.b16 %v2212, %v2211
        %2214 = vrot.lane.b32.xlu0 %v2162, 64
        %v2215 = vpop.permute.xlu0 %2214
        %2216 = vrot.lane.b32.xlu0 %v2163, 64
        %v2217 = vpop.permute.xlu0 %2216
        %2218 = vrot.lane.b32.xlu0 %v2164, 64
        %v2219 = vpop.permute.xlu0 %2218
        %2220 = vrot.lane.b32.xlu0 %v2165, 64
        %v2221 = vpop.permute.xlu0 %2220
        %2222 = vrot.lane.b32.xlu0 %v2166, 64
        %v2223 = vpop.permute.xlu0 %2222
        %2224 = vrot.lane.b32.xlu0 %v2167, 64
        %v2225 = vpop.permute.xlu0 %2224
        %2226 = vrot.lane.b32.xlu0 %v2168, 64
        %v2227 = vpop.permute.xlu0 %2226
        %2228 = vrot.lane.b32.xlu0 %v2169, 64
        %v2229 = vpop.permute.xlu0 %2228
        %2230 = vrot.lane.b32.xlu0 %v2170, 64
        %v2231 = vpop.permute.xlu0 %2230
        %2232 = vrot.lane.b32.xlu0 %v2171, 64
        %v2233 = vpop.permute.xlu0 %2232
        %2234 = vrot.lane.b32.xlu0 %v2172, 64
        %v2235 = vpop.permute.xlu0 %2234
        %2236 = vrot.lane.b32.xlu0 %v2173, 64
        %v2237 = vpop.permute.xlu0 %2236
        %2238 = vrot.lane.b32.xlu0 %v2174, 64
        %v2239 = vpop.permute.xlu0 %2238
        %2240 = vrot.lane.b32.xlu0 %v2175, 64
        %v2241 = vpop.permute.xlu0 %2240
        %2242 = vrot.lane.b32.xlu0 %v2178, 64
        %v2243 = vpop.permute.xlu0 %2242
        %2244 = vrot.lane.b32.xlu0 %v2213, 64
        %v2245 = vpop.permute.xlu0 %2244
        %v2246 = vunpack.c.l.b16 %v2019
        %v2247 = vunpack.c.l.b16 %v2022
        %v2248 = vunpack.c.l.b16 %v2026
        %v2249 = vunpack.c.l.b16 %v2029
        %v2250 = vunpack.c.l.b16 %v2033
        %v2251 = vunpack.c.l.b16 %v2036
        %v2252 = vunpack.c.l.b16 %v2040
        %v2253 = vunpack.c.l.b16 %v2043
        %v2254 = vunpack.c.l.b16 %v2047
        %v2255 = vunpack.c.l.b16 %v2050
        %v2256 = vunpack.c.l.b16 %v2054
        %v2257 = vunpack.c.l.b16 %v2057
        %v2258 = vunpack.c.l.b16 %v2061
        %v2259 = vunpack.c.l.b16 %v2064
        %v2260 = vunpack.c.l.b16 %v2068
        %v2261 = vunpack.c.l.b16 %v2071
        %v2262 = vunpack.c.l.b16 %v2075
        %v2263 = vunpack.c.l.b16 %v2078
        %v2264 = vunpack.c.l.b16 %v2082
        %v2265 = vunpack.c.l.b16 %v2085
        %v2266 = vunpack.c.l.b16 %v2089
        %v2267 = vunpack.c.l.b16 %v2092
        %v2268 = vunpack.c.l.b16 %v2096
        %v2269 = vunpack.c.l.b16 %v2099
        %v2270 = vunpack.c.l.b16 %v2103
        %v2271 = vunpack.c.l.b16 %v2106
        %v2272 = vunpack.c.l.b16 %v2110
        %v2273 = vunpack.c.l.b16 %v2113
        %v2274 = vunpack.c.l.b16 %v2117
        %v2275 = vunpack.c.l.b16 %v2120
        %v2276 = vunpack.c.l.b16 %v2124
        %v2277 = vunpack.c.l.b16 %v2127
        %v2278 = vpack.c.b16 %v2247, %v2246
        %v2279 = vpack.c.b16 %v2249, %v2248
        %v2280 = vpack.c.b16 %v2251, %v2250
        %v2281 = vpack.c.b16 %v2253, %v2252
        %v2282 = vpack.c.b16 %v2255, %v2254
        %v2283 = vpack.c.b16 %v2257, %v2256
        %v2284 = vpack.c.b16 %v2259, %v2258
        %v2285 = vpack.c.b16 %v2261, %v2260
        %v2286 = vpack.c.b16 %v2263, %v2262
        %v2287 = vpack.c.b16 %v2265, %v2264
        %v2288 = vpack.c.b16 %v2267, %v2266
        %v2289 = vpack.c.b16 %v2269, %v2268
        %v2290 = vpack.c.b16 %v2271, %v2270
        %v2291 = vpack.c.b16 %v2273, %v2272
        %v2292 = vpack.c.b16 %v2275, %v2274
        %v2293 = vpack.c.b16 %v2277, %v2276
        %2294 = vrot.lane.b32.xlu0 %v2278, 96
        %v2295 = vpop.permute.xlu0 %2294
        %2296 = vrot.lane.b32.xlu0 %v2279, 96
        %v2297 = vpop.permute.xlu0 %2296
        %2298 = vrot.lane.b32.xlu0 %v2280, 96
        %v2299 = vpop.permute.xlu0 %2298
        %2300 = vrot.lane.b32.xlu0 %v2281, 96
        %v2301 = vpop.permute.xlu0 %2300
        %2302 = vrot.lane.b32.xlu0 %v2282, 96
        %v2303 = vpop.permute.xlu0 %2302
        %2304 = vrot.lane.b32.xlu0 %v2283, 96
        %v2305 = vpop.permute.xlu0 %2304
        %2306 = vrot.lane.b32.xlu0 %v2284, 96
        %v2307 = vpop.permute.xlu0 %2306
        %2308 = vrot.lane.b32.xlu0 %v2285, 96
        %v2309 = vpop.permute.xlu0 %2308
        %2310 = vrot.lane.b32.xlu0 %v2286, 96
        %v2311 = vpop.permute.xlu0 %2310
        %2312 = vrot.lane.b32.xlu0 %v2287, 96
        %v2313 = vpop.permute.xlu0 %2312
        %2314 = vrot.lane.b32.xlu0 %v2288, 96
        %v2315 = vpop.permute.xlu0 %2314
        %2316 = vrot.lane.b32.xlu0 %v2289, 96
        %v2317 = vpop.permute.xlu0 %2316
        %2318 = vrot.lane.b32.xlu0 %v2290, 96
        %v2319 = vpop.permute.xlu0 %2318
        %2320 = vrot.lane.b32.xlu0 %v2291, 96
        %v2321 = vpop.permute.xlu0 %2320
        %2322 = vrot.lane.b32.xlu0 %v2292, 96
        %v2323 = vpop.permute.xlu0 %2322
        %2324 = vrot.lane.b32.xlu0 %v2293, 96
        %v2325 = vpop.permute.xlu0 %2324
        %vm2326 = vcmask 261120
        %v2329 = vsel %vm2326, %v2160, %v2180
        %v2332 = vsel %vm2326, %v2161, %v2182
        %v2335 = vsel %vm2326, %v2162, %v2184
        %v2338 = vsel %vm2326, %v2163, %v2186
        %v2341 = vsel %vm2326, %v2164, %v2188
        %v2344 = vsel %vm2326, %v2165, %v2190
        %v2347 = vsel %vm2326, %v2166, %v2192
        %v2350 = vsel %vm2326, %v2167, %v2194
        %v2353 = vsel %vm2326, %v2168, %v2196
        %v2356 = vsel %vm2326, %v2169, %v2198
        %v2359 = vsel %vm2326, %v2170, %v2200
        %v2362 = vsel %vm2326, %v2171, %v2202
        %v2365 = vsel %vm2326, %v2172, %v2204
        %v2368 = vsel %vm2326, %v2173, %v2206
        %v2371 = vsel %vm2326, %v2174, %v2208
        %v2374 = vsel %vm2326, %v2175, %v2210
        %vm2375 = vcmask 523264
        %v2377 = vsel %vm2375, %v2329, %v2215
        %v2379 = vsel %vm2375, %v2332, %v2217
        %v2381 = vsel %vm2375, %v2335, %v2219
        %v2383 = vsel %vm2375, %v2338, %v2221
        %v2385 = vsel %vm2375, %v2341, %v2223
        %v2387 = vsel %vm2375, %v2344, %v2225
        %v2389 = vsel %vm2375, %v2347, %v2227
        %v2391 = vsel %vm2375, %v2350, %v2229
        %v2393 = vsel %vm2375, %v2353, %v2231
        %v2395 = vsel %vm2375, %v2356, %v2233
        %v2397 = vsel %vm2375, %v2359, %v2235
        %v2399 = vsel %vm2375, %v2362, %v2237
        %v2401 = vsel %vm2375, %v2365, %v2239
        %v2403 = vsel %vm2375, %v2368, %v2241
        %v2405 = vsel %vm2375, %v2371, %v2243
        %v2407 = vsel %vm2375, %v2374, %v2245
        %vm2408 = vcmask 785408
        %v2410 = vsel %vm2408, %v2377, %v2295
        %v2413 = vsel %vm2408, %v2379, %v2297
        %v2416 = vsel %vm2408, %v2381, %v2299
        %v2419 = vsel %vm2408, %v2383, %v2301
        %v2422 = vsel %vm2408, %v2385, %v2303
        %v2425 = vsel %vm2408, %v2387, %v2305
        %v2428 = vsel %vm2408, %v2389, %v2307
        %v2431 = vsel %vm2408, %v2391, %v2309
        %v2434 = vsel %vm2408, %v2393, %v2311
        %v2437 = vsel %vm2408, %v2395, %v2313
        %v2440 = vsel %vm2408, %v2397, %v2315
        %v2443 = vsel %vm2408, %v2399, %v2317
        %v2446 = vsel %vm2408, %v2401, %v2319
        %v2449 = vsel %vm2408, %v2403, %v2321
        %v2452 = vsel %vm2408, %v2405, %v2323
        %v2455 = vsel %vm2408, %v2407, %v2325
        %2457 = vst [vmem:[#allocation3] sm:$0xff] %v2410
        %2458 = vst [vmem:[#allocation3 + $0x18] sm:$0xff] %v2413
        %2459 = vst [vmem:[#allocation3 + $0x30] sm:$0xff] %v2416
        %2460 = vst [vmem:[#allocation3 + $0x48] sm:$0xff] %v2419
        %2461 = vst [vmem:[#allocation3 + $0x60] sm:$0xff] %v2422
        %2462 = vst [vmem:[#allocation3 + $0x78] sm:$0xff] %v2425
        %2463 = vst [vmem:[#allocation3 + $0x90] sm:$0xff] %v2428
        %2464 = vst [vmem:[#allocation3 + $0xa8] sm:$0xff] %v2431
        %2465 = vst [vmem:[#allocation3 + $0xc0] sm:$0xff] %v2434
        %2466 = vst [vmem:[#allocation3 + $0xd8] sm:$0xff] %v2437
        %2467 = vst [vmem:[#allocation3 + $0xf0] sm:$0xff] %v2440
        %2468 = vst [vmem:[#allocation3 + $0x108] sm:$0xff] %v2443
        %2469 = vst [vmem:[#allocation3 + $0x120] sm:$0xff] %v2446
        %2470 = vst [vmem:[#allocation3 + $0x138] sm:$0xff] %v2449
        %2471 = vst [vmem:[#allocation3 + $0x150] sm:$0xff] %v2452
        %2472 = vst [vmem:[#allocation3 + $0x168] sm:$0xff] %v2455
        %v2476 = vrot.slane %v1966, 6
        %v2477 = vrot.slane %v2476, 4
        %v2478 = vrot.slane %v1438, 6
        %v2479 = vsel %vm1211, %v2477, %v2478
        %v2480 = vrot.slane %v2478, 4
        %v2481 = vrot.slane %v1439, 6
        %v2482 = vsel %vm1211, %v2480, %v2481
        %v2486 = vrot.slane %v1967, 6
        %v2487 = vrot.slane %v2486, 4
        %v2488 = vrot.slane %v1441, 6
        %v2489 = vsel %vm1211, %v2487, %v2488
        %v2490 = vrot.slane %v2488, 4
        %v2491 = vrot.slane %v1442, 6
        %v2492 = vsel %vm1211, %v2490, %v2491
        %v2493 = vld [vmem:[#allocation2 + $0x48] sm:$0xc]
        %v2494 = vld [vmem:[#allocation2 + $0x4c] sm:$0xf]
        %v2495 = vld [vmem:[#allocation2 + $0x50] sm:$0x7]
        %v2496 = vld [vmem:[#allocation2 + $0x54] sm:$0xc]
        %v2497 = vld [vmem:[#allocation2 + $0x58] sm:$0xf]
        %v2498 = vld [vmem:[#allocation2 + $0x5c] sm:$0x7]
        %v2499 = vld [vmem:[#allocation2 + $0x60] sm:$0xc]
        %v2500 = vld [vmem:[#allocation2 + $0x64] sm:$0xf]
        %v2501 = vld [vmem:[#allocation2 + $0x68] sm:$0x7]
        %v2502 = vld [vmem:[#allocation2 + $0x6c] sm:$0xc]
        %v2503 = vld [vmem:[#allocation2 + $0x70] sm:$0xf]
        %v2504 = vld [vmem:[#allocation2 + $0x74] sm:$0x7]
        %v2505 = vld [vmem:[#allocation2 + $0x78] sm:$0xc]
        %v2506 = vld [vmem:[#allocation2 + $0x7c] sm:$0xf]
        %v2507 = vld [vmem:[#allocation2 + $0x80] sm:$0x7]
        %v2508 = vld [vmem:[#allocation2 + $0x84] sm:$0xc]
        %v2509 = vld [vmem:[#allocation2 + $0x88] sm:$0xf]
        %v2510 = vld [vmem:[#allocation2 + $0x8c] sm:$0x7]
        %v2511 = vld [vmem:[#allocation2 + $0x90] sm:$0xc]
        %v2512 = vld [vmem:[#allocation2 + $0x94] sm:$0xf]
        %v2513 = vld [vmem:[#allocation2 + $0x98] sm:$0x7]
        %v2514 = vld [vmem:[#allocation2 + $0x9c] sm:$0xc]
        %v2515 = vld [vmem:[#allocation2 + $0xa0] sm:$0xf]
        %v2516 = vld [vmem:[#allocation2 + $0xa4] sm:$0x7]
        %v2517 = vld [vmem:[#allocation2 + $0xa8] sm:$0xc]
        %v2518 = vld [vmem:[#allocation2 + $0xac] sm:$0xf]
        %v2519 = vld [vmem:[#allocation2 + $0xb0] sm:$0x7]
        %v2520 = vld [vmem:[#allocation2 + $0xb4] sm:$0xc]
        %v2521 = vld [vmem:[#allocation2 + $0xb8] sm:$0xf]
        %v2522 = vld [vmem:[#allocation2 + $0xbc] sm:$0x7]
        %v2523 = vld [vmem:[#allocation2 + $0xc0] sm:$0xc]
        %v2524 = vld [vmem:[#allocation2 + $0xc4] sm:$0xf]
        %v2525 = vld [vmem:[#allocation2 + $0xc8] sm:$0x7]
        %v2526 = vld [vmem:[#allocation2 + $0xcc] sm:$0xc]
        %v2527 = vld [vmem:[#allocation2 + $0xd0] sm:$0xf]
        %v2528 = vld [vmem:[#allocation2 + $0xd4] sm:$0x7]
        %v2529 = vld [vmem:[#allocation2 + $0xd8] sm:$0xc]
        %v2530 = vld [vmem:[#allocation2 + $0xdc] sm:$0xf]
        %v2531 = vld [vmem:[#allocation2 + $0xe0] sm:$0x7]
        %v2532 = vld [vmem:[#allocation2 + $0xe4] sm:$0xc]
        %v2533 = vld [vmem:[#allocation2 + $0xe8] sm:$0xf]
        %v2534 = vld [vmem:[#allocation2 + $0xec] sm:$0x7]
        %v2535 = vld [vmem:[#allocation2 + $0xf0] sm:$0xc]
        %v2536 = vld [vmem:[#allocation2 + $0xf4] sm:$0xf]
        %v2537 = vld [vmem:[#allocation2 + $0xf8] sm:$0x7]
        %v2538 = vld [vmem:[#allocation2 + $0xfc] sm:$0xc]
        %v2539 = vld [vmem:[#allocation2 + $0x100] sm:$0xf]
        %v2540 = vld [vmem:[#allocation2 + $0x104] sm:$0x7]
        %v2541 = vld [vmem:[#allocation2 + $0x108] sm:$0xc]
        %v2542 = vld [vmem:[#allocation2 + $0x10c] sm:$0xf]
        %v2543 = vld [vmem:[#allocation2 + $0x110] sm:$0x7]
        %v2544 = vld [vmem:[#allocation2 + $0x114] sm:$0xc]
        %v2545 = vld [vmem:[#allocation2 + $0x118] sm:$0xf]
        %v2546 = vld [vmem:[#allocation2 + $0x11c] sm:$0x7]
        %vm2547 = vsmask.f32 1280
        %vm2548 = vsmask.f32 5392
        %vm2549 = vmor %vm2547, %vm2548
        %v2551 = vshrl.u32 %v2493, 16
        %v2553 = vrot.slane %v2551, 6
        %v2554 = vshll.u32 %v2493, 16
        %v2556 = vrot.slane %v2554, 7
        %v2557 = vor.u32 %v2553, %v2556
        %v2558 = vrot.slane %v2557, 4
        %v2560 = vshrl.u32 %v2494, 16
        %v2562 = vrot.slane %v2560, 6
        %v2563 = vshll.u32 %v2494, 16
        %v2565 = vrot.slane %v2563, 7
        %v2566 = vor.u32 %v2562, %v2565
        %v2567 = vsel %vm2549, %v2558, %v2566
        %v2568 = vrot.slane %v2566, 4
        %v2570 = vshrl.u32 %v2495, 16
        %v2572 = vrot.slane %v2570, 6
        %v2573 = vshll.u32 %v2495, 16
        %v2575 = vrot.slane %v2573, 7
        %v2576 = vor.u32 %v2572, %v2575
        %v2577 = vsel %vm2549, %v2568, %v2576
        %v2579 = vshrl.u32 %v2496, 16
        %v2581 = vrot.slane %v2579, 6
        %v2582 = vshll.u32 %v2496, 16
        %v2584 = vrot.slane %v2582, 7
        %v2585 = vor.u32 %v2581, %v2584
        %v2586 = vrot.slane %v2585, 4
        %v2588 = vshrl.u32 %v2497, 16
        %v2590 = vrot.slane %v2588, 6
        %v2591 = vshll.u32 %v2497, 16
        %v2593 = vrot.slane %v2591, 7
        %v2594 = vor.u32 %v2590, %v2593
        %v2595 = vsel %vm2549, %v2586, %v2594
        %v2596 = vrot.slane %v2594, 4
        %v2598 = vshrl.u32 %v2498, 16
        %v2600 = vrot.slane %v2598, 6
        %v2601 = vshll.u32 %v2498, 16
        %v2603 = vrot.slane %v2601, 7
        %v2604 = vor.u32 %v2600, %v2603
        %v2605 = vsel %vm2549, %v2596, %v2604
        %v2607 = vshrl.u32 %v2499, 16
        %v2609 = vrot.slane %v2607, 6
        %v2610 = vshll.u32 %v2499, 16
        %v2612 = vrot.slane %v2610, 7
        %v2613 = vor.u32 %v2609, %v2612
        %v2614 = vrot.slane %v2613, 4
        %v2616 = vshrl.u32 %v2500, 16
        %v2618 = vrot.slane %v2616, 6
        %v2619 = vshll.u32 %v2500, 16
        %v2621 = vrot.slane %v2619, 7
        %v2622 = vor.u32 %v2618, %v2621
        %v2623 = vsel %vm2549, %v2614, %v2622
        %v2624 = vrot.slane %v2622, 4
        %v2626 = vshrl.u32 %v2501, 16
        %v2628 = vrot.slane %v2626, 6
        %v2629 = vshll.u32 %v2501, 16
        %v2631 = vrot.slane %v2629, 7
        %v2632 = vor.u32 %v2628, %v2631
        %v2633 = vsel %vm2549, %v2624, %v2632
        %v2635 = vshrl.u32 %v2502, 16
        %v2637 = vrot.slane %v2635, 6
        %v2638 = vshll.u32 %v2502, 16
        %v2640 = vrot.slane %v2638, 7
        %v2641 = vor.u32 %v2637, %v2640
        %v2642 = vrot.slane %v2641, 4
        %v2644 = vshrl.u32 %v2503, 16
        %v2646 = vrot.slane %v2644, 6
        %v2647 = vshll.u32 %v2503, 16
        %v2649 = vrot.slane %v2647, 7
        %v2650 = vor.u32 %v2646, %v2649
        %v2651 = vsel %vm2549, %v2642, %v2650
        %v2652 = vrot.slane %v2650, 4
        %v2654 = vshrl.u32 %v2504, 16
        %v2656 = vrot.slane %v2654, 6
        %v2657 = vshll.u32 %v2504, 16
        %v2659 = vrot.slane %v2657, 7
        %v2660 = vor.u32 %v2656, %v2659
        %v2661 = vsel %vm2549, %v2652, %v2660
        %v2663 = vshrl.u32 %v2505, 16
        %v2665 = vrot.slane %v2663, 6
        %v2666 = vshll.u32 %v2505, 16
        %v2668 = vrot.slane %v2666, 7
        %v2669 = vor.u32 %v2665, %v2668
        %v2670 = vrot.slane %v2669, 4
        %v2672 = vshrl.u32 %v2506, 16
        %v2674 = vrot.slane %v2672, 6
        %v2675 = vshll.u32 %v2506, 16
        %v2677 = vrot.slane %v2675, 7
        %v2678 = vor.u32 %v2674, %v2677
        %v2679 = vsel %vm2549, %v2670, %v2678
        %v2680 = vrot.slane %v2678, 4
        %v2682 = vshrl.u32 %v2507, 16
        %v2684 = vrot.slane %v2682, 6
        %v2685 = vshll.u32 %v2507, 16
        %v2687 = vrot.slane %v2685, 7
        %v2688 = vor.u32 %v2684, %v2687
        %v2689 = vsel %vm2549, %v2680, %v2688
        %v2691 = vshrl.u32 %v2508, 16
        %v2693 = vrot.slane %v2691, 6
        %v2694 = vshll.u32 %v2508, 16
        %v2696 = vrot.slane %v2694, 7
        %v2697 = vor.u32 %v2693, %v2696
        %v2698 = vrot.slane %v2697, 4
        %v2700 = vshrl.u32 %v2509, 16
        %v2702 = vrot.slane %v2700, 6
        %v2703 = vshll.u32 %v2509, 16
        %v2705 = vrot.slane %v2703, 7
        %v2706 = vor.u32 %v2702, %v2705
        %v2707 = vsel %vm2549, %v2698, %v2706
        %v2708 = vrot.slane %v2706, 4
        %v2710 = vshrl.u32 %v2510, 16
        %v2712 = vrot.slane %v2710, 6
        %v2713 = vshll.u32 %v2510, 16
        %v2715 = vrot.slane %v2713, 7
        %v2716 = vor.u32 %v2712, %v2715
        %v2717 = vsel %vm2549, %v2708, %v2716
        %v2719 = vshrl.u32 %v2511, 16
        %v2721 = vrot.slane %v2719, 6
        %v2722 = vshll.u32 %v2511, 16
        %v2724 = vrot.slane %v2722, 7
        %v2725 = vor.u32 %v2721, %v2724
        %v2726 = vrot.slane %v2725, 4
        %v2728 = vshrl.u32 %v2512, 16
        %v2730 = vrot.slane %v2728, 6
        %v2731 = vshll.u32 %v2512, 16
        %v2733 = vrot.slane %v2731, 7
        %v2734 = vor.u32 %v2730, %v2733
        %v2735 = vsel %vm2549, %v2726, %v2734
        %v2736 = vrot.slane %v2734, 4
        %v2738 = vshrl.u32 %v2513, 16
        %v2740 = vrot.slane %v2738, 6
        %v2741 = vshll.u32 %v2513, 16
        %v2743 = vrot.slane %v2741, 7
        %v2744 = vor.u32 %v2740, %v2743
        %v2745 = vsel %vm2549, %v2736, %v2744
        %v2747 = vshrl.u32 %v2514, 16
        %v2749 = vrot.slane %v2747, 6
        %v2750 = vshll.u32 %v2514, 16
        %v2752 = vrot.slane %v2750, 7
        %v2753 = vor.u32 %v2749, %v2752
        %v2754 = vrot.slane %v2753, 4
        %v2756 = vshrl.u32 %v2515, 16
        %v2758 = vrot.slane %v2756, 6
        %v2759 = vshll.u32 %v2515, 16
        %v2761 = vrot.slane %v2759, 7
        %v2762 = vor.u32 %v2758, %v2761
        %v2763 = vsel %vm2549, %v2754, %v2762
        %v2764 = vrot.slane %v2762, 4
        %v2766 = vshrl.u32 %v2516, 16
        %v2768 = vrot.slane %v2766, 6
        %v2769 = vshll.u32 %v2516, 16
        %v2771 = vrot.slane %v2769, 7
        %v2772 = vor.u32 %v2768, %v2771
        %v2773 = vsel %vm2549, %v2764, %v2772
        %v2775 = vshrl.u32 %v2517, 16
        %v2777 = vrot.slane %v2775, 6
        %v2778 = vshll.u32 %v2517, 16
        %v2780 = vrot.slane %v2778, 7
        %v2781 = vor.u32 %v2777, %v2780
        %v2782 = vrot.slane %v2781, 4
        %v2784 = vshrl.u32 %v2518, 16
        %v2786 = vrot.slane %v2784, 6
        %v2787 = vshll.u32 %v2518, 16
        %v2789 = vrot.slane %v2787, 7
        %v2790 = vor.u32 %v2786, %v2789
        %v2791 = vsel %vm2549, %v2782, %v2790
        %v2792 = vrot.slane %v2790, 4
        %v2794 = vshrl.u32 %v2519, 16
        %v2796 = vrot.slane %v2794, 6
        %v2797 = vshll.u32 %v2519, 16
        %v2799 = vrot.slane %v2797, 7
        %v2800 = vor.u32 %v2796, %v2799
        %v2801 = vsel %vm2549, %v2792, %v2800
        %v2803 = vshrl.u32 %v2520, 16
        %v2805 = vrot.slane %v2803, 6
        %v2806 = vshll.u32 %v2520, 16
        %v2808 = vrot.slane %v2806, 7
        %v2809 = vor.u32 %v2805, %v2808
        %v2810 = vrot.slane %v2809, 4
        %v2812 = vshrl.u32 %v2521, 16
        %v2814 = vrot.slane %v2812, 6
        %v2815 = vshll.u32 %v2521, 16
        %v2817 = vrot.slane %v2815, 7
        %v2818 = vor.u32 %v2814, %v2817
        %v2819 = vsel %vm2549, %v2810, %v2818
        %v2820 = vrot.slane %v2818, 4
        %v2822 = vshrl.u32 %v2522, 16
        %v2824 = vrot.slane %v2822, 6
        %v2825 = vshll.u32 %v2522, 16
        %v2827 = vrot.slane %v2825, 7
        %v2828 = vor.u32 %v2824, %v2827
        %v2829 = vsel %vm2549, %v2820, %v2828
        %v2831 = vshrl.u32 %v2523, 16
        %v2833 = vrot.slane %v2831, 6
        %v2834 = vshll.u32 %v2523, 16
        %v2836 = vrot.slane %v2834, 7
        %v2837 = vor.u32 %v2833, %v2836
        %v2838 = vrot.slane %v2837, 4
        %v2840 = vshrl.u32 %v2524, 16
        %v2842 = vrot.slane %v2840, 6
        %v2843 = vshll.u32 %v2524, 16
        %v2845 = vrot.slane %v2843, 7
        %v2846 = vor.u32 %v2842, %v2845
        %v2847 = vsel %vm2549, %v2838, %v2846
        %v2848 = vrot.slane %v2846, 4
        %v2850 = vshrl.u32 %v2525, 16
        %v2852 = vrot.slane %v2850, 6
        %v2853 = vshll.u32 %v2525, 16
        %v2855 = vrot.slane %v2853, 7
        %v2856 = vor.u32 %v2852, %v2855
        %v2857 = vsel %vm2549, %v2848, %v2856
        %v2859 = vshrl.u32 %v2526, 16
        %v2861 = vrot.slane %v2859, 6
        %v2862 = vshll.u32 %v2526, 16
        %v2864 = vrot.slane %v2862, 7
        %v2865 = vor.u32 %v2861, %v2864
        %v2866 = vrot.slane %v2865, 4
        %v2868 = vshrl.u32 %v2527, 16
        %v2870 = vrot.slane %v2868, 6
        %v2871 = vshll.u32 %v2527, 16
        %v2873 = vrot.slane %v2871, 7
        %v2874 = vor.u32 %v2870, %v2873
        %v2875 = vsel %vm2549, %v2866, %v2874
        %v2876 = vrot.slane %v2874, 4
        %v2878 = vshrl.u32 %v2528, 16
        %v2880 = vrot.slane %v2878, 6
        %v2881 = vshll.u32 %v2528, 16
        %v2883 = vrot.slane %v2881, 7
        %v2884 = vor.u32 %v2880, %v2883
        %v2885 = vsel %vm2549, %v2876, %v2884
        %v2887 = vshrl.u32 %v2529, 16
        %v2889 = vrot.slane %v2887, 6
        %v2890 = vshll.u32 %v2529, 16
        %v2892 = vrot.slane %v2890, 7
        %v2893 = vor.u32 %v2889, %v2892
        %v2894 = vrot.slane %v2893, 4
        %v2896 = vshrl.u32 %v2530, 16
        %v2898 = vrot.slane %v2896, 6
        %v2899 = vshll.u32 %v2530, 16
        %v2901 = vrot.slane %v2899, 7
        %v2902 = vor.u32 %v2898, %v2901
        %v2903 = vsel %vm2549, %v2894, %v2902
        %v2904 = vrot.slane %v2902, 4
        %v2906 = vshrl.u32 %v2531, 16
        %v2908 = vrot.slane %v2906, 6
        %v2909 = vshll.u32 %v2531, 16
        %v2911 = vrot.slane %v2909, 7
        %v2912 = vor.u32 %v2908, %v2911
        %v2913 = vsel %vm2549, %v2904, %v2912
        %v2915 = vshrl.u32 %v2532, 16
        %v2917 = vrot.slane %v2915, 6
        %v2918 = vshll.u32 %v2532, 16
        %v2920 = vrot.slane %v2918, 7
        %v2921 = vor.u32 %v2917, %v2920
        %v2922 = vrot.slane %v2921, 4
        %v2924 = vshrl.u32 %v2533, 16
        %v2926 = vrot.slane %v2924, 6
        %v2927 = vshll.u32 %v2533, 16
        %v2929 = vrot.slane %v2927, 7
        %v2930 = vor.u32 %v2926, %v2929
        %v2931 = vsel %vm2549, %v2922, %v2930
        %v2932 = vrot.slane %v2930, 4
        %v2934 = vshrl.u32 %v2534, 16
        %v2936 = vrot.slane %v2934, 6
        %v2937 = vshll.u32 %v2534, 16
        %v2939 = vrot.slane %v2937, 7
        %v2940 = vor.u32 %v2936, %v2939
        %v2941 = vsel %vm2549, %v2932, %v2940
        %v2943 = vshrl.u32 %v2535, 16
        %v2945 = vrot.slane %v2943, 6
        %v2946 = vshll.u32 %v2535, 16
        %v2948 = vrot.slane %v2946, 7
        %v2949 = vor.u32 %v2945, %v2948
        %v2950 = vrot.slane %v2949, 4
        %v2952 = vshrl.u32 %v2536, 16
        %v2954 = vrot.slane %v2952, 6
        %v2955 = vshll.u32 %v2536, 16
        %v2957 = vrot.slane %v2955, 7
        %v2958 = vor.u32 %v2954, %v2957
        %v2959 = vsel %vm2549, %v2950, %v2958
        %v2960 = vrot.slane %v2958, 4
        %v2962 = vshrl.u32 %v2537, 16
        %v2964 = vrot.slane %v2962, 6
        %v2965 = vshll.u32 %v2537, 16
        %v2967 = vrot.slane %v2965, 7
        %v2968 = vor.u32 %v2964, %v2967
        %v2969 = vsel %vm2549, %v2960, %v2968
        %v2971 = vshrl.u32 %v2538, 16
        %v2973 = vrot.slane %v2971, 6
        %v2974 = vshll.u32 %v2538, 16
        %v2976 = vrot.slane %v2974, 7
        %v2977 = vor.u32 %v2973, %v2976
        %v2978 = vrot.slane %v2977, 4
        %v2980 = vshrl.u32 %v2539, 16
        %v2982 = vrot.slane %v2980, 6
        %v2983 = vshll.u32 %v2539, 16
        %v2985 = vrot.slane %v2983, 7
        %v2986 = vor.u32 %v2982, %v2985
        %v2987 = vsel %vm2549, %v2978, %v2986
        %v2988 = vrot.slane %v2986, 4
        %v2990 = vshrl.u32 %v2540, 16
        %v2992 = vrot.slane %v2990, 6
        %v2993 = vshll.u32 %v2540, 16
        %v2995 = vrot.slane %v2993, 7
        %v2996 = vor.u32 %v2992, %v2995
        %v2997 = vsel %vm2549, %v2988, %v2996
        %v2999 = vshrl.u32 %v2541, 16
        %v3001 = vrot.slane %v2999, 6
        %v3002 = vshll.u32 %v2541, 16
        %v3004 = vrot.slane %v3002, 7
        %v3005 = vor.u32 %v3001, %v3004
        %v3006 = vrot.slane %v3005, 4
        %v3008 = vshrl.u32 %v2542, 16
        %v3010 = vrot.slane %v3008, 6
        %v3011 = vshll.u32 %v2542, 16
        %v3013 = vrot.slane %v3011, 7
        %v3014 = vor.u32 %v3010, %v3013
        %v3015 = vsel %vm2549, %v3006, %v3014
        %v3016 = vrot.slane %v3014, 4
        %v3018 = vshrl.u32 %v2543, 16
        %v3020 = vrot.slane %v3018, 6
        %v3021 = vshll.u32 %v2543, 16
        %v3023 = vrot.slane %v3021, 7
        %v3024 = vor.u32 %v3020, %v3023
        %v3025 = vsel %vm2549, %v3016, %v3024
        %v3026 = vunpack.c.l.b16 %v2479
        %v3027 = vunpack.c.l.b16 %v2482
        %v3028 = vpack.c.b16 %v3027, %v3026
        %v3029 = vunpack.c.l.b16 %v2489
        %v3030 = vunpack.c.l.b16 %v2492
        %v3031 = vpack.c.b16 %v3030, %v3029
        %3032 = vrot.lane.b32.xlu0 %v2280, 32
        %v3033 = vpop.permute.xlu0 %3032
        %3034 = vrot.lane.b32.xlu0 %v2281, 32
        %v3035 = vpop.permute.xlu0 %3034
        %3036 = vrot.lane.b32.xlu0 %v2282, 32
        %v3037 = vpop.permute.xlu0 %3036
        %3038 = vrot.lane.b32.xlu0 %v2283, 32
        %v3039 = vpop.permute.xlu0 %3038
        %3040 = vrot.lane.b32.xlu0 %v2284, 32
        %v3041 = vpop.permute.xlu0 %3040
        %3042 = vrot.lane.b32.xlu0 %v2285, 32
        %v3043 = vpop.permute.xlu0 %3042
        %3044 = vrot.lane.b32.xlu0 %v2286, 32
        %v3045 = vpop.permute.xlu0 %3044
        %3046 = vrot.lane.b32.xlu0 %v2287, 32
        %v3047 = vpop.permute.xlu0 %3046
        %3048 = vrot.lane.b32.xlu0 %v2288, 32
        %v3049 = vpop.permute.xlu0 %3048
        %3050 = vrot.lane.b32.xlu0 %v2289, 32
        %v3051 = vpop.permute.xlu0 %3050
        %3052 = vrot.lane.b32.xlu0 %v2290, 32
        %v3053 = vpop.permute.xlu0 %3052
        %3054 = vrot.lane.b32.xlu0 %v2291, 32
        %v3055 = vpop.permute.xlu0 %3054
        %3056 = vrot.lane.b32.xlu0 %v2292, 32
        %v3057 = vpop.permute.xlu0 %3056
        %3058 = vrot.lane.b32.xlu0 %v2293, 32
        %v3059 = vpop.permute.xlu0 %3058
        %3060 = vrot.lane.b32.xlu0 %v3028, 32
        %v3061 = vpop.permute.xlu0 %3060
        %3062 = vrot.lane.b32.xlu0 %v3031, 32
        %v3063 = vpop.permute.xlu0 %3062
        %v3064 = vunpack.c.l.b16 %v2567
        %v3065 = vunpack.c.l.b16 %v2577
        %v3066 = vunpack.c.l.b16 %v2595
        %v3067 = vunpack.c.l.b16 %v2605
        %v3068 = vunpack.c.l.b16 %v2623
        %v3069 = vunpack.c.l.b16 %v2633
        %v3070 = vunpack.c.l.b16 %v2651
        %v3071 = vunpack.c.l.b16 %v2661
        %v3072 = vunpack.c.l.b16 %v2679
        %v3073 = vunpack.c.l.b16 %v2689
        %v3074 = vunpack.c.l.b16 %v2707
        %v3075 = vunpack.c.l.b16 %v2717
        %v3076 = vunpack.c.l.b16 %v2735
        %v3077 = vunpack.c.l.b16 %v2745
        %v3078 = vunpack.c.l.b16 %v2763
        %v3079 = vunpack.c.l.b16 %v2773
        %v3080 = vunpack.c.l.b16 %v2791
        %v3081 = vunpack.c.l.b16 %v2801
        %v3082 = vunpack.c.l.b16 %v2819
        %v3083 = vunpack.c.l.b16 %v2829
        %v3084 = vunpack.c.l.b16 %v2847
        %v3085 = vunpack.c.l.b16 %v2857
        %v3086 = vunpack.c.l.b16 %v2875
        %v3087 = vunpack.c.l.b16 %v2885
        %v3088 = vunpack.c.l.b16 %v2903
        %v3089 = vunpack.c.l.b16 %v2913
        %v3090 = vunpack.c.l.b16 %v2931
        %v3091 = vunpack.c.l.b16 %v2941
        %v3092 = vunpack.c.l.b16 %v2959
        %v3093 = vunpack.c.l.b16 %v2969
        %v3094 = vunpack.c.l.b16 %v2987
        %v3095 = vunpack.c.l.b16 %v2997
        %v3096 = vpack.c.b16 %v3065, %v3064
        %v3097 = vpack.c.b16 %v3067, %v3066
        %v3098 = vpack.c.b16 %v3069, %v3068
        %v3099 = vpack.c.b16 %v3071, %v3070
        %v3100 = vpack.c.b16 %v3073, %v3072
        %v3101 = vpack.c.b16 %v3075, %v3074
        %v3102 = vpack.c.b16 %v3077, %v3076
        %v3103 = vpack.c.b16 %v3079, %v3078
        %v3104 = vpack.c.b16 %v3081, %v3080
        %v3105 = vpack.c.b16 %v3083, %v3082
        %v3106 = vpack.c.b16 %v3085, %v3084
        %v3107 = vpack.c.b16 %v3087, %v3086
        %v3108 = vpack.c.b16 %v3089, %v3088
        %v3109 = vpack.c.b16 %v3091, %v3090
        %v3110 = vpack.c.b16 %v3093, %v3092
        %v3111 = vpack.c.b16 %v3095, %v3094
        %3112 = vrot.lane.b32.xlu0 %v3096, 64
        %v3113 = vpop.permute.xlu0 %3112
        %3114 = vrot.lane.b32.xlu0 %v3097, 64
        %v3115 = vpop.permute.xlu0 %3114
        %3116 = vrot.lane.b32.xlu0 %v3098, 64
        %v3117 = vpop.permute.xlu0 %3116
        %3118 = vrot.lane.b32.xlu0 %v3099, 64
        %v3119 = vpop.permute.xlu0 %3118
        %3120 = vrot.lane.b32.xlu0 %v3100, 64
        %v3121 = vpop.permute.xlu0 %3120
        %3122 = vrot.lane.b32.xlu0 %v3101, 64
        %v3123 = vpop.permute.xlu0 %3122
        %3124 = vrot.lane.b32.xlu0 %v3102, 64
        %v3125 = vpop.permute.xlu0 %3124
        %3126 = vrot.lane.b32.xlu0 %v3103, 64
        %v3127 = vpop.permute.xlu0 %3126
        %3128 = vrot.lane.b32.xlu0 %v3104, 64
        %v3129 = vpop.permute.xlu0 %3128
        %3130 = vrot.lane.b32.xlu0 %v3105, 64
        %v3131 = vpop.permute.xlu0 %3130
        %3132 = vrot.lane.b32.xlu0 %v3106, 64
        %v3133 = vpop.permute.xlu0 %3132
        %3134 = vrot.lane.b32.xlu0 %v3107, 64
        %v3135 = vpop.permute.xlu0 %3134
        %3136 = vrot.lane.b32.xlu0 %v3108, 64
        %v3137 = vpop.permute.xlu0 %3136
        %3138 = vrot.lane.b32.xlu0 %v3109, 64
        %v3139 = vpop.permute.xlu0 %3138
        %3140 = vrot.lane.b32.xlu0 %v3110, 64
        %v3141 = vpop.permute.xlu0 %3140
        %3142 = vrot.lane.b32.xlu0 %v3111, 64
        %v3143 = vpop.permute.xlu0 %3142
        %v3144 = vunpack.c.l.b16 %v3015
        %v3145 = vunpack.c.l.b16 %v3025
        %v3146 = vpack.c.b16 %v3145, %v3144
        %3147 = vrot.lane.b32.xlu0 %v3097, 96
        %v3148 = vpop.permute.xlu0 %3147
        %3149 = vrot.lane.b32.xlu0 %v3098, 96
        %v3150 = vpop.permute.xlu0 %3149
        %3151 = vrot.lane.b32.xlu0 %v3099, 96
        %v3152 = vpop.permute.xlu0 %3151
        %3153 = vrot.lane.b32.xlu0 %v3100, 96
        %v3154 = vpop.permute.xlu0 %3153
        %3155 = vrot.lane.b32.xlu0 %v3101, 96
        %v3156 = vpop.permute.xlu0 %3155
        %3157 = vrot.lane.b32.xlu0 %v3102, 96
        %v3158 = vpop.permute.xlu0 %3157
        %3159 = vrot.lane.b32.xlu0 %v3103, 96
        %v3160 = vpop.permute.xlu0 %3159
        %3161 = vrot.lane.b32.xlu0 %v3104, 96
        %v3162 = vpop.permute.xlu0 %3161
        %3163 = vrot.lane.b32.xlu0 %v3105, 96
        %v3164 = vpop.permute.xlu0 %3163
        %3165 = vrot.lane.b32.xlu0 %v3106, 96
        %v3166 = vpop.permute.xlu0 %3165
        %3167 = vrot.lane.b32.xlu0 %v3107, 96
        %v3168 = vpop.permute.xlu0 %3167
        %3169 = vrot.lane.b32.xlu0 %v3108, 96
        %v3170 = vpop.permute.xlu0 %3169
        %3171 = vrot.lane.b32.xlu0 %v3109, 96
        %v3172 = vpop.permute.xlu0 %3171
        %3173 = vrot.lane.b32.xlu0 %v3110, 96
        %v3174 = vpop.permute.xlu0 %3173
        %3175 = vrot.lane.b32.xlu0 %v3111, 96
        %v3176 = vpop.permute.xlu0 %3175
        %3177 = vrot.lane.b32.xlu0 %v3146, 96
        %v3178 = vpop.permute.xlu0 %3177
        %v3181 = vsel %vm2326, %v2279, %v3033
        %v3184 = vsel %vm2326, %v2280, %v3035
        %v3187 = vsel %vm2326, %v2281, %v3037
        %v3190 = vsel %vm2326, %v2282, %v3039
        %v3193 = vsel %vm2326, %v2283, %v3041
        %v3196 = vsel %vm2326, %v2284, %v3043
        %v3199 = vsel %vm2326, %v2285, %v3045
        %v3202 = vsel %vm2326, %v2286, %v3047
        %v3205 = vsel %vm2326, %v2287, %v3049
        %v3208 = vsel %vm2326, %v2288, %v3051
        %v3211 = vsel %vm2326, %v2289, %v3053
        %v3214 = vsel %vm2326, %v2290, %v3055
        %v3217 = vsel %vm2326, %v2291, %v3057
        %v3220 = vsel %vm2326, %v2292, %v3059
        %v3223 = vsel %vm2326, %v2293, %v3061
        %v3226 = vsel %vm2326, %v3028, %v3063
        %v3228 = vsel %vm2375, %v3181, %v3113
        %v3230 = vsel %vm2375, %v3184, %v3115
        %v3232 = vsel %vm2375, %v3187, %v3117
        %v3234 = vsel %vm2375, %v3190, %v3119
        %v3236 = vsel %vm2375, %v3193, %v3121
        %v3238 = vsel %vm2375, %v3196, %v3123
        %v3240 = vsel %vm2375, %v3199, %v3125
        %v3242 = vsel %vm2375, %v3202, %v3127
        %v3244 = vsel %vm2375, %v3205, %v3129
        %v3246 = vsel %vm2375, %v3208, %v3131
        %v3248 = vsel %vm2375, %v3211, %v3133
        %v3250 = vsel %vm2375, %v3214, %v3135
        %v3252 = vsel %vm2375, %v3217, %v3137
        %v3254 = vsel %vm2375, %v3220, %v3139
        %v3256 = vsel %vm2375, %v3223, %v3141
        %v3258 = vsel %vm2375, %v3226, %v3143
        %v3260 = vsel %vm2408, %v3228, %v3148
        %v3263 = vsel %vm2408, %v3230, %v3150
        %v3266 = vsel %vm2408, %v3232, %v3152
        %v3269 = vsel %vm2408, %v3234, %v3154
        %v3272 = vsel %vm2408, %v3236, %v3156
        %v3275 = vsel %vm2408, %v3238, %v3158
        %v3278 = vsel %vm2408, %v3240, %v3160
        %v3281 = vsel %vm2408, %v3242, %v3162
        %v3284 = vsel %vm2408, %v3244, %v3164
        %v3287 = vsel %vm2408, %v3246, %v3166
        %v3290 = vsel %vm2408, %v3248, %v3168
        %v3293 = vsel %vm2408, %v3250, %v3170
        %v3296 = vsel %vm2408, %v3252, %v3172
        %v3299 = vsel %vm2408, %v3254, %v3174
        %v3302 = vsel %vm2408, %v3256, %v3176
        %v3305 = vsel %vm2408, %v3258, %v3178
        %3307 = vst [vmem:[#allocation3 + $0x8] sm:$0xff] %v3260
        %3308 = vst [vmem:[#allocation3 + $0x20] sm:$0xff] %v3263
        %3309 = vst [vmem:[#allocation3 + $0x38] sm:$0xff] %v3266
        %3310 = vst [vmem:[#allocation3 + $0x50] sm:$0xff] %v3269
        %3311 = vst [vmem:[#allocation3 + $0x68] sm:$0xff] %v3272
        %3312 = vst [vmem:[#allocation3 + $0x80] sm:$0xff] %v3275
        %3313 = vst [vmem:[#allocation3 + $0x98] sm:$0xff] %v3278
        %3314 = vst [vmem:[#allocation3 + $0xb0] sm:$0xff] %v3281
        %3315 = vst [vmem:[#allocation3 + $0xc8] sm:$0xff] %v3284
        %3316 = vst [vmem:[#allocation3 + $0xe0] sm:$0xff] %v3287
        %3317 = vst [vmem:[#allocation3 + $0xf8] sm:$0xff] %v3290
        %3318 = vst [vmem:[#allocation3 + $0x110] sm:$0xff] %v3293
        %3319 = vst [vmem:[#allocation3 + $0x128] sm:$0xff] %v3296
        %3320 = vst [vmem:[#allocation3 + $0x140] sm:$0xff] %v3299
        %3321 = vst [vmem:[#allocation3 + $0x158] sm:$0xff] %v3302
        %3322 = vst [vmem:[#allocation3 + $0x170] sm:$0xff] %v3305
        %v3324 = vshrl.u32 %v2544, 16
        %v3326 = vrot.slane %v3324, 6
        %v3327 = vshll.u32 %v2544, 16
        %v3329 = vrot.slane %v3327, 7
        %v3330 = vor.u32 %v3326, %v3329
        %v3331 = vrot.slane %v3330, 4
        %v3333 = vshrl.u32 %v2545, 16
        %v3335 = vrot.slane %v3333, 6
        %v3336 = vshll.u32 %v2545, 16
        %v3338 = vrot.slane %v3336, 7
        %v3339 = vor.u32 %v3335, %v3338
        %v3340 = vsel %vm2549, %v3331, %v3339
        %v3341 = vrot.slane %v3339, 4
        %v3343 = vshrl.u32 %v2546, 16
        %v3345 = vrot.slane %v3343, 6
        %v3346 = vshll.u32 %v2546, 16
        %v3348 = vrot.slane %v3346, 7
        %v3349 = vor.u32 %v3345, %v3348
        %v3350 = vsel %vm2549, %v3341, %v3349
        %v3351 = vunpack.c.l.b16 %v3340
        %v3352 = vunpack.c.l.b16 %v3350
        %v3353 = vpack.c.b16 %v3352, %v3351
        %3370 = vst.msk [vmem:[#allocation3 + $0x10] sm:$0xff] %vm2326, %v3098
        %3371 = vst.msk [vmem:[#allocation3 + $0x28] sm:$0xff] %vm2326, %v3099
        %3372 = vst.msk [vmem:[#allocation3 + $0x40] sm:$0xff] %vm2326, %v3100
        %3373 = vst.msk [vmem:[#allocation3 + $0x58] sm:$0xff] %vm2326, %v3101
        %3374 = vst.msk [vmem:[#allocation3 + $0x70] sm:$0xff] %vm2326, %v3102
        %3375 = vst.msk [vmem:[#allocation3 + $0x88] sm:$0xff] %vm2326, %v3103
        %3376 = vst.msk [vmem:[#allocation3 + $0xa0] sm:$0xff] %vm2326, %v3104
        %3377 = vst.msk [vmem:[#allocation3 + $0xb8] sm:$0xff] %vm2326, %v3105
        %3378 = vst.msk [vmem:[#allocation3 + $0xd0] sm:$0xff] %vm2326, %v3106
        %3379 = vst.msk [vmem:[#allocation3 + $0xe8] sm:$0xff] %vm2326, %v3107
        %3380 = vst.msk [vmem:[#allocation3 + $0x100] sm:$0xff] %vm2326, %v3108
        %3381 = vst.msk [vmem:[#allocation3 + $0x118] sm:$0xff] %vm2326, %v3109
        %3382 = vst.msk [vmem:[#allocation3 + $0x130] sm:$0xff] %vm2326, %v3110
        %3383 = vst.msk [vmem:[#allocation3 + $0x148] sm:$0xff] %vm2326, %v3111
        %3384 = vst.msk [vmem:[#allocation3 + $0x160] sm:$0xff] %vm2326, %v3146
        %3385 = vst.msk [vmem:[#allocation3 + $0x178] sm:$0xff] %vm2326, %v3353
        %v3386 = vld [vmem:[#allocation3] sm:$0xff]
        %v3387 = vld [vmem:[#allocation3 + $0x8] sm:$0xff]
        %v3388 = vld [vmem:[#allocation3 + $0x10] sm:$0xff]
        %v3389 = vld [vmem:[#allocation3 + $0x18] sm:$0xff]
        %v3390 = vld [vmem:[#allocation3 + $0x20] sm:$0xff]
        %v3391 = vld [vmem:[#allocation3 + $0x28] sm:$0xff]
        %v3392 = vld [vmem:[#allocation3 + $0x30] sm:$0xff]
        %v3393 = vld [vmem:[#allocation3 + $0x38] sm:$0xff]
        %v3394 = vld [vmem:[#allocation3 + $0x40] sm:$0xff]
        %v3395 = vld [vmem:[#allocation3 + $0x48] sm:$0xff]
        %v3396 = vld [vmem:[#allocation3 + $0x50] sm:$0xff]
        %v3397 = vld [vmem:[#allocation3 + $0x58] sm:$0xff]
        %v3398 = vld [vmem:[#allocation3 + $0x60] sm:$0xff]
        %v3399 = vld [vmem:[#allocation3 + $0x68] sm:$0xff]
        %v3400 = vld [vmem:[#allocation3 + $0x70] sm:$0xff]
        %v3401 = vld [vmem:[#allocation3 + $0x78] sm:$0xff]
        %v3402 = vld [vmem:[#allocation3 + $0x80] sm:$0xff]
        %v3403 = vld [vmem:[#allocation3 + $0x88] sm:$0xff]
        %v3404 = vld [vmem:[#allocation3 + $0x90] sm:$0xff]
        %v3405 = vld [vmem:[#allocation3 + $0x98] sm:$0xff]
        %v3406 = vld [vmem:[#allocation3 + $0xa0] sm:$0xff]
        %v3407 = vld [vmem:[#allocation3 + $0xa8] sm:$0xff]
        %v3408 = vld [vmem:[#allocation3 + $0xb0] sm:$0xff]
        %v3409 = vld [vmem:[#allocation3 + $0xb8] sm:$0xff]
        %v3410 = vld [vmem:[#allocation3 + $0xc0] sm:$0xff]
        %v3411 = vld [vmem:[#allocation3 + $0xc8] sm:$0xff]
        %v3412 = vld [vmem:[#allocation3 + $0xd0] sm:$0xff]
        %v3413 = vld [vmem:[#allocation3 + $0xd8] sm:$0xff]
        %v3414 = vld [vmem:[#allocation3 + $0xe0] sm:$0xff]
        %v3415 = vld [vmem:[#allocation3 + $0xe8] sm:$0xff]
        %v3416 = vld [vmem:[#allocation3 + $0xf0] sm:$0xff]
        %v3417 = vld [vmem:[#allocation3 + $0xf8] sm:$0xff]
        %v3418 = vld [vmem:[#allocation3 + $0x100] sm:$0xff]
        %v3419 = vld [vmem:[#allocation3 + $0x108] sm:$0xff]
        %v3420 = vld [vmem:[#allocation3 + $0x110] sm:$0xff]
        %v3421 = vld [vmem:[#allocation3 + $0x118] sm:$0xff]
        %v3422 = vld [vmem:[#allocation3 + $0x120] sm:$0xff]
        %v3423 = vld [vmem:[#allocation3 + $0x128] sm:$0xff]
        %v3424 = vld [vmem:[#allocation3 + $0x130] sm:$0xff]
        %v3425 = vld [vmem:[#allocation3 + $0x138] sm:$0xff]
        %v3426 = vld [vmem:[#allocation3 + $0x140] sm:$0xff]
        %v3427 = vld [vmem:[#allocation3 + $0x148] sm:$0xff]
        %v3428 = vld [vmem:[#allocation3 + $0x150] sm:$0xff]
        %v3429 = vld [vmem:[#allocation3 + $0x158] sm:$0xff]
        %v3430 = vld [vmem:[#allocation3 + $0x160] sm:$0xff]
        %v3431 = vld [vmem:[#allocation3 + $0x168] sm:$0xff]
        %v3432 = vld [vmem:[#allocation3 + $0x170] sm:$0xff]
        %v3433 = vld [vmem:[#allocation3 + $0x178] sm:$0xff]
        %v3434 = vld [vmem:[#allocation12] sm:$0xf]
        %v3435 = vld [vmem:[#allocation12 + $0x4] sm:$0xf]
        %v3436 = vld [vmem:[#allocation12 + $0x8] sm:$0xf]
        %v3437 = vld [vmem:[#allocation12 + $0xc] sm:$0xf]
        %v3438 = vld [vmem:[#allocation12 + $0x10] sm:$0xf]
        %v3439 = vld [vmem:[#allocation12 + $0x14] sm:$0xf]
        %v3440 = vld [vmem:[#allocation12 + $0x18] sm:$0xf]
        %v3441 = vld [vmem:[#allocation12 + $0x1c] sm:$0xf]
        %v3442 = vld [vmem:[#allocation12 + $0x20] sm:$0xf]
        %v3443 = vld [vmem:[#allocation12 + $0x24] sm:$0xf]
        %v3444 = vld [vmem:[#allocation12 + $0x28] sm:$0xf]
        %v3445 = vld [vmem:[#allocation12 + $0x2c] sm:$0xf]
        %v3446 = vld [vmem:[#allocation12 + $0x30] sm:$0xf]
        %v3447 = vld [vmem:[#allocation12 + $0x34] sm:$0xf]
        %v3448 = vld [vmem:[#allocation12 + $0x38] sm:$0xf]
        %v3449 = vld [vmem:[#allocation12 + $0x3c] sm:$0xf]
        %v3450 = vld [vmem:[#allocation12 + $0x40] sm:$0xf]
        %v3451 = vld [vmem:[#allocation12 + $0x44] sm:$0xf]
        %v3452 = vld [vmem:[#allocation12 + $0x48] sm:$0xf]
        %v3453 = vld [vmem:[#allocation12 + $0x4c] sm:$0xf]
        %v3454 = vld [vmem:[#allocation12 + $0x50] sm:$0xf]
        %v3455 = vld [vmem:[#allocation12 + $0x54] sm:$0xf]
        %v3456 = vld [vmem:[#allocation12 + $0x58] sm:$0xf]
        %v3457 = vld [vmem:[#allocation12 + $0x5c] sm:$0xf]
        %v3458 = vld [vmem:[#allocation12 + $0x60] sm:$0xf]
        %v3459 = vld [vmem:[#allocation12 + $0x64] sm:$0xf]
        %v3460 = vld [vmem:[#allocation12 + $0x68] sm:$0xf]
        %v3461 = vld [vmem:[#allocation12 + $0x6c] sm:$0xf]
        %v3462 = vld [vmem:[#allocation12 + $0x70] sm:$0xf]
        %v3463 = vld [vmem:[#allocation12 + $0x74] sm:$0xf]
        %v3464 = vld [vmem:[#allocation12 + $0x78] sm:$0xf]
        %v3465 = vld [vmem:[#allocation12 + $0x7c] sm:$0xf]
        %v3466 = vld [vmem:[#allocation12 + $0x80] sm:$0xf]
        %v3467 = vld [vmem:[#allocation12 + $0x84] sm:$0xf]
        %v3468 = vld [vmem:[#allocation12 + $0x88] sm:$0xf]
        %v3469 = vld [vmem:[#allocation12 + $0x8c] sm:$0xf]
        %v3470 = vld [vmem:[#allocation12 + $0x90] sm:$0xf]
        %v3471 = vld [vmem:[#allocation12 + $0x94] sm:$0xf]
        %v3472 = vld [vmem:[#allocation13] sm:$0x1]
        %v3474 = vlaneseq
        %v3475 = vshrl.u32 %v3474, 7
        %v3476 = vsub.s32 0, %v3475
        %v3477 = vrot.slane %v3472, %v3476
        %v3517 = vunpack.c.l.b16 %v3434
        %v3518 = vunpack.c.l.b16 %v3435
        %v3519 = vunpack.c.l.b16 %v3436
        %v3520 = vunpack.c.l.b16 %v3437
        %v3521 = vunpack.c.l.b16 %v3438
        %v3522 = vunpack.c.l.b16 %v3439
        %v3523 = vunpack.c.l.b16 %v3440
        %v3524 = vunpack.c.l.b16 %v3441
        %v3525 = vunpack.c.l.b16 %v3442
        %v3526 = vunpack.c.l.b16 %v3443
        %v3527 = vunpack.c.l.b16 %v3444
        %v3528 = vunpack.c.l.b16 %v3445
        %v3529 = vunpack.c.l.b16 %v3446
        %v3530 = vunpack.c.l.b16 %v3447
        %v3531 = vunpack.c.l.b16 %v3448
        %v3532 = vunpack.c.l.b16 %v3449
        %v3533 = vunpack.c.l.b16 %v3450
        %v3534 = vunpack.c.l.b16 %v3451
        %v3535 = vunpack.c.l.b16 %v3452
        %v3536 = vunpack.c.l.b16 %v3453
        %v3537 = vunpack.c.l.b16 %v3454
        %v3538 = vunpack.c.l.b16 %v3455
        %v3539 = vunpack.c.l.b16 %v3456
        %v3540 = vunpack.c.l.b16 %v3457
        %v3541 = vunpack.c.l.b16 %v3458
        %v3542 = vunpack.c.l.b16 %v3459
        %v3543 = vunpack.c.l.b16 %v3460
        %v3544 = vunpack.c.l.b16 %v3461
        %v3545 = vunpack.c.l.b16 %v3462
        %v3546 = vunpack.c.l.b16 %v3463
        %v3547 = vunpack.c.l.b16 %v3464
        %v3548 = vunpack.c.l.b16 %v3465
        %v3549 = vunpack.c.l.b16 %v3466
        %v3550 = vunpack.c.l.b16 %v3467
        %v3551 = vunpack.c.l.b16 %v3468
        %v3552 = vunpack.c.l.b16 %v3469
        %v3553 = vunpack.c.l.b16 %v3470
        %v3554 = vunpack.c.l.b16 %v3471
        %v3555 = vpack.c.b16 %v3518, %v3517
        %v3556 = vpack.c.b16 %v3520, %v3519
        %v3557 = vpack.c.b16 %v3522, %v3521
        %v3558 = vpack.c.b16 %v3524, %v3523
        %v3559 = vpack.c.b16 %v3526, %v3525
        %v3560 = vpack.c.b16 %v3528, %v3527
        %v3561 = vpack.c.b16 %v3530, %v3529
        %v3562 = vpack.c.b16 %v3532, %v3531
        %v3563 = vpack.c.b16 %v3534, %v3533
        %v3564 = vpack.c.b16 %v3536, %v3535
        %v3565 = vpack.c.b16 %v3538, %v3537
        %v3566 = vpack.c.b16 %v3540, %v3539
        %v3567 = vpack.c.b16 %v3542, %v3541
        %v3568 = vpack.c.b16 %v3544, %v3543
        %v3569 = vpack.c.b16 %v3546, %v3545
        %v3570 = vpack.c.b16 %v3548, %v3547
        %v3571 = vpack.c.b16 %v3550, %v3549
        %v3572 = vpack.c.b16 %v3552, %v3551
        %v3573 = vpack.c.b16 %v3554, %v3553
        %vm3593 = vcmask 392192
        %v3595 = vsel %vm3593, %v3388, 0
        %v3598 = vsel %vm3593, %v3391, 0
        %v3601 = vsel %vm3593, %v3394, 0
        %v3604 = vsel %vm3593, %v3397, 0
        %v3607 = vsel %vm3593, %v3400, 0
        %v3610 = vsel %vm3593, %v3403, 0
        %v3613 = vsel %vm3593, %v3406, 0
        %v3616 = vsel %vm3593, %v3409, 0
        %v3619 = vsel %vm3593, %v3412, 0
        %v3622 = vsel %vm3593, %v3415, 0
        %v3625 = vsel %vm3593, %v3418, 0
        %v3628 = vsel %vm3593, %v3421, 0
        %v3631 = vsel %vm3593, %v3424, 0
        %v3634 = vsel %vm3593, %v3427, 0
        %v3637 = vsel %vm3593, %v3430, 0
        %v3640 = vsel %vm3593, %v3433, 0
        %3642 = vmatprep.subr.bf16.mxu0 0
        %3643 = vmatpush1.bf16.msra.mxu0 %v3555
        %3644 = vmatprep.subr.bf16.mxu0 0
        %3645 = vmatpush1.bf16.msra.mxu0 %v3556
        %3646 = vmatprep.subr.bf16.mxu0 0
        %3647 = vmatpush1.bf16.msra.mxu0 %v3557
        %3648 = vmatprep.subr.bf16.mxu0 0
        %3649 = vmatpush1.bf16.msra.mxu0 %v3558
        %3650 = vmatprep.subr.bf16.mxu0 0
        %3651 = vmatpush1.bf16.msra.mxu0 %v3559
        %3652 = vmatprep.subr.bf16.mxu0 0
        %3653 = vmatpush1.bf16.msra.mxu0 %v3560
        %3654 = vmatprep.subr.bf16.mxu0 0
        %3655 = vmatpush1.bf16.msra.mxu0 %v3561
        %3656 = vmatprep.subr.bf16.mxu0 0
        %3657 = vmatpush1.bf16.msra.mxu0 %v3562
        %3658 = vmatprep.subr.bf16.mxu0 0
        %3659 = vmatpush1.bf16.msra.mxu0 %v3563
        %3660 = vmatprep.subr.bf16.mxu0 0
        %3661 = vmatpush1.bf16.msra.mxu0 %v3564
        %3662 = vmatprep.subr.bf16.mxu0 0
        %3663 = vmatpush1.bf16.msra.mxu0 %v3565
        %3664 = vmatprep.subr.bf16.mxu0 0
        %3665 = vmatpush1.bf16.msra.mxu0 %v3566
        %3666 = vmatprep.subr.bf16.mxu0 0
        %3667 = vmatpush1.bf16.msra.mxu0 %v3567
        %3668 = vmatprep.subr.bf16.mxu0 0
        %3669 = vmatpush1.bf16.msra.mxu0 %v3568
        %3670 = vmatprep.subr.bf16.mxu0 0
        %3671 = vmatpush1.bf16.msra.mxu0 %v3569
        %3672 = vmatprep.subr.bf16.mxu0 0
        %3673 = vmatpush1.bf16.msra.mxu0 %v3570
        %3674 = vmatprep.mubr.bf16.mxu0 %v3387
        %3675 = vmatmul.mubr.bf16.gmra.mrb[0].mxu0 %v3386
        %v3676 = vpop.f32.mrb[0].mxu0
        %v3677 = vadd.f32 %v3477, %v3676
        %v3678 = vpop.f32.mrb[0].mxu0
        %v3679 = vpop.f32.mrb[0].mxu0
        %v3680 = vadd.f32 %v3477, %v3679
        %v3681 = vpop.f32.mrb[0].mxu0
        %3682 = vmatprep.mubr.bf16.mxu0 %v3390
        %3683 = vmatmul.mubr.bf16.gmra.mrb[0].mxu0 %v3389
        %v3684 = vpop.f32.mrb[0].mxu0
        %v3685 = vadd.f32 %v3477, %v3684
        %v3686 = vpop.f32.mrb[0].mxu0
        %v3687 = vpop.f32.mrb[0].mxu0
        %v3688 = vadd.f32 %v3477, %v3687
        %v3689 = vpop.f32.mrb[0].mxu0
        %3690 = vmatprep.mubr.bf16.mxu0 %v3393
        %3691 = vmatmul.mubr.bf16.gmra.mrb[0].mxu0 %v3392
        %v3692 = vpop.f32.mrb[0].mxu0
        %v3693 = vadd.f32 %v3477, %v3692
        %v3694 = vpop.f32.mrb[0].mxu0
        %v3695 = vpop.f32.mrb[0].mxu0
        %v3696 = vadd.f32 %v3477, %v3695
        %v3697 = vpop.f32.mrb[0].mxu0
        %3698 = vmatprep.mubr.bf16.mxu0 %v3396
        %3699 = vmatmul.mubr.bf16.gmra.mrb[0].mxu0 %v3395
        %v3700 = vpop.f32.mrb[0].mxu0
        %v3701 = vadd.f32 %v3477, %v3700
        %v3702 = vpop.f32.mrb[0].mxu0
        %v3703 = vpop.f32.mrb[0].mxu0
        %v3704 = vadd.f32 %v3477, %v3703
        %v3705 = vpop.f32.mrb[0].mxu0
        %3706 = vmatprep.mubr.bf16.mxu0 %v3399
        %3707 = vmatmul.mubr.bf16.gmra.mrb[0].mxu0 %v3398
        %v3708 = vpop.f32.mrb[0].mxu0
        %v3709 = vadd.f32 %v3477, %v3708
        %v3710 = vpop.f32.mrb[0].mxu0
        %v3711 = vpop.f32.mrb[0].mxu0
        %v3712 = vadd.f32 %v3477, %v3711
        %v3713 = vpop.f32.mrb[0].mxu0
        %3714 = vmatprep.mubr.bf16.mxu0 %v3402
        %3715 = vmatmul.mubr.bf16.gmra.mrb[0].mxu0 %v3401
        %v3716 = vpop.f32.mrb[0].mxu0
        %v3717 = vadd.f32 %v3477, %v3716
        %v3718 = vpop.f32.mrb[0].mxu0
        %v3719 = vpop.f32.mrb[0].mxu0
        %v3720 = vadd.f32 %v3477, %v3719
        %v3721 = vpop.f32.mrb[0].mxu0
        %3722 = vmatprep.mubr.bf16.mxu0 %v3405
        %3723 = vmatmul.mubr.bf16.gmra.mrb[0].mxu0 %v3404
        %v3724 = vpop.f32.mrb[0].mxu0
        %v3725 = vadd.f32 %v3477, %v3724
        %v3726 = vpop.f32.mrb[0].mxu0
        %v3727 = vpop.f32.mrb[0].mxu0
        %v3728 = vadd.f32 %v3477, %v3727
        %v3729 = vpop.f32.mrb[0].mxu0
        %3730 = vmatprep.mubr.bf16.mxu0 %v3408
        %3731 = vmatmul.mubr.bf16.gmra.mrb[0].mxu0 %v3407
        %v3732 = vpop.f32.mrb[0].mxu0
        %v3733 = vadd.f32 %v3477, %v3732
        %v3734 = vpop.f32.mrb[0].mxu0
        %v3735 = vpop.f32.mrb[0].mxu0
        %v3736 = vadd.f32 %v3477, %v3735
        %v3737 = vpop.f32.mrb[0].mxu0
        %3738 = vmatprep.mubr.bf16.mxu0 %v3411
        %3739 = vmatmul.mubr.bf16.gmra.mrb[0].mxu0 %v3410
        %v3740 = vpop.f32.mrb[0].mxu0
        %v3741 = vadd.f32 %v3477, %v3740
        %v3742 = vpop.f32.mrb[0].mxu0
        %v3743 = vpop.f32.mrb[0].mxu0
        %v3744 = vadd.f32 %v3477, %v3743
        %v3745 = vpop.f32.mrb[0].mxu0
        %3746 = vmatprep.mubr.bf16.mxu0 %v3414
        %3747 = vmatmul.mubr.bf16.gmra.mrb[0].mxu0 %v3413
        %v3748 = vpop.f32.mrb[0].mxu0
        %v3749 = vadd.f32 %v3477, %v3748
        %v3750 = vpop.f32.mrb[0].mxu0
        %v3751 = vpop.f32.mrb[0].mxu0
        %v3752 = vadd.f32 %v3477, %v3751
        %v3753 = vpop.f32.mrb[0].mxu0
        %3754 = vmatprep.mubr.bf16.mxu0 %v3417
        %3755 = vmatmul.mubr.bf16.gmra.mrb[0].mxu0 %v3416
        %v3756 = vpop.f32.mrb[0].mxu0
        %v3757 = vadd.f32 %v3477, %v3756
        %v3758 = vpop.f32.mrb[0].mxu0
        %v3759 = vpop.f32.mrb[0].mxu0
        %v3760 = vadd.f32 %v3477, %v3759
        %v3761 = vpop.f32.mrb[0].mxu0
        %3762 = vmatprep.mubr.bf16.mxu0 %v3420
        %3763 = vmatmul.mubr.bf16.gmra.mrb[0].mxu0 %v3419
        %v3764 = vpop.f32.mrb[0].mxu0
        %v3765 = vadd.f32 %v3477, %v3764
        %v3766 = vpop.f32.mrb[0].mxu0
        %v3767 = vpop.f32.mrb[0].mxu0
        %v3768 = vadd.f32 %v3477, %v3767
        %v3769 = vpop.f32.mrb[0].mxu0
        %3770 = vmatprep.mubr.bf16.mxu0 %v3423
        %3771 = vmatmul.mubr.bf16.gmra.mrb[0].mxu0 %v3422
        %v3772 = vpop.f32.mrb[0].mxu0
        %v3773 = vadd.f32 %v3477, %v3772
        %v3774 = vpop.f32.mrb[0].mxu0
        %v3775 = vpop.f32.mrb[0].mxu0
        %v3776 = vadd.f32 %v3477, %v3775
        %v3777 = vpop.f32.mrb[0].mxu0
        %3778 = vmatprep.mubr.bf16.mxu0 %v3426
        %3779 = vmatmul.mubr.bf16.gmra.mrb[0].mxu0 %v3425
        %v3780 = vpop.f32.mrb[0].mxu0
        %v3781 = vadd.f32 %v3477, %v3780
        %v3782 = vpop.f32.mrb[0].mxu0
        %v3783 = vpop.f32.mrb[0].mxu0
        %v3784 = vadd.f32 %v3477, %v3783
        %v3785 = vpop.f32.mrb[0].mxu0
        %3786 = vmatprep.mubr.bf16.mxu0 %v3429
        %3787 = vmatmul.mubr.bf16.gmra.mrb[0].mxu0 %v3428
        %v3788 = vpop.f32.mrb[0].mxu0
        %v3789 = vadd.f32 %v3477, %v3788
        %v3790 = vpop.f32.mrb[0].mxu0
        %v3791 = vpop.f32.mrb[0].mxu0
        %v3792 = vadd.f32 %v3477, %v3791
        %v3793 = vpop.f32.mrb[0].mxu0
        %3794 = vmatprep.mubr.bf16.mxu0 %v3432
        %3795 = vmatmul.mubr.bf16.gmra.mrb[0].mxu0 %v3431
        %v3796 = vpop.f32.mrb[0].mxu0
        %v3797 = vadd.f32 %v3477, %v3796
        %v3798 = vpop.f32.mrb[0].mxu0
        %v3799 = vpop.f32.mrb[0].mxu0
        %v3800 = vadd.f32 %v3477, %v3799
        %v3801 = vpop.f32.mrb[0].mxu0
        %3802 = vdwg.mxu0
        %3803 = vmatprep.subr.bf16.mxu0 0
        %3804 = vmatpush1.bf16.msra.mxu0 %v3571
        %3805 = vmatprep.subr.bf16.mxu0 0
        %3806 = vmatpush1.bf16.msra.mxu0 %v3572
        %3807 = vmatprep.subr.bf16.mxu0 0
        %3808 = vmatpush1.bf16.msra.mxu0 %v3573
        %3809 = vmatprep.subr.bf16.mxu0 0
        %3810 = vmatpush1.bf16.msra.mxu0 0
        %3811 = vmatprep.subr.bf16.mxu0 0
        %3812 = vmatpush1.bf16.msra.mxu0 0
        %3813 = vmatprep.subr.bf16.mxu0 0
        %3814 = vmatpush1.bf16.msra.mxu0 0
        %3815 = vmatprep.subr.bf16.mxu0 0
        %3816 = vmatpush1.bf16.msra.mxu0 0
        %3817 = vmatprep.subr.bf16.mxu0 0
        %3818 = vmatpush1.bf16.msra.mxu0 0
        %3819 = vmatprep.subr.bf16.mxu0 0
        %3820 = vmatpush1.bf16.msra.mxu0 0
        %3821 = vmatprep.subr.bf16.mxu0 0
        %3822 = vmatpush1.bf16.msra.mxu0 0
        %3823 = vmatprep.subr.bf16.mxu0 0
        %3824 = vmatpush1.bf16.msra.mxu0 0
        %3825 = vmatprep.subr.bf16.mxu0 0
        %3826 = vmatpush1.bf16.msra.mxu0 0
        %3827 = vmatprep.subr.bf16.mxu0 0
        %3828 = vmatpush1.bf16.msra.mxu0 0
        %3829 = vmatprep.subr.bf16.mxu0 0
        %3830 = vmatpush1.bf16.msra.mxu0 0
        %3831 = vmatprep.subr.bf16.mxu0 0
        %3832 = vmatpush1.bf16.msra.mxu0 0
        %3833 = vmatprep.subr.bf16.mxu0 0
        %3834 = vmatpush1.bf16.msra.mxu0 0
        %3835 = vmatprep.mubr.bf16.mxu0 0
        %3836 = vmatmul.mubr.bf16.gmra.mrb[0].mxu0 %v3595
        %v3837 = vpop.f32.mrb[0].mxu0
        %v3838 = vadd.f32 %v3677, %v3837
        %v3839 = vpop.f32.mrb[0].mxu0
        %v3840 = vpop.f32.mrb[0].mxu0
        %v3841 = vadd.f32 %v3680, %v3840
        %v3842 = vpop.f32.mrb[0].mxu0
        %3843 = vmatprep.mubr.bf16.mxu0 0
        %3844 = vmatmul.mubr.bf16.gmra.mrb[0].mxu0 %v3598
        %v3845 = vpop.f32.mrb[0].mxu0
        %v3846 = vadd.f32 %v3685, %v3845
        %v3847 = vpop.f32.mrb[0].mxu0
        %v3848 = vpop.f32.mrb[0].mxu0
        %v3849 = vadd.f32 %v3688, %v3848
        %v3850 = vpop.f32.mrb[0].mxu0
        %3851 = vmatprep.mubr.bf16.mxu0 0
        %3852 = vmatmul.mubr.bf16.gmra.mrb[0].mxu0 %v3601
        %v3853 = vpop.f32.mrb[0].mxu0
        %v3854 = vadd.f32 %v3693, %v3853
        %v3855 = vpop.f32.mrb[0].mxu0
        %v3856 = vpop.f32.mrb[0].mxu0
        %v3857 = vadd.f32 %v3696, %v3856
        %v3858 = vpop.f32.mrb[0].mxu0
        %3859 = vmatprep.mubr.bf16.mxu0 0
        %3860 = vmatmul.mubr.bf16.gmra.mrb[0].mxu0 %v3604
        %v3861 = vpop.f32.mrb[0].mxu0
        %v3862 = vadd.f32 %v3701, %v3861
        %v3863 = vpop.f32.mrb[0].mxu0
        %v3864 = vpop.f32.mrb[0].mxu0
        %v3865 = vadd.f32 %v3704, %v3864
        %v3866 = vpop.f32.mrb[0].mxu0
        %3867 = vmatprep.mubr.bf16.mxu0 0
        %3868 = vmatmul.mubr.bf16.gmra.mrb[0].mxu0 %v3607
        %v3869 = vpop.f32.mrb[0].mxu0
        %v3870 = vadd.f32 %v3709, %v3869
        %v3871 = vpop.f32.mrb[0].mxu0
        %v3872 = vpop.f32.mrb[0].mxu0
        %v3873 = vadd.f32 %v3712, %v3872
        %v3874 = vpop.f32.mrb[0].mxu0
        %3875 = vmatprep.mubr.bf16.mxu0 0
        %3876 = vmatmul.mubr.bf16.gmra.mrb[0].mxu0 %v3610
        %v3877 = vpop.f32.mrb[0].mxu0
        %v3878 = vadd.f32 %v3717, %v3877
        %v3879 = vpop.f32.mrb[0].mxu0
        %v3880 = vpop.f32.mrb[0].mxu0
        %v3881 = vadd.f32 %v3720, %v3880
        %v3882 = vpop.f32.mrb[0].mxu0
        %3883 = vmatprep.mubr.bf16.mxu0 0
        %3884 = vmatmul.mubr.bf16.gmra.mrb[0].mxu0 %v3613
        %v3885 = vpop.f32.mrb[0].mxu0
        %v3886 = vadd.f32 %v3725, %v3885
        %v3887 = vpop.f32.mrb[0].mxu0
        %v3888 = vpop.f32.mrb[0].mxu0
        %v3889 = vadd.f32 %v3728, %v3888
        %v3890 = vpop.f32.mrb[0].mxu0
        %3891 = vmatprep.mubr.bf16.mxu0 0
        %3892 = vmatmul.mubr.bf16.gmra.mrb[0].mxu0 %v3616
        %v3893 = vpop.f32.mrb[0].mxu0
        %v3894 = vadd.f32 %v3733, %v3893
        %v3895 = vpop.f32.mrb[0].mxu0
        %v3896 = vpop.f32.mrb[0].mxu0
        %v3897 = vadd.f32 %v3736, %v3896
        %v3898 = vpop.f32.mrb[0].mxu0
        %3899 = vmatprep.mubr.bf16.mxu0 0
        %3900 = vmatmul.mubr.bf16.gmra.mrb[0].mxu0 %v3619
        %v3901 = vpop.f32.mrb[0].mxu0
        %v3902 = vadd.f32 %v3741, %v3901
        %v3903 = vpop.f32.mrb[0].mxu0
        %v3904 = vpop.f32.mrb[0].mxu0
        %v3905 = vadd.f32 %v3744, %v3904
        %v3906 = vpop.f32.mrb[0].mxu0
        %3907 = vmatprep.mubr.bf16.mxu0 0
        %3908 = vmatmul.mubr.bf16.gmra.mrb[0].mxu0 %v3622
        %v3909 = vpop.f32.mrb[0].mxu0
        %v3910 = vadd.f32 %v3749, %v3909
        %v3911 = vpop.f32.mrb[0].mxu0
        %v3912 = vpop.f32.mrb[0].mxu0
        %v3913 = vadd.f32 %v3752, %v3912
        %v3914 = vpop.f32.mrb[0].mxu0
        %3915 = vmatprep.mubr.bf16.mxu0 0
        %3916 = vmatmul.mubr.bf16.gmra.mrb[0].mxu0 %v3625
        %v3917 = vpop.f32.mrb[0].mxu0
        %v3918 = vadd.f32 %v3757, %v3917
        %v3919 = vpop.f32.mrb[0].mxu0
        %v3920 = vpop.f32.mrb[0].mxu0
        %v3921 = vadd.f32 %v3760, %v3920
        %v3922 = vpop.f32.mrb[0].mxu0
        %3923 = vmatprep.mubr.bf16.mxu0 0
        %3924 = vmatmul.mubr.bf16.gmra.mrb[0].mxu0 %v3628
        %v3925 = vpop.f32.mrb[0].mxu0
        %v3926 = vadd.f32 %v3765, %v3925
        %v3927 = vpop.f32.mrb[0].mxu0
        %v3928 = vpop.f32.mrb[0].mxu0
        %v3929 = vadd.f32 %v3768, %v3928
        %v3930 = vpop.f32.mrb[0].mxu0
        %3931 = vmatprep.mubr.bf16.mxu0 0
        %3932 = vmatmul.mubr.bf16.gmra.mrb[0].mxu0 %v3631
        %v3933 = vpop.f32.mrb[0].mxu0
        %v3934 = vadd.f32 %v3773, %v3933
        %v3935 = vpop.f32.mrb[0].mxu0
        %v3936 = vpop.f32.mrb[0].mxu0
        %v3937 = vadd.f32 %v3776, %v3936
        %v3938 = vpop.f32.mrb[0].mxu0
        %3939 = vmatprep.mubr.bf16.mxu0 0
        %3940 = vmatmul.mubr.bf16.gmra.mrb[0].mxu0 %v3634
        %v3941 = vpop.f32.mrb[0].mxu0
        %v3942 = vadd.f32 %v3781, %v3941
        %v3943 = vpop.f32.mrb[0].mxu0
        %v3944 = vpop.f32.mrb[0].mxu0
        %v3945 = vadd.f32 %v3784, %v3944
        %v3946 = vpop.f32.mrb[0].mxu0
        %3947 = vmatprep.mubr.bf16.mxu0 0
        %3948 = vmatmul.mubr.bf16.gmra.mrb[0].mxu0 %v3637
        %v3949 = vpop.f32.mrb[0].mxu0
        %v3950 = vadd.f32 %v3789, %v3949
        %v3951 = vpop.f32.mrb[0].mxu0
        %v3952 = vpop.f32.mrb[0].mxu0
        %v3953 = vadd.f32 %v3792, %v3952
        %v3954 = vpop.f32.mrb[0].mxu0
        %3955 = vmatprep.mubr.bf16.mxu0 0
        %3956 = vmatmul.mubr.bf16.gmra.mrb[0].mxu0 %v3640
        %v3957 = vpop.f32.mrb[0].mxu0
        %v3958 = vadd.f32 %v3797, %v3957
        %v3959 = vpop.f32.mrb[0].mxu0
        %v3960 = vpop.f32.mrb[0].mxu0
        %v3961 = vadd.f32 %v3800, %v3960
        %v3962 = vpop.f32.mrb[0].mxu0
        %3963 = vdwg.mxu0
        %v3964 = vtanh.pop %v3838
        %v3965 = vtanh.pop %v3841
        %v3966 = vtanh.pop %v3846
        %v3967 = vtanh.pop %v3849
        %v3968 = vtanh.pop %v3854
        %v3969 = vtanh.pop %v3857
        %v3970 = vtanh.pop %v3862
        %v3971 = vtanh.pop %v3865
        %v3972 = vtanh.pop %v3870
        %v3973 = vtanh.pop %v3873
        %v3974 = vtanh.pop %v3878
        %v3975 = vtanh.pop %v3881
        %v3976 = vtanh.pop %v3886
        %v3977 = vtanh.pop %v3889
        %v3978 = vtanh.pop %v3894
        %v3979 = vtanh.pop %v3897
        %v3980 = vtanh.pop %v3902
        %v3981 = vtanh.pop %v3905
        %v3982 = vtanh.pop %v3910
        %v3983 = vtanh.pop %v3913
        %v3984 = vtanh.pop %v3918
        %v3985 = vtanh.pop %v3921
        %v3986 = vtanh.pop %v3926
        %v3987 = vtanh.pop %v3929
        %v3988 = vtanh.pop %v3934
        %v3989 = vtanh.pop %v3937
        %v3990 = vtanh.pop %v3942
        %v3991 = vtanh.pop %v3945
        %v3992 = vtanh.pop %v3950
        %v3993 = vtanh.pop %v3953
        %v3994 = vtanh.pop %v3958
        %v3995 = vtanh.pop %v3961
        %v3996 = vxor.u32 %v3838, 2147483648
        %v3997 = vxor.u32 %v3841, 2147483648
        %v3998 = vxor.u32 %v3846, 2147483648
        %v3999 = vxor.u32 %v3849, 2147483648
        %v4000 = vxor.u32 %v3854, 2147483648
        %v4001 = vxor.u32 %v3857, 2147483648
        %v4002 = vxor.u32 %v3862, 2147483648
        %v4003 = vxor.u32 %v3865, 2147483648
        %v4004 = vxor.u32 %v3870, 2147483648
        %v4005 = vxor.u32 %v3873, 2147483648
        %v4006 = vxor.u32 %v3878, 2147483648
        %v4007 = vxor.u32 %v3881, 2147483648
        %v4008 = vxor.u32 %v3886, 2147483648
        %v4009 = vxor.u32 %v3889, 2147483648
        %v4010 = vxor.u32 %v3894, 2147483648
        %v4011 = vxor.u32 %v3897, 2147483648
        %v4012 = vxor.u32 %v3902, 2147483648
        %v4013 = vxor.u32 %v3905, 2147483648
        %v4014 = vxor.u32 %v3910, 2147483648
        %v4015 = vxor.u32 %v3913, 2147483648
        %v4016 = vxor.u32 %v3918, 2147483648
        %v4017 = vxor.u32 %v3921, 2147483648
        %v4018 = vxor.u32 %v3926, 2147483648
        %v4019 = vxor.u32 %v3929, 2147483648
        %v4020 = vxor.u32 %v3934, 2147483648
        %v4021 = vxor.u32 %v3937, 2147483648
        %v4022 = vxor.u32 %v3942, 2147483648
        %v4023 = vxor.u32 %v3945, 2147483648
        %v4024 = vxor.u32 %v3950, 2147483648
        %v4025 = vxor.u32 %v3953, 2147483648
        %v4026 = vxor.u32 %v3958, 2147483648
        %v4027 = vxor.u32 %v3961, 2147483648
        %v4028 = vmul.f32 %v3996, 1.442695
        %v4029 = vpow.pop %v4028
        %v4030 = vmul.f32 %v3997, 1.442695
        %v4031 = vpow.pop %v4030
        %v4032 = vmul.f32 %v3998, 1.442695
        %v4033 = vpow.pop %v4032
        %v4034 = vmul.f32 %v3999, 1.442695
        %v4035 = vpow.pop %v4034
        %v4036 = vmul.f32 %v4000, 1.442695
        %v4037 = vpow.pop %v4036
        %v4038 = vmul.f32 %v4001, 1.442695
        %v4039 = vpow.pop %v4038
        %v4040 = vmul.f32 %v4002, 1.442695
        %v4041 = vpow.pop %v4040
        %v4042 = vmul.f32 %v4003, 1.442695
        %v4043 = vpow.pop %v4042
        %v4044 = vmul.f32 %v4004, 1.442695
        %v4045 = vpow.pop %v4044
        %v4046 = vmul.f32 %v4005, 1.442695
        %v4047 = vpow.pop %v4046
        %v4048 = vmul.f32 %v4006, 1.442695
        %v4049 = vpow.pop %v4048
        %v4050 = vmul.f32 %v4007, 1.442695
        %v4051 = vpow.pop %v4050
        %v4052 = vmul.f32 %v4008, 1.442695
        %v4053 = vpow.pop %v4052
        %v4054 = vmul.f32 %v4009, 1.442695
        %v4055 = vpow.pop %v4054
        %v4056 = vmul.f32 %v4010, 1.442695
        %v4057 = vpow.pop %v4056
        %v4058 = vmul.f32 %v4011, 1.442695
        %v4059 = vpow.pop %v4058
        %v4060 = vmul.f32 %v4012, 1.442695
        %v4061 = vpow.pop %v4060
        %v4062 = vmul.f32 %v4013, 1.442695
        %v4063 = vpow.pop %v4062
        %v4064 = vmul.f32 %v4014, 1.442695
        %v4065 = vpow.pop %v4064
        %v4066 = vmul.f32 %v4015, 1.442695
        %v4067 = vpow.pop %v4066
        %v4068 = vmul.f32 %v4016, 1.442695
        %v4069 = vpow.pop %v4068
        %v4070 = vmul.f32 %v4017, 1.442695
        %v4071 = vpow.pop %v4070
        %v4072 = vmul.f32 %v4018, 1.442695
        %v4073 = vpow.pop %v4072
        %v4074 = vmul.f32 %v4019, 1.442695
        %v4075 = vpow.pop %v4074
        %v4076 = vmul.f32 %v4020, 1.442695
        %v4077 = vpow.pop %v4076
        %v4078 = vmul.f32 %v4021, 1.442695
        %v4079 = vpow.pop %v4078
        %v4080 = vmul.f32 %v4022, 1.442695
        %v4081 = vpow.pop %v4080
        %v4082 = vmul.f32 %v4023, 1.442695
        %v4083 = vpow.pop %v4082
        %v4084 = vmul.f32 %v4024, 1.442695
        %v4085 = vpow.pop %v4084
        %v4086 = vmul.f32 %v4025, 1.442695
        %v4087 = vpow.pop %v4086
        %v4088 = vmul.f32 %v4026, 1.442695
        %v4089 = vpow.pop %v4088
        %v4090 = vmul.f32 %v4027, 1.442695
        %v4091 = vpow.pop %v4090
        %v4092 = vadd.f32 %v4029, 1.0
        %v4093 = vadd.f32 %v4031, 1.0
        %v4094 = vadd.f32 %v4033, 1.0
        %v4095 = vadd.f32 %v4035, 1.0
        %v4096 = vadd.f32 %v4037, 1.0
        %v4097 = vadd.f32 %v4039, 1.0
        %v4098 = vadd.f32 %v4041, 1.0
        %v4099 = vadd.f32 %v4043, 1.0
        %v4100 = vadd.f32 %v4045, 1.0
        %v4101 = vadd.f32 %v4047, 1.0
        %v4102 = vadd.f32 %v4049, 1.0
        %v4103 = vadd.f32 %v4051, 1.0
        %v4104 = vadd.f32 %v4053, 1.0
        %v4105 = vadd.f32 %v4055, 1.0
        %v4106 = vadd.f32 %v4057, 1.0
        %v4107 = vadd.f32 %v4059, 1.0
        %v4108 = vadd.f32 %v4061, 1.0
        %v4109 = vadd.f32 %v4063, 1.0
        %v4110 = vadd.f32 %v4065, 1.0
        %v4111 = vadd.f32 %v4067, 1.0
        %v4112 = vadd.f32 %v4069, 1.0
        %v4113 = vadd.f32 %v4071, 1.0
        %v4114 = vadd.f32 %v4073, 1.0
        %v4115 = vadd.f32 %v4075, 1.0
        %v4116 = vadd.f32 %v4077, 1.0
        %v4117 = vadd.f32 %v4079, 1.0
        %v4118 = vadd.f32 %v4081, 1.0
        %v4119 = vadd.f32 %v4083, 1.0
        %v4120 = vadd.f32 %v4085, 1.0
        %v4121 = vadd.f32 %v4087, 1.0
        %v4122 = vadd.f32 %v4089, 1.0
        %v4123 = vadd.f32 %v4091, 1.0
        %v4124 = vrcp.pop %v4092
        %v4125 = vmul.f32 1.0, %v4124
        %v4126 = vrcp.pop %v4093
        %v4127 = vmul.f32 1.0, %v4126
        %v4128 = vrcp.pop %v4094
        %v4129 = vmul.f32 1.0, %v4128
        %v4130 = vrcp.pop %v4095
        %v4131 = vmul.f32 1.0, %v4130
        %v4132 = vrcp.pop %v4096
        %v4133 = vmul.f32 1.0, %v4132
        %v4134 = vrcp.pop %v4097
        %v4135 = vmul.f32 1.0, %v4134
        %v4136 = vrcp.pop %v4098
        %v4137 = vmul.f32 1.0, %v4136
        %v4138 = vrcp.pop %v4099
        %v4139 = vmul.f32 1.0, %v4138
        %v4140 = vrcp.pop %v4100
        %v4141 = vmul.f32 1.0, %v4140
        %v4142 = vrcp.pop %v4101
        %v4143 = vmul.f32 1.0, %v4142
        %v4144 = vrcp.pop %v4102
        %v4145 = vmul.f32 1.0, %v4144
        %v4146 = vrcp.pop %v4103
        %v4147 = vmul.f32 1.0, %v4146
        %v4148 = vrcp.pop %v4104
        %v4149 = vmul.f32 1.0, %v4148
        %v4150 = vrcp.pop %v4105
        %v4151 = vmul.f32 1.0, %v4150
        %v4152 = vrcp.pop %v4106
        %v4153 = vmul.f32 1.0, %v4152
        %v4154 = vrcp.pop %v4107
        %v4155 = vmul.f32 1.0, %v4154
        %v4156 = vrcp.pop %v4108
        %v4157 = vmul.f32 1.0, %v4156
        %v4158 = vrcp.pop %v4109
        %v4159 = vmul.f32 1.0, %v4158
        %v4160 = vrcp.pop %v4110
        %v4161 = vmul.f32 1.0, %v4160
        %v4162 = vrcp.pop %v4111
        %v4163 = vmul.f32 1.0, %v4162
        %v4164 = vrcp.pop %v4112
        %v4165 = vmul.f32 1.0, %v4164
        %v4166 = vrcp.pop %v4113
        %v4167 = vmul.f32 1.0, %v4166
        %v4168 = vrcp.pop %v4114
        %v4169 = vmul.f32 1.0, %v4168
        %v4170 = vrcp.pop %v4115
        %v4171 = vmul.f32 1.0, %v4170
        %v4172 = vrcp.pop %v4116
        %v4173 = vmul.f32 1.0, %v4172
        %v4174 = vrcp.pop %v4117
        %v4175 = vmul.f32 1.0, %v4174
        %v4176 = vrcp.pop %v4118
        %v4177 = vmul.f32 1.0, %v4176
        %v4178 = vrcp.pop %v4119
        %v4179 = vmul.f32 1.0, %v4178
        %v4180 = vrcp.pop %v4120
        %v4181 = vmul.f32 1.0, %v4180
        %v4182 = vrcp.pop %v4121
        %v4183 = vmul.f32 1.0, %v4182
        %v4184 = vrcp.pop %v4122
        %v4185 = vmul.f32 1.0, %v4184
        %v4186 = vrcp.pop %v4123
        %v4187 = vmul.f32 1.0, %v4186
        %4220 = vrot.lane.b32.xlu0 %v4125, 96
        %v4221 = vpop.permute.xlu0 %4220
        %4222 = vrot.lane.b32.xlu0 %v4127, 96
        %v4223 = vpop.permute.xlu0 %4222
        %4224 = vrot.lane.b32.xlu0 %v4129, 96
        %v4225 = vpop.permute.xlu0 %4224
        %4226 = vrot.lane.b32.xlu0 %v4131, 96
        %v4227 = vpop.permute.xlu0 %4226
        %4228 = vrot.lane.b32.xlu0 %v4133, 96
        %v4229 = vpop.permute.xlu0 %4228
        %4230 = vrot.lane.b32.xlu0 %v4135, 96
        %v4231 = vpop.permute.xlu0 %4230
        %4232 = vrot.lane.b32.xlu0 %v4137, 96
        %v4233 = vpop.permute.xlu0 %4232
        %4234 = vrot.lane.b32.xlu0 %v4139, 96
        %v4235 = vpop.permute.xlu0 %4234
        %4236 = vrot.lane.b32.xlu0 %v4141, 96
        %v4237 = vpop.permute.xlu0 %4236
        %4238 = vrot.lane.b32.xlu0 %v4143, 96
        %v4239 = vpop.permute.xlu0 %4238
        %4240 = vrot.lane.b32.xlu0 %v4145, 96
        %v4241 = vpop.permute.xlu0 %4240
        %4242 = vrot.lane.b32.xlu0 %v4147, 96
        %v4243 = vpop.permute.xlu0 %4242
        %4244 = vrot.lane.b32.xlu0 %v4149, 96
        %v4245 = vpop.permute.xlu0 %4244
        %4246 = vrot.lane.b32.xlu0 %v4151, 96
        %v4247 = vpop.permute.xlu0 %4246
        %4248 = vrot.lane.b32.xlu0 %v4153, 96
        %v4249 = vpop.permute.xlu0 %4248
        %4250 = vrot.lane.b32.xlu0 %v4155, 96
        %v4251 = vpop.permute.xlu0 %4250
        %4252 = vrot.lane.b32.xlu0 %v4157, 96
        %v4253 = vpop.permute.xlu0 %4252
        %4254 = vrot.lane.b32.xlu0 %v4159, 96
        %v4255 = vpop.permute.xlu0 %4254
        %4256 = vrot.lane.b32.xlu0 %v4161, 96
        %v4257 = vpop.permute.xlu0 %4256
        %4258 = vrot.lane.b32.xlu0 %v4163, 96
        %v4259 = vpop.permute.xlu0 %4258
        %4260 = vrot.lane.b32.xlu0 %v4165, 96
        %v4261 = vpop.permute.xlu0 %4260
        %4262 = vrot.lane.b32.xlu0 %v4167, 96
        %v4263 = vpop.permute.xlu0 %4262
        %4264 = vrot.lane.b32.xlu0 %v4169, 96
        %v4265 = vpop.permute.xlu0 %4264
        %4266 = vrot.lane.b32.xlu0 %v4171, 96
        %v4267 = vpop.permute.xlu0 %4266
        %4268 = vrot.lane.b32.xlu0 %v4173, 96
        %v4269 = vpop.permute.xlu0 %4268
        %4270 = vrot.lane.b32.xlu0 %v4175, 96
        %v4271 = vpop.permute.xlu0 %4270
        %4272 = vrot.lane.b32.xlu0 %v4177, 96
        %v4273 = vpop.permute.xlu0 %4272
        %4274 = vrot.lane.b32.xlu0 %v4179, 96
        %v4275 = vpop.permute.xlu0 %4274
        %4276 = vrot.lane.b32.xlu0 %v4181, 96
        %v4277 = vpop.permute.xlu0 %4276
        %4278 = vrot.lane.b32.xlu0 %v4183, 96
        %v4279 = vpop.permute.xlu0 %4278
        %4280 = vrot.lane.b32.xlu0 %v4185, 96
        %v4281 = vpop.permute.xlu0 %4280
        %4282 = vrot.lane.b32.xlu0 %v4187, 96
        %v4283 = vpop.permute.xlu0 %4282
        %v4316 = vmul.f32 %v3964, %v4221
        %v4317 = vmul.f32 %v3965, %v4223
        %v4318 = vmul.f32 %v3966, %v4225
        %v4319 = vmul.f32 %v3967, %v4227
        %v4320 = vmul.f32 %v3968, %v4229
        %v4321 = vmul.f32 %v3969, %v4231
        %v4322 = vmul.f32 %v3970, %v4233
        %v4323 = vmul.f32 %v3971, %v4235
        %v4324 = vmul.f32 %v3972, %v4237
        %v4325 = vmul.f32 %v3973, %v4239
        %v4326 = vmul.f32 %v3974, %v4241
        %v4327 = vmul.f32 %v3975, %v4243
        %v4328 = vmul.f32 %v3976, %v4245
        %v4329 = vmul.f32 %v3977, %v4247
        %v4330 = vmul.f32 %v3978, %v4249
        %v4331 = vmul.f32 %v3979, %v4251
        %v4332 = vmul.f32 %v3980, %v4253
        %v4333 = vmul.f32 %v3981, %v4255
        %v4334 = vmul.f32 %v3982, %v4257
        %v4335 = vmul.f32 %v3983, %v4259
        %v4336 = vmul.f32 %v3984, %v4261
        %v4337 = vmul.f32 %v3985, %v4263
        %v4338 = vmul.f32 %v3986, %v4265
        %v4339 = vmul.f32 %v3987, %v4267
        %v4340 = vmul.f32 %v3988, %v4269
        %v4341 = vmul.f32 %v3989, %v4271
        %v4342 = vmul.f32 %v3990, %v4273
        %v4343 = vmul.f32 %v3991, %v4275
        %v4344 = vmul.f32 %v3992, %v4277
        %v4345 = vmul.f32 %v3993, %v4279
        %v4346 = vmul.f32 %v3994, %v4281
        %v4347 = vmul.f32 %v3995, %v4283
        %v4348 = vpack.c.bf16 %v4317, %v4316
        %v4349 = vpack.c.bf16 %v4319, %v4318
        %v4350 = vpack.c.bf16 %v4321, %v4320
        %v4351 = vpack.c.bf16 %v4323, %v4322
        %v4352 = vpack.c.bf16 %v4325, %v4324
        %v4353 = vpack.c.bf16 %v4327, %v4326
        %v4354 = vpack.c.bf16 %v4329, %v4328
        %v4355 = vpack.c.bf16 %v4331, %v4330
        %v4356 = vpack.c.bf16 %v4333, %v4332
        %v4357 = vpack.c.bf16 %v4335, %v4334
        %v4358 = vpack.c.bf16 %v4337, %v4336
        %v4359 = vpack.c.bf16 %v4339, %v4338
        %v4360 = vpack.c.bf16 %v4341, %v4340
        %v4361 = vpack.c.bf16 %v4343, %v4342
        %v4362 = vpack.c.bf16 %v4345, %v4344
        %v4363 = vpack.c.bf16 %v4347, %v4346
        %v4364 = vld [vmem:[#allocation15] sm:$0xf]
        %v4365 = vld [vmem:[#allocation15 + $0x4] sm:$0xf]
        %v4366 = vld [vmem:[#allocation15 + $0x8] sm:$0xf]
        %v4367 = vld [vmem:[#allocation15 + $0xc] sm:$0xf]
        %v4368 = vld [vmem:[#allocation16] sm:$0x1]
        %v4370 = vlaneseq
        %v4371 = vshrl.u32 %v4370, 7
        %v4372 = vsub.s32 0, %v4371
        %v4373 = vrot.slane %v4368, %v4372
        %v4379 = vunpack.c.l.b16 %v4364
        %v4380 = vunpack.c.l.b16 %v4365
        %v4381 = vunpack.c.l.b16 %v4366
        %v4382 = vunpack.c.l.b16 %v4367
        %v4383 = vpack.c.b16 %v4380, %v4379
        %v4384 = vpack.c.b16 %v4382, %v4381
        %v4388 = vsel %vm2326, %v4348, 0
        %v4391 = vsel %vm2326, %v4349, 0
        %v4394 = vsel %vm2326, %v4350, 0
        %v4397 = vsel %vm2326, %v4351, 0
        %v4400 = vsel %vm2326, %v4352, 0
        %v4403 = vsel %vm2326, %v4353, 0
        %v4406 = vsel %vm2326, %v4354, 0
        %v4409 = vsel %vm2326, %v4355, 0
        %v4412 = vsel %vm2326, %v4356, 0
        %v4415 = vsel %vm2326, %v4357, 0
        %v4418 = vsel %vm2326, %v4358, 0
        %v4421 = vsel %vm2326, %v4359, 0
        %v4424 = vsel %vm2326, %v4360, 0
        %v4427 = vsel %vm2326, %v4361, 0
        %v4430 = vsel %vm2326, %v4362, 0
        %v4433 = vsel %vm2326, %v4363, 0
        %4435 = vmatprep.subr.bf16.mxu0 0
        %4436 = vmatpush1.bf16.msra.mxu0 %v4383
        %4437 = vmatprep.subr.bf16.mxu0 0
        %4438 = vmatpush1.bf16.msra.mxu0 %v4384
        %4439 = vmatprep.subr.bf16.mxu0 0
        %4440 = vmatpush1.bf16.msra.mxu0 0
        %4441 = vmatprep.subr.bf16.mxu0 0
        %4442 = vmatpush1.bf16.msra.mxu0 0
        %4443 = vmatprep.subr.bf16.mxu0 0
        %4444 = vmatpush1.bf16.msra.mxu0 0
        %4445 = vmatprep.subr.bf16.mxu0 0
        %4446 = vmatpush1.bf16.msra.mxu0 0
        %4447 = vmatprep.subr.bf16.mxu0 0
        %4448 = vmatpush1.bf16.msra.mxu0 0
        %4449 = vmatprep.subr.bf16.mxu0 0
        %4450 = vmatpush1.bf16.msra.mxu0 0
        %4451 = vmatprep.subr.bf16.mxu0 0
        %4452 = vmatpush1.bf16.msra.mxu0 0
        %4453 = vmatprep.subr.bf16.mxu0 0
        %4454 = vmatpush1.bf16.msra.mxu0 0
        %4455 = vmatprep.subr.bf16.mxu0 0
        %4456 = vmatpush1.bf16.msra.mxu0 0
        %4457 = vmatprep.subr.bf16.mxu0 0
        %4458 = vmatpush1.bf16.msra.mxu0 0
        %4459 = vmatprep.subr.bf16.mxu0 0
        %4460 = vmatpush1.bf16.msra.mxu0 0
        %4461 = vmatprep.subr.bf16.mxu0 0
        %4462 = vmatpush1.bf16.msra.mxu0 0
        %4463 = vmatprep.subr.bf16.mxu0 0
        %4464 = vmatpush1.bf16.msra.mxu0 0
        %4465 = vmatprep.subr.bf16.mxu0 0
        %4466 = vmatpush1.bf16.msra.mxu0 0
        %4467 = vmatprep.mubr.bf16.mxu0 0
        %4468 = vmatmul.mubr.bf16.gmra.mrb[0].mxu0 %v4388
        %v4469 = vpop.f32.mrb[0].mxu0
        %v4470 = vadd.f32 %v4373, %v4469
        %v4471 = vpop.f32.mrb[0].mxu0
        %v4472 = vpop.f32.mrb[0].mxu0
        %v4473 = vadd.f32 %v4373, %v4472
        %v4474 = vpop.f32.mrb[0].mxu0
        %4475 = vmatprep.mubr.bf16.mxu0 0
        %4476 = vmatmul.mubr.bf16.gmra.mrb[0].mxu0 %v4391
        %v4477 = vpop.f32.mrb[0].mxu0
        %v4478 = vadd.f32 %v4373, %v4477
        %v4479 = vpop.f32.mrb[0].mxu0
        %v4480 = vpop.f32.mrb[0].mxu0
        %v4481 = vadd.f32 %v4373, %v4480
        %v4482 = vpop.f32.mrb[0].mxu0
        %4483 = vmatprep.mubr.bf16.mxu0 0
        %4484 = vmatmul.mubr.bf16.gmra.mrb[0].mxu0 %v4394
        %v4485 = vpop.f32.mrb[0].mxu0
        %v4486 = vadd.f32 %v4373, %v4485
        %v4487 = vpop.f32.mrb[0].mxu0
        %v4488 = vpop.f32.mrb[0].mxu0
        %v4489 = vadd.f32 %v4373, %v4488
        %v4490 = vpop.f32.mrb[0].mxu0
        %4491 = vmatprep.mubr.bf16.mxu0 0
        %4492 = vmatmul.mubr.bf16.gmra.mrb[0].mxu0 %v4397
        %v4493 = vpop.f32.mrb[0].mxu0
        %v4494 = vadd.f32 %v4373, %v4493
        %v4495 = vpop.f32.mrb[0].mxu0
        %v4496 = vpop.f32.mrb[0].mxu0
        %v4497 = vadd.f32 %v4373, %v4496
        %v4498 = vpop.f32.mrb[0].mxu0
        %4499 = vmatprep.mubr.bf16.mxu0 0
        %4500 = vmatmul.mubr.bf16.gmra.mrb[0].mxu0 %v4400
        %v4501 = vpop.f32.mrb[0].mxu0
        %v4502 = vadd.f32 %v4373, %v4501
        %v4503 = vpop.f32.mrb[0].mxu0
        %v4504 = vpop.f32.mrb[0].mxu0
        %v4505 = vadd.f32 %v4373, %v4504
        %v4506 = vpop.f32.mrb[0].mxu0
        %4507 = vmatprep.mubr.bf16.mxu0 0
        %4508 = vmatmul.mubr.bf16.gmra.mrb[0].mxu0 %v4403
        %v4509 = vpop.f32.mrb[0].mxu0
        %v4510 = vadd.f32 %v4373, %v4509
        %v4511 = vpop.f32.mrb[0].mxu0
        %v4512 = vpop.f32.mrb[0].mxu0
        %v4513 = vadd.f32 %v4373, %v4512
        %v4514 = vpop.f32.mrb[0].mxu0
        %4515 = vmatprep.mubr.bf16.mxu0 0
        %4516 = vmatmul.mubr.bf16.gmra.mrb[0].mxu0 %v4406
        %v4517 = vpop.f32.mrb[0].mxu0
        %v4518 = vadd.f32 %v4373, %v4517
        %v4519 = vpop.f32.mrb[0].mxu0
        %v4520 = vpop.f32.mrb[0].mxu0
        %v4521 = vadd.f32 %v4373, %v4520
        %v4522 = vpop.f32.mrb[0].mxu0
        %4523 = vmatprep.mubr.bf16.mxu0 0
        %4524 = vmatmul.mubr.bf16.gmra.mrb[0].mxu0 %v4409
        %v4525 = vpop.f32.mrb[0].mxu0
        %v4526 = vadd.f32 %v4373, %v4525
        %v4527 = vpop.f32.mrb[0].mxu0
        %v4528 = vpop.f32.mrb[0].mxu0
        %v4529 = vadd.f32 %v4373, %v4528
        %v4530 = vpop.f32.mrb[0].mxu0
        %4531 = vmatprep.mubr.bf16.mxu0 0
        %4532 = vmatmul.mubr.bf16.gmra.mrb[0].mxu0 %v4412
        %v4533 = vpop.f32.mrb[0].mxu0
        %v4534 = vadd.f32 %v4373, %v4533
        %v4535 = vpop.f32.mrb[0].mxu0
        %v4536 = vpop.f32.mrb[0].mxu0
        %v4537 = vadd.f32 %v4373, %v4536
        %v4538 = vpop.f32.mrb[0].mxu0
        %4539 = vmatprep.mubr.bf16.mxu0 0
        %4540 = vmatmul.mubr.bf16.gmra.mrb[0].mxu0 %v4415
        %v4541 = vpop.f32.mrb[0].mxu0
        %v4542 = vadd.f32 %v4373, %v4541
        %v4543 = vpop.f32.mrb[0].mxu0
        %v4544 = vpop.f32.mrb[0].mxu0
        %v4545 = vadd.f32 %v4373, %v4544
        %v4546 = vpop.f32.mrb[0].mxu0
        %4547 = vmatprep.mubr.bf16.mxu0 0
        %4548 = vmatmul.mubr.bf16.gmra.mrb[0].mxu0 %v4418
        %v4549 = vpop.f32.mrb[0].mxu0
        %v4550 = vadd.f32 %v4373, %v4549
        %v4551 = vpop.f32.mrb[0].mxu0
        %v4552 = vpop.f32.mrb[0].mxu0
        %v4553 = vadd.f32 %v4373, %v4552
        %v4554 = vpop.f32.mrb[0].mxu0
        %4555 = vmatprep.mubr.bf16.mxu0 0
        %4556 = vmatmul.mubr.bf16.gmra.mrb[0].mxu0 %v4421
        %v4557 = vpop.f32.mrb[0].mxu0
        %v4558 = vadd.f32 %v4373, %v4557
        %v4559 = vpop.f32.mrb[0].mxu0
        %v4560 = vpop.f32.mrb[0].mxu0
        %v4561 = vadd.f32 %v4373, %v4560
        %v4562 = vpop.f32.mrb[0].mxu0
        %4563 = vmatprep.mubr.bf16.mxu0 0
        %4564 = vmatmul.mubr.bf16.gmra.mrb[0].mxu0 %v4424
        %v4565 = vpop.f32.mrb[0].mxu0
        %v4566 = vadd.f32 %v4373, %v4565
        %v4567 = vpop.f32.mrb[0].mxu0
        %v4568 = vpop.f32.mrb[0].mxu0
        %v4569 = vadd.f32 %v4373, %v4568
        %v4570 = vpop.f32.mrb[0].mxu0
        %4571 = vmatprep.mubr.bf16.mxu0 0
        %4572 = vmatmul.mubr.bf16.gmra.mrb[0].mxu0 %v4427
        %v4573 = vpop.f32.mrb[0].mxu0
        %v4574 = vadd.f32 %v4373, %v4573
        %v4575 = vpop.f32.mrb[0].mxu0
        %v4576 = vpop.f32.mrb[0].mxu0
        %v4577 = vadd.f32 %v4373, %v4576
        %v4578 = vpop.f32.mrb[0].mxu0
        %4579 = vmatprep.mubr.bf16.mxu0 0
        %4580 = vmatmul.mubr.bf16.gmra.mrb[0].mxu0 %v4430
        %v4581 = vpop.f32.mrb[0].mxu0
        %v4582 = vadd.f32 %v4373, %v4581
        %v4583 = vpop.f32.mrb[0].mxu0
        %v4584 = vpop.f32.mrb[0].mxu0
        %v4585 = vadd.f32 %v4373, %v4584
        %v4586 = vpop.f32.mrb[0].mxu0
        %4587 = vmatprep.mubr.bf16.mxu0 0
        %4588 = vmatmul.mubr.bf16.gmra.mrb[0].mxu0 %v4433
        %v4589 = vpop.f32.mrb[0].mxu0
        %v4590 = vadd.f32 %v4373, %v4589
        %v4591 = vpop.f32.mrb[0].mxu0
        %v4592 = vpop.f32.mrb[0].mxu0
        %v4593 = vadd.f32 %v4373, %v4592
        %v4594 = vpop.f32.mrb[0].mxu0
        %4595 = vdwg.mxu0
        %v4596 = vadd.f32 %v810, %v4470
        %v4597 = vadd.f32 %v813, %v4473
        %v4598 = vadd.f32 %v818, %v4478
        %v4599 = vadd.f32 %v821, %v4481
        %v4600 = vadd.f32 %v826, %v4486
        %v4601 = vadd.f32 %v829, %v4489
        %v4602 = vadd.f32 %v834, %v4494
        %v4603 = vadd.f32 %v837, %v4497
        %v4604 = vadd.f32 %v842, %v4502
        %v4605 = vadd.f32 %v845, %v4505
        %v4606 = vadd.f32 %v850, %v4510
        %v4607 = vadd.f32 %v853, %v4513
        %v4608 = vadd.f32 %v858, %v4518
        %v4609 = vadd.f32 %v861, %v4521
        %v4610 = vadd.f32 %v866, %v4526
        %v4611 = vadd.f32 %v869, %v4529
        %v4612 = vadd.f32 %v874, %v4534
        %v4613 = vadd.f32 %v877, %v4537
        %v4614 = vadd.f32 %v882, %v4542
        %v4615 = vadd.f32 %v885, %v4545
        %v4616 = vadd.f32 %v890, %v4550
        %v4617 = vadd.f32 %v893, %v4553
        %v4618 = vadd.f32 %v898, %v4558
        %v4619 = vadd.f32 %v901, %v4561
        %v4620 = vadd.f32 %v906, %v4566
        %v4621 = vadd.f32 %v909, %v4569
        %v4622 = vadd.f32 %v914, %v4574
        %v4623 = vadd.f32 %v917, %v4577
        %v4624 = vadd.f32 %v922, %v4582
        %v4625 = vadd.f32 %v925, %v4585
        %v4626 = vadd.f32 %v930, %v4590
        %v4627 = vadd.f32 %v933, %v4593
        %v4628 = vmul.f32 %v4596, 0.70710677
        %v4629 = vmul.f32 %v4597, 0.70710677
        %v4630 = vmul.f32 %v4598, 0.70710677
        %v4631 = vmul.f32 %v4599, 0.70710677
        %v4632 = vmul.f32 %v4600, 0.70710677
        %v4633 = vmul.f32 %v4601, 0.70710677
        %v4634 = vmul.f32 %v4602, 0.70710677
        %v4635 = vmul.f32 %v4603, 0.70710677
        %v4636 = vmul.f32 %v4604, 0.70710677
        %v4637 = vmul.f32 %v4605, 0.70710677
        %v4638 = vmul.f32 %v4606, 0.70710677
        %v4639 = vmul.f32 %v4607, 0.70710677
        %v4640 = vmul.f32 %v4608, 0.70710677
        %v4641 = vmul.f32 %v4609, 0.70710677
        %v4642 = vmul.f32 %v4610, 0.70710677
        %v4643 = vmul.f32 %v4611, 0.70710677
        %v4644 = vmul.f32 %v4612, 0.70710677
        %v4645 = vmul.f32 %v4613, 0.70710677
        %v4646 = vmul.f32 %v4614, 0.70710677
        %v4647 = vmul.f32 %v4615, 0.70710677
        %v4648 = vmul.f32 %v4616, 0.70710677
        %v4649 = vmul.f32 %v4617, 0.70710677
        %v4650 = vmul.f32 %v4618, 0.70710677
        %v4651 = vmul.f32 %v4619, 0.70710677
        %v4652 = vmul.f32 %v4620, 0.70710677
        %v4653 = vmul.f32 %v4621, 0.70710677
        %v4654 = vmul.f32 %v4622, 0.70710677
        %v4655 = vmul.f32 %v4623, 0.70710677
        %v4656 = vmul.f32 %v4624, 0.70710677
        %v4657 = vmul.f32 %v4625, 0.70710677
        %v4658 = vmul.f32 %v4626, 0.70710677
        %v4659 = vmul.f32 %v4627, 0.70710677
        %v4660 = vadd.f32 %v4470, 0.0
        %v4661 = vadd.f32 %v4473, 0.0
        %v4662 = vadd.f32 %v4478, 0.0
        %v4663 = vadd.f32 %v4481, 0.0
        %v4664 = vadd.f32 %v4486, 0.0
        %v4665 = vadd.f32 %v4489, 0.0
        %v4666 = vadd.f32 %v4494, 0.0
        %v4667 = vadd.f32 %v4497, 0.0
        %v4668 = vadd.f32 %v4502, 0.0
        %v4669 = vadd.f32 %v4505, 0.0
        %v4670 = vadd.f32 %v4510, 0.0
        %v4671 = vadd.f32 %v4513, 0.0
        %v4672 = vadd.f32 %v4518, 0.0
        %v4673 = vadd.f32 %v4521, 0.0
        %v4674 = vadd.f32 %v4526, 0.0
        %v4675 = vadd.f32 %v4529, 0.0
        %v4676 = vadd.f32 %v4534, 0.0
        %v4677 = vadd.f32 %v4537, 0.0
        %v4678 = vadd.f32 %v4542, 0.0
        %v4679 = vadd.f32 %v4545, 0.0
        %v4680 = vadd.f32 %v4550, 0.0
        %v4681 = vadd.f32 %v4553, 0.0
        %v4682 = vadd.f32 %v4558, 0.0
        %v4683 = vadd.f32 %v4561, 0.0
        %v4684 = vadd.f32 %v4566, 0.0
        %v4685 = vadd.f32 %v4569, 0.0
        %v4686 = vadd.f32 %v4574, 0.0
        %v4687 = vadd.f32 %v4577, 0.0
        %v4688 = vadd.f32 %v4582, 0.0
        %v4689 = vadd.f32 %v4585, 0.0
        %v4690 = vadd.f32 %v4590, 0.0
        %v4691 = vadd.f32 %v4593, 0.0
        %v4692 = vpack.c.bf16 %v4629, %v4628
        %v4693 = vpack.c.bf16 %v4631, %v4630
        %v4694 = vpack.c.bf16 %v4633, %v4632
        %v4695 = vpack.c.bf16 %v4635, %v4634
        %v4696 = vpack.c.bf16 %v4637, %v4636
        %v4697 = vpack.c.bf16 %v4639, %v4638
        %v4698 = vpack.c.bf16 %v4641, %v4640
        %v4699 = vpack.c.bf16 %v4643, %v4642
        %v4700 = vpack.c.bf16 %v4645, %v4644
        %v4701 = vpack.c.bf16 %v4647, %v4646
        %v4702 = vpack.c.bf16 %v4649, %v4648
        %v4703 = vpack.c.bf16 %v4651, %v4650
        %v4704 = vpack.c.bf16 %v4653, %v4652
        %v4705 = vpack.c.bf16 %v4655, %v4654
        %v4706 = vpack.c.bf16 %v4657, %v4656
        %v4707 = vpack.c.bf16 %v4659, %v4658
        %v4724 = vunpack.c.l.b16 %v4692
        %v4725 = vunpack.c.h.b16 %v4692
        %v4726 = vunpack.c.l.b16 %v4693
        %v4727 = vunpack.c.h.b16 %v4693
        %v4728 = vunpack.c.l.b16 %v4694
        %v4729 = vunpack.c.h.b16 %v4694
        %v4730 = vunpack.c.l.b16 %v4695
        %v4731 = vunpack.c.h.b16 %v4695
        %v4732 = vunpack.c.l.b16 %v4696
        %v4733 = vunpack.c.h.b16 %v4696
        %v4734 = vunpack.c.l.b16 %v4697
        %v4735 = vunpack.c.h.b16 %v4697
        %v4736 = vunpack.c.l.b16 %v4698
        %v4737 = vunpack.c.h.b16 %v4698
        %v4738 = vunpack.c.l.b16 %v4699
        %v4739 = vunpack.c.h.b16 %v4699
        %v4740 = vunpack.c.l.b16 %v4700
        %v4741 = vunpack.c.h.b16 %v4700
        %v4742 = vunpack.c.l.b16 %v4701
        %v4743 = vunpack.c.h.b16 %v4701
        %v4744 = vunpack.c.l.b16 %v4702
        %v4745 = vunpack.c.h.b16 %v4702
        %v4746 = vunpack.c.l.b16 %v4703
        %v4747 = vunpack.c.h.b16 %v4703
        %v4748 = vunpack.c.l.b16 %v4704
        %v4749 = vunpack.c.h.b16 %v4704
        %v4750 = vunpack.c.l.b16 %v4705
        %v4751 = vunpack.c.h.b16 %v4705
        %v4752 = vunpack.c.l.b16 %v4706
        %v4753 = vunpack.c.h.b16 %v4706
        %v4754 = vunpack.c.l.b16 %v4707
        %v4755 = vunpack.c.h.b16 %v4707
        %v4756 = vpack.c.b16 %v4724, %v4724
        %v4757 = vpack.c.b16 %v4725, %v4725
        %v4758 = vpack.c.b16 %v4726, %v4726
        %v4759 = vpack.c.b16 %v4727, %v4727
        %v4760 = vpack.c.b16 %v4728, %v4728
        %v4761 = vpack.c.b16 %v4729, %v4729
        %v4762 = vpack.c.b16 %v4730, %v4730
        %v4763 = vpack.c.b16 %v4731, %v4731
        %v4764 = vpack.c.b16 %v4732, %v4732
        %v4765 = vpack.c.b16 %v4733, %v4733
        %v4766 = vpack.c.b16 %v4734, %v4734
        %v4767 = vpack.c.b16 %v4735, %v4735
        %v4768 = vpack.c.b16 %v4736, %v4736
        %v4769 = vpack.c.b16 %v4737, %v4737
        %v4770 = vpack.c.b16 %v4738, %v4738
        %v4771 = vpack.c.b16 %v4739, %v4739
        %v4772 = vpack.c.b16 %v4740, %v4740
        %v4773 = vpack.c.b16 %v4741, %v4741
        %v4774 = vpack.c.b16 %v4742, %v4742
        %v4775 = vpack.c.b16 %v4743, %v4743
        %v4776 = vpack.c.b16 %v4744, %v4744
        %v4777 = vpack.c.b16 %v4745, %v4745
        %v4778 = vpack.c.b16 %v4746, %v4746
        %v4779 = vpack.c.b16 %v4747, %v4747
        %v4780 = vpack.c.b16 %v4748, %v4748
        %v4781 = vpack.c.b16 %v4749, %v4749
        %v4782 = vpack.c.b16 %v4750, %v4750
        %v4783 = vpack.c.b16 %v4751, %v4751
        %v4784 = vpack.c.b16 %v4752, %v4752
        %v4785 = vpack.c.b16 %v4753, %v4753
        %v4786 = vpack.c.b16 %v4754, %v4754
        %v4787 = vpack.c.b16 %v4755, %v4755
        %v4788 = vrot.slane %v4756, 6
        %v4789 = vrot.slane %v4788, 4
        %v4790 = vrot.slane %v4757, 6
        %v4791 = vsel %vm1211, %v4789, %v4790
        %v4792 = vrot.slane %v4790, 4
        %v4793 = vrot.slane %v4758, 6
        %v4794 = vrot.slane %v4793, 4
        %v4795 = vrot.slane %v4759, 6
        %v4796 = vsel %vm1211, %v4794, %v4795
        %v4797 = vrot.slane %v4795, 4
        %v4798 = vrot.slane %v4760, 6
        %v4799 = vrot.slane %v4798, 4
        %v4800 = vrot.slane %v4761, 6
        %v4801 = vsel %vm1211, %v4799, %v4800
        %v4802 = vrot.slane %v4800, 4
        %v4803 = vrot.slane %v4762, 6
        %v4804 = vrot.slane %v4803, 4
        %v4805 = vrot.slane %v4763, 6
        %v4806 = vsel %vm1211, %v4804, %v4805
        %v4807 = vrot.slane %v4805, 4
        %v4808 = vrot.slane %v4764, 6
        %v4809 = vrot.slane %v4808, 4
        %v4810 = vrot.slane %v4765, 6
        %v4811 = vsel %vm1211, %v4809, %v4810
        %v4812 = vrot.slane %v4810, 4
        %v4813 = vrot.slane %v4766, 6
        %v4814 = vrot.slane %v4813, 4
        %v4815 = vrot.slane %v4767, 6
        %v4816 = vsel %vm1211, %v4814, %v4815
        %v4817 = vrot.slane %v4815, 4
        %v4818 = vrot.slane %v4768, 6
        %v4819 = vrot.slane %v4818, 4
        %v4820 = vrot.slane %v4769, 6
        %v4821 = vsel %vm1211, %v4819, %v4820
        %v4822 = vrot.slane %v4820, 4
        %v4823 = vrot.slane %v4770, 6
        %v4824 = vrot.slane %v4823, 4
        %v4825 = vrot.slane %v4771, 6
        %v4826 = vsel %vm1211, %v4824, %v4825
        %v4827 = vrot.slane %v4825, 4
        %v4828 = vrot.slane %v4772, 6
        %v4829 = vrot.slane %v4828, 4
        %v4830 = vrot.slane %v4773, 6
        %v4831 = vsel %vm1211, %v4829, %v4830
        %v4832 = vrot.slane %v4830, 4
        %v4833 = vrot.slane %v4774, 6
        %v4834 = vrot.slane %v4833, 4
        %v4835 = vrot.slane %v4775, 6
        %v4836 = vsel %vm1211, %v4834, %v4835
        %v4837 = vrot.slane %v4835, 4
        %v4838 = vrot.slane %v4776, 6
        %v4839 = vrot.slane %v4838, 4
        %v4840 = vrot.slane %v4777, 6
        %v4841 = vsel %vm1211, %v4839, %v4840
        %v4842 = vrot.slane %v4840, 4
        %v4843 = vrot.slane %v4778, 6
        %v4844 = vrot.slane %v4843, 4
        %v4845 = vrot.slane %v4779, 6
        %v4846 = vsel %vm1211, %v4844, %v4845
        %v4847 = vrot.slane %v4845, 4
        %v4848 = vrot.slane %v4780, 6
        %v4849 = vrot.slane %v4848, 4
        %v4850 = vrot.slane %v4781, 6
        %v4851 = vsel %vm1211, %v4849, %v4850
        %v4852 = vrot.slane %v4850, 4
        %v4853 = vrot.slane %v4782, 6
        %v4854 = vrot.slane %v4853, 4
        %v4855 = vrot.slane %v4783, 6
        %v4856 = vsel %vm1211, %v4854, %v4855
        %v4857 = vrot.slane %v4855, 4
        %v4858 = vrot.slane %v4784, 6
        %v4859 = vrot.slane %v4858, 4
        %v4860 = vrot.slane %v4785, 6
        %v4861 = vsel %vm1211, %v4859, %v4860
        %v4862 = vrot.slane %v4860, 4
        %v4863 = vrot.slane %v4786, 6
        %v4864 = vrot.slane %v4863, 4
        %v4865 = vrot.slane %v4787, 6
        %v4866 = vsel %vm1211, %v4864, %v4865
        %v4867 = vrot.slane %v4865, 4
        %4916 = vst.msk [vmem:[%s1340] sm:$0xc] %vm577, %v4788
        %4917 = vst.msk [vmem:[%s1340 + $0x4] sm:$0xf] %vm527, %v4791
        %4918 = vst.msk [vmem:[%s1340 + $0x8] sm:$0x3] %vm552, %v4792
        %4919 = vst.msk [vmem:[%s1340 + $0xc] sm:$0xc] %vm577, %v4793
        %4920 = vst.msk [vmem:[%s1340 + $0x10] sm:$0xf] %vm527, %v4796
        %4921 = vst.msk [vmem:[%s1340 + $0x14] sm:$0x3] %vm552, %v4797
        %4922 = vst.msk [vmem:[%s1340 + $0x18] sm:$0xc] %vm577, %v4798
        %4923 = vst.msk [vmem:[%s1340 + $0x1c] sm:$0xf] %vm527, %v4801
        %4924 = vst.msk [vmem:[%s1340 + $0x20] sm:$0x3] %vm552, %v4802
        %4925 = vst.msk [vmem:[%s1340 + $0x24] sm:$0xc] %vm577, %v4803
        %4926 = vst.msk [vmem:[%s1340 + $0x28] sm:$0xf] %vm527, %v4806
        %4927 = vst.msk [vmem:[%s1340 + $0x2c] sm:$0x3] %vm552, %v4807
        %4928 = vst.msk [vmem:[%s1340 + $0x30] sm:$0xc] %vm577, %v4808
        %4929 = vst.msk [vmem:[%s1340 + $0x34] sm:$0xf] %vm527, %v4811
        %4930 = vst.msk [vmem:[%s1340 + $0x38] sm:$0x3] %vm552, %v4812
        %4931 = vst.msk [vmem:[%s1340 + $0x3c] sm:$0xc] %vm577, %v4813
        %4932 = vst.msk [vmem:[%s1340 + $0x40] sm:$0xf] %vm527, %v4816
        %4933 = vst.msk [vmem:[%s1340 + $0x44] sm:$0x3] %vm552, %v4817
        %4934 = vst.msk [vmem:[%s1340 + $0x48] sm:$0xc] %vm577, %v4818
        %4935 = vst.msk [vmem:[%s1340 + $0x4c] sm:$0xf] %vm527, %v4821
        %4936 = vst.msk [vmem:[%s1340 + $0x50] sm:$0x3] %vm552, %v4822
        %4937 = vst.msk [vmem:[%s1340 + $0x54] sm:$0xc] %vm577, %v4823
        %4938 = vst.msk [vmem:[%s1340 + $0x58] sm:$0xf] %vm527, %v4826
        %4939 = vst.msk [vmem:[%s1340 + $0x5c] sm:$0x3] %vm552, %v4827
        %4940 = vst.msk [vmem:[%s1340 + $0x60] sm:$0xc] %vm577, %v4828
        %4941 = vst.msk [vmem:[%s1340 + $0x64] sm:$0xf] %vm527, %v4831
        %4942 = vst.msk [vmem:[%s1340 + $0x68] sm:$0x3] %vm552, %v4832
        %4943 = vst.msk [vmem:[%s1340 + $0x6c] sm:$0xc] %vm577, %v4833
        %4944 = vst.msk [vmem:[%s1340 + $0x70] sm:$0xf] %vm527, %v4836
        %4945 = vst.msk [vmem:[%s1340 + $0x74] sm:$0x3] %vm552, %v4837
        %4946 = vst.msk [vmem:[%s1340 + $0x78] sm:$0xc] %vm577, %v4838
        %4947 = vst.msk [vmem:[%s1340 + $0x7c] sm:$0xf] %vm527, %v4841
        %4948 = vst.msk [vmem:[%s1340 + $0x80] sm:$0x3] %vm552, %v4842
        %4949 = vst.msk [vmem:[%s1340 + $0x84] sm:$0xc] %vm577, %v4843
        %4950 = vst.msk [vmem:[%s1340 + $0x88] sm:$0xf] %vm527, %v4846
        %4951 = vst.msk [vmem:[%s1340 + $0x8c] sm:$0x3] %vm552, %v4847
        %4952 = vst.msk [vmem:[%s1340 + $0x90] sm:$0xc] %vm577, %v4848
        %4953 = vst.msk [vmem:[%s1340 + $0x94] sm:$0xf] %vm527, %v4851
        %4954 = vst.msk [vmem:[%s1340 + $0x98] sm:$0x3] %vm552, %v4852
        %4955 = vst.msk [vmem:[%s1340 + $0x9c] sm:$0xc] %vm577, %v4853
        %4956 = vst.msk [vmem:[%s1340 + $0xa0] sm:$0xf] %vm527, %v4856
        %4957 = vst.msk [vmem:[%s1340 + $0xa4] sm:$0x3] %vm552, %v4857
        %4958 = vst.msk [vmem:[%s1340 + $0xa8] sm:$0xc] %vm577, %v4858
        %4959 = vst.msk [vmem:[%s1340 + $0xac] sm:$0xf] %vm527, %v4861
        %4960 = vst.msk [vmem:[%s1340 + $0xb0] sm:$0x3] %vm552, %v4862
        %4961 = vst.msk [vmem:[%s1340 + $0xb4] sm:$0xc] %vm577, %v4863
        %4962 = vst.msk [vmem:[%s1340 + $0xb8] sm:$0xf] %vm527, %v4866
        %4963 = vst.msk [vmem:[%s1340 + $0xbc] sm:$0x3] %vm552, %v4867
        %v4964 = vld [vmem:[#allocation2 + $0x30] sm:$0xe]
        %v4965 = vld [vmem:[#allocation2 + $0x34] sm:$0xf]
        %v4966 = vld [vmem:[#allocation2 + $0x38] sm:$0x1]
        %v4967 = vld [vmem:[#allocation2 + $0x3c] sm:$0xe]
        %v4968 = vld [vmem:[#allocation2 + $0x40] sm:$0xf]
        %v4969 = vld [vmem:[#allocation2 + $0x44] sm:$0x1]
        %v4970 = vld [vmem:[#allocation2 + $0x48] sm:$0xe]
        %v4971 = vld [vmem:[#allocation2 + $0x4c] sm:$0xf]
        %v4972 = vld [vmem:[#allocation2 + $0x50] sm:$0x1]
        %v4973 = vld [vmem:[#allocation2 + $0x54] sm:$0xe]
        %v4974 = vld [vmem:[#allocation2 + $0x58] sm:$0xf]
        %v4975 = vld [vmem:[#allocation2 + $0x5c] sm:$0x1]
        %v4976 = vld [vmem:[#allocation2 + $0x60] sm:$0xe]
        %v4977 = vld [vmem:[#allocation2 + $0x64] sm:$0xf]
        %v4978 = vld [vmem:[#allocation2 + $0x68] sm:$0x1]
        %v4979 = vld [vmem:[#allocation2 + $0x6c] sm:$0xe]
        %v4980 = vld [vmem:[#allocation2 + $0x70] sm:$0xf]
        %v4981 = vld [vmem:[#allocation2 + $0x74] sm:$0x1]
        %v4982 = vld [vmem:[#allocation2 + $0x78] sm:$0xe]
        %v4983 = vld [vmem:[#allocation2 + $0x7c] sm:$0xf]
        %v4984 = vld [vmem:[#allocation2 + $0x80] sm:$0x1]
        %v4985 = vld [vmem:[#allocation2 + $0x84] sm:$0xe]
        %v4986 = vld [vmem:[#allocation2 + $0x88] sm:$0xf]
        %v4987 = vld [vmem:[#allocation2 + $0x8c] sm:$0x1]
        %v4988 = vld [vmem:[#allocation2 + $0x90] sm:$0xe]
        %v4989 = vld [vmem:[#allocation2 + $0x94] sm:$0xf]
        %v4990 = vld [vmem:[#allocation2 + $0x98] sm:$0x1]
        %v4991 = vld [vmem:[#allocation2 + $0x9c] sm:$0xe]
        %v4992 = vld [vmem:[#allocation2 + $0xa0] sm:$0xf]
        %v4993 = vld [vmem:[#allocation2 + $0xa4] sm:$0x1]
        %v4994 = vld [vmem:[#allocation2 + $0xa8] sm:$0xe]
        %v4995 = vld [vmem:[#allocation2 + $0xac] sm:$0xf]
        %v4996 = vld [vmem:[#allocation2 + $0xb0] sm:$0x1]
        %v4997 = vld [vmem:[#allocation2 + $0xb4] sm:$0xe]
        %v4998 = vld [vmem:[#allocation2 + $0xb8] sm:$0xf]
        %v4999 = vld [vmem:[#allocation2 + $0xbc] sm:$0x1]
        %v5000 = vld [vmem:[#allocation2 + $0xc0] sm:$0xe]
        %v5001 = vld [vmem:[#allocation2 + $0xc4] sm:$0xf]
        %v5002 = vld [vmem:[#allocation2 + $0xc8] sm:$0x1]
        %v5003 = vld [vmem:[#allocation2 + $0xcc] sm:$0xe]
        %v5004 = vld [vmem:[#allocation2 + $0xd0] sm:$0xf]
        %v5005 = vld [vmem:[#allocation2 + $0xd4] sm:$0x1]
        %v5006 = vld [vmem:[#allocation2 + $0xd8] sm:$0xe]
        %v5007 = vld [vmem:[#allocation2 + $0xdc] sm:$0xf]
        %v5008 = vld [vmem:[#allocation2 + $0xe0] sm:$0x1]
        %v5009 = vld [vmem:[#allocation2 + $0xe4] sm:$0xe]
        %v5010 = vld [vmem:[#allocation2 + $0xe8] sm:$0xf]
        %v5011 = vld [vmem:[#allocation2 + $0xec] sm:$0x1]
        %v5012 = vld [vmem:[#allocation2 + $0xf0] sm:$0xe]
        %v5013 = vld [vmem:[#allocation2 + $0xf4] sm:$0xf]
        %v5014 = vld [vmem:[#allocation2 + $0xf8] sm:$0x1]
        %v5015 = vld [vmem:[#allocation2 + $0xfc] sm:$0xe]
        %v5016 = vld [vmem:[#allocation2 + $0x100] sm:$0xf]
        %v5017 = vld [vmem:[#allocation2 + $0x104] sm:$0x1]
        %v5018 = vld [vmem:[#allocation2 + $0x108] sm:$0xe]
        %v5019 = vld [vmem:[#allocation2 + $0x10c] sm:$0xf]
        %v5020 = vld [vmem:[#allocation2 + $0x110] sm:$0x1]
        %v5021 = vld [vmem:[#allocation2 + $0x114] sm:$0xe]
        %v5022 = vld [vmem:[#allocation2 + $0x118] sm:$0xf]
        %v5023 = vld [vmem:[#allocation2 + $0x11c] sm:$0x1]
        %vm5072 = vcmask 1042432
        %vm5073 = vcmask 1046532
        %vm5074 = vmor %vm5072, %vm5073
        %v5075 = vrot.slane %v4964, 5
        %v5076 = vrot.slane %v5075, 4
        %v5077 = vrot.slane %v4965, 5
        %v5078 = vsel %vm5074, %v5076, %v5077
        %v5079 = vrot.slane %v5077, 4
        %v5080 = vrot.slane %v4966, 5
        %v5081 = vsel %vm5074, %v5079, %v5080
        %v5082 = vrot.slane %v4967, 5
        %v5083 = vrot.slane %v5082, 4
        %v5084 = vrot.slane %v4968, 5
        %v5085 = vsel %vm5074, %v5083, %v5084
        %v5086 = vrot.slane %v5084, 4
        %v5087 = vrot.slane %v4969, 5
        %v5088 = vsel %vm5074, %v5086, %v5087
        %v5089 = vrot.slane %v4970, 5
        %v5090 = vrot.slane %v5089, 4
        %v5091 = vrot.slane %v4971, 5
        %v5092 = vsel %vm5074, %v5090, %v5091
        %v5093 = vrot.slane %v5091, 4
        %v5094 = vrot.slane %v4972, 5
        %v5095 = vsel %vm5074, %v5093, %v5094
        %v5096 = vrot.slane %v4973, 5
        %v5097 = vrot.slane %v5096, 4
        %v5098 = vrot.slane %v4974, 5
        %v5099 = vsel %vm5074, %v5097, %v5098
        %v5100 = vrot.slane %v5098, 4
        %v5101 = vrot.slane %v4975, 5
        %v5102 = vsel %vm5074, %v5100, %v5101
        %v5103 = vrot.slane %v4976, 5
        %v5104 = vrot.slane %v5103, 4
        %v5105 = vrot.slane %v4977, 5
        %v5106 = vsel %vm5074, %v5104, %v5105
        %v5107 = vrot.slane %v5105, 4
        %v5108 = vrot.slane %v4978, 5
        %v5109 = vsel %vm5074, %v5107, %v5108
        %v5110 = vrot.slane %v4979, 5
        %v5111 = vrot.slane %v5110, 4
        %v5112 = vrot.slane %v4980, 5
        %v5113 = vsel %vm5074, %v5111, %v5112
        %v5114 = vrot.slane %v5112, 4
        %v5115 = vrot.slane %v4981, 5
        %v5116 = vsel %vm5074, %v5114, %v5115
        %v5117 = vrot.slane %v4982, 5
        %v5118 = vrot.slane %v5117, 4
        %v5119 = vrot.slane %v4983, 5
        %v5120 = vsel %vm5074, %v5118, %v5119
        %v5121 = vrot.slane %v5119, 4
        %v5122 = vrot.slane %v4984, 5
        %v5123 = vsel %vm5074, %v5121, %v5122
        %v5124 = vrot.slane %v4985, 5
        %v5125 = vrot.slane %v5124, 4
        %v5126 = vrot.slane %v4986, 5
        %v5127 = vsel %vm5074, %v5125, %v5126
        %v5128 = vrot.slane %v5126, 4
        %v5129 = vrot.slane %v4987, 5
        %v5130 = vsel %vm5074, %v5128, %v5129
        %v5131 = vrot.slane %v4988, 5
        %v5132 = vrot.slane %v5131, 4
        %v5133 = vrot.slane %v4989, 5
        %v5134 = vsel %vm5074, %v5132, %v5133
        %v5135 = vrot.slane %v5133, 4
        %v5136 = vrot.slane %v4990, 5
        %v5137 = vsel %vm5074, %v5135, %v5136
        %v5138 = vrot.slane %v4991, 5
        %v5139 = vrot.slane %v5138, 4
        %v5140 = vrot.slane %v4992, 5
        %v5141 = vsel %vm5074, %v5139, %v5140
        %v5142 = vrot.slane %v5140, 4
        %v5143 = vrot.slane %v4993, 5
        %v5144 = vsel %vm5074, %v5142, %v5143
        %v5145 = vrot.slane %v4994, 5
        %v5146 = vrot.slane %v5145, 4
        %v5147 = vrot.slane %v4995, 5
        %v5148 = vsel %vm5074, %v5146, %v5147
        %v5149 = vrot.slane %v5147, 4
        %v5150 = vrot.slane %v4996, 5
        %v5151 = vsel %vm5074, %v5149, %v5150
        %v5152 = vrot.slane %v4997, 5
        %v5153 = vrot.slane %v5152, 4
        %v5154 = vrot.slane %v4998, 5
        %v5155 = vsel %vm5074, %v5153, %v5154
        %v5156 = vrot.slane %v5154, 4
        %v5157 = vrot.slane %v4999, 5
        %v5158 = vsel %vm5074, %v5156, %v5157
        %v5159 = vrot.slane %v5000, 5
        %v5160 = vrot.slane %v5159, 4
        %v5161 = vrot.slane %v5001, 5
        %v5162 = vsel %vm5074, %v5160, %v5161
        %v5163 = vrot.slane %v5161, 4
        %v5164 = vrot.slane %v5002, 5
        %v5165 = vsel %vm5074, %v5163, %v5164
        %v5166 = vrot.slane %v5003, 5
        %v5167 = vrot.slane %v5166, 4
        %v5168 = vrot.slane %v5004, 5
        %v5169 = vsel %vm5074, %v5167, %v5168
        %v5170 = vrot.slane %v5168, 4
        %v5171 = vrot.slane %v5005, 5
        %v5172 = vsel %vm5074, %v5170, %v5171
        %v5173 = vrot.slane %v5006, 5
        %v5174 = vrot.slane %v5173, 4
        %v5175 = vrot.slane %v5007, 5
        %v5176 = vsel %vm5074, %v5174, %v5175
        %v5177 = vrot.slane %v5175, 4
        %v5178 = vrot.slane %v5008, 5
        %v5179 = vsel %vm5074, %v5177, %v5178
        %v5180 = vrot.slane %v5009, 5
        %v5181 = vrot.slane %v5180, 4
        %v5182 = vrot.slane %v5010, 5
        %v5183 = vsel %vm5074, %v5181, %v5182
        %v5184 = vrot.slane %v5182, 4
        %v5185 = vrot.slane %v5011, 5
        %v5186 = vsel %vm5074, %v5184, %v5185
        %v5193 = vrot.slane %v5012, 5
        %v5194 = vrot.slane %v5193, 4
        %v5195 = vrot.slane %v5013, 5
        %v5196 = vsel %vm5074, %v5194, %v5195
        %v5197 = vrot.slane %v5195, 4
        %v5198 = vrot.slane %v5014, 5
        %v5199 = vsel %vm5074, %v5197, %v5198
        %v5200 = vrot.slane %v5015, 5
        %v5201 = vrot.slane %v5200, 4
        %v5202 = vrot.slane %v5016, 5
        %v5203 = vsel %vm5074, %v5201, %v5202
        %v5204 = vrot.slane %v5202, 4
        %v5205 = vrot.slane %v5017, 5
        %v5206 = vsel %vm5074, %v5204, %v5205
        %v5213 = vrot.slane %v5018, 5
        %v5214 = vrot.slane %v5213, 4
        %v5215 = vrot.slane %v5019, 5
        %v5216 = vsel %vm5074, %v5214, %v5215
        %v5217 = vrot.slane %v5215, 4
        %v5218 = vrot.slane %v5020, 5
        %v5219 = vsel %vm5074, %v5217, %v5218
        %v5220 = vrot.slane %v5021, 5
        %v5221 = vrot.slane %v5220, 4
        %v5222 = vrot.slane %v5022, 5
        %v5223 = vsel %vm5074, %v5221, %v5222
        %v5224 = vrot.slane %v5222, 4
        %v5225 = vrot.slane %v5023, 5
        %v5226 = vsel %vm5074, %v5224, %v5225
        %v5227 = vld [vmem:[#allocation2 + $0x30] sm:$0xc]
        %v5228 = vld [vmem:[#allocation2 + $0x38] sm:$0x3]
        %v5229 = vld [vmem:[#allocation2 + $0x3c] sm:$0xc]
        %v5230 = vld [vmem:[#allocation2 + $0x44] sm:$0x3]
        %v5231 = vld [vmem:[#allocation2 + $0x48] sm:$0xc]
        %v5232 = vld [vmem:[#allocation2 + $0x50] sm:$0x3]
        %v5233 = vld [vmem:[#allocation2 + $0x54] sm:$0xc]
        %v5234 = vld [vmem:[#allocation2 + $0x5c] sm:$0x3]
        %v5235 = vld [vmem:[#allocation2 + $0x60] sm:$0xc]
        %v5236 = vld [vmem:[#allocation2 + $0x68] sm:$0x3]
        %v5237 = vld [vmem:[#allocation2 + $0x6c] sm:$0xc]
        %v5238 = vld [vmem:[#allocation2 + $0x74] sm:$0x3]
        %v5239 = vld [vmem:[#allocation2 + $0x78] sm:$0xc]
        %v5240 = vld [vmem:[#allocation2 + $0x80] sm:$0x3]
        %v5241 = vld [vmem:[#allocation2 + $0x84] sm:$0xc]
        %v5242 = vld [vmem:[#allocation2 + $0x8c] sm:$0x3]
        %v5243 = vld [vmem:[#allocation2 + $0x90] sm:$0xc]
        %v5244 = vld [vmem:[#allocation2 + $0x98] sm:$0x3]
        %v5245 = vld [vmem:[#allocation2 + $0x9c] sm:$0xc]
        %v5246 = vld [vmem:[#allocation2 + $0xa4] sm:$0x3]
        %v5247 = vld [vmem:[#allocation2 + $0xa8] sm:$0xc]
        %v5248 = vld [vmem:[#allocation2 + $0xb0] sm:$0x3]
        %v5249 = vld [vmem:[#allocation2 + $0xb4] sm:$0xc]
        %v5250 = vld [vmem:[#allocation2 + $0xbc] sm:$0x3]
        %v5251 = vld [vmem:[#allocation2 + $0xc0] sm:$0xc]
        %v5252 = vld [vmem:[#allocation2 + $0xc8] sm:$0x3]
        %v5253 = vld [vmem:[#allocation2 + $0xcc] sm:$0xc]
        %v5254 = vld [vmem:[#allocation2 + $0xd4] sm:$0x3]
        %v5255 = vld [vmem:[#allocation2 + $0xd8] sm:$0xc]
        %v5256 = vld [vmem:[#allocation2 + $0xe0] sm:$0x3]
        %v5257 = vld [vmem:[#allocation2 + $0xe4] sm:$0xc]
        %v5258 = vld [vmem:[#allocation2 + $0xec] sm:$0x3]
        %v5259 = vld [vmem:[#allocation2 + $0xf0] sm:$0xc]
        %v5260 = vld [vmem:[#allocation2 + $0xf8] sm:$0x3]
        %v5261 = vld [vmem:[#allocation2 + $0xfc] sm:$0xc]
        %v5262 = vld [vmem:[#allocation2 + $0x104] sm:$0x3]
        %v5263 = vld [vmem:[#allocation2 + $0x108] sm:$0xc]
        %v5264 = vld [vmem:[#allocation2 + $0x110] sm:$0x3]
        %v5265 = vld [vmem:[#allocation2 + $0x114] sm:$0xc]
        %v5266 = vld [vmem:[#allocation2 + $0x11c] sm:$0x3]
        %v5299 = vrot.slane %v5227, 6
        %v5300 = vrot.slane %v5299, 4
        %v5301 = vrot.slane %v4965, 6
        %v5302 = vsel %vm1211, %v5300, %v5301
        %v5303 = vrot.slane %v5301, 4
        %v5304 = vrot.slane %v5228, 6
        %v5305 = vsel %vm1211, %v5303, %v5304
        %v5306 = vrot.slane %v5229, 6
        %v5307 = vrot.slane %v5306, 4
        %v5308 = vrot.slane %v4968, 6
        %v5309 = vsel %vm1211, %v5307, %v5308
        %v5310 = vrot.slane %v5308, 4
        %v5311 = vrot.slane %v5230, 6
        %v5312 = vsel %vm1211, %v5310, %v5311
        %v5313 = vrot.slane %v5231, 6
        %v5314 = vrot.slane %v5313, 4
        %v5315 = vrot.slane %v4971, 6
        %v5316 = vsel %vm1211, %v5314, %v5315
        %v5317 = vrot.slane %v5315, 4
        %v5318 = vrot.slane %v5232, 6
        %v5319 = vsel %vm1211, %v5317, %v5318
        %v5320 = vrot.slane %v5233, 6
        %v5321 = vrot.slane %v5320, 4
        %v5322 = vrot.slane %v4974, 6
        %v5323 = vsel %vm1211, %v5321, %v5322
        %v5324 = vrot.slane %v5322, 4
        %v5325 = vrot.slane %v5234, 6
        %v5326 = vsel %vm1211, %v5324, %v5325
        %v5327 = vrot.slane %v5235, 6
        %v5328 = vrot.slane %v5327, 4
        %v5329 = vrot.slane %v4977, 6
        %v5330 = vsel %vm1211, %v5328, %v5329
        %v5331 = vrot.slane %v5329, 4
        %v5332 = vrot.slane %v5236, 6
        %v5333 = vsel %vm1211, %v5331, %v5332
        %v5334 = vrot.slane %v5237, 6
        %v5335 = vrot.slane %v5334, 4
        %v5336 = vrot.slane %v4980, 6
        %v5337 = vsel %vm1211, %v5335, %v5336
        %v5338 = vrot.slane %v5336, 4
        %v5339 = vrot.slane %v5238, 6
        %v5340 = vsel %vm1211, %v5338, %v5339
        %v5341 = vrot.slane %v5239, 6
        %v5342 = vrot.slane %v5341, 4
        %v5343 = vrot.slane %v4983, 6
        %v5344 = vsel %vm1211, %v5342, %v5343
        %v5345 = vrot.slane %v5343, 4
        %v5346 = vrot.slane %v5240, 6
        %v5347 = vsel %vm1211, %v5345, %v5346
        %v5348 = vrot.slane %v5241, 6
        %v5349 = vrot.slane %v5348, 4
        %v5350 = vrot.slane %v4986, 6
        %v5351 = vsel %vm1211, %v5349, %v5350
        %v5352 = vrot.slane %v5350, 4
        %v5353 = vrot.slane %v5242, 6
        %v5354 = vsel %vm1211, %v5352, %v5353
        %v5355 = vrot.slane %v5243, 6
        %v5356 = vrot.slane %v5355, 4
        %v5357 = vrot.slane %v4989, 6
        %v5358 = vsel %vm1211, %v5356, %v5357
        %v5359 = vrot.slane %v5357, 4
        %v5360 = vrot.slane %v5244, 6
        %v5361 = vsel %vm1211, %v5359, %v5360
        %v5362 = vrot.slane %v5245, 6
        %v5363 = vrot.slane %v5362, 4
        %v5364 = vrot.slane %v4992, 6
        %v5365 = vsel %vm1211, %v5363, %v5364
        %v5366 = vrot.slane %v5364, 4
        %v5367 = vrot.slane %v5246, 6
        %v5368 = vsel %vm1211, %v5366, %v5367
        %v5369 = vrot.slane %v5247, 6
        %v5370 = vrot.slane %v5369, 4
        %v5371 = vrot.slane %v4995, 6
        %v5372 = vsel %vm1211, %v5370, %v5371
        %v5373 = vrot.slane %v5371, 4
        %v5374 = vrot.slane %v5248, 6
        %v5375 = vsel %vm1211, %v5373, %v5374
        %v5376 = vrot.slane %v5249, 6
        %v5377 = vrot.slane %v5376, 4
        %v5378 = vrot.slane %v4998, 6
        %v5379 = vsel %vm1211, %v5377, %v5378
        %v5380 = vrot.slane %v5378, 4
        %v5381 = vrot.slane %v5250, 6
        %v5382 = vsel %vm1211, %v5380, %v5381
        %v5383 = vrot.slane %v5251, 6
        %v5384 = vrot.slane %v5383, 4
        %v5385 = vrot.slane %v5001, 6
        %v5386 = vsel %vm1211, %v5384, %v5385
        %v5387 = vrot.slane %v5385, 4
        %v5388 = vrot.slane %v5252, 6
        %v5389 = vsel %vm1211, %v5387, %v5388
        %v5390 = vrot.slane %v5253, 6
        %v5391 = vrot.slane %v5390, 4
        %v5392 = vrot.slane %v5004, 6
        %v5393 = vsel %vm1211, %v5391, %v5392
        %v5394 = vrot.slane %v5392, 4
        %v5395 = vrot.slane %v5254, 6
        %v5396 = vsel %vm1211, %v5394, %v5395
        %v5397 = vrot.slane %v5255, 6
        %v5398 = vrot.slane %v5397, 4
        %v5399 = vrot.slane %v5007, 6
        %v5400 = vsel %vm1211, %v5398, %v5399
        %v5401 = vrot.slane %v5399, 4
        %v5402 = vrot.slane %v5256, 6
        %v5403 = vsel %vm1211, %v5401, %v5402
        %v5404 = vrot.slane %v5257, 6
        %v5405 = vrot.slane %v5404, 4
        %v5406 = vrot.slane %v5010, 6
        %v5407 = vsel %vm1211, %v5405, %v5406
        %v5408 = vrot.slane %v5406, 4
        %v5409 = vrot.slane %v5258, 6
        %v5410 = vsel %vm1211, %v5408, %v5409
        %v5411 = vunpack.c.l.b16 %v5078
        %v5412 = vunpack.c.l.b16 %v5081
        %v5413 = vunpack.c.l.b16 %v5085
        %v5414 = vunpack.c.l.b16 %v5088
        %v5415 = vunpack.c.l.b16 %v5092
        %v5416 = vunpack.c.l.b16 %v5095
        %v5417 = vunpack.c.l.b16 %v5099
        %v5418 = vunpack.c.l.b16 %v5102
        %v5419 = vunpack.c.l.b16 %v5106
        %v5420 = vunpack.c.l.b16 %v5109
        %v5421 = vunpack.c.l.b16 %v5113
        %v5422 = vunpack.c.l.b16 %v5116
        %v5423 = vunpack.c.l.b16 %v5120
        %v5424 = vunpack.c.l.b16 %v5123
        %v5425 = vunpack.c.l.b16 %v5127
        %v5426 = vunpack.c.l.b16 %v5130
        %v5427 = vunpack.c.l.b16 %v5134
        %v5428 = vunpack.c.l.b16 %v5137
        %v5429 = vunpack.c.l.b16 %v5141
        %v5430 = vunpack.c.l.b16 %v5144
        %v5431 = vunpack.c.l.b16 %v5148
        %v5432 = vunpack.c.l.b16 %v5151
        %v5433 = vunpack.c.l.b16 %v5155
        %v5434 = vunpack.c.l.b16 %v5158
        %v5435 = vunpack.c.l.b16 %v5162
        %v5436 = vunpack.c.l.b16 %v5165
        %v5437 = vunpack.c.l.b16 %v5169
        %v5438 = vunpack.c.l.b16 %v5172
        %v5439 = vunpack.c.l.b16 %v5176
        %v5440 = vunpack.c.l.b16 %v5179
        %v5441 = vunpack.c.l.b16 %v5183
        %v5442 = vunpack.c.l.b16 %v5186
        %v5443 = vpack.c.b16 %v5412, %v5411
        %v5444 = vpack.c.b16 %v5414, %v5413
        %v5445 = vpack.c.b16 %v5416, %v5415
        %v5446 = vpack.c.b16 %v5418, %v5417
        %v5447 = vpack.c.b16 %v5420, %v5419
        %v5448 = vpack.c.b16 %v5422, %v5421
        %v5449 = vpack.c.b16 %v5424, %v5423
        %v5450 = vpack.c.b16 %v5426, %v5425
        %v5451 = vpack.c.b16 %v5428, %v5427
        %v5452 = vpack.c.b16 %v5430, %v5429
        %v5453 = vpack.c.b16 %v5432, %v5431
        %v5454 = vpack.c.b16 %v5434, %v5433
        %v5455 = vpack.c.b16 %v5436, %v5435
        %v5456 = vpack.c.b16 %v5438, %v5437
        %v5457 = vpack.c.b16 %v5440, %v5439
        %v5458 = vpack.c.b16 %v5442, %v5441
        %v5459 = vunpack.c.l.b16 %v5196
        %v5460 = vunpack.c.l.b16 %v5199
        %v5461 = vunpack.c.l.b16 %v5203
        %v5462 = vunpack.c.l.b16 %v5206
        %v5463 = vpack.c.b16 %v5460, %v5459
        %v5464 = vpack.c.b16 %v5462, %v5461
        %5465 = vrot.lane.b32.xlu0 %v5445, 32
        %v5466 = vpop.permute.xlu0 %5465
        %5467 = vrot.lane.b32.xlu0 %v5446, 32
        %v5468 = vpop.permute.xlu0 %5467
        %5469 = vrot.lane.b32.xlu0 %v5447, 32
        %v5470 = vpop.permute.xlu0 %5469
        %5471 = vrot.lane.b32.xlu0 %v5448, 32
        %v5472 = vpop.permute.xlu0 %5471
        %5473 = vrot.lane.b32.xlu0 %v5449, 32
        %v5474 = vpop.permute.xlu0 %5473
        %5475 = vrot.lane.b32.xlu0 %v5450, 32
        %v5476 = vpop.permute.xlu0 %5475
        %5477 = vrot.lane.b32.xlu0 %v5451, 32
        %v5478 = vpop.permute.xlu0 %5477
        %5479 = vrot.lane.b32.xlu0 %v5452, 32
        %v5480 = vpop.permute.xlu0 %5479
        %5481 = vrot.lane.b32.xlu0 %v5453, 32
        %v5482 = vpop.permute.xlu0 %5481
        %5483 = vrot.lane.b32.xlu0 %v5454, 32
        %v5484 = vpop.permute.xlu0 %5483
        %5485 = vrot.lane.b32.xlu0 %v5455, 32
        %v5486 = vpop.permute.xlu0 %5485
        %5487 = vrot.lane.b32.xlu0 %v5456, 32
        %v5488 = vpop.permute.xlu0 %5487
        %5489 = vrot.lane.b32.xlu0 %v5457, 32
        %v5490 = vpop.permute.xlu0 %5489
        %5491 = vrot.lane.b32.xlu0 %v5458, 32
        %v5492 = vpop.permute.xlu0 %5491
        %5493 = vrot.lane.b32.xlu0 %v5463, 32
        %v5494 = vpop.permute.xlu0 %5493
        %5495 = vrot.lane.b32.xlu0 %v5464, 32
        %v5496 = vpop.permute.xlu0 %5495
        %v5497 = vunpack.c.l.b16 %v5216
        %v5498 = vunpack.c.l.b16 %v5219
        %v5499 = vunpack.c.l.b16 %v5223
        %v5500 = vunpack.c.l.b16 %v5226
        %v5501 = vpack.c.b16 %v5498, %v5497
        %v5502 = vpack.c.b16 %v5500, %v5499
        %5503 = vrot.lane.b32.xlu0 %v5447, 64
        %v5504 = vpop.permute.xlu0 %5503
        %5505 = vrot.lane.b32.xlu0 %v5448, 64
        %v5506 = vpop.permute.xlu0 %5505
        %5507 = vrot.lane.b32.xlu0 %v5449, 64
        %v5508 = vpop.permute.xlu0 %5507
        %5509 = vrot.lane.b32.xlu0 %v5450, 64
        %v5510 = vpop.permute.xlu0 %5509
        %5511 = vrot.lane.b32.xlu0 %v5451, 64
        %v5512 = vpop.permute.xlu0 %5511
        %5513 = vrot.lane.b32.xlu0 %v5452, 64
        %v5514 = vpop.permute.xlu0 %5513
        %5515 = vrot.lane.b32.xlu0 %v5453, 64
        %v5516 = vpop.permute.xlu0 %5515
        %5517 = vrot.lane.b32.xlu0 %v5454, 64
        %v5518 = vpop.permute.xlu0 %5517
        %5519 = vrot.lane.b32.xlu0 %v5455, 64
        %v5520 = vpop.permute.xlu0 %5519
        %5521 = vrot.lane.b32.xlu0 %v5456, 64
        %v5522 = vpop.permute.xlu0 %5521
        %5523 = vrot.lane.b32.xlu0 %v5457, 64
        %v5524 = vpop.permute.xlu0 %5523
        %5525 = vrot.lane.b32.xlu0 %v5458, 64
        %v5526 = vpop.permute.xlu0 %5525
        %5527 = vrot.lane.b32.xlu0 %v5463, 64
        %v5528 = vpop.permute.xlu0 %5527
        %5529 = vrot.lane.b32.xlu0 %v5464, 64
        %v5530 = vpop.permute.xlu0 %5529
        %5531 = vrot.lane.b32.xlu0 %v5501, 64
        %v5532 = vpop.permute.xlu0 %5531
        %5533 = vrot.lane.b32.xlu0 %v5502, 64
        %v5534 = vpop.permute.xlu0 %5533
        %v5535 = vunpack.c.l.b16 %v5302
        %v5536 = vunpack.c.l.b16 %v5305
        %v5537 = vunpack.c.l.b16 %v5309
        %v5538 = vunpack.c.l.b16 %v5312
        %v5539 = vunpack.c.l.b16 %v5316
        %v5540 = vunpack.c.l.b16 %v5319
        %v5541 = vunpack.c.l.b16 %v5323
        %v5542 = vunpack.c.l.b16 %v5326
        %v5543 = vunpack.c.l.b16 %v5330
        %v5544 = vunpack.c.l.b16 %v5333
        %v5545 = vunpack.c.l.b16 %v5337
        %v5546 = vunpack.c.l.b16 %v5340
        %v5547 = vunpack.c.l.b16 %v5344
        %v5548 = vunpack.c.l.b16 %v5347
        %v5549 = vunpack.c.l.b16 %v5351
        %v5550 = vunpack.c.l.b16 %v5354
        %v5551 = vunpack.c.l.b16 %v5358
        %v5552 = vunpack.c.l.b16 %v5361
        %v5553 = vunpack.c.l.b16 %v5365
        %v5554 = vunpack.c.l.b16 %v5368
        %v5555 = vunpack.c.l.b16 %v5372
        %v5556 = vunpack.c.l.b16 %v5375
        %v5557 = vunpack.c.l.b16 %v5379
        %v5558 = vunpack.c.l.b16 %v5382
        %v5559 = vunpack.c.l.b16 %v5386
        %v5560 = vunpack.c.l.b16 %v5389
        %v5561 = vunpack.c.l.b16 %v5393
        %v5562 = vunpack.c.l.b16 %v5396
        %v5563 = vunpack.c.l.b16 %v5400
        %v5564 = vunpack.c.l.b16 %v5403
        %v5565 = vunpack.c.l.b16 %v5407
        %v5566 = vunpack.c.l.b16 %v5410
        %v5567 = vpack.c.b16 %v5536, %v5535
        %v5568 = vpack.c.b16 %v5538, %v5537
        %v5569 = vpack.c.b16 %v5540, %v5539
        %v5570 = vpack.c.b16 %v5542, %v5541
        %v5571 = vpack.c.b16 %v5544, %v5543
        %v5572 = vpack.c.b16 %v5546, %v5545
        %v5573 = vpack.c.b16 %v5548, %v5547
        %v5574 = vpack.c.b16 %v5550, %v5549
        %v5575 = vpack.c.b16 %v5552, %v5551
        %v5576 = vpack.c.b16 %v5554, %v5553
        %v5577 = vpack.c.b16 %v5556, %v5555
        %v5578 = vpack.c.b16 %v5558, %v5557
        %v5579 = vpack.c.b16 %v5560, %v5559
        %v5580 = vpack.c.b16 %v5562, %v5561
        %v5581 = vpack.c.b16 %v5564, %v5563
        %v5582 = vpack.c.b16 %v5566, %v5565
        %5583 = vrot.lane.b32.xlu0 %v5567, 96
        %v5584 = vpop.permute.xlu0 %5583
        %5585 = vrot.lane.b32.xlu0 %v5568, 96
        %v5586 = vpop.permute.xlu0 %5585
        %5587 = vrot.lane.b32.xlu0 %v5569, 96
        %v5588 = vpop.permute.xlu0 %5587
        %5589 = vrot.lane.b32.xlu0 %v5570, 96
        %v5590 = vpop.permute.xlu0 %5589
        %5591 = vrot.lane.b32.xlu0 %v5571, 96
        %v5592 = vpop.permute.xlu0 %5591
        %5593 = vrot.lane.b32.xlu0 %v5572, 96
        %v5594 = vpop.permute.xlu0 %5593
        %5595 = vrot.lane.b32.xlu0 %v5573, 96
        %v5596 = vpop.permute.xlu0 %5595
        %5597 = vrot.lane.b32.xlu0 %v5574, 96
        %v5598 = vpop.permute.xlu0 %5597
        %5599 = vrot.lane.b32.xlu0 %v5575, 96
        %v5600 = vpop.permute.xlu0 %5599
        %5601 = vrot.lane.b32.xlu0 %v5576, 96
        %v5602 = vpop.permute.xlu0 %5601
        %5603 = vrot.lane.b32.xlu0 %v5577, 96
        %v5604 = vpop.permute.xlu0 %5603
        %5605 = vrot.lane.b32.xlu0 %v5578, 96
        %v5606 = vpop.permute.xlu0 %5605
        %5607 = vrot.lane.b32.xlu0 %v5579, 96
        %v5608 = vpop.permute.xlu0 %5607
        %5609 = vrot.lane.b32.xlu0 %v5580, 96
        %v5610 = vpop.permute.xlu0 %5609
        %5611 = vrot.lane.b32.xlu0 %v5581, 96
        %v5612 = vpop.permute.xlu0 %5611
        %5613 = vrot.lane.b32.xlu0 %v5582, 96
        %v5614 = vpop.permute.xlu0 %5613
        %v5617 = vsel %vm2326, %v5443, %v5466
        %v5620 = vsel %vm2326, %v5444, %v5468
        %v5623 = vsel %vm2326, %v5445, %v5470
        %v5626 = vsel %vm2326, %v5446, %v5472
        %v5629 = vsel %vm2326, %v5447, %v5474
        %v5632 = vsel %vm2326, %v5448, %v5476
        %v5635 = vsel %vm2326, %v5449, %v5478
        %v5638 = vsel %vm2326, %v5450, %v5480
        %v5641 = vsel %vm2326, %v5451, %v5482
        %v5644 = vsel %vm2326, %v5452, %v5484
        %v5647 = vsel %vm2326, %v5453, %v5486
        %v5650 = vsel %vm2326, %v5454, %v5488
        %v5653 = vsel %vm2326, %v5455, %v5490
        %v5656 = vsel %vm2326, %v5456, %v5492
        %v5659 = vsel %vm2326, %v5457, %v5494
        %v5662 = vsel %vm2326, %v5458, %v5496
        %v5664 = vsel %vm2375, %v5617, %v5504
        %v5666 = vsel %vm2375, %v5620, %v5506
        %v5668 = vsel %vm2375, %v5623, %v5508
        %v5670 = vsel %vm2375, %v5626, %v5510
        %v5672 = vsel %vm2375, %v5629, %v5512
        %v5674 = vsel %vm2375, %v5632, %v5514
        %v5676 = vsel %vm2375, %v5635, %v5516
        %v5678 = vsel %vm2375, %v5638, %v5518
        %v5680 = vsel %vm2375, %v5641, %v5520
        %v5682 = vsel %vm2375, %v5644, %v5522
        %v5684 = vsel %vm2375, %v5647, %v5524
        %v5686 = vsel %vm2375, %v5650, %v5526
        %v5688 = vsel %vm2375, %v5653, %v5528
        %v5690 = vsel %vm2375, %v5656, %v5530
        %v5692 = vsel %vm2375, %v5659, %v5532
        %v5694 = vsel %vm2375, %v5662, %v5534
        %v5696 = vsel %vm2408, %v5664, %v5584
        %v5699 = vsel %vm2408, %v5666, %v5586
        %v5702 = vsel %vm2408, %v5668, %v5588
        %v5705 = vsel %vm2408, %v5670, %v5590
        %v5708 = vsel %vm2408, %v5672, %v5592
        %v5711 = vsel %vm2408, %v5674, %v5594
        %v5714 = vsel %vm2408, %v5676, %v5596
        %v5717 = vsel %vm2408, %v5678, %v5598
        %v5720 = vsel %vm2408, %v5680, %v5600
        %v5723 = vsel %vm2408, %v5682, %v5602
        %v5726 = vsel %vm2408, %v5684, %v5604
        %v5729 = vsel %vm2408, %v5686, %v5606
        %v5732 = vsel %vm2408, %v5688, %v5608
        %v5735 = vsel %vm2408, %v5690, %v5610
        %v5738 = vsel %vm2408, %v5692, %v5612
        %v5741 = vsel %vm2408, %v5694, %v5614
        %5743 = vst [vmem:[#allocation3] sm:$0xff] %v5696
        %5744 = vst [vmem:[#allocation3 + $0x18] sm:$0xff] %v5699
        %5745 = vst [vmem:[#allocation3 + $0x30] sm:$0xff] %v5702
        %5746 = vst [vmem:[#allocation3 + $0x48] sm:$0xff] %v5705
        %5747 = vst [vmem:[#allocation3 + $0x60] sm:$0xff] %v5708
        %5748 = vst [vmem:[#allocation3 + $0x78] sm:$0xff] %v5711
        %5749 = vst [vmem:[#allocation3 + $0x90] sm:$0xff] %v5714
        %5750 = vst [vmem:[#allocation3 + $0xa8] sm:$0xff] %v5717
        %5751 = vst [vmem:[#allocation3 + $0xc0] sm:$0xff] %v5720
        %5752 = vst [vmem:[#allocation3 + $0xd8] sm:$0xff] %v5723
        %5753 = vst [vmem:[#allocation3 + $0xf0] sm:$0xff] %v5726
        %5754 = vst [vmem:[#allocation3 + $0x108] sm:$0xff] %v5729
        %5755 = vst [vmem:[#allocation3 + $0x120] sm:$0xff] %v5732
        %5756 = vst [vmem:[#allocation3 + $0x138] sm:$0xff] %v5735
        %5757 = vst [vmem:[#allocation3 + $0x150] sm:$0xff] %v5738
        %5758 = vst [vmem:[#allocation3 + $0x168] sm:$0xff] %v5741
        %v5763 = vrot.slane %v5259, 6
        %v5764 = vrot.slane %v5763, 4
        %v5765 = vrot.slane %v5013, 6
        %v5766 = vsel %vm1211, %v5764, %v5765
        %v5767 = vrot.slane %v5765, 4
        %v5768 = vrot.slane %v5260, 6
        %v5769 = vsel %vm1211, %v5767, %v5768
        %v5770 = vrot.slane %v5261, 6
        %v5771 = vrot.slane %v5770, 4
        %v5772 = vrot.slane %v5016, 6
        %v5773 = vsel %vm1211, %v5771, %v5772
        %v5774 = vrot.slane %v5772, 4
        %v5775 = vrot.slane %v5262, 6
        %v5776 = vsel %vm1211, %v5774, %v5775
        %v5781 = vrot.slane %v5263, 6
        %v5782 = vrot.slane %v5781, 4
        %v5783 = vrot.slane %v5019, 6
        %v5784 = vsel %vm1211, %v5782, %v5783
        %v5785 = vrot.slane %v5783, 4
        %v5786 = vrot.slane %v5264, 6
        %v5787 = vsel %vm1211, %v5785, %v5786
        %v5788 = vrot.slane %v5265, 6
        %v5789 = vrot.slane %v5788, 4
        %v5790 = vrot.slane %v5022, 6
        %v5791 = vsel %vm1211, %v5789, %v5790
        %v5792 = vrot.slane %v5790, 4
        %v5793 = vrot.slane %v5266, 6
        %v5794 = vsel %vm1211, %v5792, %v5793
        %v5795 = vld [vmem:[#allocation2 + $0x30] sm:$0x8]
        %v5796 = vld [vmem:[#allocation2 + $0x34] sm:$0xf]
        %v5797 = vld [vmem:[#allocation2 + $0x38] sm:$0x7]
        %v5798 = vld [vmem:[#allocation2 + $0x3c] sm:$0x8]
        %v5799 = vld [vmem:[#allocation2 + $0x40] sm:$0xf]
        %v5800 = vld [vmem:[#allocation2 + $0x44] sm:$0x7]
        %v5801 = vld [vmem:[#allocation2 + $0x48] sm:$0x8]
        %v5802 = vld [vmem:[#allocation2 + $0x4c] sm:$0xf]
        %v5803 = vld [vmem:[#allocation2 + $0x50] sm:$0x7]
        %v5804 = vld [vmem:[#allocation2 + $0x54] sm:$0x8]
        %v5805 = vld [vmem:[#allocation2 + $0x58] sm:$0xf]
        %v5806 = vld [vmem:[#allocation2 + $0x5c] sm:$0x7]
        %v5807 = vld [vmem:[#allocation2 + $0x60] sm:$0x8]
        %v5808 = vld [vmem:[#allocation2 + $0x64] sm:$0xf]
        %v5809 = vld [vmem:[#allocation2 + $0x68] sm:$0x7]
        %v5810 = vld [vmem:[#allocation2 + $0x6c] sm:$0x8]
        %v5811 = vld [vmem:[#allocation2 + $0x70] sm:$0xf]
        %v5812 = vld [vmem:[#allocation2 + $0x74] sm:$0x7]
        %v5813 = vld [vmem:[#allocation2 + $0x78] sm:$0x8]
        %v5814 = vld [vmem:[#allocation2 + $0x7c] sm:$0xf]
        %v5815 = vld [vmem:[#allocation2 + $0x80] sm:$0x7]
        %v5816 = vld [vmem:[#allocation2 + $0x84] sm:$0x8]
        %v5817 = vld [vmem:[#allocation2 + $0x88] sm:$0xf]
        %v5818 = vld [vmem:[#allocation2 + $0x8c] sm:$0x7]
        %v5819 = vld [vmem:[#allocation2 + $0x90] sm:$0x8]
        %v5820 = vld [vmem:[#allocation2 + $0x94] sm:$0xf]
        %v5821 = vld [vmem:[#allocation2 + $0x98] sm:$0x7]
        %v5822 = vld [vmem:[#allocation2 + $0x9c] sm:$0x8]
        %v5823 = vld [vmem:[#allocation2 + $0xa0] sm:$0xf]
        %v5824 = vld [vmem:[#allocation2 + $0xa4] sm:$0x7]
        %v5825 = vld [vmem:[#allocation2 + $0xa8] sm:$0x8]
        %v5826 = vld [vmem:[#allocation2 + $0xac] sm:$0xf]
        %v5827 = vld [vmem:[#allocation2 + $0xb0] sm:$0x7]
        %v5828 = vld [vmem:[#allocation2 + $0xb4] sm:$0x8]
        %v5829 = vld [vmem:[#allocation2 + $0xb8] sm:$0xf]
        %v5830 = vld [vmem:[#allocation2 + $0xbc] sm:$0x7]
        %v5831 = vld [vmem:[#allocation2 + $0xc0] sm:$0x8]
        %v5832 = vld [vmem:[#allocation2 + $0xc4] sm:$0xf]
        %v5833 = vld [vmem:[#allocation2 + $0xc8] sm:$0x7]
        %v5834 = vld [vmem:[#allocation2 + $0xcc] sm:$0x8]
        %v5835 = vld [vmem:[#allocation2 + $0xd0] sm:$0xf]
        %v5836 = vld [vmem:[#allocation2 + $0xd4] sm:$0x7]
        %v5837 = vld [vmem:[#allocation2 + $0xd8] sm:$0x8]
        %v5838 = vld [vmem:[#allocation2 + $0xdc] sm:$0xf]
        %v5839 = vld [vmem:[#allocation2 + $0xe0] sm:$0x7]
        %v5840 = vld [vmem:[#allocation2 + $0xe4] sm:$0x8]
        %v5841 = vld [vmem:[#allocation2 + $0xe8] sm:$0xf]
        %v5842 = vld [vmem:[#allocation2 + $0xec] sm:$0x7]
        %v5843 = vld [vmem:[#allocation2 + $0xf0] sm:$0x8]
        %v5844 = vld [vmem:[#allocation2 + $0xf4] sm:$0xf]
        %v5845 = vld [vmem:[#allocation2 + $0xf8] sm:$0x7]
        %v5846 = vld [vmem:[#allocation2 + $0xfc] sm:$0x8]
        %v5847 = vld [vmem:[#allocation2 + $0x100] sm:$0xf]
        %v5848 = vld [vmem:[#allocation2 + $0x104] sm:$0x7]
        %v5849 = vld [vmem:[#allocation2 + $0x108] sm:$0x8]
        %v5850 = vld [vmem:[#allocation2 + $0x10c] sm:$0xf]
        %v5851 = vld [vmem:[#allocation2 + $0x110] sm:$0x7]
        %v5852 = vld [vmem:[#allocation2 + $0x114] sm:$0x8]
        %v5853 = vld [vmem:[#allocation2 + $0x118] sm:$0xf]
        %v5854 = vld [vmem:[#allocation2 + $0x11c] sm:$0x7]
        %vm5903 = vcmask 1040384
        %vm5904 = vcmask 1044484
        %vm5905 = vmor %vm5903, %vm5904
        %v5906 = vrot.slane %v5795, 7
        %v5907 = vrot.slane %v5906, 4
        %v5908 = vrot.slane %v5796, 7
        %v5909 = vsel %vm5905, %v5907, %v5908
        %v5910 = vrot.slane %v5908, 4
        %v5911 = vrot.slane %v5797, 7
        %v5912 = vsel %vm5905, %v5910, %v5911
        %v5913 = vrot.slane %v5798, 7
        %v5914 = vrot.slane %v5913, 4
        %v5915 = vrot.slane %v5799, 7
        %v5916 = vsel %vm5905, %v5914, %v5915
        %v5917 = vrot.slane %v5915, 4
        %v5918 = vrot.slane %v5800, 7
        %v5919 = vsel %vm5905, %v5917, %v5918
        %v5920 = vrot.slane %v5801, 7
        %v5921 = vrot.slane %v5920, 4
        %v5922 = vrot.slane %v5802, 7
        %v5923 = vsel %vm5905, %v5921, %v5922
        %v5924 = vrot.slane %v5922, 4
        %v5925 = vrot.slane %v5803, 7
        %v5926 = vsel %vm5905, %v5924, %v5925
        %v5927 = vrot.slane %v5804, 7
        %v5928 = vrot.slane %v5927, 4
        %v5929 = vrot.slane %v5805, 7
        %v5930 = vsel %vm5905, %v5928, %v5929
        %v5931 = vrot.slane %v5929, 4
        %v5932 = vrot.slane %v5806, 7
        %v5933 = vsel %vm5905, %v5931, %v5932
        %v5934 = vrot.slane %v5807, 7
        %v5935 = vrot.slane %v5934, 4
        %v5936 = vrot.slane %v5808, 7
        %v5937 = vsel %vm5905, %v5935, %v5936
        %v5938 = vrot.slane %v5936, 4
        %v5939 = vrot.slane %v5809, 7
        %v5940 = vsel %vm5905, %v5938, %v5939
        %v5941 = vrot.slane %v5810, 7
        %v5942 = vrot.slane %v5941, 4
        %v5943 = vrot.slane %v5811, 7
        %v5944 = vsel %vm5905, %v5942, %v5943
        %v5945 = vrot.slane %v5943, 4
        %v5946 = vrot.slane %v5812, 7
        %v5947 = vsel %vm5905, %v5945, %v5946
        %v5948 = vrot.slane %v5813, 7
        %v5949 = vrot.slane %v5948, 4
        %v5950 = vrot.slane %v5814, 7
        %v5951 = vsel %vm5905, %v5949, %v5950
        %v5952 = vrot.slane %v5950, 4
        %v5953 = vrot.slane %v5815, 7
        %v5954 = vsel %vm5905, %v5952, %v5953
        %v5955 = vrot.slane %v5816, 7
        %v5956 = vrot.slane %v5955, 4
        %v5957 = vrot.slane %v5817, 7
        %v5958 = vsel %vm5905, %v5956, %v5957
        %v5959 = vrot.slane %v5957, 4
        %v5960 = vrot.slane %v5818, 7
        %v5961 = vsel %vm5905, %v5959, %v5960
        %v5962 = vrot.slane %v5819, 7
        %v5963 = vrot.slane %v5962, 4
        %v5964 = vrot.slane %v5820, 7
        %v5965 = vsel %vm5905, %v5963, %v5964
        %v5966 = vrot.slane %v5964, 4
        %v5967 = vrot.slane %v5821, 7
        %v5968 = vsel %vm5905, %v5966, %v5967
        %v5969 = vrot.slane %v5822, 7
        %v5970 = vrot.slane %v5969, 4
        %v5971 = vrot.slane %v5823, 7
        %v5972 = vsel %vm5905, %v5970, %v5971
        %v5973 = vrot.slane %v5971, 4
        %v5974 = vrot.slane %v5824, 7
        %v5975 = vsel %vm5905, %v5973, %v5974
        %v5976 = vrot.slane %v5825, 7
        %v5977 = vrot.slane %v5976, 4
        %v5978 = vrot.slane %v5826, 7
        %v5979 = vsel %vm5905, %v5977, %v5978
        %v5980 = vrot.slane %v5978, 4
        %v5981 = vrot.slane %v5827, 7
        %v5982 = vsel %vm5905, %v5980, %v5981
        %v5983 = vrot.slane %v5828, 7
        %v5984 = vrot.slane %v5983, 4
        %v5985 = vrot.slane %v5829, 7
        %v5986 = vsel %vm5905, %v5984, %v5985
        %v5987 = vrot.slane %v5985, 4
        %v5988 = vrot.slane %v5830, 7
        %v5989 = vsel %vm5905, %v5987, %v5988
        %v5990 = vrot.slane %v5831, 7
        %v5991 = vrot.slane %v5990, 4
        %v5992 = vrot.slane %v5832, 7
        %v5993 = vsel %vm5905, %v5991, %v5992
        %v5994 = vrot.slane %v5992, 4
        %v5995 = vrot.slane %v5833, 7
        %v5996 = vsel %vm5905, %v5994, %v5995
        %v5997 = vrot.slane %v5834, 7
        %v5998 = vrot.slane %v5997, 4
        %v5999 = vrot.slane %v5835, 7
        %v6000 = vsel %vm5905, %v5998, %v5999
        %v6001 = vrot.slane %v5999, 4
        %v6002 = vrot.slane %v5836, 7
        %v6003 = vsel %vm5905, %v6001, %v6002
        %v6004 = vrot.slane %v5837, 7
        %v6005 = vrot.slane %v6004, 4
        %v6006 = vrot.slane %v5838, 7
        %v6007 = vsel %vm5905, %v6005, %v6006
        %v6008 = vrot.slane %v6006, 4
        %v6009 = vrot.slane %v5839, 7
        %v6010 = vsel %vm5905, %v6008, %v6009
        %v6011 = vrot.slane %v5840, 7
        %v6012 = vrot.slane %v6011, 4
        %v6013 = vrot.slane %v5841, 7
        %v6014 = vsel %vm5905, %v6012, %v6013
        %v6015 = vrot.slane %v6013, 4
        %v6016 = vrot.slane %v5842, 7
        %v6017 = vsel %vm5905, %v6015, %v6016
        %v6024 = vrot.slane %v5843, 7
        %v6025 = vrot.slane %v6024, 4
        %v6026 = vrot.slane %v5844, 7
        %v6027 = vsel %vm5905, %v6025, %v6026
        %v6028 = vrot.slane %v6026, 4
        %v6029 = vrot.slane %v5845, 7
        %v6030 = vsel %vm5905, %v6028, %v6029
        %v6031 = vrot.slane %v5846, 7
        %v6032 = vrot.slane %v6031, 4
        %v6033 = vrot.slane %v5847, 7
        %v6034 = vsel %vm5905, %v6032, %v6033
        %v6035 = vrot.slane %v6033, 4
        %v6036 = vrot.slane %v5848, 7
        %v6037 = vsel %vm5905, %v6035, %v6036
        %v6038 = vunpack.c.l.b16 %v5766
        %v6039 = vunpack.c.l.b16 %v5769
        %v6040 = vunpack.c.l.b16 %v5773
        %v6041 = vunpack.c.l.b16 %v5776
        %v6042 = vpack.c.b16 %v6039, %v6038
        %v6043 = vpack.c.b16 %v6041, %v6040
        %v6044 = vunpack.c.l.b16 %v5784
        %v6045 = vunpack.c.l.b16 %v5787
        %v6046 = vunpack.c.l.b16 %v5791
        %v6047 = vunpack.c.l.b16 %v5794
        %v6048 = vpack.c.b16 %v6045, %v6044
        %v6049 = vpack.c.b16 %v6047, %v6046
        %6050 = vrot.lane.b32.xlu0 %v5571, 32
        %v6051 = vpop.permute.xlu0 %6050
        %6052 = vrot.lane.b32.xlu0 %v5572, 32
        %v6053 = vpop.permute.xlu0 %6052
        %6054 = vrot.lane.b32.xlu0 %v5573, 32
        %v6055 = vpop.permute.xlu0 %6054
        %6056 = vrot.lane.b32.xlu0 %v5574, 32
        %v6057 = vpop.permute.xlu0 %6056
        %6058 = vrot.lane.b32.xlu0 %v5575, 32
        %v6059 = vpop.permute.xlu0 %6058
        %6060 = vrot.lane.b32.xlu0 %v5576, 32
        %v6061 = vpop.permute.xlu0 %6060
        %6062 = vrot.lane.b32.xlu0 %v5577, 32
        %v6063 = vpop.permute.xlu0 %6062
        %6064 = vrot.lane.b32.xlu0 %v5578, 32
        %v6065 = vpop.permute.xlu0 %6064
        %6066 = vrot.lane.b32.xlu0 %v5579, 32
        %v6067 = vpop.permute.xlu0 %6066
        %6068 = vrot.lane.b32.xlu0 %v5580, 32
        %v6069 = vpop.permute.xlu0 %6068
        %6070 = vrot.lane.b32.xlu0 %v5581, 32
        %v6071 = vpop.permute.xlu0 %6070
        %6072 = vrot.lane.b32.xlu0 %v5582, 32
        %v6073 = vpop.permute.xlu0 %6072
        %6074 = vrot.lane.b32.xlu0 %v6042, 32
        %v6075 = vpop.permute.xlu0 %6074
        %6076 = vrot.lane.b32.xlu0 %v6043, 32
        %v6077 = vpop.permute.xlu0 %6076
        %6078 = vrot.lane.b32.xlu0 %v6048, 32
        %v6079 = vpop.permute.xlu0 %6078
        %6080 = vrot.lane.b32.xlu0 %v6049, 32
        %v6081 = vpop.permute.xlu0 %6080
        %v6082 = vunpack.c.l.b16 %v5909
        %v6083 = vunpack.c.l.b16 %v5912
        %v6084 = vunpack.c.l.b16 %v5916
        %v6085 = vunpack.c.l.b16 %v5919
        %v6086 = vunpack.c.l.b16 %v5923
        %v6087 = vunpack.c.l.b16 %v5926
        %v6088 = vunpack.c.l.b16 %v5930
        %v6089 = vunpack.c.l.b16 %v5933
        %v6090 = vunpack.c.l.b16 %v5937
        %v6091 = vunpack.c.l.b16 %v5940
        %v6092 = vunpack.c.l.b16 %v5944
        %v6093 = vunpack.c.l.b16 %v5947
        %v6094 = vunpack.c.l.b16 %v5951
        %v6095 = vunpack.c.l.b16 %v5954
        %v6096 = vunpack.c.l.b16 %v5958
        %v6097 = vunpack.c.l.b16 %v5961
        %v6098 = vunpack.c.l.b16 %v5965
        %v6099 = vunpack.c.l.b16 %v5968
        %v6100 = vunpack.c.l.b16 %v5972
        %v6101 = vunpack.c.l.b16 %v5975
        %v6102 = vunpack.c.l.b16 %v5979
        %v6103 = vunpack.c.l.b16 %v5982
        %v6104 = vunpack.c.l.b16 %v5986
        %v6105 = vunpack.c.l.b16 %v5989
        %v6106 = vunpack.c.l.b16 %v5993
        %v6107 = vunpack.c.l.b16 %v5996
        %v6108 = vunpack.c.l.b16 %v6000
        %v6109 = vunpack.c.l.b16 %v6003
        %v6110 = vunpack.c.l.b16 %v6007
        %v6111 = vunpack.c.l.b16 %v6010
        %v6112 = vunpack.c.l.b16 %v6014
        %v6113 = vunpack.c.l.b16 %v6017
        %v6114 = vpack.c.b16 %v6083, %v6082
        %v6115 = vpack.c.b16 %v6085, %v6084
        %v6116 = vpack.c.b16 %v6087, %v6086
        %v6117 = vpack.c.b16 %v6089, %v6088
        %v6118 = vpack.c.b16 %v6091, %v6090
        %v6119 = vpack.c.b16 %v6093, %v6092
        %v6120 = vpack.c.b16 %v6095, %v6094
        %v6121 = vpack.c.b16 %v6097, %v6096
        %v6122 = vpack.c.b16 %v6099, %v6098
        %v6123 = vpack.c.b16 %v6101, %v6100
        %v6124 = vpack.c.b16 %v6103, %v6102
        %v6125 = vpack.c.b16 %v6105, %v6104
        %v6126 = vpack.c.b16 %v6107, %v6106
        %v6127 = vpack.c.b16 %v6109, %v6108
        %v6128 = vpack.c.b16 %v6111, %v6110
        %v6129 = vpack.c.b16 %v6113, %v6112
        %6130 = vrot.lane.b32.xlu0 %v6114, 64
        %v6131 = vpop.permute.xlu0 %6130
        %6132 = vrot.lane.b32.xlu0 %v6115, 64
        %v6133 = vpop.permute.xlu0 %6132
        %6134 = vrot.lane.b32.xlu0 %v6116, 64
        %v6135 = vpop.permute.xlu0 %6134
        %6136 = vrot.lane.b32.xlu0 %v6117, 64
        %v6137 = vpop.permute.xlu0 %6136
        %6138 = vrot.lane.b32.xlu0 %v6118, 64
        %v6139 = vpop.permute.xlu0 %6138
        %6140 = vrot.lane.b32.xlu0 %v6119, 64
        %v6141 = vpop.permute.xlu0 %6140
        %6142 = vrot.lane.b32.xlu0 %v6120, 64
        %v6143 = vpop.permute.xlu0 %6142
        %6144 = vrot.lane.b32.xlu0 %v6121, 64
        %v6145 = vpop.permute.xlu0 %6144
        %6146 = vrot.lane.b32.xlu0 %v6122, 64
        %v6147 = vpop.permute.xlu0 %6146
        %6148 = vrot.lane.b32.xlu0 %v6123, 64
        %v6149 = vpop.permute.xlu0 %6148
        %6150 = vrot.lane.b32.xlu0 %v6124, 64
        %v6151 = vpop.permute.xlu0 %6150
        %6152 = vrot.lane.b32.xlu0 %v6125, 64
        %v6153 = vpop.permute.xlu0 %6152
        %6154 = vrot.lane.b32.xlu0 %v6126, 64
        %v6155 = vpop.permute.xlu0 %6154
        %6156 = vrot.lane.b32.xlu0 %v6127, 64
        %v6157 = vpop.permute.xlu0 %6156
        %6158 = vrot.lane.b32.xlu0 %v6128, 64
        %v6159 = vpop.permute.xlu0 %6158
        %6160 = vrot.lane.b32.xlu0 %v6129, 64
        %v6161 = vpop.permute.xlu0 %6160
        %v6162 = vunpack.c.l.b16 %v6027
        %v6163 = vunpack.c.l.b16 %v6030
        %v6164 = vunpack.c.l.b16 %v6034
        %v6165 = vunpack.c.l.b16 %v6037
        %v6166 = vpack.c.b16 %v6163, %v6162
        %v6167 = vpack.c.b16 %v6165, %v6164
        %6168 = vrot.lane.b32.xlu0 %v6116, 96
        %v6169 = vpop.permute.xlu0 %6168
        %6170 = vrot.lane.b32.xlu0 %v6117, 96
        %v6171 = vpop.permute.xlu0 %6170
        %6172 = vrot.lane.b32.xlu0 %v6118, 96
        %v6173 = vpop.permute.xlu0 %6172
        %6174 = vrot.lane.b32.xlu0 %v6119, 96
        %v6175 = vpop.permute.xlu0 %6174
        %6176 = vrot.lane.b32.xlu0 %v6120, 96
        %v6177 = vpop.permute.xlu0 %6176
        %6178 = vrot.lane.b32.xlu0 %v6121, 96
        %v6179 = vpop.permute.xlu0 %6178
        %6180 = vrot.lane.b32.xlu0 %v6122, 96
        %v6181 = vpop.permute.xlu0 %6180
        %6182 = vrot.lane.b32.xlu0 %v6123, 96
        %v6183 = vpop.permute.xlu0 %6182
        %6184 = vrot.lane.b32.xlu0 %v6124, 96
        %v6185 = vpop.permute.xlu0 %6184
        %6186 = vrot.lane.b32.xlu0 %v6125, 96
        %v6187 = vpop.permute.xlu0 %6186
        %6188 = vrot.lane.b32.xlu0 %v6126, 96
        %v6189 = vpop.permute.xlu0 %6188
        %6190 = vrot.lane.b32.xlu0 %v6127, 96
        %v6191 = vpop.permute.xlu0 %6190
        %6192 = vrot.lane.b32.xlu0 %v6128, 96
        %v6193 = vpop.permute.xlu0 %6192
        %6194 = vrot.lane.b32.xlu0 %v6129, 96
        %v6195 = vpop.permute.xlu0 %6194
        %6196 = vrot.lane.b32.xlu0 %v6166, 96
        %v6197 = vpop.permute.xlu0 %6196
        %6198 = vrot.lane.b32.xlu0 %v6167, 96
        %v6199 = vpop.permute.xlu0 %6198
        %v6202 = vsel %vm2326, %v5569, %v6051
        %v6205 = vsel %vm2326, %v5570, %v6053
        %v6208 = vsel %vm2326, %v5571, %v6055
        %v6211 = vsel %vm2326, %v5572, %v6057
        %v6214 = vsel %vm2326, %v5573, %v6059
        %v6217 = vsel %vm2326, %v5574, %v6061
        %v6220 = vsel %vm2326, %v5575, %v6063
        %v6223 = vsel %vm2326, %v5576, %v6065
        %v6226 = vsel %vm2326, %v5577, %v6067
        %v6229 = vsel %vm2326, %v5578, %v6069
        %v6232 = vsel %vm2326, %v5579, %v6071
        %v6235 = vsel %vm2326, %v5580, %v6073
        %v6238 = vsel %vm2326, %v5581, %v6075
        %v6241 = vsel %vm2326, %v5582, %v6077
        %v6244 = vsel %vm2326, %v6042, %v6079
        %v6247 = vsel %vm2326, %v6043, %v6081
        %v6249 = vsel %vm2375, %v6202, %v6131
        %v6251 = vsel %vm2375, %v6205, %v6133
        %v6253 = vsel %vm2375, %v6208, %v6135
        %v6255 = vsel %vm2375, %v6211, %v6137
        %v6257 = vsel %vm2375, %v6214, %v6139
        %v6259 = vsel %vm2375, %v6217, %v6141
        %v6261 = vsel %vm2375, %v6220, %v6143
        %v6263 = vsel %vm2375, %v6223, %v6145
        %v6265 = vsel %vm2375, %v6226, %v6147
        %v6267 = vsel %vm2375, %v6229, %v6149
        %v6269 = vsel %vm2375, %v6232, %v6151
        %v6271 = vsel %vm2375, %v6235, %v6153
        %v6273 = vsel %vm2375, %v6238, %v6155
        %v6275 = vsel %vm2375, %v6241, %v6157
        %v6277 = vsel %vm2375, %v6244, %v6159
        %v6279 = vsel %vm2375, %v6247, %v6161
        %v6281 = vsel %vm2408, %v6249, %v6169
        %v6284 = vsel %vm2408, %v6251, %v6171
        %v6287 = vsel %vm2408, %v6253, %v6173
        %v6290 = vsel %vm2408, %v6255, %v6175
        %v6293 = vsel %vm2408, %v6257, %v6177
        %v6296 = vsel %vm2408, %v6259, %v6179
        %v6299 = vsel %vm2408, %v6261, %v6181
        %v6302 = vsel %vm2408, %v6263, %v6183
        %v6305 = vsel %vm2408, %v6265, %v6185
        %v6308 = vsel %vm2408, %v6267, %v6187
        %v6311 = vsel %vm2408, %v6269, %v6189
        %v6314 = vsel %vm2408, %v6271, %v6191
        %v6317 = vsel %vm2408, %v6273, %v6193
        %v6320 = vsel %vm2408, %v6275, %v6195
        %v6323 = vsel %vm2408, %v6277, %v6197
        %v6326 = vsel %vm2408, %v6279, %v6199
        %6328 = vst [vmem:[#allocation3 + $0x8] sm:$0xff] %v6281
        %6329 = vst [vmem:[#allocation3 + $0x20] sm:$0xff] %v6284
        %6330 = vst [vmem:[#allocation3 + $0x38] sm:$0xff] %v6287
        %6331 = vst [vmem:[#allocation3 + $0x50] sm:$0xff] %v6290
        %6332 = vst [vmem:[#allocation3 + $0x68] sm:$0xff] %v6293
        %6333 = vst [vmem:[#allocation3 + $0x80] sm:$0xff] %v6296
        %6334 = vst [vmem:[#allocation3 + $0x98] sm:$0xff] %v6299
        %6335 = vst [vmem:[#allocation3 + $0xb0] sm:$0xff] %v6302
        %6336 = vst [vmem:[#allocation3 + $0xc8] sm:$0xff] %v6305
        %6337 = vst [vmem:[#allocation3 + $0xe0] sm:$0xff] %v6308
        %6338 = vst [vmem:[#allocation3 + $0xf8] sm:$0xff] %v6311
        %6339 = vst [vmem:[#allocation3 + $0x110] sm:$0xff] %v6314
        %6340 = vst [vmem:[#allocation3 + $0x128] sm:$0xff] %v6317
        %6341 = vst [vmem:[#allocation3 + $0x140] sm:$0xff] %v6320
        %6342 = vst [vmem:[#allocation3 + $0x158] sm:$0xff] %v6323
        %6343 = vst [vmem:[#allocation3 + $0x170] sm:$0xff] %v6326
        %v6350 = vrot.slane %v5849, 7
        %v6351 = vrot.slane %v6350, 4
        %v6352 = vrot.slane %v5850, 7
        %v6353 = vsel %vm5905, %v6351, %v6352
        %v6354 = vrot.slane %v6352, 4
        %v6355 = vrot.slane %v5851, 7
        %v6356 = vsel %vm5905, %v6354, %v6355
        %v6357 = vrot.slane %v5852, 7
        %v6358 = vrot.slane %v6357, 4
        %v6359 = vrot.slane %v5853, 7
        %v6360 = vsel %vm5905, %v6358, %v6359
        %v6361 = vrot.slane %v6359, 4
        %v6362 = vrot.slane %v5854, 7
        %v6363 = vsel %vm5905, %v6361, %v6362
        %v6364 = vunpack.c.l.b16 %v6353
        %v6365 = vunpack.c.l.b16 %v6356
        %v6366 = vunpack.c.l.b16 %v6360
        %v6367 = vunpack.c.l.b16 %v6363
        %v6368 = vpack.c.b16 %v6365, %v6364
        %v6369 = vpack.c.b16 %v6367, %v6366
        %6386 = vst.msk [vmem:[#allocation3 + $0x10] sm:$0xff] %vm2326, %v6118
        %6387 = vst.msk [vmem:[#allocation3 + $0x28] sm:$0xff] %vm2326, %v6119
        %6388 = vst.msk [vmem:[#allocation3 + $0x40] sm:$0xff] %vm2326, %v6120
        %6389 = vst.msk [vmem:[#allocation3 + $0x58] sm:$0xff] %vm2326, %v6121
        %6390 = vst.msk [vmem:[#allocation3 + $0x70] sm:$0xff] %vm2326, %v6122
        %6391 = vst.msk [vmem:[#allocation3 + $0x88] sm:$0xff] %vm2326, %v6123
        %6392 = vst.msk [vmem:[#allocation3 + $0xa0] sm:$0xff] %vm2326, %v6124
        %6393 = vst.msk [vmem:[#allocation3 + $0xb8] sm:$0xff] %vm2326, %v6125
        %6394 = vst.msk [vmem:[#allocation3 + $0xd0] sm:$0xff] %vm2326, %v6126
        %6395 = vst.msk [vmem:[#allocation3 + $0xe8] sm:$0xff] %vm2326, %v6127
        %6396 = vst.msk [vmem:[#allocation3 + $0x100] sm:$0xff] %vm2326, %v6128
        %6397 = vst.msk [vmem:[#allocation3 + $0x118] sm:$0xff] %vm2326, %v6129
        %6398 = vst.msk [vmem:[#allocation3 + $0x130] sm:$0xff] %vm2326, %v6166
        %6399 = vst.msk [vmem:[#allocation3 + $0x148] sm:$0xff] %vm2326, %v6167
        %6400 = vst.msk [vmem:[#allocation3 + $0x160] sm:$0xff] %vm2326, %v6368
        %6401 = vst.msk [vmem:[#allocation3 + $0x178] sm:$0xff] %vm2326, %v6369
        %v6402 = vld [vmem:[#allocation3] sm:$0xff]
        %v6403 = vld [vmem:[#allocation3 + $0x8] sm:$0xff]
        %v6404 = vld [vmem:[#allocation3 + $0x10] sm:$0xff]
        %v6405 = vld [vmem:[#allocation3 + $0x18] sm:$0xff]
        %v6406 = vld [vmem:[#allocation3 + $0x20] sm:$0xff]
        %v6407 = vld [vmem:[#allocation3 + $0x28] sm:$0xff]
        %v6408 = vld [vmem:[#allocation3 + $0x30] sm:$0xff]
        %v6409 = vld [vmem:[#allocation3 + $0x38] sm:$0xff]
        %v6410 = vld [vmem:[#allocation3 + $0x40] sm:$0xff]
        %v6411 = vld [vmem:[#allocation3 + $0x48] sm:$0xff]
        %v6412 = vld [vmem:[#allocation3 + $0x50] sm:$0xff]
        %v6413 = vld [vmem:[#allocation3 + $0x58] sm:$0xff]
        %v6414 = vld [vmem:[#allocation3 + $0x60] sm:$0xff]
        %v6415 = vld [vmem:[#allocation3 + $0x68] sm:$0xff]
        %v6416 = vld [vmem:[#allocation3 + $0x70] sm:$0xff]
        %v6417 = vld [vmem:[#allocation3 + $0x78] sm:$0xff]
        %v6418 = vld [vmem:[#allocation3 + $0x80] sm:$0xff]
        %v6419 = vld [vmem:[#allocation3 + $0x88] sm:$0xff]
        %v6420 = vld [vmem:[#allocation3 + $0x90] sm:$0xff]
        %v6421 = vld [vmem:[#allocation3 + $0x98] sm:$0xff]
        %v6422 = vld [vmem:[#allocation3 + $0xa0] sm:$0xff]
        %v6423 = vld [vmem:[#allocation3 + $0xa8] sm:$0xff]
        %v6424 = vld [vmem:[#allocation3 + $0xb0] sm:$0xff]
        %v6425 = vld [vmem:[#allocation3 + $0xb8] sm:$0xff]
        %v6426 = vld [vmem:[#allocation3 + $0xc0] sm:$0xff]
        %v6427 = vld [vmem:[#allocation3 + $0xc8] sm:$0xff]
        %v6428 = vld [vmem:[#allocation3 + $0xd0] sm:$0xff]
        %v6429 = vld [vmem:[#allocation3 + $0xd8] sm:$0xff]
        %v6430 = vld [vmem:[#allocation3 + $0xe0] sm:$0xff]
        %v6431 = vld [vmem:[#allocation3 + $0xe8] sm:$0xff]
        %v6432 = vld [vmem:[#allocation3 + $0xf0] sm:$0xff]
        %v6433 = vld [vmem:[#allocation3 + $0xf8] sm:$0xff]
        %v6434 = vld [vmem:[#allocation3 + $0x100] sm:$0xff]
        %v6435 = vld [vmem:[#allocation3 + $0x108] sm:$0xff]
        %v6436 = vld [vmem:[#allocation3 + $0x110] sm:$0xff]
        %v6437 = vld [vmem:[#allocation3 + $0x118] sm:$0xff]
        %v6438 = vld [vmem:[#allocation3 + $0x120] sm:$0xff]
        %v6439 = vld [vmem:[#allocation3 + $0x128] sm:$0xff]
        %v6440 = vld [vmem:[#allocation3 + $0x130] sm:$0xff]
        %v6441 = vld [vmem:[#allocation3 + $0x138] sm:$0xff]
        %v6442 = vld [vmem:[#allocation3 + $0x140] sm:$0xff]
        %v6443 = vld [vmem:[#allocation3 + $0x148] sm:$0xff]
        %v6444 = vld [vmem:[#allocation3 + $0x150] sm:$0xff]
        %v6445 = vld [vmem:[#allocation3 + $0x158] sm:$0xff]
        %v6446 = vld [vmem:[#allocation3 + $0x160] sm:$0xff]
        %v6447 = vld [vmem:[#allocation3 + $0x168] sm:$0xff]
        %v6448 = vld [vmem:[#allocation3 + $0x170] sm:$0xff]
        %v6449 = vld [vmem:[#allocation3 + $0x178] sm:$0xff]
        %s6450 = scalar_lea.vmem [#allocation12], 152
        %v6451 = vld [vmem:[%s6450] sm:$0xf]
        %v6452 = vld [vmem:[%s6450 + $0x4] sm:$0xf]
        %v6453 = vld [vmem:[%s6450 + $0x8] sm:$0xf]
        %v6454 = vld [vmem:[%s6450 + $0xc] sm:$0xf]
        %v6455 = vld [vmem:[%s6450 + $0x10] sm:$0xf]
        %v6456 = vld [vmem:[%s6450 + $0x14] sm:$0xf]
        %v6457 = vld [vmem:[%s6450 + $0x18] sm:$0xf]
        %v6458 = vld [vmem:[%s6450 + $0x1c] sm:$0xf]
        %v6459 = vld [vmem:[%s6450 + $0x20] sm:$0xf]
        %v6460 = vld [vmem:[%s6450 + $0x24] sm:$0xf]
        %v6461 = vld [vmem:[%s6450 + $0x28] sm:$0xf]
        %v6462 = vld [vmem:[%s6450 + $0x2c] sm:$0xf]
        %v6463 = vld [vmem:[%s6450 + $0x30] sm:$0xf]
        %v6464 = vld [vmem:[%s6450 + $0x34] sm:$0xf]
        %v6465 = vld [vmem:[%s6450 + $0x38] sm:$0xf]
        %v6466 = vld [vmem:[%s6450 + $0x3c] sm:$0xf]
        %v6467 = vld [vmem:[%s6450 + $0x40] sm:$0xf]
        %v6468 = vld [vmem:[%s6450 + $0x44] sm:$0xf]
        %v6469 = vld [vmem:[%s6450 + $0x48] sm:$0xf]
        %v6470 = vld [vmem:[%s6450 + $0x4c] sm:$0xf]
        %v6471 = vld [vmem:[%s6450 + $0x50] sm:$0xf]
        %v6472 = vld [vmem:[%s6450 + $0x54] sm:$0xf]
        %v6473 = vld [vmem:[%s6450 + $0x58] sm:$0xf]
        %v6474 = vld [vmem:[%s6450 + $0x5c] sm:$0xf]
        %v6475 = vld [vmem:[%s6450 + $0x60] sm:$0xf]
        %v6476 = vld [vmem:[%s6450 + $0x64] sm:$0xf]
        %v6477 = vld [vmem:[%s6450 + $0x68] sm:$0xf]
        %v6478 = vld [vmem:[%s6450 + $0x6c] sm:$0xf]
        %v6479 = vld [vmem:[%s6450 + $0x70] sm:$0xf]
        %v6480 = vld [vmem:[%s6450 + $0x74] sm:$0xf]
        %v6481 = vld [vmem:[%s6450 + $0x78] sm:$0xf]
        %v6482 = vld [vmem:[%s6450 + $0x7c] sm:$0xf]
        %v6483 = vld [vmem:[%s6450 + $0x80] sm:$0xf]
        %v6484 = vld [vmem:[%s6450 + $0x84] sm:$0xf]
        %v6485 = vld [vmem:[%s6450 + $0x88] sm:$0xf]
        %v6486 = vld [vmem:[%s6450 + $0x8c] sm:$0xf]
        %v6487 = vld [vmem:[%s6450 + $0x90] sm:$0xf]
        %v6488 = vld [vmem:[%s6450 + $0x94] sm:$0xf]
        %s6489 = scalar_lea.vmem [#allocation13], 1
        %v6490 = vld [vmem:[%s6489] sm:$0x1]
        %v6492 = vlaneseq
        %v6493 = vshrl.u32 %v6492, 7
        %v6494 = vsub.s32 0, %v6493
        %v6495 = vrot.slane %v6490, %v6494
        %v6535 = vunpack.c.l.b16 %v6451
        %v6536 = vunpack.c.l.b16 %v6452
        %v6537 = vunpack.c.l.b16 %v6453
        %v6538 = vunpack.c.l.b16 %v6454
        %v6539 = vunpack.c.l.b16 %v6455
        %v6540 = vunpack.c.l.b16 %v6456
        %v6541 = vunpack.c.l.b16 %v6457
        %v6542 = vunpack.c.l.b16 %v6458
        %v6543 = vunpack.c.l.b16 %v6459
        %v6544 = vunpack.c.l.b16 %v6460
        %v6545 = vunpack.c.l.b16 %v6461
        %v6546 = vunpack.c.l.b16 %v6462
        %v6547 = vunpack.c.l.b16 %v6463
        %v6548 = vunpack.c.l.b16 %v6464
        %v6549 = vunpack.c.l.b16 %v6465
        %v6550 = vunpack.c.l.b16 %v6466
        %v6551 = vunpack.c.l.b16 %v6467
        %v6552 = vunpack.c.l.b16 %v6468
        %v6553 = vunpack.c.l.b16 %v6469
        %v6554 = vunpack.c.l.b16 %v6470
        %v6555 = vunpack.c.l.b16 %v6471
        %v6556 = vunpack.c.l.b16 %v6472
        %v6557 = vunpack.c.l.b16 %v6473
        %v6558 = vunpack.c.l.b16 %v6474
        %v6559 = vunpack.c.l.b16 %v6475
        %v6560 = vunpack.c.l.b16 %v6476
        %v6561 = vunpack.c.l.b16 %v6477
        %v6562 = vunpack.c.l.b16 %v6478
        %v6563 = vunpack.c.l.b16 %v6479
        %v6564 = vunpack.c.l.b16 %v6480
        %v6565 = vunpack.c.l.b16 %v6481
        %v6566 = vunpack.c.l.b16 %v6482
        %v6567 = vunpack.c.l.b16 %v6483
        %v6568 = vunpack.c.l.b16 %v6484
        %v6569 = vunpack.c.l.b16 %v6485
        %v6570 = vunpack.c.l.b16 %v6486
        %v6571 = vunpack.c.l.b16 %v6487
        %v6572 = vunpack.c.l.b16 %v6488
        %v6573 = vpack.c.b16 %v6536, %v6535
        %v6574 = vpack.c.b16 %v6538, %v6537
        %v6575 = vpack.c.b16 %v6540, %v6539
        %v6576 = vpack.c.b16 %v6542, %v6541
        %v6577 = vpack.c.b16 %v6544, %v6543
        %v6578 = vpack.c.b16 %v6546, %v6545
        %v6579 = vpack.c.b16 %v6548, %v6547
        %v6580 = vpack.c.b16 %v6550, %v6549
        %v6581 = vpack.c.b16 %v6552, %v6551
        %v6582 = vpack.c.b16 %v6554, %v6553
        %v6583 = vpack.c.b16 %v6556, %v6555
        %v6584 = vpack.c.b16 %v6558, %v6557
        %v6585 = vpack.c.b16 %v6560, %v6559
        %v6586 = vpack.c.b16 %v6562, %v6561
        %v6587 = vpack.c.b16 %v6564, %v6563
        %v6588 = vpack.c.b16 %v6566, %v6565
        %v6589 = vpack.c.b16 %v6568, %v6567
        %v6590 = vpack.c.b16 %v6570, %v6569
        %v6591 = vpack.c.b16 %v6572, %v6571
        %v6612 = vsel %vm3593, %v6404, 0
        %v6615 = vsel %vm3593, %v6407, 0
        %v6618 = vsel %vm3593, %v6410, 0
        %v6621 = vsel %vm3593, %v6413, 0
        %v6624 = vsel %vm3593, %v6416, 0
        %v6627 = vsel %vm3593, %v6419, 0
        %v6630 = vsel %vm3593, %v6422, 0
        %v6633 = vsel %vm3593, %v6425, 0
        %v6636 = vsel %vm3593, %v6428, 0
        %v6639 = vsel %vm3593, %v6431, 0
        %v6642 = vsel %vm3593, %v6434, 0
        %v6645 = vsel %vm3593, %v6437, 0
        %v6648 = vsel %vm3593, %v6440, 0
        %v6651 = vsel %vm3593, %v6443, 0
        %v6654 = vsel %vm3593, %v6446, 0
        %v6657 = vsel %vm3593, %v6449, 0
        %6659 = vmatprep.subr.bf16.mxu0 0
        %6660 = vmatpush1.bf16.msra.mxu0 %v6573
        %6661 = vmatprep.subr.bf16.mxu0 0
        %6662 = vmatpush1.bf16.msra.mxu0 %v6574
        %6663 = vmatprep.subr.bf16.mxu0 0
        %6664 = vmatpush1.bf16.msra.mxu0 %v6575
        %6665 = vmatprep.subr.bf16.mxu0 0
        %6666 = vmatpush1.bf16.msra.mxu0 %v6576
        %6667 = vmatprep.subr.bf16.mxu0 0
        %6668 = vmatpush1.bf16.msra.mxu0 %v6577
        %6669 = vmatprep.subr.bf16.mxu0 0
        %6670 = vmatpush1.bf16.msra.mxu0 %v6578
        %6671 = vmatprep.subr.bf16.mxu0 0
        %6672 = vmatpush1.bf16.msra.mxu0 %v6579
        %6673 = vmatprep.subr.bf16.mxu0 0
        %6674 = vmatpush1.bf16.msra.mxu0 %v6580
        %6675 = vmatprep.subr.bf16.mxu0 0
        %6676 = vmatpush1.bf16.msra.mxu0 %v6581
        %6677 = vmatprep.subr.bf16.mxu0 0
        %6678 = vmatpush1.bf16.msra.mxu0 %v6582
        %6679 = vmatprep.subr.bf16.mxu0 0
        %6680 = vmatpush1.bf16.msra.mxu0 %v6583
        %6681 = vmatprep.subr.bf16.mxu0 0
        %6682 = vmatpush1.bf16.msra.mxu0 %v6584
        %6683 = vmatprep.subr.bf16.mxu0 0
        %6684 = vmatpush1.bf16.msra.mxu0 %v6585
        %6685 = vmatprep.subr.bf16.mxu0 0
        %6686 = vmatpush1.bf16.msra.mxu0 %v6586
        %6687 = vmatprep.subr.bf16.mxu0 0
        %6688 = vmatpush1.bf16.msra.mxu0 %v6587
        %6689 = vmatprep.subr.bf16.mxu0 0
        %6690 = vmatpush1.bf16.msra.mxu0 %v6588
        %6691 = vmatprep.mubr.bf16.mxu0 %v6403
        %6692 = vmatmul.mubr.bf16.gmra.mrb[0].mxu0 %v6402
        %v6693 = vpop.f32.mrb[0].mxu0
        %v6694 = vadd.f32 %v6495, %v6693
        %v6695 = vpop.f32.mrb[0].mxu0
        %v6696 = vpop.f32.mrb[0].mxu0
        %v6697 = vadd.f32 %v6495, %v6696
        %v6698 = vpop.f32.mrb[0].mxu0
        %6699 = vmatprep.mubr.bf16.mxu0 %v6406
        %6700 = vmatmul.mubr.bf16.gmra.mrb[0].mxu0 %v6405
        %v6701 = vpop.f32.mrb[0].mxu0
        %v6702 = vadd.f32 %v6495, %v6701
        %v6703 = vpop.f32.mrb[0].mxu0
        %v6704 = vpop.f32.mrb[0].mxu0
        %v6705 = vadd.f32 %v6495, %v6704
        %v6706 = vpop.f32.mrb[0].mxu0
        %6707 = vmatprep.mubr.bf16.mxu0 %v6409
        %6708 = vmatmul.mubr.bf16.gmra.mrb[0].mxu0 %v6408
        %v6709 = vpop.f32.mrb[0].mxu0
        %v6710 = vadd.f32 %v6495, %v6709
        %v6711 = vpop.f32.mrb[0].mxu0
        %v6712 = vpop.f32.mrb[0].mxu0
        %v6713 = vadd.f32 %v6495, %v6712
        %v6714 = vpop.f32.mrb[0].mxu0
        %6715 = vmatprep.mubr.bf16.mxu0 %v6412
        %6716 = vmatmul.mubr.bf16.gmra.mrb[0].mxu0 %v6411
        %v6717 = vpop.f32.mrb[0].mxu0
        %v6718 = vadd.f32 %v6495, %v6717
        %v6719 = vpop.f32.mrb[0].mxu0
        %v6720 = vpop.f32.mrb[0].mxu0
        %v6721 = vadd.f32 %v6495, %v6720
        %v6722 = vpop.f32.mrb[0].mxu0
        %6723 = vmatprep.mubr.bf16.mxu0 %v6415
        %6724 = vmatmul.mubr.bf16.gmra.mrb[0].mxu0 %v6414
        %v6725 = vpop.f32.mrb[0].mxu0
        %v6726 = vadd.f32 %v6495, %v6725
        %v6727 = vpop.f32.mrb[0].mxu0
        %v6728 = vpop.f32.mrb[0].mxu0
        %v6729 = vadd.f32 %v6495, %v6728
        %v6730 = vpop.f32.mrb[0].mxu0
        %6731 = vmatprep.mubr.bf16.mxu0 %v6418
        %6732 = vmatmul.mubr.bf16.gmra.mrb[0].mxu0 %v6417
        %v6733 = vpop.f32.mrb[0].mxu0
        %v6734 = vadd.f32 %v6495, %v6733
        %v6735 = vpop.f32.mrb[0].mxu0
        %v6736 = vpop.f32.mrb[0].mxu0
        %v6737 = vadd.f32 %v6495, %v6736
        %v6738 = vpop.f32.mrb[0].mxu0
        %6739 = vmatprep.mubr.bf16.mxu0 %v6421
        %6740 = vmatmul.mubr.bf16.gmra.mrb[0].mxu0 %v6420
        %v6741 = vpop.f32.mrb[0].mxu0
        %v6742 = vadd.f32 %v6495, %v6741
        %v6743 = vpop.f32.mrb[0].mxu0
        %v6744 = vpop.f32.mrb[0].mxu0
        %v6745 = vadd.f32 %v6495, %v6744
        %v6746 = vpop.f32.mrb[0].mxu0
        %6747 = vmatprep.mubr.bf16.mxu0 %v6424
        %6748 = vmatmul.mubr.bf16.gmra.mrb[0].mxu0 %v6423
        %v6749 = vpop.f32.mrb[0].mxu0
        %v6750 = vadd.f32 %v6495, %v6749
        %v6751 = vpop.f32.mrb[0].mxu0
        %v6752 = vpop.f32.mrb[0].mxu0
        %v6753 = vadd.f32 %v6495, %v6752
        %v6754 = vpop.f32.mrb[0].mxu0
        %6755 = vmatprep.mubr.bf16.mxu0 %v6427
        %6756 = vmatmul.mubr.bf16.gmra.mrb[0].mxu0 %v6426
        %v6757 = vpop.f32.mrb[0].mxu0
        %v6758 = vadd.f32 %v6495, %v6757
        %v6759 = vpop.f32.mrb[0].mxu0
        %v6760 = vpop.f32.mrb[0].mxu0
        %v6761 = vadd.f32 %v6495, %v6760
        %v6762 = vpop.f32.mrb[0].mxu0
        %6763 = vmatprep.mubr.bf16.mxu0 %v6430
        %6764 = vmatmul.mubr.bf16.gmra.mrb[0].mxu0 %v6429
        %v6765 = vpop.f32.mrb[0].mxu0
        %v6766 = vadd.f32 %v6495, %v6765
        %v6767 = vpop.f32.mrb[0].mxu0
        %v6768 = vpop.f32.mrb[0].mxu0
        %v6769 = vadd.f32 %v6495, %v6768
        %v6770 = vpop.f32.mrb[0].mxu0
        %6771 = vmatprep.mubr.bf16.mxu0 %v6433
        %6772 = vmatmul.mubr.bf16.gmra.mrb[0].mxu0 %v6432
        %v6773 = vpop.f32.mrb[0].mxu0
        %v6774 = vadd.f32 %v6495, %v6773
        %v6775 = vpop.f32.mrb[0].mxu0
        %v6776 = vpop.f32.mrb[0].mxu0
        %v6777 = vadd.f32 %v6495, %v6776
        %v6778 = vpop.f32.mrb[0].mxu0
        %6779 = vmatprep.mubr.bf16.mxu0 %v6436
        %6780 = vmatmul.mubr.bf16.gmra.mrb[0].mxu0 %v6435
        %v6781 = vpop.f32.mrb[0].mxu0
        %v6782 = vadd.f32 %v6495, %v6781
        %v6783 = vpop.f32.mrb[0].mxu0
        %v6784 = vpop.f32.mrb[0].mxu0
        %v6785 = vadd.f32 %v6495, %v6784
        %v6786 = vpop.f32.mrb[0].mxu0
        %6787 = vmatprep.mubr.bf16.mxu0 %v6439
        %6788 = vmatmul.mubr.bf16.gmra.mrb[0].mxu0 %v6438
        %v6789 = vpop.f32.mrb[0].mxu0
        %v6790 = vadd.f32 %v6495, %v6789
        %v6791 = vpop.f32.mrb[0].mxu0
        %v6792 = vpop.f32.mrb[0].mxu0
        %v6793 = vadd.f32 %v6495, %v6792
        %v6794 = vpop.f32.mrb[0].mxu0
        %6795 = vmatprep.mubr.bf16.mxu0 %v6442
        %6796 = vmatmul.mubr.bf16.gmra.mrb[0].mxu0 %v6441
        %v6797 = vpop.f32.mrb[0].mxu0
        %v6798 = vadd.f32 %v6495, %v6797
        %v6799 = vpop.f32.mrb[0].mxu0
        %v6800 = vpop.f32.mrb[0].mxu0
        %v6801 = vadd.f32 %v6495, %v6800
        %v6802 = vpop.f32.mrb[0].mxu0
        %6803 = vmatprep.mubr.bf16.mxu0 %v6445
        %6804 = vmatmul.mubr.bf16.gmra.mrb[0].mxu0 %v6444
        %v6805 = vpop.f32.mrb[0].mxu0
        %v6806 = vadd.f32 %v6495, %v6805
        %v6807 = vpop.f32.mrb[0].mxu0
        %v6808 = vpop.f32.mrb[0].mxu0
        %v6809 = vadd.f32 %v6495, %v6808
        %v6810 = vpop.f32.mrb[0].mxu0
        %6811 = vmatprep.mubr.bf16.mxu0 %v6448
        %6812 = vmatmul.mubr.bf16.gmra.mrb[0].mxu0 %v6447
        %v6813 = vpop.f32.mrb[0].mxu0
        %v6814 = vadd.f32 %v6495, %v6813
        %v6815 = vpop.f32.mrb[0].mxu0
        %v6816 = vpop.f32.mrb[0].mxu0
        %v6817 = vadd.f32 %v6495, %v6816
        %v6818 = vpop.f32.mrb[0].mxu0
        %6819 = vdwg.mxu0
        %6820 = vmatprep.subr.bf16.mxu0 0
        %6821 = vmatpush1.bf16.msra.mxu0 %v6589
        %6822 = vmatprep.subr.bf16.mxu0 0
        %6823 = vmatpush1.bf16.msra.mxu0 %v6590
        %6824 = vmatprep.subr.bf16.mxu0 0
        %6825 = vmatpush1.bf16.msra.mxu0 %v6591
        %6826 = vmatprep.subr.bf16.mxu0 0
        %6827 = vmatpush1.bf16.msra.mxu0 0
        %6828 = vmatprep.subr.bf16.mxu0 0
        %6829 = vmatpush1.bf16.msra.mxu0 0
        %6830 = vmatprep.subr.bf16.mxu0 0
        %6831 = vmatpush1.bf16.msra.mxu0 0
        %6832 = vmatprep.subr.bf16.mxu0 0
        %6833 = vmatpush1.bf16.msra.mxu0 0
        %6834 = vmatprep.subr.bf16.mxu0 0
        %6835 = vmatpush1.bf16.msra.mxu0 0
        %6836 = vmatprep.subr.bf16.mxu0 0
        %6837 = vmatpush1.bf16.msra.mxu0 0
        %6838 = vmatprep.subr.bf16.mxu0 0
        %6839 = vmatpush1.bf16.msra.mxu0 0
        %6840 = vmatprep.subr.bf16.mxu0 0
        %6841 = vmatpush1.bf16.msra.mxu0 0
        %6842 = vmatprep.subr.bf16.mxu0 0
        %6843 = vmatpush1.bf16.msra.mxu0 0
        %6844 = vmatprep.subr.bf16.mxu0 0
        %6845 = vmatpush1.bf16.msra.mxu0 0
        %6846 = vmatprep.subr.bf16.mxu0 0
        %6847 = vmatpush1.bf16.msra.mxu0 0
        %6848 = vmatprep.subr.bf16.mxu0 0
        %6849 = vmatpush1.bf16.msra.mxu0 0
        %6850 = vmatprep.subr.bf16.mxu0 0
        %6851 = vmatpush1.bf16.msra.mxu0 0
        %6852 = vmatprep.mubr.bf16.mxu0 0
        %6853 = vmatmul.mubr.bf16.gmra.mrb[0].mxu0 %v6612
        %v6854 = vpop.f32.mrb[0].mxu0
        %v6855 = vadd.f32 %v6694, %v6854
        %v6856 = vpop.f32.mrb[0].mxu0
        %v6857 = vpop.f32.mrb[0].mxu0
        %v6858 = vadd.f32 %v6697, %v6857
        %v6859 = vpop.f32.mrb[0].mxu0
        %6860 = vmatprep.mubr.bf16.mxu0 0
        %6861 = vmatmul.mubr.bf16.gmra.mrb[0].mxu0 %v6615
        %v6862 = vpop.f32.mrb[0].mxu0
        %v6863 = vadd.f32 %v6702, %v6862
        %v6864 = vpop.f32.mrb[0].mxu0
        %v6865 = vpop.f32.mrb[0].mxu0
        %v6866 = vadd.f32 %v6705, %v6865
        %v6867 = vpop.f32.mrb[0].mxu0
        %6868 = vmatprep.mubr.bf16.mxu0 0
        %6869 = vmatmul.mubr.bf16.gmra.mrb[0].mxu0 %v6618
        %v6870 = vpop.f32.mrb[0].mxu0
        %v6871 = vadd.f32 %v6710, %v6870
        %v6872 = vpop.f32.mrb[0].mxu0
        %v6873 = vpop.f32.mrb[0].mxu0
        %v6874 = vadd.f32 %v6713, %v6873
        %v6875 = vpop.f32.mrb[0].mxu0
        %6876 = vmatprep.mubr.bf16.mxu0 0
        %6877 = vmatmul.mubr.bf16.gmra.mrb[0].mxu0 %v6621
        %v6878 = vpop.f32.mrb[0].mxu0
        %v6879 = vadd.f32 %v6718, %v6878
        %v6880 = vpop.f32.mrb[0].mxu0
        %v6881 = vpop.f32.mrb[0].mxu0
        %v6882 = vadd.f32 %v6721, %v6881
        %v6883 = vpop.f32.mrb[0].mxu0
        %6884 = vmatprep.mubr.bf16.mxu0 0
        %6885 = vmatmul.mubr.bf16.gmra.mrb[0].mxu0 %v6624
        %v6886 = vpop.f32.mrb[0].mxu0
        %v6887 = vadd.f32 %v6726, %v6886
        %v6888 = vpop.f32.mrb[0].mxu0
        %v6889 = vpop.f32.mrb[0].mxu0
        %v6890 = vadd.f32 %v6729, %v6889
        %v6891 = vpop.f32.mrb[0].mxu0
        %6892 = vmatprep.mubr.bf16.mxu0 0
        %6893 = vmatmul.mubr.bf16.gmra.mrb[0].mxu0 %v6627
        %v6894 = vpop.f32.mrb[0].mxu0
        %v6895 = vadd.f32 %v6734, %v6894
        %v6896 = vpop.f32.mrb[0].mxu0
        %v6897 = vpop.f32.mrb[0].mxu0
        %v6898 = vadd.f32 %v6737, %v6897
        %v6899 = vpop.f32.mrb[0].mxu0
        %6900 = vmatprep.mubr.bf16.mxu0 0
        %6901 = vmatmul.mubr.bf16.gmra.mrb[0].mxu0 %v6630
        %v6902 = vpop.f32.mrb[0].mxu0
        %v6903 = vadd.f32 %v6742, %v6902
        %v6904 = vpop.f32.mrb[0].mxu0
        %v6905 = vpop.f32.mrb[0].mxu0
        %v6906 = vadd.f32 %v6745, %v6905
        %v6907 = vpop.f32.mrb[0].mxu0
        %6908 = vmatprep.mubr.bf16.mxu0 0
        %6909 = vmatmul.mubr.bf16.gmra.mrb[0].mxu0 %v6633
        %v6910 = vpop.f32.mrb[0].mxu0
        %v6911 = vadd.f32 %v6750, %v6910
        %v6912 = vpop.f32.mrb[0].mxu0
        %v6913 = vpop.f32.mrb[0].mxu0
        %v6914 = vadd.f32 %v6753, %v6913
        %v6915 = vpop.f32.mrb[0].mxu0
        %6916 = vmatprep.mubr.bf16.mxu0 0
        %6917 = vmatmul.mubr.bf16.gmra.mrb[0].mxu0 %v6636
        %v6918 = vpop.f32.mrb[0].mxu0
        %v6919 = vadd.f32 %v6758, %v6918
        %v6920 = vpop.f32.mrb[0].mxu0
        %v6921 = vpop.f32.mrb[0].mxu0
        %v6922 = vadd.f32 %v6761, %v6921
        %v6923 = vpop.f32.mrb[0].mxu0
        %6924 = vmatprep.mubr.bf16.mxu0 0
        %6925 = vmatmul.mubr.bf16.gmra.mrb[0].mxu0 %v6639
        %v6926 = vpop.f32.mrb[0].mxu0
        %v6927 = vadd.f32 %v6766, %v6926
        %v6928 = vpop.f32.mrb[0].mxu0
        %v6929 = vpop.f32.mrb[0].mxu0
        %v6930 = vadd.f32 %v6769, %v6929
        %v6931 = vpop.f32.mrb[0].mxu0
        %6932 = vmatprep.mubr.bf16.mxu0 0
        %6933 = vmatmul.mubr.bf16.gmra.mrb[0].mxu0 %v6642
        %v6934 = vpop.f32.mrb[0].mxu0
        %v6935 = vadd.f32 %v6774, %v6934
        %v6936 = vpop.f32.mrb[0].mxu0
        %v6937 = vpop.f32.mrb[0].mxu0
        %v6938 = vadd.f32 %v6777, %v6937
        %v6939 = vpop.f32.mrb[0].mxu0
        %6940 = vmatprep.mubr.bf16.mxu0 0
        %6941 = vmatmul.mubr.bf16.gmra.mrb[0].mxu0 %v6645
        %v6942 = vpop.f32.mrb[0].mxu0
        %v6943 = vadd.f32 %v6782, %v6942
        %v6944 = vpop.f32.mrb[0].mxu0
        %v6945 = vpop.f32.mrb[0].mxu0
        %v6946 = vadd.f32 %v6785, %v6945
        %v6947 = vpop.f32.mrb[0].mxu0
        %6948 = vmatprep.mubr.bf16.mxu0 0
        %6949 = vmatmul.mubr.bf16.gmra.mrb[0].mxu0 %v6648
        %v6950 = vpop.f32.mrb[0].mxu0
        %v6951 = vadd.f32 %v6790, %v6950
        %v6952 = vpop.f32.mrb[0].mxu0
        %v6953 = vpop.f32.mrb[0].mxu0
        %v6954 = vadd.f32 %v6793, %v6953
        %v6955 = vpop.f32.mrb[0].mxu0
        %6956 = vmatprep.mubr.bf16.mxu0 0
        %6957 = vmatmul.mubr.bf16.gmra.mrb[0].mxu0 %v6651
        %v6958 = vpop.f32.mrb[0].mxu0
        %v6959 = vadd.f32 %v6798, %v6958
        %v6960 = vpop.f32.mrb[0].mxu0
        %v6961 = vpop.f32.mrb[0].mxu0
        %v6962 = vadd.f32 %v6801, %v6961
        %v6963 = vpop.f32.mrb[0].mxu0
        %6964 = vmatprep.mubr.bf16.mxu0 0
        %6965 = vmatmul.mubr.bf16.gmra.mrb[0].mxu0 %v6654
        %v6966 = vpop.f32.mrb[0].mxu0
        %v6967 = vadd.f32 %v6806, %v6966
        %v6968 = vpop.f32.mrb[0].mxu0
        %v6969 = vpop.f32.mrb[0].mxu0
        %v6970 = vadd.f32 %v6809, %v6969
        %v6971 = vpop.f32.mrb[0].mxu0
        %6972 = vmatprep.mubr.bf16.mxu0 0
        %6973 = vmatmul.mubr.bf16.gmra.mrb[0].mxu0 %v6657
        %v6974 = vpop.f32.mrb[0].mxu0
        %v6975 = vadd.f32 %v6814, %v6974
        %v6976 = vpop.f32.mrb[0].mxu0
        %v6977 = vpop.f32.mrb[0].mxu0
        %v6978 = vadd.f32 %v6817, %v6977
        %v6979 = vpop.f32.mrb[0].mxu0
        %6980 = vdwg.mxu0
        %v6981 = vtanh.pop %v6855
        %v6982 = vtanh.pop %v6858
        %v6983 = vtanh.pop %v6863
        %v6984 = vtanh.pop %v6866
        %v6985 = vtanh.pop %v6871
        %v6986 = vtanh.pop %v6874
        %v6987 = vtanh.pop %v6879
        %v6988 = vtanh.pop %v6882
        %v6989 = vtanh.pop %v6887
        %v6990 = vtanh.pop %v6890
        %v6991 = vtanh.pop %v6895
        %v6992 = vtanh.pop %v6898
        %v6993 = vtanh.pop %v6903
        %v6994 = vtanh.pop %v6906
        %v6995 = vtanh.pop %v6911
        %v6996 = vtanh.pop %v6914
        %v6997 = vtanh.pop %v6919
        %v6998 = vtanh.pop %v6922
        %v6999 = vtanh.pop %v6927
        %v7000 = vtanh.pop %v6930
        %v7001 = vtanh.pop %v6935
        %v7002 = vtanh.pop %v6938
        %v7003 = vtanh.pop %v6943
        %v7004 = vtanh.pop %v6946
        %v7005 = vtanh.pop %v6951
        %v7006 = vtanh.pop %v6954
        %v7007 = vtanh.pop %v6959
        %v7008 = vtanh.pop %v6962
        %v7009 = vtanh.pop %v6967
        %v7010 = vtanh.pop %v6970
        %v7011 = vtanh.pop %v6975
        %v7012 = vtanh.pop %v6978
        %v7013 = vxor.u32 %v6855, 2147483648
        %v7014 = vxor.u32 %v6858, 2147483648
        %v7015 = vxor.u32 %v6863, 2147483648
        %v7016 = vxor.u32 %v6866, 2147483648
        %v7017 = vxor.u32 %v6871, 2147483648
        %v7018 = vxor.u32 %v6874, 2147483648
        %v7019 = vxor.u32 %v6879, 2147483648
        %v7020 = vxor.u32 %v6882, 2147483648
        %v7021 = vxor.u32 %v6887, 2147483648
        %v7022 = vxor.u32 %v6890, 2147483648
        %v7023 = vxor.u32 %v6895, 2147483648
        %v7024 = vxor.u32 %v6898, 2147483648
        %v7025 = vxor.u32 %v6903, 2147483648
        %v7026 = vxor.u32 %v6906, 2147483648
        %v7027 = vxor.u32 %v6911, 2147483648
        %v7028 = vxor.u32 %v6914, 2147483648
        %v7029 = vxor.u32 %v6919, 2147483648
        %v7030 = vxor.u32 %v6922, 2147483648
        %v7031 = vxor.u32 %v6927, 2147483648
        %v7032 = vxor.u32 %v6930, 2147483648
        %v7033 = vxor.u32 %v6935, 2147483648
        %v7034 = vxor.u32 %v6938, 2147483648
        %v7035 = vxor.u32 %v6943, 2147483648
        %v7036 = vxor.u32 %v6946, 2147483648
        %v7037 = vxor.u32 %v6951, 2147483648
        %v7038 = vxor.u32 %v6954, 2147483648
        %v7039 = vxor.u32 %v6959, 2147483648
        %v7040 = vxor.u32 %v6962, 2147483648
        %v7041 = vxor.u32 %v6967, 2147483648
        %v7042 = vxor.u32 %v6970, 2147483648
        %v7043 = vxor.u32 %v6975, 2147483648
        %v7044 = vxor.u32 %v6978, 2147483648
        %v7045 = vmul.f32 %v7013, 1.442695
        %v7046 = vpow.pop %v7045
        %v7047 = vmul.f32 %v7014, 1.442695
        %v7048 = vpow.pop %v7047
        %v7049 = vmul.f32 %v7015, 1.442695
        %v7050 = vpow.pop %v7049
        %v7051 = vmul.f32 %v7016, 1.442695
        %v7052 = vpow.pop %v7051
        %v7053 = vmul.f32 %v7017, 1.442695
        %v7054 = vpow.pop %v7053
        %v7055 = vmul.f32 %v7018, 1.442695
        %v7056 = vpow.pop %v7055
        %v7057 = vmul.f32 %v7019, 1.442695
        %v7058 = vpow.pop %v7057
        %v7059 = vmul.f32 %v7020, 1.442695
        %v7060 = vpow.pop %v7059
        %v7061 = vmul.f32 %v7021, 1.442695
        %v7062 = vpow.pop %v7061
        %v7063 = vmul.f32 %v7022, 1.442695
        %v7064 = vpow.pop %v7063
        %v7065 = vmul.f32 %v7023, 1.442695
        %v7066 = vpow.pop %v7065
        %v7067 = vmul.f32 %v7024, 1.442695
        %v7068 = vpow.pop %v7067
        %v7069 = vmul.f32 %v7025, 1.442695
        %v7070 = vpow.pop %v7069
        %v7071 = vmul.f32 %v7026, 1.442695
        %v7072 = vpow.pop %v7071
        %v7073 = vmul.f32 %v7027, 1.442695
        %v7074 = vpow.pop %v7073
        %v7075 = vmul.f32 %v7028, 1.442695
        %v7076 = vpow.pop %v7075
        %v7077 = vmul.f32 %v7029, 1.442695
        %v7078 = vpow.pop %v7077
        %v7079 = vmul.f32 %v7030, 1.442695
        %v7080 = vpow.pop %v7079
        %v7081 = vmul.f32 %v7031, 1.442695
        %v7082 = vpow.pop %v7081
        %v7083 = vmul.f32 %v7032, 1.442695
        %v7084 = vpow.pop %v7083
        %v7085 = vmul.f32 %v7033, 1.442695
        %v7086 = vpow.pop %v7085
        %v7087 = vmul.f32 %v7034, 1.442695
        %v7088 = vpow.pop %v7087
        %v7089 = vmul.f32 %v7035, 1.442695
        %v7090 = vpow.pop %v7089
        %v7091 = vmul.f32 %v7036, 1.442695
        %v7092 = vpow.pop %v7091
        %v7093 = vmul.f32 %v7037, 1.442695
        %v7094 = vpow.pop %v7093
        %v7095 = vmul.f32 %v7038, 1.442695
        %v7096 = vpow.pop %v7095
        %v7097 = vmul.f32 %v7039, 1.442695
        %v7098 = vpow.pop %v7097
        %v7099 = vmul.f32 %v7040, 1.442695
        %v7100 = vpow.pop %v7099
        %v7101 = vmul.f32 %v7041, 1.442695
        %v7102 = vpow.pop %v7101
        %v7103 = vmul.f32 %v7042, 1.442695
        %v7104 = vpow.pop %v7103
        %v7105 = vmul.f32 %v7043, 1.442695
        %v7106 = vpow.pop %v7105
        %v7107 = vmul.f32 %v7044, 1.442695
        %v7108 = vpow.pop %v7107
        %v7109 = vadd.f32 %v7046, 1.0
        %v7110 = vadd.f32 %v7048, 1.0
        %v7111 = vadd.f32 %v7050, 1.0
        %v7112 = vadd.f32 %v7052, 1.0
        %v7113 = vadd.f32 %v7054, 1.0
        %v7114 = vadd.f32 %v7056, 1.0
        %v7115 = vadd.f32 %v7058, 1.0
        %v7116 = vadd.f32 %v7060, 1.0
        %v7117 = vadd.f32 %v7062, 1.0
        %v7118 = vadd.f32 %v7064, 1.0
        %v7119 = vadd.f32 %v7066, 1.0
        %v7120 = vadd.f32 %v7068, 1.0
        %v7121 = vadd.f32 %v7070, 1.0
        %v7122 = vadd.f32 %v7072, 1.0
        %v7123 = vadd.f32 %v7074, 1.0
        %v7124 = vadd.f32 %v7076, 1.0
        %v7125 = vadd.f32 %v7078, 1.0
        %v7126 = vadd.f32 %v7080, 1.0
        %v7127 = vadd.f32 %v7082, 1.0
        %v7128 = vadd.f32 %v7084, 1.0
        %v7129 = vadd.f32 %v7086, 1.0
        %v7130 = vadd.f32 %v7088, 1.0
        %v7131 = vadd.f32 %v7090, 1.0
        %v7132 = vadd.f32 %v7092, 1.0
        %v7133 = vadd.f32 %v7094, 1.0
        %v7134 = vadd.f32 %v7096, 1.0
        %v7135 = vadd.f32 %v7098, 1.0
        %v7136 = vadd.f32 %v7100, 1.0
        %v7137 = vadd.f32 %v7102, 1.0
        %v7138 = vadd.f32 %v7104, 1.0
        %v7139 = vadd.f32 %v7106, 1.0
        %v7140 = vadd.f32 %v7108, 1.0
        %v7141 = vrcp.pop %v7109
        %v7142 = vmul.f32 1.0, %v7141
        %v7143 = vrcp.pop %v7110
        %v7144 = vmul.f32 1.0, %v7143
        %v7145 = vrcp.pop %v7111
        %v7146 = vmul.f32 1.0, %v7145
        %v7147 = vrcp.pop %v7112
        %v7148 = vmul.f32 1.0, %v7147
        %v7149 = vrcp.pop %v7113
        %v7150 = vmul.f32 1.0, %v7149
        %v7151 = vrcp.pop %v7114
        %v7152 = vmul.f32 1.0, %v7151
        %v7153 = vrcp.pop %v7115
        %v7154 = vmul.f32 1.0, %v7153
        %v7155 = vrcp.pop %v7116
        %v7156 = vmul.f32 1.0, %v7155
        %v7157 = vrcp.pop %v7117
        %v7158 = vmul.f32 1.0, %v7157
        %v7159 = vrcp.pop %v7118
        %v7160 = vmul.f32 1.0, %v7159
        %v7161 = vrcp.pop %v7119
        %v7162 = vmul.f32 1.0, %v7161
        %v7163 = vrcp.pop %v7120
        %v7164 = vmul.f32 1.0, %v7163
        %v7165 = vrcp.pop %v7121
        %v7166 = vmul.f32 1.0, %v7165
        %v7167 = vrcp.pop %v7122
        %v7168 = vmul.f32 1.0, %v7167
        %v7169 = vrcp.pop %v7123
        %v7170 = vmul.f32 1.0, %v7169
        %v7171 = vrcp.pop %v7124
        %v7172 = vmul.f32 1.0, %v7171
        %v7173 = vrcp.pop %v7125
        %v7174 = vmul.f32 1.0, %v7173
        %v7175 = vrcp.pop %v7126
        %v7176 = vmul.f32 1.0, %v7175
        %v7177 = vrcp.pop %v7127
        %v7178 = vmul.f32 1.0, %v7177
        %v7179 = vrcp.pop %v7128
        %v7180 = vmul.f32 1.0, %v7179
        %v7181 = vrcp.pop %v7129
        %v7182 = vmul.f32 1.0, %v7181
        %v7183 = vrcp.pop %v7130
        %v7184 = vmul.f32 1.0, %v7183
        %v7185 = vrcp.pop %v7131
        %v7186 = vmul.f32 1.0, %v7185
        %v7187 = vrcp.pop %v7132
        %v7188 = vmul.f32 1.0, %v7187
        %v7189 = vrcp.pop %v7133
        %v7190 = vmul.f32 1.0, %v7189
        %v7191 = vrcp.pop %v7134
        %v7192 = vmul.f32 1.0, %v7191
        %v7193 = vrcp.pop %v7135
        %v7194 = vmul.f32 1.0, %v7193
        %v7195 = vrcp.pop %v7136
        %v7196 = vmul.f32 1.0, %v7195
        %v7197 = vrcp.pop %v7137
        %v7198 = vmul.f32 1.0, %v7197
        %v7199 = vrcp.pop %v7138
        %v7200 = vmul.f32 1.0, %v7199
        %v7201 = vrcp.pop %v7139
        %v7202 = vmul.f32 1.0, %v7201
        %v7203 = vrcp.pop %v7140
        %v7204 = vmul.f32 1.0, %v7203
        %7237 = vrot.lane.b32.xlu0 %v7142, 96
        %v7238 = vpop.permute.xlu0 %7237
        %7239 = vrot.lane.b32.xlu0 %v7144, 96
        %v7240 = vpop.permute.xlu0 %7239
        %7241 = vrot.lane.b32.xlu0 %v7146, 96
        %v7242 = vpop.permute.xlu0 %7241
        %7243 = vrot.lane.b32.xlu0 %v7148, 96
        %v7244 = vpop.permute.xlu0 %7243
        %7245 = vrot.lane.b32.xlu0 %v7150, 96
        %v7246 = vpop.permute.xlu0 %7245
        %7247 = vrot.lane.b32.xlu0 %v7152, 96
        %v7248 = vpop.permute.xlu0 %7247
        %7249 = vrot.lane.b32.xlu0 %v7154, 96
        %v7250 = vpop.permute.xlu0 %7249
        %7251 = vrot.lane.b32.xlu0 %v7156, 96
        %v7252 = vpop.permute.xlu0 %7251
        %7253 = vrot.lane.b32.xlu0 %v7158, 96
        %v7254 = vpop.permute.xlu0 %7253
        %7255 = vrot.lane.b32.xlu0 %v7160, 96
        %v7256 = vpop.permute.xlu0 %7255
        %7257 = vrot.lane.b32.xlu0 %v7162, 96
        %v7258 = vpop.permute.xlu0 %7257
        %7259 = vrot.lane.b32.xlu0 %v7164, 96
        %v7260 = vpop.permute.xlu0 %7259
        %7261 = vrot.lane.b32.xlu0 %v7166, 96
        %v7262 = vpop.permute.xlu0 %7261
        %7263 = vrot.lane.b32.xlu0 %v7168, 96
        %v7264 = vpop.permute.xlu0 %7263
        %7265 = vrot.lane.b32.xlu0 %v7170, 96
        %v7266 = vpop.permute.xlu0 %7265
        %7267 = vrot.lane.b32.xlu0 %v7172, 96
        %v7268 = vpop.permute.xlu0 %7267
        %7269 = vrot.lane.b32.xlu0 %v7174, 96
        %v7270 = vpop.permute.xlu0 %7269
        %7271 = vrot.lane.b32.xlu0 %v7176, 96
        %v7272 = vpop.permute.xlu0 %7271
        %7273 = vrot.lane.b32.xlu0 %v7178, 96
        %v7274 = vpop.permute.xlu0 %7273
        %7275 = vrot.lane.b32.xlu0 %v7180, 96
        %v7276 = vpop.permute.xlu0 %7275
        %7277 = vrot.lane.b32.xlu0 %v7182, 96
        %v7278 = vpop.permute.xlu0 %7277
        %7279 = vrot.lane.b32.xlu0 %v7184, 96
        %v7280 = vpop.permute.xlu0 %7279
        %7281 = vrot.lane.b32.xlu0 %v7186, 96
        %v7282 = vpop.permute.xlu0 %7281
        %7283 = vrot.lane.b32.xlu0 %v7188, 96
        %v7284 = vpop.permute.xlu0 %7283
        %7285 = vrot.lane.b32.xlu0 %v7190, 96
        %v7286 = vpop.permute.xlu0 %7285
        %7287 = vrot.lane.b32.xlu0 %v7192, 96
        %v7288 = vpop.permute.xlu0 %7287
        %7289 = vrot.lane.b32.xlu0 %v7194, 96
        %v7290 = vpop.permute.xlu0 %7289
        %7291 = vrot.lane.b32.xlu0 %v7196, 96
        %v7292 = vpop.permute.xlu0 %7291
        %7293 = vrot.lane.b32.xlu0 %v7198, 96
        %v7294 = vpop.permute.xlu0 %7293
        %7295 = vrot.lane.b32.xlu0 %v7200, 96
        %v7296 = vpop.permute.xlu0 %7295
        %7297 = vrot.lane.b32.xlu0 %v7202, 96
        %v7298 = vpop.permute.xlu0 %7297
        %7299 = vrot.lane.b32.xlu0 %v7204, 96
        %v7300 = vpop.permute.xlu0 %7299
        %v7333 = vmul.f32 %v6981, %v7238
        %v7334 = vmul.f32 %v6982, %v7240
        %v7335 = vmul.f32 %v6983, %v7242
        %v7336 = vmul.f32 %v6984, %v7244
        %v7337 = vmul.f32 %v6985, %v7246
        %v7338 = vmul.f32 %v6986, %v7248
        %v7339 = vmul.f32 %v6987, %v7250
        %v7340 = vmul.f32 %v6988, %v7252
        %v7341 = vmul.f32 %v6989, %v7254
        %v7342 = vmul.f32 %v6990, %v7256
        %v7343 = vmul.f32 %v6991, %v7258
        %v7344 = vmul.f32 %v6992, %v7260
        %v7345 = vmul.f32 %v6993, %v7262
        %v7346 = vmul.f32 %v6994, %v7264
        %v7347 = vmul.f32 %v6995, %v7266
        %v7348 = vmul.f32 %v6996, %v7268
        %v7349 = vmul.f32 %v6997, %v7270
        %v7350 = vmul.f32 %v6998, %v7272
        %v7351 = vmul.f32 %v6999, %v7274
        %v7352 = vmul.f32 %v7000, %v7276
        %v7353 = vmul.f32 %v7001, %v7278
        %v7354 = vmul.f32 %v7002, %v7280
        %v7355 = vmul.f32 %v7003, %v7282
        %v7356 = vmul.f32 %v7004, %v7284
        %v7357 = vmul.f32 %v7005, %v7286
        %v7358 = vmul.f32 %v7006, %v7288
        %v7359 = vmul.f32 %v7007, %v7290
        %v7360 = vmul.f32 %v7008, %v7292
        %v7361 = vmul.f32 %v7009, %v7294
        %v7362 = vmul.f32 %v7010, %v7296
        %v7363 = vmul.f32 %v7011, %v7298
        %v7364 = vmul.f32 %v7012, %v7300
        %v7365 = vpack.c.bf16 %v7334, %v7333
        %v7366 = vpack.c.bf16 %v7336, %v7335
        %v7367 = vpack.c.bf16 %v7338, %v7337
        %v7368 = vpack.c.bf16 %v7340, %v7339
        %v7369 = vpack.c.bf16 %v7342, %v7341
        %v7370 = vpack.c.bf16 %v7344, %v7343
        %v7371 = vpack.c.bf16 %v7346, %v7345
        %v7372 = vpack.c.bf16 %v7348, %v7347
        %v7373 = vpack.c.bf16 %v7350, %v7349
        %v7374 = vpack.c.bf16 %v7352, %v7351
        %v7375 = vpack.c.bf16 %v7354, %v7353
        %v7376 = vpack.c.bf16 %v7356, %v7355
        %v7377 = vpack.c.bf16 %v7358, %v7357
        %v7378 = vpack.c.bf16 %v7360, %v7359
        %v7379 = vpack.c.bf16 %v7362, %v7361
        %v7380 = vpack.c.bf16 %v7364, %v7363
        %s7381 = scalar_lea.vmem [#allocation15], 16
        %v7382 = vld [vmem:[%s7381] sm:$0xf]
        %v7383 = vld [vmem:[%s7381 + $0x4] sm:$0xf]
        %v7384 = vld [vmem:[%s7381 + $0x8] sm:$0xf]
        %v7385 = vld [vmem:[%s7381 + $0xc] sm:$0xf]
        %s7386 = scalar_lea.vmem [#allocation16], 1
        %v7387 = vld [vmem:[%s7386] sm:$0x1]
        %v7389 = vlaneseq
        %v7390 = vshrl.u32 %v7389, 7
        %v7391 = vsub.s32 0, %v7390
        %v7392 = vrot.slane %v7387, %v7391
        %v7398 = vunpack.c.l.b16 %v7382
        %v7399 = vunpack.c.l.b16 %v7383
        %v7400 = vunpack.c.l.b16 %v7384
        %v7401 = vunpack.c.l.b16 %v7385
        %v7402 = vpack.c.b16 %v7399, %v7398
        %v7403 = vpack.c.b16 %v7401, %v7400
        %v7407 = vsel %vm2326, %v7365, 0
        %v7410 = vsel %vm2326, %v7366, 0
        %v7413 = vsel %vm2326, %v7367, 0
        %v7416 = vsel %vm2326, %v7368, 0
        %v7419 = vsel %vm2326, %v7369, 0
        %v7422 = vsel %vm2326, %v7370, 0
        %v7425 = vsel %vm2326, %v7371, 0
        %v7428 = vsel %vm2326, %v7372, 0
        %v7431 = vsel %vm2326, %v7373, 0
        %v7434 = vsel %vm2326, %v7374, 0
        %v7437 = vsel %vm2326, %v7375, 0
        %v7440 = vsel %vm2326, %v7376, 0
        %v7443 = vsel %vm2326, %v7377, 0
        %v7446 = vsel %vm2326, %v7378, 0
        %v7449 = vsel %vm2326, %v7379, 0
        %v7452 = vsel %vm2326, %v7380, 0
        %7454 = vmatprep.subr.bf16.mxu0 0
        %7455 = vmatpush1.bf16.msra.mxu0 %v7402
        %7456 = vmatprep.subr.bf16.mxu0 0
        %7457 = vmatpush1.bf16.msra.mxu0 %v7403
        %7458 = vmatprep.subr.bf16.mxu0 0
        %7459 = vmatpush1.bf16.msra.mxu0 0
        %7460 = vmatprep.subr.bf16.mxu0 0
        %7461 = vmatpush1.bf16.msra.mxu0 0
        %7462 = vmatprep.subr.bf16.mxu0 0
        %7463 = vmatpush1.bf16.msra.mxu0 0
        %7464 = vmatprep.subr.bf16.mxu0 0
        %7465 = vmatpush1.bf16.msra.mxu0 0
        %7466 = vmatprep.subr.bf16.mxu0 0
        %7467 = vmatpush1.bf16.msra.mxu0 0
        %7468 = vmatprep.subr.bf16.mxu0 0
        %7469 = vmatpush1.bf16.msra.mxu0 0
        %7470 = vmatprep.subr.bf16.mxu0 0
        %7471 = vmatpush1.bf16.msra.mxu0 0
        %7472 = vmatprep.subr.bf16.mxu0 0
        %7473 = vmatpush1.bf16.msra.mxu0 0
        %7474 = vmatprep.subr.bf16.mxu0 0
        %7475 = vmatpush1.bf16.msra.mxu0 0
        %7476 = vmatprep.subr.bf16.mxu0 0
        %7477 = vmatpush1.bf16.msra.mxu0 0
        %7478 = vmatprep.subr.bf16.mxu0 0
        %7479 = vmatpush1.bf16.msra.mxu0 0
        %7480 = vmatprep.subr.bf16.mxu0 0
        %7481 = vmatpush1.bf16.msra.mxu0 0
        %7482 = vmatprep.subr.bf16.mxu0 0
        %7483 = vmatpush1.bf16.msra.mxu0 0
        %7484 = vmatprep.subr.bf16.mxu0 0
        %7485 = vmatpush1.bf16.msra.mxu0 0
        %7486 = vmatprep.mubr.bf16.mxu0 0
        %7487 = vmatmul.mubr.bf16.gmra.mrb[0].mxu0 %v7407
        %v7488 = vpop.f32.mrb[0].mxu0
        %v7489 = vadd.f32 %v7392, %v7488
        %v7490 = vpop.f32.mrb[0].mxu0
        %v7491 = vpop.f32.mrb[0].mxu0
        %v7492 = vadd.f32 %v7392, %v7491
        %v7493 = vpop.f32.mrb[0].mxu0
        %7494 = vmatprep.mubr.bf16.mxu0 0
        %7495 = vmatmul.mubr.bf16.gmra.mrb[0].mxu0 %v7410
        %v7496 = vpop.f32.mrb[0].mxu0
        %v7497 = vadd.f32 %v7392, %v7496
        %v7498 = vpop.f32.mrb[0].mxu0
        %v7499 = vpop.f32.mrb[0].mxu0
        %v7500 = vadd.f32 %v7392, %v7499
        %v7501 = vpop.f32.mrb[0].mxu0
        %7502 = vmatprep.mubr.bf16.mxu0 0
        %7503 = vmatmul.mubr.bf16.gmra.mrb[0].mxu0 %v7413
        %v7504 = vpop.f32.mrb[0].mxu0
        %v7505 = vadd.f32 %v7392, %v7504
        %v7506 = vpop.f32.mrb[0].mxu0
        %v7507 = vpop.f32.mrb[0].mxu0
        %v7508 = vadd.f32 %v7392, %v7507
        %v7509 = vpop.f32.mrb[0].mxu0
        %7510 = vmatprep.mubr.bf16.mxu0 0
        %7511 = vmatmul.mubr.bf16.gmra.mrb[0].mxu0 %v7416
        %v7512 = vpop.f32.mrb[0].mxu0
        %v7513 = vadd.f32 %v7392, %v7512
        %v7514 = vpop.f32.mrb[0].mxu0
        %v7515 = vpop.f32.mrb[0].mxu0
        %v7516 = vadd.f32 %v7392, %v7515
        %v7517 = vpop.f32.mrb[0].mxu0
        %7518 = vmatprep.mubr.bf16.mxu0 0
        %7519 = vmatmul.mubr.bf16.gmra.mrb[0].mxu0 %v7419
        %v7520 = vpop.f32.mrb[0].mxu0
        %v7521 = vadd.f32 %v7392, %v7520
        %v7522 = vpop.f32.mrb[0].mxu0
        %v7523 = vpop.f32.mrb[0].mxu0
        %v7524 = vadd.f32 %v7392, %v7523
        %v7525 = vpop.f32.mrb[0].mxu0
        %7526 = vmatprep.mubr.bf16.mxu0 0
        %7527 = vmatmul.mubr.bf16.gmra.mrb[0].mxu0 %v7422
        %v7528 = vpop.f32.mrb[0].mxu0
        %v7529 = vadd.f32 %v7392, %v7528
        %v7530 = vpop.f32.mrb[0].mxu0
        %v7531 = vpop.f32.mrb[0].mxu0
        %v7532 = vadd.f32 %v7392, %v7531
        %v7533 = vpop.f32.mrb[0].mxu0
        %7534 = vmatprep.mubr.bf16.mxu0 0
        %7535 = vmatmul.mubr.bf16.gmra.mrb[0].mxu0 %v7425
        %v7536 = vpop.f32.mrb[0].mxu0
        %v7537 = vadd.f32 %v7392, %v7536
        %v7538 = vpop.f32.mrb[0].mxu0
        %v7539 = vpop.f32.mrb[0].mxu0
        %v7540 = vadd.f32 %v7392, %v7539
        %v7541 = vpop.f32.mrb[0].mxu0
        %7542 = vmatprep.mubr.bf16.mxu0 0
        %7543 = vmatmul.mubr.bf16.gmra.mrb[0].mxu0 %v7428
        %v7544 = vpop.f32.mrb[0].mxu0
        %v7545 = vadd.f32 %v7392, %v7544
        %v7546 = vpop.f32.mrb[0].mxu0
        %v7547 = vpop.f32.mrb[0].mxu0
        %v7548 = vadd.f32 %v7392, %v7547
        %v7549 = vpop.f32.mrb[0].mxu0
        %7550 = vmatprep.mubr.bf16.mxu0 0
        %7551 = vmatmul.mubr.bf16.gmra.mrb[0].mxu0 %v7431
        %v7552 = vpop.f32.mrb[0].mxu0
        %v7553 = vadd.f32 %v7392, %v7552
        %v7554 = vpop.f32.mrb[0].mxu0
        %v7555 = vpop.f32.mrb[0].mxu0
        %v7556 = vadd.f32 %v7392, %v7555
        %v7557 = vpop.f32.mrb[0].mxu0
        %7558 = vmatprep.mubr.bf16.mxu0 0
        %7559 = vmatmul.mubr.bf16.gmra.mrb[0].mxu0 %v7434
        %v7560 = vpop.f32.mrb[0].mxu0
        %v7561 = vadd.f32 %v7392, %v7560
        %v7562 = vpop.f32.mrb[0].mxu0
        %v7563 = vpop.f32.mrb[0].mxu0
        %v7564 = vadd.f32 %v7392, %v7563
        %v7565 = vpop.f32.mrb[0].mxu0
        %7566 = vmatprep.mubr.bf16.mxu0 0
        %7567 = vmatmul.mubr.bf16.gmra.mrb[0].mxu0 %v7437
        %v7568 = vpop.f32.mrb[0].mxu0
        %v7569 = vadd.f32 %v7392, %v7568
        %v7570 = vpop.f32.mrb[0].mxu0
        %v7571 = vpop.f32.mrb[0].mxu0
        %v7572 = vadd.f32 %v7392, %v7571
        %v7573 = vpop.f32.mrb[0].mxu0
        %7574 = vmatprep.mubr.bf16.mxu0 0
        %7575 = vmatmul.mubr.bf16.gmra.mrb[0].mxu0 %v7440
        %v7576 = vpop.f32.mrb[0].mxu0
        %v7577 = vadd.f32 %v7392, %v7576
        %v7578 = vpop.f32.mrb[0].mxu0
        %v7579 = vpop.f32.mrb[0].mxu0
        %v7580 = vadd.f32 %v7392, %v7579
        %v7581 = vpop.f32.mrb[0].mxu0
        %7582 = vmatprep.mubr.bf16.mxu0 0
        %7583 = vmatmul.mubr.bf16.gmra.mrb[0].mxu0 %v7443
        %v7584 = vpop.f32.mrb[0].mxu0
        %v7585 = vadd.f32 %v7392, %v7584
        %v7586 = vpop.f32.mrb[0].mxu0
        %v7587 = vpop.f32.mrb[0].mxu0
        %v7588 = vadd.f32 %v7392, %v7587
        %v7589 = vpop.f32.mrb[0].mxu0
        %7590 = vmatprep.mubr.bf16.mxu0 0
        %7591 = vmatmul.mubr.bf16.gmra.mrb[0].mxu0 %v7446
        %v7592 = vpop.f32.mrb[0].mxu0
        %v7593 = vadd.f32 %v7392, %v7592
        %v7594 = vpop.f32.mrb[0].mxu0
        %v7595 = vpop.f32.mrb[0].mxu0
        %v7596 = vadd.f32 %v7392, %v7595
        %v7597 = vpop.f32.mrb[0].mxu0
        %7598 = vmatprep.mubr.bf16.mxu0 0
        %7599 = vmatmul.mubr.bf16.gmra.mrb[0].mxu0 %v7449
        %v7600 = vpop.f32.mrb[0].mxu0
        %v7601 = vadd.f32 %v7392, %v7600
        %v7602 = vpop.f32.mrb[0].mxu0
        %v7603 = vpop.f32.mrb[0].mxu0
        %v7604 = vadd.f32 %v7392, %v7603
        %v7605 = vpop.f32.mrb[0].mxu0
        %7606 = vmatprep.mubr.bf16.mxu0 0
        %7607 = vmatmul.mubr.bf16.gmra.mrb[0].mxu0 %v7452
        %v7608 = vpop.f32.mrb[0].mxu0
        %v7609 = vadd.f32 %v7392, %v7608
        %v7610 = vpop.f32.mrb[0].mxu0
        %v7611 = vpop.f32.mrb[0].mxu0
        %v7612 = vadd.f32 %v7392, %v7611
        %v7613 = vpop.f32.mrb[0].mxu0
        %7614 = vdwg.mxu0
        %v7615 = vadd.f32 %v4628, %v7489
        %v7616 = vadd.f32 %v4629, %v7492
        %v7617 = vadd.f32 %v4630, %v7497
        %v7618 = vadd.f32 %v4631, %v7500
        %v7619 = vadd.f32 %v4632, %v7505
        %v7620 = vadd.f32 %v4633, %v7508
        %v7621 = vadd.f32 %v4634, %v7513
        %v7622 = vadd.f32 %v4635, %v7516
        %v7623 = vadd.f32 %v4636, %v7521
        %v7624 = vadd.f32 %v4637, %v7524
        %v7625 = vadd.f32 %v4638, %v7529
        %v7626 = vadd.f32 %v4639, %v7532
        %v7627 = vadd.f32 %v4640, %v7537
        %v7628 = vadd.f32 %v4641, %v7540
        %v7629 = vadd.f32 %v4642, %v7545
        %v7630 = vadd.f32 %v4643, %v7548
        %v7631 = vadd.f32 %v4644, %v7553
        %v7632 = vadd.f32 %v4645, %v7556
        %v7633 = vadd.f32 %v4646, %v7561
        %v7634 = vadd.f32 %v4647, %v7564
        %v7635 = vadd.f32 %v4648, %v7569
        %v7636 = vadd.f32 %v4649, %v7572
        %v7637 = vadd.f32 %v4650, %v7577
        %v7638 = vadd.f32 %v4651, %v7580
        %v7639 = vadd.f32 %v4652, %v7585
        %v7640 = vadd.f32 %v4653, %v7588
        %v7641 = vadd.f32 %v4654, %v7593
        %v7642 = vadd.f32 %v4655, %v7596
        %v7643 = vadd.f32 %v4656, %v7601
        %v7644 = vadd.f32 %v4657, %v7604
        %v7645 = vadd.f32 %v4658, %v7609
        %v7646 = vadd.f32 %v4659, %v7612
        %v7647 = vmul.f32 %v7615, 0.70710677
        %v7648 = vmul.f32 %v7616, 0.70710677
        %v7649 = vmul.f32 %v7617, 0.70710677
        %v7650 = vmul.f32 %v7618, 0.70710677
        %v7651 = vmul.f32 %v7619, 0.70710677
        %v7652 = vmul.f32 %v7620, 0.70710677
        %v7653 = vmul.f32 %v7621, 0.70710677
        %v7654 = vmul.f32 %v7622, 0.70710677
        %v7655 = vmul.f32 %v7623, 0.70710677
        %v7656 = vmul.f32 %v7624, 0.70710677
        %v7657 = vmul.f32 %v7625, 0.70710677
        %v7658 = vmul.f32 %v7626, 0.70710677
        %v7659 = vmul.f32 %v7627, 0.70710677
        %v7660 = vmul.f32 %v7628, 0.70710677
        %v7661 = vmul.f32 %v7629, 0.70710677
        %v7662 = vmul.f32 %v7630, 0.70710677
        %v7663 = vmul.f32 %v7631, 0.70710677
        %v7664 = vmul.f32 %v7632, 0.70710677
        %v7665 = vmul.f32 %v7633, 0.70710677
        %v7666 = vmul.f32 %v7634, 0.70710677
        %v7667 = vmul.f32 %v7635, 0.70710677
        %v7668 = vmul.f32 %v7636, 0.70710677
        %v7669 = vmul.f32 %v7637, 0.70710677
        %v7670 = vmul.f32 %v7638, 0.70710677
        %v7671 = vmul.f32 %v7639, 0.70710677
        %v7672 = vmul.f32 %v7640, 0.70710677
        %v7673 = vmul.f32 %v7641, 0.70710677
        %v7674 = vmul.f32 %v7642, 0.70710677
        %v7675 = vmul.f32 %v7643, 0.70710677
        %v7676 = vmul.f32 %v7644, 0.70710677
        %v7677 = vmul.f32 %v7645, 0.70710677
        %v7678 = vmul.f32 %v7646, 0.70710677
        %v7679 = vadd.f32 %v4660, %v7489
        %v7680 = vadd.f32 %v4661, %v7492
        %v7681 = vadd.f32 %v4662, %v7497
        %v7682 = vadd.f32 %v4663, %v7500
        %v7683 = vadd.f32 %v4664, %v7505
        %v7684 = vadd.f32 %v4665, %v7508
        %v7685 = vadd.f32 %v4666, %v7513
        %v7686 = vadd.f32 %v4667, %v7516
        %v7687 = vadd.f32 %v4668, %v7521
        %v7688 = vadd.f32 %v4669, %v7524
        %v7689 = vadd.f32 %v4670, %v7529
        %v7690 = vadd.f32 %v4671, %v7532
        %v7691 = vadd.f32 %v4672, %v7537
        %v7692 = vadd.f32 %v4673, %v7540
        %v7693 = vadd.f32 %v4674, %v7545
        %v7694 = vadd.f32 %v4675, %v7548
        %v7695 = vadd.f32 %v4676, %v7553
        %v7696 = vadd.f32 %v4677, %v7556
        %v7697 = vadd.f32 %v4678, %v7561
        %v7698 = vadd.f32 %v4679, %v7564
        %v7699 = vadd.f32 %v4680, %v7569
        %v7700 = vadd.f32 %v4681, %v7572
        %v7701 = vadd.f32 %v4682, %v7577
        %v7702 = vadd.f32 %v4683, %v7580
        %v7703 = vadd.f32 %v4684, %v7585
        %v7704 = vadd.f32 %v4685, %v7588
        %v7705 = vadd.f32 %v4686, %v7593
        %v7706 = vadd.f32 %v4687, %v7596
        %v7707 = vadd.f32 %v4688, %v7601
        %v7708 = vadd.f32 %v4689, %v7604
        %v7709 = vadd.f32 %v4690, %v7609
        %v7710 = vadd.f32 %v4691, %v7612
        %v7711 = vpack.c.bf16 %v7648, %v7647
        %v7712 = vpack.c.bf16 %v7650, %v7649
        %v7713 = vpack.c.bf16 %v7652, %v7651
        %v7714 = vpack.c.bf16 %v7654, %v7653
        %v7715 = vpack.c.bf16 %v7656, %v7655
        %v7716 = vpack.c.bf16 %v7658, %v7657
        %v7717 = vpack.c.bf16 %v7660, %v7659
        %v7718 = vpack.c.bf16 %v7662, %v7661
        %v7719 = vpack.c.bf16 %v7664, %v7663
        %v7720 = vpack.c.bf16 %v7666, %v7665
        %v7721 = vpack.c.bf16 %v7668, %v7667
        %v7722 = vpack.c.bf16 %v7670, %v7669
        %v7723 = vpack.c.bf16 %v7672, %v7671
        %v7724 = vpack.c.bf16 %v7674, %v7673
        %v7725 = vpack.c.bf16 %v7676, %v7675
        %v7726 = vpack.c.bf16 %v7678, %v7677
        %v7743 = vunpack.c.l.b16 %v7711
        %v7744 = vunpack.c.h.b16 %v7711
        %v7745 = vunpack.c.l.b16 %v7712
        %v7746 = vunpack.c.h.b16 %v7712
        %v7747 = vunpack.c.l.b16 %v7713
        %v7748 = vunpack.c.h.b16 %v7713
        %v7749 = vunpack.c.l.b16 %v7714
        %v7750 = vunpack.c.h.b16 %v7714
        %v7751 = vunpack.c.l.b16 %v7715
        %v7752 = vunpack.c.h.b16 %v7715
        %v7753 = vunpack.c.l.b16 %v7716
        %v7754 = vunpack.c.h.b16 %v7716
        %v7755 = vunpack.c.l.b16 %v7717
        %v7756 = vunpack.c.h.b16 %v7717
        %v7757 = vunpack.c.l.b16 %v7718
        %v7758 = vunpack.c.h.b16 %v7718
        %v7759 = vunpack.c.l.b16 %v7719
        %v7760 = vunpack.c.h.b16 %v7719
        %v7761 = vunpack.c.l.b16 %v7720
        %v7762 = vunpack.c.h.b16 %v7720
        %v7763 = vunpack.c.l.b16 %v7721
        %v7764 = vunpack.c.h.b16 %v7721
        %v7765 = vunpack.c.l.b16 %v7722
        %v7766 = vunpack.c.h.b16 %v7722
        %v7767 = vunpack.c.l.b16 %v7723
        %v7768 = vunpack.c.h.b16 %v7723
        %v7769 = vunpack.c.l.b16 %v7724
        %v7770 = vunpack.c.h.b16 %v7724
        %v7771 = vunpack.c.l.b16 %v7725
        %v7772 = vunpack.c.h.b16 %v7725
        %v7773 = vunpack.c.l.b16 %v7726
        %v7774 = vunpack.c.h.b16 %v7726
        %v7775 = vpack.c.b16 %v7743, %v7743
        %v7776 = vpack.c.b16 %v7744, %v7744
        %v7777 = vpack.c.b16 %v7745, %v7745
        %v7778 = vpack.c.b16 %v7746, %v7746
        %v7779 = vpack.c.b16 %v7747, %v7747
        %v7780 = vpack.c.b16 %v7748, %v7748
        %v7781 = vpack.c.b16 %v7749, %v7749
        %v7782 = vpack.c.b16 %v7750, %v7750
        %v7783 = vpack.c.b16 %v7751, %v7751
        %v7784 = vpack.c.b16 %v7752, %v7752
        %v7785 = vpack.c.b16 %v7753, %v7753
        %v7786 = vpack.c.b16 %v7754, %v7754
        %v7787 = vpack.c.b16 %v7755, %v7755
        %v7788 = vpack.c.b16 %v7756, %v7756
        %v7789 = vpack.c.b16 %v7757, %v7757
        %v7790 = vpack.c.b16 %v7758, %v7758
        %v7791 = vpack.c.b16 %v7759, %v7759
        %v7792 = vpack.c.b16 %v7760, %v7760
        %v7793 = vpack.c.b16 %v7761, %v7761
        %v7794 = vpack.c.b16 %v7762, %v7762
        %v7795 = vpack.c.b16 %v7763, %v7763
        %v7796 = vpack.c.b16 %v7764, %v7764
        %v7797 = vpack.c.b16 %v7765, %v7765
        %v7798 = vpack.c.b16 %v7766, %v7766
        %v7799 = vpack.c.b16 %v7767, %v7767
        %v7800 = vpack.c.b16 %v7768, %v7768
        %v7801 = vpack.c.b16 %v7769, %v7769
        %v7802 = vpack.c.b16 %v7770, %v7770
        %v7803 = vpack.c.b16 %v7771, %v7771
        %v7804 = vpack.c.b16 %v7772, %v7772
        %v7805 = vpack.c.b16 %v7773, %v7773
        %v7806 = vpack.c.b16 %v7774, %v7774
        %v7807 = vrot.slane %v7775, 6
        %v7808 = vrot.slane %v7807, 4
        %v7809 = vrot.slane %v7776, 6
        %v7810 = vsel %vm1211, %v7808, %v7809
        %v7811 = vrot.slane %v7809, 4
        %v7812 = vrot.slane %v7777, 6
        %v7813 = vrot.slane %v7812, 4
        %v7814 = vrot.slane %v7778, 6
        %v7815 = vsel %vm1211, %v7813, %v7814
        %v7816 = vrot.slane %v7814, 4
        %v7817 = vrot.slane %v7779, 6
        %v7818 = vrot.slane %v7817, 4
        %v7819 = vrot.slane %v7780, 6
        %v7820 = vsel %vm1211, %v7818, %v7819
        %v7821 = vrot.slane %v7819, 4
        %v7822 = vrot.slane %v7781, 6
        %v7823 = vrot.slane %v7822, 4
        %v7824 = vrot.slane %v7782, 6
        %v7825 = vsel %vm1211, %v7823, %v7824
        %v7826 = vrot.slane %v7824, 4
        %v7827 = vrot.slane %v7783, 6
        %v7828 = vrot.slane %v7827, 4
        %v7829 = vrot.slane %v7784, 6
        %v7830 = vsel %vm1211, %v7828, %v7829
        %v7831 = vrot.slane %v7829, 4
        %v7832 = vrot.slane %v7785, 6
        %v7833 = vrot.slane %v7832, 4
        %v7834 = vrot.slane %v7786, 6
        %v7835 = vsel %vm1211, %v7833, %v7834
        %v7836 = vrot.slane %v7834, 4
        %v7837 = vrot.slane %v7787, 6
        %v7838 = vrot.slane %v7837, 4
        %v7839 = vrot.slane %v7788, 6
        %v7840 = vsel %vm1211, %v7838, %v7839
        %v7841 = vrot.slane %v7839, 4
        %v7842 = vrot.slane %v7789, 6
        %v7843 = vrot.slane %v7842, 4
        %v7844 = vrot.slane %v7790, 6
        %v7845 = vsel %vm1211, %v7843, %v7844
        %v7846 = vrot.slane %v7844, 4
        %v7847 = vrot.slane %v7791, 6
        %v7848 = vrot.slane %v7847, 4
        %v7849 = vrot.slane %v7792, 6
        %v7850 = vsel %vm1211, %v7848, %v7849
        %v7851 = vrot.slane %v7849, 4
        %v7852 = vrot.slane %v7793, 6
        %v7853 = vrot.slane %v7852, 4
        %v7854 = vrot.slane %v7794, 6
        %v7855 = vsel %vm1211, %v7853, %v7854
        %v7856 = vrot.slane %v7854, 4
        %v7857 = vrot.slane %v7795, 6
        %v7858 = vrot.slane %v7857, 4
        %v7859 = vrot.slane %v7796, 6
        %v7860 = vsel %vm1211, %v7858, %v7859
        %v7861 = vrot.slane %v7859, 4
        %v7862 = vrot.slane %v7797, 6
        %v7863 = vrot.slane %v7862, 4
        %v7864 = vrot.slane %v7798, 6
        %v7865 = vsel %vm1211, %v7863, %v7864
        %v7866 = vrot.slane %v7864, 4
        %v7867 = vrot.slane %v7799, 6
        %v7868 = vrot.slane %v7867, 4
        %v7869 = vrot.slane %v7800, 6
        %v7870 = vsel %vm1211, %v7868, %v7869
        %v7871 = vrot.slane %v7869, 4
        %v7872 = vrot.slane %v7801, 6
        %v7873 = vrot.slane %v7872, 4
        %v7874 = vrot.slane %v7802, 6
        %v7875 = vsel %vm1211, %v7873, %v7874
        %v7876 = vrot.slane %v7874, 4
        %v7877 = vrot.slane %v7803, 6
        %v7878 = vrot.slane %v7877, 4
        %v7879 = vrot.slane %v7804, 6
        %v7880 = vsel %vm1211, %v7878, %v7879
        %v7881 = vrot.slane %v7879, 4
        %v7882 = vrot.slane %v7805, 6
        %v7883 = vrot.slane %v7882, 4
        %v7884 = vrot.slane %v7806, 6
        %v7885 = vsel %vm1211, %v7883, %v7884
        %v7886 = vrot.slane %v7884, 4
        %7935 = vst.msk [vmem:[%s1340] sm:$0xc] %vm577, %v7807
        %7936 = vst.msk [vmem:[%s1340 + $0x4] sm:$0xf] %vm527, %v7810
        %7937 = vst.msk [vmem:[%s1340 + $0x8] sm:$0x3] %vm552, %v7811
        %7938 = vst.msk [vmem:[%s1340 + $0xc] sm:$0xc] %vm577, %v7812
        %7939 = vst.msk [vmem:[%s1340 + $0x10] sm:$0xf] %vm527, %v7815
        %7940 = vst.msk [vmem:[%s1340 + $0x14] sm:$0x3] %vm552, %v7816
        %7941 = vst.msk [vmem:[%s1340 + $0x18] sm:$0xc] %vm577, %v7817
        %7942 = vst.msk [vmem:[%s1340 + $0x1c] sm:$0xf] %vm527, %v7820
        %7943 = vst.msk [vmem:[%s1340 + $0x20] sm:$0x3] %vm552, %v7821
        %7944 = vst.msk [vmem:[%s1340 + $0x24] sm:$0xc] %vm577, %v7822
        %7945 = vst.msk [vmem:[%s1340 + $0x28] sm:$0xf] %vm527, %v7825
        %7946 = vst.msk [vmem:[%s1340 + $0x2c] sm:$0x3] %vm552, %v7826
        %7947 = vst.msk [vmem:[%s1340 + $0x30] sm:$0xc] %vm577, %v7827
        %7948 = vst.msk [vmem:[%s1340 + $0x34] sm:$0xf] %vm527, %v7830
        %7949 = vst.msk [vmem:[%s1340 + $0x38] sm:$0x3] %vm552, %v7831
        %7950 = vst.msk [vmem:[%s1340 + $0x3c] sm:$0xc] %vm577, %v7832
        %7951 = vst.msk [vmem:[%s1340 + $0x40] sm:$0xf] %vm527, %v7835
        %7952 = vst.msk [vmem:[%s1340 + $0x44] sm:$0x3] %vm552, %v7836
        %7953 = vst.msk [vmem:[%s1340 + $0x48] sm:$0xc] %vm577, %v7837
        %7954 = vst.msk [vmem:[%s1340 + $0x4c] sm:$0xf] %vm527, %v7840
        %7955 = vst.msk [vmem:[%s1340 + $0x50] sm:$0x3] %vm552, %v7841
        %7956 = vst.msk [vmem:[%s1340 + $0x54] sm:$0xc] %vm577, %v7842
        %7957 = vst.msk [vmem:[%s1340 + $0x58] sm:$0xf] %vm527, %v7845
        %7958 = vst.msk [vmem:[%s1340 + $0x5c] sm:$0x3] %vm552, %v7846
        %7959 = vst.msk [vmem:[%s1340 + $0x60] sm:$0xc] %vm577, %v7847
        %7960 = vst.msk [vmem:[%s1340 + $0x64] sm:$0xf] %vm527, %v7850
        %7961 = vst.msk [vmem:[%s1340 + $0x68] sm:$0x3] %vm552, %v7851
        %7962 = vst.msk [vmem:[%s1340 + $0x6c] sm:$0xc] %vm577, %v7852
        %7963 = vst.msk [vmem:[%s1340 + $0x70] sm:$0xf] %vm527, %v7855
        %7964 = vst.msk [vmem:[%s1340 + $0x74] sm:$0x3] %vm552, %v7856
        %7965 = vst.msk [vmem:[%s1340 + $0x78] sm:$0xc] %vm577, %v7857
        %7966 = vst.msk [vmem:[%s1340 + $0x7c] sm:$0xf] %vm527, %v7860
        %7967 = vst.msk [vmem:[%s1340 + $0x80] sm:$0x3] %vm552, %v7861
        %7968 = vst.msk [vmem:[%s1340 + $0x84] sm:$0xc] %vm577, %v7862
        %7969 = vst.msk [vmem:[%s1340 + $0x88] sm:$0xf] %vm527, %v7865
        %7970 = vst.msk [vmem:[%s1340 + $0x8c] sm:$0x3] %vm552, %v7866
        %7971 = vst.msk [vmem:[%s1340 + $0x90] sm:$0xc] %vm577, %v7867
        %7972 = vst.msk [vmem:[%s1340 + $0x94] sm:$0xf] %vm527, %v7870
        %7973 = vst.msk [vmem:[%s1340 + $0x98] sm:$0x3] %vm552, %v7871
        %7974 = vst.msk [vmem:[%s1340 + $0x9c] sm:$0xc] %vm577, %v7872
        %7975 = vst.msk [vmem:[%s1340 + $0xa0] sm:$0xf] %vm527, %v7875
        %7976 = vst.msk [vmem:[%s1340 + $0xa4] sm:$0x3] %vm552, %v7876
        %7977 = vst.msk [vmem:[%s1340 + $0xa8] sm:$0xc] %vm577, %v7877
        %7978 = vst.msk [vmem:[%s1340 + $0xac] sm:$0xf] %vm527, %v7880
        %7979 = vst.msk [vmem:[%s1340 + $0xb0] sm:$0x3] %vm552, %v7881
        %7980 = vst.msk [vmem:[%s1340 + $0xb4] sm:$0xc] %vm577, %v7882
        %7981 = vst.msk [vmem:[%s1340 + $0xb8] sm:$0xf] %vm527, %v7885
        %7982 = vst.msk [vmem:[%s1340 + $0xbc] sm:$0x3] %vm552, %v7886
        %v7983 = vld [vmem:[#allocation2] sm:$0xf]
        %v7984 = vld [vmem:[#allocation2 + $0x4] sm:$0xf]
        %v7985 = vld [vmem:[#allocation2 + $0xc] sm:$0xf]
        %v7986 = vld [vmem:[#allocation2 + $0x10] sm:$0xf]
        %v7987 = vld [vmem:[#allocation2 + $0x18] sm:$0xf]
        %v7988 = vld [vmem:[#allocation2 + $0x1c] sm:$0xf]
        %v7989 = vld [vmem:[#allocation2 + $0x24] sm:$0xf]
        %v7990 = vld [vmem:[#allocation2 + $0x28] sm:$0xf]
        %v7991 = vld [vmem:[#allocation2 + $0x30] sm:$0xf]
        %v7992 = vld [vmem:[#allocation2 + $0x34] sm:$0xf]
        %v7993 = vld [vmem:[#allocation2 + $0x3c] sm:$0xf]
        %v7994 = vld [vmem:[#allocation2 + $0x40] sm:$0xf]
        %v7995 = vld [vmem:[#allocation2 + $0x48] sm:$0xf]
        %v7996 = vld [vmem:[#allocation2 + $0x4c] sm:$0xf]
        %v7997 = vld [vmem:[#allocation2 + $0x54] sm:$0xf]
        %v7998 = vld [vmem:[#allocation2 + $0x58] sm:$0xf]
        %v7999 = vld [vmem:[#allocation2 + $0x60] sm:$0xf]
        %v8000 = vld [vmem:[#allocation2 + $0x64] sm:$0xf]
        %v8001 = vld [vmem:[#allocation2 + $0x6c] sm:$0xf]
        %v8002 = vld [vmem:[#allocation2 + $0x70] sm:$0xf]
        %v8003 = vld [vmem:[#allocation2 + $0x78] sm:$0xf]
        %v8004 = vld [vmem:[#allocation2 + $0x7c] sm:$0xf]
        %v8005 = vld [vmem:[#allocation2 + $0x84] sm:$0xf]
        %v8006 = vld [vmem:[#allocation2 + $0x88] sm:$0xf]
        %v8007 = vld [vmem:[#allocation2 + $0x90] sm:$0xf]
        %v8008 = vld [vmem:[#allocation2 + $0x94] sm:$0xf]
        %v8009 = vld [vmem:[#allocation2 + $0x9c] sm:$0xf]
        %v8010 = vld [vmem:[#allocation2 + $0xa0] sm:$0xf]
        %v8011 = vld [vmem:[#allocation2 + $0xa8] sm:$0xf]
        %v8012 = vld [vmem:[#allocation2 + $0xac] sm:$0xf]
        %v8013 = vld [vmem:[#allocation2 + $0xb4] sm:$0xf]
        %v8014 = vld [vmem:[#allocation2 + $0xb8] sm:$0xf]
        %v8015 = vld [vmem:[#allocation2 + $0xc0] sm:$0xf]
        %v8016 = vld [vmem:[#allocation2 + $0xc4] sm:$0xf]
        %v8017 = vld [vmem:[#allocation2 + $0xcc] sm:$0xf]
        %v8018 = vld [vmem:[#allocation2 + $0xd0] sm:$0xf]
        %v8019 = vld [vmem:[#allocation2 + $0xd8] sm:$0xf]
        %v8020 = vld [vmem:[#allocation2 + $0xdc] sm:$0xf]
        %v8021 = vld [vmem:[#allocation2 + $0xe4] sm:$0xf]
        %v8022 = vld [vmem:[#allocation2 + $0xe8] sm:$0xf]
        %v8023 = vld [vmem:[#allocation2 + $0xf0] sm:$0xf]
        %v8024 = vld [vmem:[#allocation2 + $0xf4] sm:$0xf]
        %v8025 = vld [vmem:[#allocation2 + $0xfc] sm:$0xf]
        %v8026 = vld [vmem:[#allocation2 + $0x100] sm:$0xf]
        %v8027 = vld [vmem:[#allocation2 + $0x108] sm:$0xf]
        %v8028 = vld [vmem:[#allocation2 + $0x10c] sm:$0xf]
        %v8029 = vld [vmem:[#allocation2 + $0x114] sm:$0xf]
        %v8030 = vld [vmem:[#allocation2 + $0x118] sm:$0xf]
        %v8031 = vld [vmem:[#allocation2] sm:$0xc]
        %v8032 = vld [vmem:[#allocation2 + $0x8] sm:$0x3]
        %v8033 = vld [vmem:[#allocation2 + $0xc] sm:$0xc]
        %v8034 = vld [vmem:[#allocation2 + $0x14] sm:$0x3]
        %v8035 = vld [vmem:[#allocation2 + $0x18] sm:$0xc]
        %v8036 = vld [vmem:[#allocation2 + $0x20] sm:$0x3]
        %v8037 = vld [vmem:[#allocation2 + $0x24] sm:$0xc]
        %v8038 = vld [vmem:[#allocation2 + $0x2c] sm:$0x3]
        %v8039 = vld [vmem:[#allocation2 + $0x30] sm:$0xc]
        %v8040 = vld [vmem:[#allocation2 + $0x38] sm:$0x3]
        %v8041 = vld [vmem:[#allocation2 + $0x3c] sm:$0xc]
        %v8042 = vld [vmem:[#allocation2 + $0x44] sm:$0x3]
        %v8043 = vld [vmem:[#allocation2 + $0x48] sm:$0xc]
        %v8044 = vld [vmem:[#allocation2 + $0x50] sm:$0x3]
        %v8045 = vld [vmem:[#allocation2 + $0x54] sm:$0xc]
        %v8046 = vld [vmem:[#allocation2 + $0x5c] sm:$0x3]
        %v8047 = vld [vmem:[#allocation2 + $0x60] sm:$0xc]
        %v8048 = vld [vmem:[#allocation2 + $0x68] sm:$0x3]
        %v8049 = vld [vmem:[#allocation2 + $0x6c] sm:$0xc]
        %v8050 = vld [vmem:[#allocation2 + $0x74] sm:$0x3]
        %v8051 = vld [vmem:[#allocation2 + $0x78] sm:$0xc]
        %v8052 = vld [vmem:[#allocation2 + $0x80] sm:$0x3]
        %v8053 = vld [vmem:[#allocation2 + $0x84] sm:$0xc]
        %v8054 = vld [vmem:[#allocation2 + $0x8c] sm:$0x3]
        %v8055 = vld [vmem:[#allocation2 + $0x90] sm:$0xc]
        %v8056 = vld [vmem:[#allocation2 + $0x98] sm:$0x3]
        %v8057 = vld [vmem:[#allocation2 + $0x9c] sm:$0xc]
        %v8058 = vld [vmem:[#allocation2 + $0xa4] sm:$0x3]
        %v8059 = vld [vmem:[#allocation2 + $0xa8] sm:$0xc]
        %v8060 = vld [vmem:[#allocation2 + $0xb0] sm:$0x3]
        %v8061 = vld [vmem:[#allocation2 + $0xb4] sm:$0xc]
        %v8062 = vld [vmem:[#allocation2 + $0xbc] sm:$0x3]
        %v8063 = vld [vmem:[#allocation2 + $0xc0] sm:$0xc]
        %v8064 = vld [vmem:[#allocation2 + $0xc8] sm:$0x3]
        %v8065 = vld [vmem:[#allocation2 + $0xcc] sm:$0xc]
        %v8066 = vld [vmem:[#allocation2 + $0xd4] sm:$0x3]
        %v8067 = vld [vmem:[#allocation2 + $0xd8] sm:$0xc]
        %v8068 = vld [vmem:[#allocation2 + $0xe0] sm:$0x3]
        %v8069 = vld [vmem:[#allocation2 + $0xe4] sm:$0xc]
        %v8070 = vld [vmem:[#allocation2 + $0xec] sm:$0x3]
        %v8071 = vld [vmem:[#allocation2 + $0xf0] sm:$0xc]
        %v8072 = vld [vmem:[#allocation2 + $0xf8] sm:$0x3]
        %v8073 = vld [vmem:[#allocation2 + $0xfc] sm:$0xc]
        %v8074 = vld [vmem:[#allocation2 + $0x104] sm:$0x3]
        %v8075 = vld [vmem:[#allocation2 + $0x108] sm:$0xc]
        %v8076 = vld [vmem:[#allocation2 + $0x110] sm:$0x3]
        %v8077 = vld [vmem:[#allocation2 + $0x114] sm:$0xc]
        %v8078 = vld [vmem:[#allocation2 + $0x11c] sm:$0x3]
        %v8127 = vrot.slane %v8031, 6
        %v8128 = vrot.slane %v8127, 4
        %v8129 = vrot.slane %v7984, 6
        %v8130 = vsel %vm1211, %v8128, %v8129
        %v8131 = vrot.slane %v8129, 4
        %v8132 = vrot.slane %v8032, 6
        %v8133 = vsel %vm1211, %v8131, %v8132
        %v8134 = vrot.slane %v8033, 6
        %v8135 = vrot.slane %v8134, 4
        %v8136 = vrot.slane %v7986, 6
        %v8137 = vsel %vm1211, %v8135, %v8136
        %v8138 = vrot.slane %v8136, 4
        %v8139 = vrot.slane %v8034, 6
        %v8140 = vsel %vm1211, %v8138, %v8139
        %v8141 = vrot.slane %v8035, 6
        %v8142 = vrot.slane %v8141, 4
        %v8143 = vrot.slane %v7988, 6
        %v8144 = vsel %vm1211, %v8142, %v8143
        %v8145 = vrot.slane %v8143, 4
        %v8146 = vrot.slane %v8036, 6
        %v8147 = vsel %vm1211, %v8145, %v8146
        %v8148 = vrot.slane %v8037, 6
        %v8149 = vrot.slane %v8148, 4
        %v8150 = vrot.slane %v7990, 6
        %v8151 = vsel %vm1211, %v8149, %v8150
        %v8152 = vrot.slane %v8150, 4
        %v8153 = vrot.slane %v8038, 6
        %v8154 = vsel %vm1211, %v8152, %v8153
        %v8155 = vrot.slane %v8039, 6
        %v8156 = vrot.slane %v8155, 4
        %v8157 = vrot.slane %v7992, 6
        %v8158 = vsel %vm1211, %v8156, %v8157
        %v8159 = vrot.slane %v8157, 4
        %v8160 = vrot.slane %v8040, 6
        %v8161 = vsel %vm1211, %v8159, %v8160
        %v8162 = vrot.slane %v8041, 6
        %v8163 = vrot.slane %v8162, 4
        %v8164 = vrot.slane %v7994, 6
        %v8165 = vsel %vm1211, %v8163, %v8164
        %v8166 = vrot.slane %v8164, 4
        %v8167 = vrot.slane %v8042, 6
        %v8168 = vsel %vm1211, %v8166, %v8167
        %v8169 = vrot.slane %v8043, 6
        %v8170 = vrot.slane %v8169, 4
        %v8171 = vrot.slane %v7996, 6
        %v8172 = vsel %vm1211, %v8170, %v8171
        %v8173 = vrot.slane %v8171, 4
        %v8174 = vrot.slane %v8044, 6
        %v8175 = vsel %vm1211, %v8173, %v8174
        %v8176 = vrot.slane %v8045, 6
        %v8177 = vrot.slane %v8176, 4
        %v8178 = vrot.slane %v7998, 6
        %v8179 = vsel %vm1211, %v8177, %v8178
        %v8180 = vrot.slane %v8178, 4
        %v8181 = vrot.slane %v8046, 6
        %v8182 = vsel %vm1211, %v8180, %v8181
        %v8183 = vrot.slane %v8047, 6
        %v8184 = vrot.slane %v8183, 4
        %v8185 = vrot.slane %v8000, 6
        %v8186 = vsel %vm1211, %v8184, %v8185
        %v8187 = vrot.slane %v8185, 4
        %v8188 = vrot.slane %v8048, 6
        %v8189 = vsel %vm1211, %v8187, %v8188
        %v8190 = vrot.slane %v8049, 6
        %v8191 = vrot.slane %v8190, 4
        %v8192 = vrot.slane %v8002, 6
        %v8193 = vsel %vm1211, %v8191, %v8192
        %v8194 = vrot.slane %v8192, 4
        %v8195 = vrot.slane %v8050, 6
        %v8196 = vsel %vm1211, %v8194, %v8195
        %v8197 = vrot.slane %v8051, 6
        %v8198 = vrot.slane %v8197, 4
        %v8199 = vrot.slane %v8004, 6
        %v8200 = vsel %vm1211, %v8198, %v8199
        %v8201 = vrot.slane %v8199, 4
        %v8202 = vrot.slane %v8052, 6
        %v8203 = vsel %vm1211, %v8201, %v8202
        %v8204 = vrot.slane %v8053, 6
        %v8205 = vrot.slane %v8204, 4
        %v8206 = vrot.slane %v8006, 6
        %v8207 = vsel %vm1211, %v8205, %v8206
        %v8208 = vrot.slane %v8206, 4
        %v8209 = vrot.slane %v8054, 6
        %v8210 = vsel %vm1211, %v8208, %v8209
        %v8211 = vrot.slane %v8055, 6
        %v8212 = vrot.slane %v8211, 4
        %v8213 = vrot.slane %v8008, 6
        %v8214 = vsel %vm1211, %v8212, %v8213
        %v8215 = vrot.slane %v8213, 4
        %v8216 = vrot.slane %v8056, 6
        %v8217 = vsel %vm1211, %v8215, %v8216
        %v8218 = vrot.slane %v8057, 6
        %v8219 = vrot.slane %v8218, 4
        %v8220 = vrot.slane %v8010, 6
        %v8221 = vsel %vm1211, %v8219, %v8220
        %v8222 = vrot.slane %v8220, 4
        %v8223 = vrot.slane %v8058, 6
        %v8224 = vsel %vm1211, %v8222, %v8223
        %v8225 = vrot.slane %v8059, 6
        %v8226 = vrot.slane %v8225, 4
        %v8227 = vrot.slane %v8012, 6
        %v8228 = vsel %vm1211, %v8226, %v8227
        %v8229 = vrot.slane %v8227, 4
        %v8230 = vrot.slane %v8060, 6
        %v8231 = vsel %vm1211, %v8229, %v8230
        %v8232 = vrot.slane %v8061, 6
        %v8233 = vrot.slane %v8232, 4
        %v8234 = vrot.slane %v8014, 6
        %v8235 = vsel %vm1211, %v8233, %v8234
        %v8236 = vrot.slane %v8234, 4
        %v8237 = vrot.slane %v8062, 6
        %v8238 = vsel %vm1211, %v8236, %v8237
        %v8255 = vunpack.c.l.b16 %v7983
        %v8256 = vunpack.c.l.b16 %v7984
        %v8257 = vunpack.c.l.b16 %v7985
        %v8258 = vunpack.c.l.b16 %v7986
        %v8259 = vunpack.c.l.b16 %v7987
        %v8260 = vunpack.c.l.b16 %v7988
        %v8261 = vunpack.c.l.b16 %v7989
        %v8262 = vunpack.c.l.b16 %v7990
        %v8263 = vunpack.c.l.b16 %v7991
        %v8264 = vunpack.c.l.b16 %v7992
        %v8265 = vunpack.c.l.b16 %v7993
        %v8266 = vunpack.c.l.b16 %v7994
        %v8267 = vunpack.c.l.b16 %v7995
        %v8268 = vunpack.c.l.b16 %v7996
        %v8269 = vunpack.c.l.b16 %v7997
        %v8270 = vunpack.c.l.b16 %v7998
        %v8271 = vunpack.c.l.b16 %v7999
        %v8272 = vunpack.c.l.b16 %v8000
        %v8273 = vunpack.c.l.b16 %v8001
        %v8274 = vunpack.c.l.b16 %v8002
        %v8275 = vunpack.c.l.b16 %v8003
        %v8276 = vunpack.c.l.b16 %v8004
        %v8277 = vunpack.c.l.b16 %v8005
        %v8278 = vunpack.c.l.b16 %v8006
        %v8279 = vunpack.c.l.b16 %v8007
        %v8280 = vunpack.c.l.b16 %v8008
        %v8281 = vunpack.c.l.b16 %v8009
        %v8282 = vunpack.c.l.b16 %v8010
        %v8283 = vunpack.c.l.b16 %v8011
        %v8284 = vunpack.c.l.b16 %v8012
        %v8285 = vunpack.c.l.b16 %v8013
        %v8286 = vunpack.c.l.b16 %v8014
        %v8287 = vpack.c.b16 %v8256, %v8255
        %v8288 = vpack.c.b16 %v8258, %v8257
        %v8289 = vpack.c.b16 %v8260, %v8259
        %v8290 = vpack.c.b16 %v8262, %v8261
        %v8291 = vpack.c.b16 %v8264, %v8263
        %v8292 = vpack.c.b16 %v8266, %v8265
        %v8293 = vpack.c.b16 %v8268, %v8267
        %v8294 = vpack.c.b16 %v8270, %v8269
        %v8295 = vpack.c.b16 %v8272, %v8271
        %v8296 = vpack.c.b16 %v8274, %v8273
        %v8297 = vpack.c.b16 %v8276, %v8275
        %v8298 = vpack.c.b16 %v8278, %v8277
        %v8299 = vpack.c.b16 %v8280, %v8279
        %v8300 = vpack.c.b16 %v8282, %v8281
        %v8301 = vpack.c.b16 %v8284, %v8283
        %v8302 = vpack.c.b16 %v8286, %v8285
        %v8311 = vunpack.c.l.b16 %v8015
        %v8312 = vunpack.c.l.b16 %v8016
        %v8313 = vunpack.c.l.b16 %v8017
        %v8314 = vunpack.c.l.b16 %v8018
        %v8315 = vunpack.c.l.b16 %v8019
        %v8316 = vunpack.c.l.b16 %v8020
        %v8317 = vunpack.c.l.b16 %v8021
        %v8318 = vunpack.c.l.b16 %v8022
        %v8319 = vpack.c.b16 %v8312, %v8311
        %v8320 = vpack.c.b16 %v8314, %v8313
        %v8321 = vpack.c.b16 %v8316, %v8315
        %v8322 = vpack.c.b16 %v8318, %v8317
        %8323 = vrot.lane.b32.xlu0 %v8291, 32
        %v8324 = vpop.permute.xlu0 %8323
        %8325 = vrot.lane.b32.xlu0 %v8292, 32
        %v8326 = vpop.permute.xlu0 %8325
        %8327 = vrot.lane.b32.xlu0 %v8293, 32
        %v8328 = vpop.permute.xlu0 %8327
        %8329 = vrot.lane.b32.xlu0 %v8294, 32
        %v8330 = vpop.permute.xlu0 %8329
        %8331 = vrot.lane.b32.xlu0 %v8295, 32
        %v8332 = vpop.permute.xlu0 %8331
        %8333 = vrot.lane.b32.xlu0 %v8296, 32
        %v8334 = vpop.permute.xlu0 %8333
        %8335 = vrot.lane.b32.xlu0 %v8297, 32
        %v8336 = vpop.permute.xlu0 %8335
        %8337 = vrot.lane.b32.xlu0 %v8298, 32
        %v8338 = vpop.permute.xlu0 %8337
        %8339 = vrot.lane.b32.xlu0 %v8299, 32
        %v8340 = vpop.permute.xlu0 %8339
        %8341 = vrot.lane.b32.xlu0 %v8300, 32
        %v8342 = vpop.permute.xlu0 %8341
        %8343 = vrot.lane.b32.xlu0 %v8301, 32
        %v8344 = vpop.permute.xlu0 %8343
        %8345 = vrot.lane.b32.xlu0 %v8302, 32
        %v8346 = vpop.permute.xlu0 %8345
        %8347 = vrot.lane.b32.xlu0 %v8319, 32
        %v8348 = vpop.permute.xlu0 %8347
        %8349 = vrot.lane.b32.xlu0 %v8320, 32
        %v8350 = vpop.permute.xlu0 %8349
        %8351 = vrot.lane.b32.xlu0 %v8321, 32
        %v8352 = vpop.permute.xlu0 %8351
        %8353 = vrot.lane.b32.xlu0 %v8322, 32
        %v8354 = vpop.permute.xlu0 %8353
        %v8363 = vunpack.c.l.b16 %v8023
        %v8364 = vunpack.c.l.b16 %v8024
        %v8365 = vunpack.c.l.b16 %v8025
        %v8366 = vunpack.c.l.b16 %v8026
        %v8367 = vunpack.c.l.b16 %v8027
        %v8368 = vunpack.c.l.b16 %v8028
        %v8369 = vunpack.c.l.b16 %v8029
        %v8370 = vunpack.c.l.b16 %v8030
        %v8371 = vpack.c.b16 %v8364, %v8363
        %v8372 = vpack.c.b16 %v8366, %v8365
        %v8373 = vpack.c.b16 %v8368, %v8367
        %v8374 = vpack.c.b16 %v8370, %v8369
        %8375 = vrot.lane.b32.xlu0 %v8295, 64
        %v8376 = vpop.permute.xlu0 %8375
        %8377 = vrot.lane.b32.xlu0 %v8296, 64
        %v8378 = vpop.permute.xlu0 %8377
        %8379 = vrot.lane.b32.xlu0 %v8297, 64
        %v8380 = vpop.permute.xlu0 %8379
        %8381 = vrot.lane.b32.xlu0 %v8298, 64
        %v8382 = vpop.permute.xlu0 %8381
        %8383 = vrot.lane.b32.xlu0 %v8299, 64
        %v8384 = vpop.permute.xlu0 %8383
        %8385 = vrot.lane.b32.xlu0 %v8300, 64
        %v8386 = vpop.permute.xlu0 %8385
        %8387 = vrot.lane.b32.xlu0 %v8301, 64
        %v8388 = vpop.permute.xlu0 %8387
        %8389 = vrot.lane.b32.xlu0 %v8302, 64
        %v8390 = vpop.permute.xlu0 %8389
        %8391 = vrot.lane.b32.xlu0 %v8319, 64
        %v8392 = vpop.permute.xlu0 %8391
        %8393 = vrot.lane.b32.xlu0 %v8320, 64
        %v8394 = vpop.permute.xlu0 %8393
        %8395 = vrot.lane.b32.xlu0 %v8321, 64
        %v8396 = vpop.permute.xlu0 %8395
        %8397 = vrot.lane.b32.xlu0 %v8322, 64
        %v8398 = vpop.permute.xlu0 %8397
        %8399 = vrot.lane.b32.xlu0 %v8371, 64
        %v8400 = vpop.permute.xlu0 %8399
        %8401 = vrot.lane.b32.xlu0 %v8372, 64
        %v8402 = vpop.permute.xlu0 %8401
        %8403 = vrot.lane.b32.xlu0 %v8373, 64
        %v8404 = vpop.permute.xlu0 %8403
        %8405 = vrot.lane.b32.xlu0 %v8374, 64
        %v8406 = vpop.permute.xlu0 %8405
        %v8407 = vunpack.c.l.b16 %v8130
        %v8408 = vunpack.c.l.b16 %v8133
        %v8409 = vunpack.c.l.b16 %v8137
        %v8410 = vunpack.c.l.b16 %v8140
        %v8411 = vunpack.c.l.b16 %v8144
        %v8412 = vunpack.c.l.b16 %v8147
        %v8413 = vunpack.c.l.b16 %v8151
        %v8414 = vunpack.c.l.b16 %v8154
        %v8415 = vunpack.c.l.b16 %v8158
        %v8416 = vunpack.c.l.b16 %v8161
        %v8417 = vunpack.c.l.b16 %v8165
        %v8418 = vunpack.c.l.b16 %v8168
        %v8419 = vunpack.c.l.b16 %v8172
        %v8420 = vunpack.c.l.b16 %v8175
        %v8421 = vunpack.c.l.b16 %v8179
        %v8422 = vunpack.c.l.b16 %v8182
        %v8423 = vunpack.c.l.b16 %v8186
        %v8424 = vunpack.c.l.b16 %v8189
        %v8425 = vunpack.c.l.b16 %v8193
        %v8426 = vunpack.c.l.b16 %v8196
        %v8427 = vunpack.c.l.b16 %v8200
        %v8428 = vunpack.c.l.b16 %v8203
        %v8429 = vunpack.c.l.b16 %v8207
        %v8430 = vunpack.c.l.b16 %v8210
        %v8431 = vunpack.c.l.b16 %v8214
        %v8432 = vunpack.c.l.b16 %v8217
        %v8433 = vunpack.c.l.b16 %v8221
        %v8434 = vunpack.c.l.b16 %v8224
        %v8435 = vunpack.c.l.b16 %v8228
        %v8436 = vunpack.c.l.b16 %v8231
        %v8437 = vunpack.c.l.b16 %v8235
        %v8438 = vunpack.c.l.b16 %v8238
        %v8439 = vpack.c.b16 %v8408, %v8407
        %v8440 = vpack.c.b16 %v8410, %v8409
        %v8441 = vpack.c.b16 %v8412, %v8411
        %v8442 = vpack.c.b16 %v8414, %v8413
        %v8443 = vpack.c.b16 %v8416, %v8415
        %v8444 = vpack.c.b16 %v8418, %v8417
        %v8445 = vpack.c.b16 %v8420, %v8419
        %v8446 = vpack.c.b16 %v8422, %v8421
        %v8447 = vpack.c.b16 %v8424, %v8423
        %v8448 = vpack.c.b16 %v8426, %v8425
        %v8449 = vpack.c.b16 %v8428, %v8427
        %v8450 = vpack.c.b16 %v8430, %v8429
        %v8451 = vpack.c.b16 %v8432, %v8431
        %v8452 = vpack.c.b16 %v8434, %v8433
        %v8453 = vpack.c.b16 %v8436, %v8435
        %v8454 = vpack.c.b16 %v8438, %v8437
        %8455 = vrot.lane.b32.xlu0 %v8439, 96
        %v8456 = vpop.permute.xlu0 %8455
        %8457 = vrot.lane.b32.xlu0 %v8440, 96
        %v8458 = vpop.permute.xlu0 %8457
        %8459 = vrot.lane.b32.xlu0 %v8441, 96
        %v8460 = vpop.permute.xlu0 %8459
        %8461 = vrot.lane.b32.xlu0 %v8442, 96
        %v8462 = vpop.permute.xlu0 %8461
        %8463 = vrot.lane.b32.xlu0 %v8443, 96
        %v8464 = vpop.permute.xlu0 %8463
        %8465 = vrot.lane.b32.xlu0 %v8444, 96
        %v8466 = vpop.permute.xlu0 %8465
        %8467 = vrot.lane.b32.xlu0 %v8445, 96
        %v8468 = vpop.permute.xlu0 %8467
        %8469 = vrot.lane.b32.xlu0 %v8446, 96
        %v8470 = vpop.permute.xlu0 %8469
        %8471 = vrot.lane.b32.xlu0 %v8447, 96
        %v8472 = vpop.permute.xlu0 %8471
        %8473 = vrot.lane.b32.xlu0 %v8448, 96
        %v8474 = vpop.permute.xlu0 %8473
        %8475 = vrot.lane.b32.xlu0 %v8449, 96
        %v8476 = vpop.permute.xlu0 %8475
        %8477 = vrot.lane.b32.xlu0 %v8450, 96
        %v8478 = vpop.permute.xlu0 %8477
        %8479 = vrot.lane.b32.xlu0 %v8451, 96
        %v8480 = vpop.permute.xlu0 %8479
        %8481 = vrot.lane.b32.xlu0 %v8452, 96
        %v8482 = vpop.permute.xlu0 %8481
        %8483 = vrot.lane.b32.xlu0 %v8453, 96
        %v8484 = vpop.permute.xlu0 %8483
        %8485 = vrot.lane.b32.xlu0 %v8454, 96
        %v8486 = vpop.permute.xlu0 %8485
        %v8489 = vsel %vm2326, %v8287, %v8324
        %v8492 = vsel %vm2326, %v8288, %v8326
        %v8495 = vsel %vm2326, %v8289, %v8328
        %v8498 = vsel %vm2326, %v8290, %v8330
        %v8501 = vsel %vm2326, %v8291, %v8332
        %v8504 = vsel %vm2326, %v8292, %v8334
        %v8507 = vsel %vm2326, %v8293, %v8336
        %v8510 = vsel %vm2326, %v8294, %v8338
        %v8513 = vsel %vm2326, %v8295, %v8340
        %v8516 = vsel %vm2326, %v8296, %v8342
        %v8519 = vsel %vm2326, %v8297, %v8344
        %v8522 = vsel %vm2326, %v8298, %v8346
        %v8525 = vsel %vm2326, %v8299, %v8348
        %v8528 = vsel %vm2326, %v8300, %v8350
        %v8531 = vsel %vm2326, %v8301, %v8352
        %v8534 = vsel %vm2326, %v8302, %v8354
        %v8536 = vsel %vm2375, %v8489, %v8376
        %v8538 = vsel %vm2375, %v8492, %v8378
        %v8540 = vsel %vm2375, %v8495, %v8380
        %v8542 = vsel %vm2375, %v8498, %v8382
        %v8544 = vsel %vm2375, %v8501, %v8384
        %v8546 = vsel %vm2375, %v8504, %v8386
        %v8548 = vsel %vm2375, %v8507, %v8388
        %v8550 = vsel %vm2375, %v8510, %v8390
        %v8552 = vsel %vm2375, %v8513, %v8392
        %v8554 = vsel %vm2375, %v8516, %v8394
        %v8556 = vsel %vm2375, %v8519, %v8396
        %v8558 = vsel %vm2375, %v8522, %v8398
        %v8560 = vsel %vm2375, %v8525, %v8400
        %v8562 = vsel %vm2375, %v8528, %v8402
        %v8564 = vsel %vm2375, %v8531, %v8404
        %v8566 = vsel %vm2375, %v8534, %v8406
        %v8568 = vsel %vm2408, %v8536, %v8456
        %v8571 = vsel %vm2408, %v8538, %v8458
        %v8574 = vsel %vm2408, %v8540, %v8460
        %v8577 = vsel %vm2408, %v8542, %v8462
        %v8580 = vsel %vm2408, %v8544, %v8464
        %v8583 = vsel %vm2408, %v8546, %v8466
        %v8586 = vsel %vm2408, %v8548, %v8468
        %v8589 = vsel %vm2408, %v8550, %v8470
        %v8592 = vsel %vm2408, %v8552, %v8472
        %v8595 = vsel %vm2408, %v8554, %v8474
        %v8598 = vsel %vm2408, %v8556, %v8476
        %v8601 = vsel %vm2408, %v8558, %v8478
        %v8604 = vsel %vm2408, %v8560, %v8480
        %v8607 = vsel %vm2408, %v8562, %v8482
        %v8610 = vsel %vm2408, %v8564, %v8484
        %v8613 = vsel %vm2408, %v8566, %v8486
        %8615 = vst [vmem:[#allocation3] sm:$0xff] %v8568
        %8616 = vst [vmem:[#allocation3 + $0x18] sm:$0xff] %v8571
        %8617 = vst [vmem:[#allocation3 + $0x30] sm:$0xff] %v8574
        %8618 = vst [vmem:[#allocation3 + $0x48] sm:$0xff] %v8577
        %8619 = vst [vmem:[#allocation3 + $0x60] sm:$0xff] %v8580
        %8620 = vst [vmem:[#allocation3 + $0x78] sm:$0xff] %v8583
        %8621 = vst [vmem:[#allocation3 + $0x90] sm:$0xff] %v8586
        %8622 = vst [vmem:[#allocation3 + $0xa8] sm:$0xff] %v8589
        %8623 = vst [vmem:[#allocation3 + $0xc0] sm:$0xff] %v8592
        %8624 = vst [vmem:[#allocation3 + $0xd8] sm:$0xff] %v8595
        %8625 = vst [vmem:[#allocation3 + $0xf0] sm:$0xff] %v8598
        %8626 = vst [vmem:[#allocation3 + $0x108] sm:$0xff] %v8601
        %8627 = vst [vmem:[#allocation3 + $0x120] sm:$0xff] %v8604
        %8628 = vst [vmem:[#allocation3 + $0x138] sm:$0xff] %v8607
        %8629 = vst [vmem:[#allocation3 + $0x150] sm:$0xff] %v8610
        %8630 = vst [vmem:[#allocation3 + $0x168] sm:$0xff] %v8613
        %v8639 = vrot.slane %v8063, 6
        %v8640 = vrot.slane %v8639, 4
        %v8641 = vrot.slane %v8016, 6
        %v8642 = vsel %vm1211, %v8640, %v8641
        %v8643 = vrot.slane %v8641, 4
        %v8644 = vrot.slane %v8064, 6
        %v8645 = vsel %vm1211, %v8643, %v8644
        %v8646 = vrot.slane %v8065, 6
        %v8647 = vrot.slane %v8646, 4
        %v8648 = vrot.slane %v8018, 6
        %v8649 = vsel %vm1211, %v8647, %v8648
        %v8650 = vrot.slane %v8648, 4
        %v8651 = vrot.slane %v8066, 6
        %v8652 = vsel %vm1211, %v8650, %v8651
        %v8653 = vrot.slane %v8067, 6
        %v8654 = vrot.slane %v8653, 4
        %v8655 = vrot.slane %v8020, 6
        %v8656 = vsel %vm1211, %v8654, %v8655
        %v8657 = vrot.slane %v8655, 4
        %v8658 = vrot.slane %v8068, 6
        %v8659 = vsel %vm1211, %v8657, %v8658
        %v8660 = vrot.slane %v8069, 6
        %v8661 = vrot.slane %v8660, 4
        %v8662 = vrot.slane %v8022, 6
        %v8663 = vsel %vm1211, %v8661, %v8662
        %v8664 = vrot.slane %v8662, 4
        %v8665 = vrot.slane %v8070, 6
        %v8666 = vsel %vm1211, %v8664, %v8665
        %v8675 = vrot.slane %v8071, 6
        %v8676 = vrot.slane %v8675, 4
        %v8677 = vrot.slane %v8024, 6
        %v8678 = vsel %vm1211, %v8676, %v8677
        %v8679 = vrot.slane %v8677, 4
        %v8680 = vrot.slane %v8072, 6
        %v8681 = vsel %vm1211, %v8679, %v8680
        %v8682 = vrot.slane %v8073, 6
        %v8683 = vrot.slane %v8682, 4
        %v8684 = vrot.slane %v8026, 6
        %v8685 = vsel %vm1211, %v8683, %v8684
        %v8686 = vrot.slane %v8684, 4
        %v8687 = vrot.slane %v8074, 6
        %v8688 = vsel %vm1211, %v8686, %v8687
        %v8689 = vrot.slane %v8075, 6
        %v8690 = vrot.slane %v8689, 4
        %v8691 = vrot.slane %v8028, 6
        %v8692 = vsel %vm1211, %v8690, %v8691
        %v8693 = vrot.slane %v8691, 4
        %v8694 = vrot.slane %v8076, 6
        %v8695 = vsel %vm1211, %v8693, %v8694
        %v8696 = vrot.slane %v8077, 6
        %v8697 = vrot.slane %v8696, 4
        %v8698 = vrot.slane %v8030, 6
        %v8699 = vsel %vm1211, %v8697, %v8698
        %v8700 = vrot.slane %v8698, 4
        %v8701 = vrot.slane %v8078, 6
        %v8702 = vsel %vm1211, %v8700, %v8701
        %v8703 = vld [vmem:[#allocation2 + $0x4] sm:$0xf]
        %v8704 = vld [vmem:[#allocation2 + $0x8] sm:$0xf]
        %v8705 = vld [vmem:[#allocation2 + $0x10] sm:$0xf]
        %v8706 = vld [vmem:[#allocation2 + $0x14] sm:$0xf]
        %v8707 = vld [vmem:[#allocation2 + $0x1c] sm:$0xf]
        %v8708 = vld [vmem:[#allocation2 + $0x20] sm:$0xf]
        %v8709 = vld [vmem:[#allocation2 + $0x28] sm:$0xf]
        %v8710 = vld [vmem:[#allocation2 + $0x2c] sm:$0xf]
        %v8711 = vld [vmem:[#allocation2 + $0x34] sm:$0xf]
        %v8712 = vld [vmem:[#allocation2 + $0x38] sm:$0xf]
        %v8713 = vld [vmem:[#allocation2 + $0x40] sm:$0xf]
        %v8714 = vld [vmem:[#allocation2 + $0x44] sm:$0xf]
        %v8715 = vld [vmem:[#allocation2 + $0x4c] sm:$0xf]
        %v8716 = vld [vmem:[#allocation2 + $0x50] sm:$0xf]
        %v8717 = vld [vmem:[#allocation2 + $0x58] sm:$0xf]
        %v8718 = vld [vmem:[#allocation2 + $0x5c] sm:$0xf]
        %v8719 = vld [vmem:[#allocation2 + $0x64] sm:$0xf]
        %v8720 = vld [vmem:[#allocation2 + $0x68] sm:$0xf]
        %v8721 = vld [vmem:[#allocation2 + $0x70] sm:$0xf]
        %v8722 = vld [vmem:[#allocation2 + $0x74] sm:$0xf]
        %v8723 = vld [vmem:[#allocation2 + $0x7c] sm:$0xf]
        %v8724 = vld [vmem:[#allocation2 + $0x80] sm:$0xf]
        %v8725 = vld [vmem:[#allocation2 + $0x88] sm:$0xf]
        %v8726 = vld [vmem:[#allocation2 + $0x8c] sm:$0xf]
        %v8727 = vld [vmem:[#allocation2 + $0x94] sm:$0xf]
        %v8728 = vld [vmem:[#allocation2 + $0x98] sm:$0xf]
        %v8729 = vld [vmem:[#allocation2 + $0xa0] sm:$0xf]
        %v8730 = vld [vmem:[#allocation2 + $0xa4] sm:$0xf]
        %v8731 = vld [vmem:[#allocation2 + $0xac] sm:$0xf]
        %v8732 = vld [vmem:[#allocation2 + $0xb0] sm:$0xf]
        %v8733 = vld [vmem:[#allocation2 + $0xb8] sm:$0xf]
        %v8734 = vld [vmem:[#allocation2 + $0xbc] sm:$0xf]
        %v8735 = vld [vmem:[#allocation2 + $0xc4] sm:$0xf]
        %v8736 = vld [vmem:[#allocation2 + $0xc8] sm:$0xf]
        %v8737 = vld [vmem:[#allocation2 + $0xd0] sm:$0xf]
        %v8738 = vld [vmem:[#allocation2 + $0xd4] sm:$0xf]
        %v8739 = vld [vmem:[#allocation2 + $0xdc] sm:$0xf]
        %v8740 = vld [vmem:[#allocation2 + $0xe0] sm:$0xf]
        %v8741 = vld [vmem:[#allocation2 + $0xe8] sm:$0xf]
        %v8742 = vld [vmem:[#allocation2 + $0xec] sm:$0xf]
        %v8743 = vld [vmem:[#allocation2 + $0xf4] sm:$0xf]
        %v8744 = vld [vmem:[#allocation2 + $0xf8] sm:$0xf]
        %v8745 = vld [vmem:[#allocation2 + $0x100] sm:$0xf]
        %v8746 = vld [vmem:[#allocation2 + $0x104] sm:$0xf]
        %v8747 = vld [vmem:[#allocation2 + $0x10c] sm:$0xf]
        %v8748 = vld [vmem:[#allocation2 + $0x110] sm:$0xf]
        %v8749 = vld [vmem:[#allocation2 + $0x118] sm:$0xf]
        %v8750 = vld [vmem:[#allocation2 + $0x11c] sm:$0xf]
        %v8751 = vunpack.c.l.b16 %v8642
        %v8752 = vunpack.c.l.b16 %v8645
        %v8753 = vunpack.c.l.b16 %v8649
        %v8754 = vunpack.c.l.b16 %v8652
        %v8755 = vunpack.c.l.b16 %v8656
        %v8756 = vunpack.c.l.b16 %v8659
        %v8757 = vunpack.c.l.b16 %v8663
        %v8758 = vunpack.c.l.b16 %v8666
        %v8759 = vpack.c.b16 %v8752, %v8751
        %v8760 = vpack.c.b16 %v8754, %v8753
        %v8761 = vpack.c.b16 %v8756, %v8755
        %v8762 = vpack.c.b16 %v8758, %v8757
        %v8763 = vunpack.c.l.b16 %v8678
        %v8764 = vunpack.c.l.b16 %v8681
        %v8765 = vunpack.c.l.b16 %v8685
        %v8766 = vunpack.c.l.b16 %v8688
        %v8767 = vunpack.c.l.b16 %v8692
        %v8768 = vunpack.c.l.b16 %v8695
        %v8769 = vunpack.c.l.b16 %v8699
        %v8770 = vunpack.c.l.b16 %v8702
        %v8771 = vpack.c.b16 %v8764, %v8763
        %v8772 = vpack.c.b16 %v8766, %v8765
        %v8773 = vpack.c.b16 %v8768, %v8767
        %v8774 = vpack.c.b16 %v8770, %v8769
        %8775 = vrot.lane.b32.xlu0 %v8447, 32
        %v8776 = vpop.permute.xlu0 %8775
        %8777 = vrot.lane.b32.xlu0 %v8448, 32
        %v8778 = vpop.permute.xlu0 %8777
        %8779 = vrot.lane.b32.xlu0 %v8449, 32
        %v8780 = vpop.permute.xlu0 %8779
        %8781 = vrot.lane.b32.xlu0 %v8450, 32
        %v8782 = vpop.permute.xlu0 %8781
        %8783 = vrot.lane.b32.xlu0 %v8451, 32
        %v8784 = vpop.permute.xlu0 %8783
        %8785 = vrot.lane.b32.xlu0 %v8452, 32
        %v8786 = vpop.permute.xlu0 %8785
        %8787 = vrot.lane.b32.xlu0 %v8453, 32
        %v8788 = vpop.permute.xlu0 %8787
        %8789 = vrot.lane.b32.xlu0 %v8454, 32
        %v8790 = vpop.permute.xlu0 %8789
        %8791 = vrot.lane.b32.xlu0 %v8759, 32
        %v8792 = vpop.permute.xlu0 %8791
        %8793 = vrot.lane.b32.xlu0 %v8760, 32
        %v8794 = vpop.permute.xlu0 %8793
        %8795 = vrot.lane.b32.xlu0 %v8761, 32
        %v8796 = vpop.permute.xlu0 %8795
        %8797 = vrot.lane.b32.xlu0 %v8762, 32
        %v8798 = vpop.permute.xlu0 %8797
        %8799 = vrot.lane.b32.xlu0 %v8771, 32
        %v8800 = vpop.permute.xlu0 %8799
        %8801 = vrot.lane.b32.xlu0 %v8772, 32
        %v8802 = vpop.permute.xlu0 %8801
        %8803 = vrot.lane.b32.xlu0 %v8773, 32
        %v8804 = vpop.permute.xlu0 %8803
        %8805 = vrot.lane.b32.xlu0 %v8774, 32
        %v8806 = vpop.permute.xlu0 %8805
        %v8839 = vunpack.c.l.b16 %v8703
        %v8840 = vunpack.c.l.b16 %v8704
        %v8841 = vunpack.c.l.b16 %v8705
        %v8842 = vunpack.c.l.b16 %v8706
        %v8843 = vunpack.c.l.b16 %v8707
        %v8844 = vunpack.c.l.b16 %v8708
        %v8845 = vunpack.c.l.b16 %v8709
        %v8846 = vunpack.c.l.b16 %v8710
        %v8847 = vunpack.c.l.b16 %v8711
        %v8848 = vunpack.c.l.b16 %v8712
        %v8849 = vunpack.c.l.b16 %v8713
        %v8850 = vunpack.c.l.b16 %v8714
        %v8851 = vunpack.c.l.b16 %v8715
        %v8852 = vunpack.c.l.b16 %v8716
        %v8853 = vunpack.c.l.b16 %v8717
        %v8854 = vunpack.c.l.b16 %v8718
        %v8855 = vunpack.c.l.b16 %v8719
        %v8856 = vunpack.c.l.b16 %v8720
        %v8857 = vunpack.c.l.b16 %v8721
        %v8858 = vunpack.c.l.b16 %v8722
        %v8859 = vunpack.c.l.b16 %v8723
        %v8860 = vunpack.c.l.b16 %v8724
        %v8861 = vunpack.c.l.b16 %v8725
        %v8862 = vunpack.c.l.b16 %v8726
        %v8863 = vunpack.c.l.b16 %v8727
        %v8864 = vunpack.c.l.b16 %v8728
        %v8865 = vunpack.c.l.b16 %v8729
        %v8866 = vunpack.c.l.b16 %v8730
        %v8867 = vunpack.c.l.b16 %v8731
        %v8868 = vunpack.c.l.b16 %v8732
        %v8869 = vunpack.c.l.b16 %v8733
        %v8870 = vunpack.c.l.b16 %v8734
        %v8871 = vpack.c.b16 %v8840, %v8839
        %v8872 = vpack.c.b16 %v8842, %v8841
        %v8873 = vpack.c.b16 %v8844, %v8843
        %v8874 = vpack.c.b16 %v8846, %v8845
        %v8875 = vpack.c.b16 %v8848, %v8847
        %v8876 = vpack.c.b16 %v8850, %v8849
        %v8877 = vpack.c.b16 %v8852, %v8851
        %v8878 = vpack.c.b16 %v8854, %v8853
        %v8879 = vpack.c.b16 %v8856, %v8855
        %v8880 = vpack.c.b16 %v8858, %v8857
        %v8881 = vpack.c.b16 %v8860, %v8859
        %v8882 = vpack.c.b16 %v8862, %v8861
        %v8883 = vpack.c.b16 %v8864, %v8863
        %v8884 = vpack.c.b16 %v8866, %v8865
        %v8885 = vpack.c.b16 %v8868, %v8867
        %v8886 = vpack.c.b16 %v8870, %v8869
        %8887 = vrot.lane.b32.xlu0 %v8871, 64
        %v8888 = vpop.permute.xlu0 %8887
        %8889 = vrot.lane.b32.xlu0 %v8872, 64
        %v8890 = vpop.permute.xlu0 %8889
        %8891 = vrot.lane.b32.xlu0 %v8873, 64
        %v8892 = vpop.permute.xlu0 %8891
        %8893 = vrot.lane.b32.xlu0 %v8874, 64
        %v8894 = vpop.permute.xlu0 %8893
        %8895 = vrot.lane.b32.xlu0 %v8875, 64
        %v8896 = vpop.permute.xlu0 %8895
        %8897 = vrot.lane.b32.xlu0 %v8876, 64
        %v8898 = vpop.permute.xlu0 %8897
        %8899 = vrot.lane.b32.xlu0 %v8877, 64
        %v8900 = vpop.permute.xlu0 %8899
        %8901 = vrot.lane.b32.xlu0 %v8878, 64
        %v8902 = vpop.permute.xlu0 %8901
        %8903 = vrot.lane.b32.xlu0 %v8879, 64
        %v8904 = vpop.permute.xlu0 %8903
        %8905 = vrot.lane.b32.xlu0 %v8880, 64
        %v8906 = vpop.permute.xlu0 %8905
        %8907 = vrot.lane.b32.xlu0 %v8881, 64
        %v8908 = vpop.permute.xlu0 %8907
        %8909 = vrot.lane.b32.xlu0 %v8882, 64
        %v8910 = vpop.permute.xlu0 %8909
        %8911 = vrot.lane.b32.xlu0 %v8883, 64
        %v8912 = vpop.permute.xlu0 %8911
        %8913 = vrot.lane.b32.xlu0 %v8884, 64
        %v8914 = vpop.permute.xlu0 %8913
        %8915 = vrot.lane.b32.xlu0 %v8885, 64
        %v8916 = vpop.permute.xlu0 %8915
        %8917 = vrot.lane.b32.xlu0 %v8886, 64
        %v8918 = vpop.permute.xlu0 %8917
        %v8927 = vunpack.c.l.b16 %v8735
        %v8928 = vunpack.c.l.b16 %v8736
        %v8929 = vunpack.c.l.b16 %v8737
        %v8930 = vunpack.c.l.b16 %v8738
        %v8931 = vunpack.c.l.b16 %v8739
        %v8932 = vunpack.c.l.b16 %v8740
        %v8933 = vunpack.c.l.b16 %v8741
        %v8934 = vunpack.c.l.b16 %v8742
        %v8935 = vpack.c.b16 %v8928, %v8927
        %v8936 = vpack.c.b16 %v8930, %v8929
        %v8937 = vpack.c.b16 %v8932, %v8931
        %v8938 = vpack.c.b16 %v8934, %v8933
        %8939 = vrot.lane.b32.xlu0 %v8875, 96
        %v8940 = vpop.permute.xlu0 %8939
        %8941 = vrot.lane.b32.xlu0 %v8876, 96
        %v8942 = vpop.permute.xlu0 %8941
        %8943 = vrot.lane.b32.xlu0 %v8877, 96
        %v8944 = vpop.permute.xlu0 %8943
        %8945 = vrot.lane.b32.xlu0 %v8878, 96
        %v8946 = vpop.permute.xlu0 %8945
        %8947 = vrot.lane.b32.xlu0 %v8879, 96
        %v8948 = vpop.permute.xlu0 %8947
        %8949 = vrot.lane.b32.xlu0 %v8880, 96
        %v8950 = vpop.permute.xlu0 %8949
        %8951 = vrot.lane.b32.xlu0 %v8881, 96
        %v8952 = vpop.permute.xlu0 %8951
        %8953 = vrot.lane.b32.xlu0 %v8882, 96
        %v8954 = vpop.permute.xlu0 %8953
        %8955 = vrot.lane.b32.xlu0 %v8883, 96
        %v8956 = vpop.permute.xlu0 %8955
        %8957 = vrot.lane.b32.xlu0 %v8884, 96
        %v8958 = vpop.permute.xlu0 %8957
        %8959 = vrot.lane.b32.xlu0 %v8885, 96
        %v8960 = vpop.permute.xlu0 %8959
        %8961 = vrot.lane.b32.xlu0 %v8886, 96
        %v8962 = vpop.permute.xlu0 %8961
        %8963 = vrot.lane.b32.xlu0 %v8935, 96
        %v8964 = vpop.permute.xlu0 %8963
        %8965 = vrot.lane.b32.xlu0 %v8936, 96
        %v8966 = vpop.permute.xlu0 %8965
        %8967 = vrot.lane.b32.xlu0 %v8937, 96
        %v8968 = vpop.permute.xlu0 %8967
        %8969 = vrot.lane.b32.xlu0 %v8938, 96
        %v8970 = vpop.permute.xlu0 %8969
        %v8973 = vsel %vm2326, %v8443, %v8776
        %v8976 = vsel %vm2326, %v8444, %v8778
        %v8979 = vsel %vm2326, %v8445, %v8780
        %v8982 = vsel %vm2326, %v8446, %v8782
        %v8985 = vsel %vm2326, %v8447, %v8784
        %v8988 = vsel %vm2326, %v8448, %v8786
        %v8991 = vsel %vm2326, %v8449, %v8788
        %v8994 = vsel %vm2326, %v8450, %v8790
        %v8997 = vsel %vm2326, %v8451, %v8792
        %v9000 = vsel %vm2326, %v8452, %v8794
        %v9003 = vsel %vm2326, %v8453, %v8796
        %v9006 = vsel %vm2326, %v8454, %v8798
        %v9009 = vsel %vm2326, %v8759, %v8800
        %v9012 = vsel %vm2326, %v8760, %v8802
        %v9015 = vsel %vm2326, %v8761, %v8804
        %v9018 = vsel %vm2326, %v8762, %v8806
        %v9020 = vsel %vm2375, %v8973, %v8888
        %v9022 = vsel %vm2375, %v8976, %v8890
        %v9024 = vsel %vm2375, %v8979, %v8892
        %v9026 = vsel %vm2375, %v8982, %v8894
        %v9028 = vsel %vm2375, %v8985, %v8896
        %v9030 = vsel %vm2375, %v8988, %v8898
        %v9032 = vsel %vm2375, %v8991, %v8900
        %v9034 = vsel %vm2375, %v8994, %v8902
        %v9036 = vsel %vm2375, %v8997, %v8904
        %v9038 = vsel %vm2375, %v9000, %v8906
        %v9040 = vsel %vm2375, %v9003, %v8908
        %v9042 = vsel %vm2375, %v9006, %v8910
        %v9044 = vsel %vm2375, %v9009, %v8912
        %v9046 = vsel %vm2375, %v9012, %v8914
        %v9048 = vsel %vm2375, %v9015, %v8916
        %v9050 = vsel %vm2375, %v9018, %v8918
        %v9052 = vsel %vm2408, %v9020, %v8940
        %v9055 = vsel %vm2408, %v9022, %v8942
        %v9058 = vsel %vm2408, %v9024, %v8944
        %v9061 = vsel %vm2408, %v9026, %v8946
        %v9064 = vsel %vm2408, %v9028, %v8948
        %v9067 = vsel %vm2408, %v9030, %v8950
        %v9070 = vsel %vm2408, %v9032, %v8952
        %v9073 = vsel %vm2408, %v9034, %v8954
        %v9076 = vsel %vm2408, %v9036, %v8956
        %v9079 = vsel %vm2408, %v9038, %v8958
        %v9082 = vsel %vm2408, %v9040, %v8960
        %v9085 = vsel %vm2408, %v9042, %v8962
        %v9088 = vsel %vm2408, %v9044, %v8964
        %v9091 = vsel %vm2408, %v9046, %v8966
        %v9094 = vsel %vm2408, %v9048, %v8968
        %v9097 = vsel %vm2408, %v9050, %v8970
        %9099 = vst [vmem:[#allocation3 + $0x8] sm:$0xff] %v9052
        %9100 = vst [vmem:[#allocation3 + $0x20] sm:$0xff] %v9055
        %9101 = vst [vmem:[#allocation3 + $0x38] sm:$0xff] %v9058
        %9102 = vst [vmem:[#allocation3 + $0x50] sm:$0xff] %v9061
        %9103 = vst [vmem:[#allocation3 + $0x68] sm:$0xff] %v9064
        %9104 = vst [vmem:[#allocation3 + $0x80] sm:$0xff] %v9067
        %9105 = vst [vmem:[#allocation3 + $0x98] sm:$0xff] %v9070
        %9106 = vst [vmem:[#allocation3 + $0xb0] sm:$0xff] %v9073
        %9107 = vst [vmem:[#allocation3 + $0xc8] sm:$0xff] %v9076
        %9108 = vst [vmem:[#allocation3 + $0xe0] sm:$0xff] %v9079
        %9109 = vst [vmem:[#allocation3 + $0xf8] sm:$0xff] %v9082
        %9110 = vst [vmem:[#allocation3 + $0x110] sm:$0xff] %v9085
        %9111 = vst [vmem:[#allocation3 + $0x128] sm:$0xff] %v9088
        %9112 = vst [vmem:[#allocation3 + $0x140] sm:$0xff] %v9091
        %9113 = vst [vmem:[#allocation3 + $0x158] sm:$0xff] %v9094
        %9114 = vst [vmem:[#allocation3 + $0x170] sm:$0xff] %v9097
        %v9123 = vunpack.c.l.b16 %v8743
        %v9124 = vunpack.c.l.b16 %v8744
        %v9125 = vunpack.c.l.b16 %v8745
        %v9126 = vunpack.c.l.b16 %v8746
        %v9127 = vunpack.c.l.b16 %v8747
        %v9128 = vunpack.c.l.b16 %v8748
        %v9129 = vunpack.c.l.b16 %v8749
        %v9130 = vunpack.c.l.b16 %v8750
        %v9131 = vpack.c.b16 %v9124, %v9123
        %v9132 = vpack.c.b16 %v9126, %v9125
        %v9133 = vpack.c.b16 %v9128, %v9127
        %v9134 = vpack.c.b16 %v9130, %v9129
        %9151 = vst.msk [vmem:[#allocation3 + $0x10] sm:$0xff] %vm2326, %v8879
        %9152 = vst.msk [vmem:[#allocation3 + $0x28] sm:$0xff] %vm2326, %v8880
        %9153 = vst.msk [vmem:[#allocation3 + $0x40] sm:$0xff] %vm2326, %v8881
        %9154 = vst.msk [vmem:[#allocation3 + $0x58] sm:$0xff] %vm2326, %v8882
        %9155 = vst.msk [vmem:[#allocation3 + $0x70] sm:$0xff] %vm2326, %v8883
        %9156 = vst.msk [vmem:[#allocation3 + $0x88] sm:$0xff] %vm2326, %v8884
        %9157 = vst.msk [vmem:[#allocation3 + $0xa0] sm:$0xff] %vm2326, %v8885
        %9158 = vst.msk [vmem:[#allocation3 + $0xb8] sm:$0xff] %vm2326, %v8886
        %9159 = vst.msk [vmem:[#allocation3 + $0xd0] sm:$0xff] %vm2326, %v8935
        %9160 = vst.msk [vmem:[#allocation3 + $0xe8] sm:$0xff] %vm2326, %v8936
        %9161 = vst.msk [vmem:[#allocation3 + $0x100] sm:$0xff] %vm2326, %v8937
        %9162 = vst.msk [vmem:[#allocation3 + $0x118] sm:$0xff] %vm2326, %v8938
        %9163 = vst.msk [vmem:[#allocation3 + $0x130] sm:$0xff] %vm2326, %v9131
        %9164 = vst.msk [vmem:[#allocation3 + $0x148] sm:$0xff] %vm2326, %v9132
        %9165 = vst.msk [vmem:[#allocation3 + $0x160] sm:$0xff] %vm2326, %v9133
        %9166 = vst.msk [vmem:[#allocation3 + $0x178] sm:$0xff] %vm2326, %v9134
        %v9167 = vld [vmem:[#allocation3] sm:$0xff]
        %v9168 = vld [vmem:[#allocation3 + $0x8] sm:$0xff]
        %v9169 = vld [vmem:[#allocation3 + $0x10] sm:$0xff]
        %v9170 = vld [vmem:[#allocation3 + $0x18] sm:$0xff]
        %v9171 = vld [vmem:[#allocation3 + $0x20] sm:$0xff]
        %v9172 = vld [vmem:[#allocation3 + $0x28] sm:$0xff]
        %v9173 = vld [vmem:[#allocation3 + $0x30] sm:$0xff]
        %v9174 = vld [vmem:[#allocation3 + $0x38] sm:$0xff]
        %v9175 = vld [vmem:[#allocation3 + $0x40] sm:$0xff]
        %v9176 = vld [vmem:[#allocation3 + $0x48] sm:$0xff]
        %v9177 = vld [vmem:[#allocation3 + $0x50] sm:$0xff]
        %v9178 = vld [vmem:[#allocation3 + $0x58] sm:$0xff]
        %v9179 = vld [vmem:[#allocation3 + $0x60] sm:$0xff]
        %v9180 = vld [vmem:[#allocation3 + $0x68] sm:$0xff]
        %v9181 = vld [vmem:[#allocation3 + $0x70] sm:$0xff]
        %v9182 = vld [vmem:[#allocation3 + $0x78] sm:$0xff]
        %v9183 = vld [vmem:[#allocation3 + $0x80] sm:$0xff]
        %v9184 = vld [vmem:[#allocation3 + $0x88] sm:$0xff]
        %v9185 = vld [vmem:[#allocation3 + $0x90] sm:$0xff]
        %v9186 = vld [vmem:[#allocation3 + $0x98] sm:$0xff]
        %v9187 = vld [vmem:[#allocation3 + $0xa0] sm:$0xff]
        %v9188 = vld [vmem:[#allocation3 + $0xa8] sm:$0xff]
        %v9189 = vld [vmem:[#allocation3 + $0xb0] sm:$0xff]
        %v9190 = vld [vmem:[#allocation3 + $0xb8] sm:$0xff]
        %v9191 = vld [vmem:[#allocation3 + $0xc0] sm:$0xff]
        %v9192 = vld [vmem:[#allocation3 + $0xc8] sm:$0xff]
        %v9193 = vld [vmem:[#allocation3 + $0xd0] sm:$0xff]
        %v9194 = vld [vmem:[#allocation3 + $0xd8] sm:$0xff]
        %v9195 = vld [vmem:[#allocation3 + $0xe0] sm:$0xff]
        %v9196 = vld [vmem:[#allocation3 + $0xe8] sm:$0xff]
        %v9197 = vld [vmem:[#allocation3 + $0xf0] sm:$0xff]
        %v9198 = vld [vmem:[#allocation3 + $0xf8] sm:$0xff]
        %v9199 = vld [vmem:[#allocation3 + $0x100] sm:$0xff]
        %v9200 = vld [vmem:[#allocation3 + $0x108] sm:$0xff]
        %v9201 = vld [vmem:[#allocation3 + $0x110] sm:$0xff]
        %v9202 = vld [vmem:[#allocation3 + $0x118] sm:$0xff]
        %v9203 = vld [vmem:[#allocation3 + $0x120] sm:$0xff]
        %v9204 = vld [vmem:[#allocation3 + $0x128] sm:$0xff]
        %v9205 = vld [vmem:[#allocation3 + $0x130] sm:$0xff]
        %v9206 = vld [vmem:[#allocation3 + $0x138] sm:$0xff]
        %v9207 = vld [vmem:[#allocation3 + $0x140] sm:$0xff]
        %v9208 = vld [vmem:[#allocation3 + $0x148] sm:$0xff]
        %v9209 = vld [vmem:[#allocation3 + $0x150] sm:$0xff]
        %v9210 = vld [vmem:[#allocation3 + $0x158] sm:$0xff]
        %v9211 = vld [vmem:[#allocation3 + $0x160] sm:$0xff]
        %v9212 = vld [vmem:[#allocation3 + $0x168] sm:$0xff]
        %v9213 = vld [vmem:[#allocation3 + $0x170] sm:$0xff]
        %v9214 = vld [vmem:[#allocation3 + $0x178] sm:$0xff]
        %s9215 = scalar_lea.vmem [#allocation12], 304
        %v9216 = vld [vmem:[%s9215] sm:$0xf]
        %v9217 = vld [vmem:[%s9215 + $0x4] sm:$0xf]
        %v9218 = vld [vmem:[%s9215 + $0x8] sm:$0xf]
        %v9219 = vld [vmem:[%s9215 + $0xc] sm:$0xf]
        %v9220 = vld [vmem:[%s9215 + $0x10] sm:$0xf]
        %v9221 = vld [vmem:[%s9215 + $0x14] sm:$0xf]
        %v9222 = vld [vmem:[%s9215 + $0x18] sm:$0xf]
        %v9223 = vld [vmem:[%s9215 + $0x1c] sm:$0xf]
        %v9224 = vld [vmem:[%s9215 + $0x20] sm:$0xf]
        %v9225 = vld [vmem:[%s9215 + $0x24] sm:$0xf]
        %v9226 = vld [vmem:[%s9215 + $0x28] sm:$0xf]
        %v9227 = vld [vmem:[%s9215 + $0x2c] sm:$0xf]
        %v9228 = vld [vmem:[%s9215 + $0x30] sm:$0xf]
        %v9229 = vld [vmem:[%s9215 + $0x34] sm:$0xf]
        %v9230 = vld [vmem:[%s9215 + $0x38] sm:$0xf]
        %v9231 = vld [vmem:[%s9215 + $0x3c] sm:$0xf]
        %v9232 = vld [vmem:[%s9215 + $0x40] sm:$0xf]
        %v9233 = vld [vmem:[%s9215 + $0x44] sm:$0xf]
        %v9234 = vld [vmem:[%s9215 + $0x48] sm:$0xf]
        %v9235 = vld [vmem:[%s9215 + $0x4c] sm:$0xf]
        %v9236 = vld [vmem:[%s9215 + $0x50] sm:$0xf]
        %v9237 = vld [vmem:[%s9215 + $0x54] sm:$0xf]
        %v9238 = vld [vmem:[%s9215 + $0x58] sm:$0xf]
        %v9239 = vld [vmem:[%s9215 + $0x5c] sm:$0xf]
        %v9240 = vld [vmem:[%s9215 + $0x60] sm:$0xf]
        %v9241 = vld [vmem:[%s9215 + $0x64] sm:$0xf]
        %v9242 = vld [vmem:[%s9215 + $0x68] sm:$0xf]
        %v9243 = vld [vmem:[%s9215 + $0x6c] sm:$0xf]
        %v9244 = vld [vmem:[%s9215 + $0x70] sm:$0xf]
        %v9245 = vld [vmem:[%s9215 + $0x74] sm:$0xf]
        %v9246 = vld [vmem:[%s9215 + $0x78] sm:$0xf]
        %v9247 = vld [vmem:[%s9215 + $0x7c] sm:$0xf]
        %v9248 = vld [vmem:[%s9215 + $0x80] sm:$0xf]
        %v9249 = vld [vmem:[%s9215 + $0x84] sm:$0xf]
        %v9250 = vld [vmem:[%s9215 + $0x88] sm:$0xf]
        %v9251 = vld [vmem:[%s9215 + $0x8c] sm:$0xf]
        %v9252 = vld [vmem:[%s9215 + $0x90] sm:$0xf]
        %v9253 = vld [vmem:[%s9215 + $0x94] sm:$0xf]
        %s9254 = scalar_lea.vmem [#allocation13], 2
        %v9255 = vld [vmem:[%s9254] sm:$0x1]
        %v9257 = vlaneseq
        %v9258 = vshrl.u32 %v9257, 7
        %v9259 = vsub.s32 0, %v9258
        %v9260 = vrot.slane %v9255, %v9259
        %v9300 = vunpack.c.l.b16 %v9216
        %v9301 = vunpack.c.l.b16 %v9217
        %v9302 = vunpack.c.l.b16 %v9218
        %v9303 = vunpack.c.l.b16 %v9219
        %v9304 = vunpack.c.l.b16 %v9220
        %v9305 = vunpack.c.l.b16 %v9221
        %v9306 = vunpack.c.l.b16 %v9222
        %v9307 = vunpack.c.l.b16 %v9223
        %v9308 = vunpack.c.l.b16 %v9224
        %v9309 = vunpack.c.l.b16 %v9225
        %v9310 = vunpack.c.l.b16 %v9226
        %v9311 = vunpack.c.l.b16 %v9227
        %v9312 = vunpack.c.l.b16 %v9228
        %v9313 = vunpack.c.l.b16 %v9229
        %v9314 = vunpack.c.l.b16 %v9230
        %v9315 = vunpack.c.l.b16 %v9231
        %v9316 = vunpack.c.l.b16 %v9232
        %v9317 = vunpack.c.l.b16 %v9233
        %v9318 = vunpack.c.l.b16 %v9234
        %v9319 = vunpack.c.l.b16 %v9235
        %v9320 = vunpack.c.l.b16 %v9236
        %v9321 = vunpack.c.l.b16 %v9237
        %v9322 = vunpack.c.l.b16 %v9238
        %v9323 = vunpack.c.l.b16 %v9239
        %v9324 = vunpack.c.l.b16 %v9240
        %v9325 = vunpack.c.l.b16 %v9241
        %v9326 = vunpack.c.l.b16 %v9242
        %v9327 = vunpack.c.l.b16 %v9243
        %v9328 = vunpack.c.l.b16 %v9244
        %v9329 = vunpack.c.l.b16 %v9245
        %v9330 = vunpack.c.l.b16 %v9246
        %v9331 = vunpack.c.l.b16 %v9247
        %v9332 = vunpack.c.l.b16 %v9248
        %v9333 = vunpack.c.l.b16 %v9249
        %v9334 = vunpack.c.l.b16 %v9250
        %v9335 = vunpack.c.l.b16 %v9251
        %v9336 = vunpack.c.l.b16 %v9252
        %v9337 = vunpack.c.l.b16 %v9253
        %v9338 = vpack.c.b16 %v9301, %v9300
        %v9339 = vpack.c.b16 %v9303, %v9302
        %v9340 = vpack.c.b16 %v9305, %v9304
        %v9341 = vpack.c.b16 %v9307, %v9306
        %v9342 = vpack.c.b16 %v9309, %v9308
        %v9343 = vpack.c.b16 %v9311, %v9310
        %v9344 = vpack.c.b16 %v9313, %v9312
        %v9345 = vpack.c.b16 %v9315, %v9314
        %v9346 = vpack.c.b16 %v9317, %v9316
        %v9347 = vpack.c.b16 %v9319, %v9318
        %v9348 = vpack.c.b16 %v9321, %v9320
        %v9349 = vpack.c.b16 %v9323, %v9322
        %v9350 = vpack.c.b16 %v9325, %v9324
        %v9351 = vpack.c.b16 %v9327, %v9326
        %v9352 = vpack.c.b16 %v9329, %v9328
        %v9353 = vpack.c.b16 %v9331, %v9330
        %v9354 = vpack.c.b16 %v9333, %v9332
        %v9355 = vpack.c.b16 %v9335, %v9334
        %v9356 = vpack.c.b16 %v9337, %v9336
        %v9377 = vsel %vm3593, %v9169, 0
        %v9380 = vsel %vm3593, %v9172, 0
        %v9383 = vsel %vm3593, %v9175, 0
        %v9386 = vsel %vm3593, %v9178, 0
        %v9389 = vsel %vm3593, %v9181, 0
        %v9392 = vsel %vm3593, %v9184, 0
        %v9395 = vsel %vm3593, %v9187, 0
        %v9398 = vsel %vm3593, %v9190, 0
        %v9401 = vsel %vm3593, %v9193, 0
        %v9404 = vsel %vm3593, %v9196, 0
        %v9407 = vsel %vm3593, %v9199, 0
        %v9410 = vsel %vm3593, %v9202, 0
        %v9413 = vsel %vm3593, %v9205, 0
        %v9416 = vsel %vm3593, %v9208, 0
        %v9419 = vsel %vm3593, %v9211, 0
        %v9422 = vsel %vm3593, %v9214, 0
        %9424 = vmatprep.subr.bf16.mxu0 0
        %9425 = vmatpush1.bf16.msra.mxu0 %v9338
        %9426 = vmatprep.subr.bf16.mxu0 0
        %9427 = vmatpush1.bf16.msra.mxu0 %v9339
        %9428 = vmatprep.subr.bf16.mxu0 0
        %9429 = vmatpush1.bf16.msra.mxu0 %v9340
        %9430 = vmatprep.subr.bf16.mxu0 0
        %9431 = vmatpush1.bf16.msra.mxu0 %v9341
        %9432 = vmatprep.subr.bf16.mxu0 0
        %9433 = vmatpush1.bf16.msra.mxu0 %v9342
        %9434 = vmatprep.subr.bf16.mxu0 0
        %9435 = vmatpush1.bf16.msra.mxu0 %v9343
        %9436 = vmatprep.subr.bf16.mxu0 0
        %9437 = vmatpush1.bf16.msra.mxu0 %v9344
        %9438 = vmatprep.subr.bf16.mxu0 0
        %9439 = vmatpush1.bf16.msra.mxu0 %v9345
        %9440 = vmatprep.subr.bf16.mxu0 0
        %9441 = vmatpush1.bf16.msra.mxu0 %v9346
        %9442 = vmatprep.subr.bf16.mxu0 0
        %9443 = vmatpush1.bf16.msra.mxu0 %v9347
        %9444 = vmatprep.subr.bf16.mxu0 0
        %9445 = vmatpush1.bf16.msra.mxu0 %v9348
        %9446 = vmatprep.subr.bf16.mxu0 0
        %9447 = vmatpush1.bf16.msra.mxu0 %v9349
        %9448 = vmatprep.subr.bf16.mxu0 0
        %9449 = vmatpush1.bf16.msra.mxu0 %v9350
        %9450 = vmatprep.subr.bf16.mxu0 0
        %9451 = vmatpush1.bf16.msra.mxu0 %v9351
        %9452 = vmatprep.subr.bf16.mxu0 0
        %9453 = vmatpush1.bf16.msra.mxu0 %v9352
        %9454 = vmatprep.subr.bf16.mxu0 0
        %9455 = vmatpush1.bf16.msra.mxu0 %v9353
        %9456 = vmatprep.mubr.bf16.mxu0 %v9168
        %9457 = vmatmul.mubr.bf16.gmra.mrb[0].mxu0 %v9167
        %v9458 = vpop.f32.mrb[0].mxu0
        %v9459 = vadd.f32 %v9260, %v9458
        %v9460 = vpop.f32.mrb[0].mxu0
        %v9461 = vpop.f32.mrb[0].mxu0
        %v9462 = vadd.f32 %v9260, %v9461
        %v9463 = vpop.f32.mrb[0].mxu0
        %9464 = vmatprep.mubr.bf16.mxu0 %v9171
        %9465 = vmatmul.mubr.bf16.gmra.mrb[0].mxu0 %v9170
        %v9466 = vpop.f32.mrb[0].mxu0
        %v9467 = vadd.f32 %v9260, %v9466
        %v9468 = vpop.f32.mrb[0].mxu0
        %v9469 = vpop.f32.mrb[0].mxu0
        %v9470 = vadd.f32 %v9260, %v9469
        %v9471 = vpop.f32.mrb[0].mxu0
        %9472 = vmatprep.mubr.bf16.mxu0 %v9174
        %9473 = vmatmul.mubr.bf16.gmra.mrb[0].mxu0 %v9173
        %v9474 = vpop.f32.mrb[0].mxu0
        %v9475 = vadd.f32 %v9260, %v9474
        %v9476 = vpop.f32.mrb[0].mxu0
        %v9477 = vpop.f32.mrb[0].mxu0
        %v9478 = vadd.f32 %v9260, %v9477
        %v9479 = vpop.f32.mrb[0].mxu0
        %9480 = vmatprep.mubr.bf16.mxu0 %v9177
        %9481 = vmatmul.mubr.bf16.gmra.mrb[0].mxu0 %v9176
        %v9482 = vpop.f32.mrb[0].mxu0
        %v9483 = vadd.f32 %v9260, %v9482
        %v9484 = vpop.f32.mrb[0].mxu0
        %v9485 = vpop.f32.mrb[0].mxu0
        %v9486 = vadd.f32 %v9260, %v9485
        %v9487 = vpop.f32.mrb[0].mxu0
        %9488 = vmatprep.mubr.bf16.mxu0 %v9180
        %9489 = vmatmul.mubr.bf16.gmra.mrb[0].mxu0 %v9179
        %v9490 = vpop.f32.mrb[0].mxu0
        %v9491 = vadd.f32 %v9260, %v9490
        %v9492 = vpop.f32.mrb[0].mxu0
        %v9493 = vpop.f32.mrb[0].mxu0
        %v9494 = vadd.f32 %v9260, %v9493
        %v9495 = vpop.f32.mrb[0].mxu0
        %9496 = vmatprep.mubr.bf16.mxu0 %v9183
        %9497 = vmatmul.mubr.bf16.gmra.mrb[0].mxu0 %v9182
        %v9498 = vpop.f32.mrb[0].mxu0
        %v9499 = vadd.f32 %v9260, %v9498
        %v9500 = vpop.f32.mrb[0].mxu0
        %v9501 = vpop.f32.mrb[0].mxu0
        %v9502 = vadd.f32 %v9260, %v9501
        %v9503 = vpop.f32.mrb[0].mxu0
        %9504 = vmatprep.mubr.bf16.mxu0 %v9186
        %9505 = vmatmul.mubr.bf16.gmra.mrb[0].mxu0 %v9185
        %v9506 = vpop.f32.mrb[0].mxu0
        %v9507 = vadd.f32 %v9260, %v9506
        %v9508 = vpop.f32.mrb[0].mxu0
        %v9509 = vpop.f32.mrb[0].mxu0
        %v9510 = vadd.f32 %v9260, %v9509
        %v9511 = vpop.f32.mrb[0].mxu0
        %9512 = vmatprep.mubr.bf16.mxu0 %v9189
        %9513 = vmatmul.mubr.bf16.gmra.mrb[0].mxu0 %v9188
        %v9514 = vpop.f32.mrb[0].mxu0
        %v9515 = vadd.f32 %v9260, %v9514
        %v9516 = vpop.f32.mrb[0].mxu0
        %v9517 = vpop.f32.mrb[0].mxu0
        %v9518 = vadd.f32 %v9260, %v9517
        %v9519 = vpop.f32.mrb[0].mxu0
        %9520 = vmatprep.mubr.bf16.mxu0 %v9192
        %9521 = vmatmul.mubr.bf16.gmra.mrb[0].mxu0 %v9191
        %v9522 = vpop.f32.mrb[0].mxu0
        %v9523 = vadd.f32 %v9260, %v9522
        %v9524 = vpop.f32.mrb[0].mxu0
        %v9525 = vpop.f32.mrb[0].mxu0
        %v9526 = vadd.f32 %v9260, %v9525
        %v9527 = vpop.f32.mrb[0].mxu0
        %9528 = vmatprep.mubr.bf16.mxu0 %v9195
        %9529 = vmatmul.mubr.bf16.gmra.mrb[0].mxu0 %v9194
        %v9530 = vpop.f32.mrb[0].mxu0
        %v9531 = vadd.f32 %v9260, %v9530
        %v9532 = vpop.f32.mrb[0].mxu0
        %v9533 = vpop.f32.mrb[0].mxu0
        %v9534 = vadd.f32 %v9260, %v9533
        %v9535 = vpop.f32.mrb[0].mxu0
        %9536 = vmatprep.mubr.bf16.mxu0 %v9198
        %9537 = vmatmul.mubr.bf16.gmra.mrb[0].mxu0 %v9197
        %v9538 = vpop.f32.mrb[0].mxu0
        %v9539 = vadd.f32 %v9260, %v9538
        %v9540 = vpop.f32.mrb[0].mxu0
        %v9541 = vpop.f32.mrb[0].mxu0
        %v9542 = vadd.f32 %v9260, %v9541
        %v9543 = vpop.f32.mrb[0].mxu0
        %9544 = vmatprep.mubr.bf16.mxu0 %v9201
        %9545 = vmatmul.mubr.bf16.gmra.mrb[0].mxu0 %v9200
        %v9546 = vpop.f32.mrb[0].mxu0
        %v9547 = vadd.f32 %v9260, %v9546
        %v9548 = vpop.f32.mrb[0].mxu0
        %v9549 = vpop.f32.mrb[0].mxu0
        %v9550 = vadd.f32 %v9260, %v9549
        %v9551 = vpop.f32.mrb[0].mxu0
        %9552 = vmatprep.mubr.bf16.mxu0 %v9204
        %9553 = vmatmul.mubr.bf16.gmra.mrb[0].mxu0 %v9203
        %v9554 = vpop.f32.mrb[0].mxu0
        %v9555 = vadd.f32 %v9260, %v9554
        %v9556 = vpop.f32.mrb[0].mxu0
        %v9557 = vpop.f32.mrb[0].mxu0
        %v9558 = vadd.f32 %v9260, %v9557
        %v9559 = vpop.f32.mrb[0].mxu0
        %9560 = vmatprep.mubr.bf16.mxu0 %v9207
        %9561 = vmatmul.mubr.bf16.gmra.mrb[0].mxu0 %v9206
        %v9562 = vpop.f32.mrb[0].mxu0
        %v9563 = vadd.f32 %v9260, %v9562
        %v9564 = vpop.f32.mrb[0].mxu0
        %v9565 = vpop.f32.mrb[0].mxu0
        %v9566 = vadd.f32 %v9260, %v9565
        %v9567 = vpop.f32.mrb[0].mxu0
        %9568 = vmatprep.mubr.bf16.mxu0 %v9210
        %9569 = vmatmul.mubr.bf16.gmra.mrb[0].mxu0 %v9209
        %v9570 = vpop.f32.mrb[0].mxu0
        %v9571 = vadd.f32 %v9260, %v9570
        %v9572 = vpop.f32.mrb[0].mxu0
        %v9573 = vpop.f32.mrb[0].mxu0
        %v9574 = vadd.f32 %v9260, %v9573
        %v9575 = vpop.f32.mrb[0].mxu0
        %9576 = vmatprep.mubr.bf16.mxu0 %v9213
        %9577 = vmatmul.mubr.bf16.gmra.mrb[0].mxu0 %v9212
        %v9578 = vpop.f32.mrb[0].mxu0
        %v9579 = vadd.f32 %v9260, %v9578
        %v9580 = vpop.f32.mrb[0].mxu0
        %v9581 = vpop.f32.mrb[0].mxu0
        %v9582 = vadd.f32 %v9260, %v9581
        %v9583 = vpop.f32.mrb[0].mxu0
        %9584 = vdwg.mxu0
        %9585 = vmatprep.subr.bf16.mxu0 0
        %9586 = vmatpush1.bf16.msra.mxu0 %v9354
        %9587 = vmatprep.subr.bf16.mxu0 0
        %9588 = vmatpush1.bf16.msra.mxu0 %v9355
        %9589 = vmatprep.subr.bf16.mxu0 0
        %9590 = vmatpush1.bf16.msra.mxu0 %v9356
        %9591 = vmatprep.subr.bf16.mxu0 0
        %9592 = vmatpush1.bf16.msra.mxu0 0
        %9593 = vmatprep.subr.bf16.mxu0 0
        %9594 = vmatpush1.bf16.msra.mxu0 0
        %9595 = vmatprep.subr.bf16.mxu0 0
        %9596 = vmatpush1.bf16.msra.mxu0 0
        %9597 = vmatprep.subr.bf16.mxu0 0
        %9598 = vmatpush1.bf16.msra.mxu0 0
        %9599 = vmatprep.subr.bf16.mxu0 0
        %9600 = vmatpush1.bf16.msra.mxu0 0
        %9601 = vmatprep.subr.bf16.mxu0 0
        %9602 = vmatpush1.bf16.msra.mxu0 0
        %9603 = vmatprep.subr.bf16.mxu0 0
        %9604 = vmatpush1.bf16.msra.mxu0 0
        %9605 = vmatprep.subr.bf16.mxu0 0
        %9606 = vmatpush1.bf16.msra.mxu0 0
        %9607 = vmatprep.subr.bf16.mxu0 0
        %9608 = vmatpush1.bf16.msra.mxu0 0
        %9609 = vmatprep.subr.bf16.mxu0 0
        %9610 = vmatpush1.bf16.msra.mxu0 0
        %9611 = vmatprep.subr.bf16.mxu0 0
        %9612 = vmatpush1.bf16.msra.mxu0 0
        %9613 = vmatprep.subr.bf16.mxu0 0
        %9614 = vmatpush1.bf16.msra.mxu0 0
        %9615 = vmatprep.subr.bf16.mxu0 0
        %9616 = vmatpush1.bf16.msra.mxu0 0
        %9617 = vmatprep.mubr.bf16.mxu0 0
        %9618 = vmatmul.mubr.bf16.gmra.mrb[0].mxu0 %v9377
        %v9619 = vpop.f32.mrb[0].mxu0
        %v9620 = vadd.f32 %v9459, %v9619
        %v9621 = vpop.f32.mrb[0].mxu0
        %v9622 = vpop.f32.mrb[0].mxu0
        %v9623 = vadd.f32 %v9462, %v9622
        %v9624 = vpop.f32.mrb[0].mxu0
        %9625 = vmatprep.mubr.bf16.mxu0 0
        %9626 = vmatmul.mubr.bf16.gmra.mrb[0].mxu0 %v9380
        %v9627 = vpop.f32.mrb[0].mxu0
        %v9628 = vadd.f32 %v9467, %v9627
        %v9629 = vpop.f32.mrb[0].mxu0
        %v9630 = vpop.f32.mrb[0].mxu0
        %v9631 = vadd.f32 %v9470, %v9630
        %v9632 = vpop.f32.mrb[0].mxu0
        %9633 = vmatprep.mubr.bf16.mxu0 0
        %9634 = vmatmul.mubr.bf16.gmra.mrb[0].mxu0 %v9383
        %v9635 = vpop.f32.mrb[0].mxu0
        %v9636 = vadd.f32 %v9475, %v9635
        %v9637 = vpop.f32.mrb[0].mxu0
        %v9638 = vpop.f32.mrb[0].mxu0
        %v9639 = vadd.f32 %v9478, %v9638
        %v9640 = vpop.f32.mrb[0].mxu0
        %9641 = vmatprep.mubr.bf16.mxu0 0
        %9642 = vmatmul.mubr.bf16.gmra.mrb[0].mxu0 %v9386
        %v9643 = vpop.f32.mrb[0].mxu0
        %v9644 = vadd.f32 %v9483, %v9643
        %v9645 = vpop.f32.mrb[0].mxu0
        %v9646 = vpop.f32.mrb[0].mxu0
        %v9647 = vadd.f32 %v9486, %v9646
        %v9648 = vpop.f32.mrb[0].mxu0
        %9649 = vmatprep.mubr.bf16.mxu0 0
        %9650 = vmatmul.mubr.bf16.gmra.mrb[0].mxu0 %v9389
        %v9651 = vpop.f32.mrb[0].mxu0
        %v9652 = vadd.f32 %v9491, %v9651
        %v9653 = vpop.f32.mrb[0].mxu0
        %v9654 = vpop.f32.mrb[0].mxu0
        %v9655 = vadd.f32 %v9494, %v9654
        %v9656 = vpop.f32.mrb[0].mxu0
        %9657 = vmatprep.mubr.bf16.mxu0 0
        %9658 = vmatmul.mubr.bf16.gmra.mrb[0].mxu0 %v9392
        %v9659 = vpop.f32.mrb[0].mxu0
        %v9660 = vadd.f32 %v9499, %v9659
        %v9661 = vpop.f32.mrb[0].mxu0
        %v9662 = vpop.f32.mrb[0].mxu0
        %v9663 = vadd.f32 %v9502, %v9662
        %v9664 = vpop.f32.mrb[0].mxu0
        %9665 = vmatprep.mubr.bf16.mxu0 0
        %9666 = vmatmul.mubr.bf16.gmra.mrb[0].mxu0 %v9395
        %v9667 = vpop.f32.mrb[0].mxu0
        %v9668 = vadd.f32 %v9507, %v9667
        %v9669 = vpop.f32.mrb[0].mxu0
        %v9670 = vpop.f32.mrb[0].mxu0
        %v9671 = vadd.f32 %v9510, %v9670
        %v9672 = vpop.f32.mrb[0].mxu0
        %9673 = vmatprep.mubr.bf16.mxu0 0
        %9674 = vmatmul.mubr.bf16.gmra.mrb[0].mxu0 %v9398
        %v9675 = vpop.f32.mrb[0].mxu0
        %v9676 = vadd.f32 %v9515, %v9675
        %v9677 = vpop.f32.mrb[0].mxu0
        %v9678 = vpop.f32.mrb[0].mxu0
        %v9679 = vadd.f32 %v9518, %v9678
        %v9680 = vpop.f32.mrb[0].mxu0
        %9681 = vmatprep.mubr.bf16.mxu0 0
        %9682 = vmatmul.mubr.bf16.gmra.mrb[0].mxu0 %v9401
        %v9683 = vpop.f32.mrb[0].mxu0
        %v9684 = vadd.f32 %v9523, %v9683
        %v9685 = vpop.f32.mrb[0].mxu0
        %v9686 = vpop.f32.mrb[0].mxu0
        %v9687 = vadd.f32 %v9526, %v9686
        %v9688 = vpop.f32.mrb[0].mxu0
        %9689 = vmatprep.mubr.bf16.mxu0 0
        %9690 = vmatmul.mubr.bf16.gmra.mrb[0].mxu0 %v9404
        %v9691 = vpop.f32.mrb[0].mxu0
        %v9692 = vadd.f32 %v9531, %v9691
        %v9693 = vpop.f32.mrb[0].mxu0
        %v9694 = vpop.f32.mrb[0].mxu0
        %v9695 = vadd.f32 %v9534, %v9694
        %v9696 = vpop.f32.mrb[0].mxu0
        %9697 = vmatprep.mubr.bf16.mxu0 0
        %9698 = vmatmul.mubr.bf16.gmra.mrb[0].mxu0 %v9407
        %v9699 = vpop.f32.mrb[0].mxu0
        %v9700 = vadd.f32 %v9539, %v9699
        %v9701 = vpop.f32.mrb[0].mxu0
        %v9702 = vpop.f32.mrb[0].mxu0
        %v9703 = vadd.f32 %v9542, %v9702
        %v9704 = vpop.f32.mrb[0].mxu0
        %9705 = vmatprep.mubr.bf16.mxu0 0
        %9706 = vmatmul.mubr.bf16.gmra.mrb[0].mxu0 %v9410
        %v9707 = vpop.f32.mrb[0].mxu0
        %v9708 = vadd.f32 %v9547, %v9707
        %v9709 = vpop.f32.mrb[0].mxu0
        %v9710 = vpop.f32.mrb[0].mxu0
        %v9711 = vadd.f32 %v9550, %v9710
        %v9712 = vpop.f32.mrb[0].mxu0
        %9713 = vmatprep.mubr.bf16.mxu0 0
        %9714 = vmatmul.mubr.bf16.gmra.mrb[0].mxu0 %v9413
        %v9715 = vpop.f32.mrb[0].mxu0
        %v9716 = vadd.f32 %v9555, %v9715
        %v9717 = vpop.f32.mrb[0].mxu0
        %v9718 = vpop.f32.mrb[0].mxu0
        %v9719 = vadd.f32 %v9558, %v9718
        %v9720 = vpop.f32.mrb[0].mxu0
        %9721 = vmatprep.mubr.bf16.mxu0 0
        %9722 = vmatmul.mubr.bf16.gmra.mrb[0].mxu0 %v9416
        %v9723 = vpop.f32.mrb[0].mxu0
        %v9724 = vadd.f32 %v9563, %v9723
        %v9725 = vpop.f32.mrb[0].mxu0
        %v9726 = vpop.f32.mrb[0].mxu0
        %v9727 = vadd.f32 %v9566, %v9726
        %v9728 = vpop.f32.mrb[0].mxu0
        %9729 = vmatprep.mubr.bf16.mxu0 0
        %9730 = vmatmul.mubr.bf16.gmra.mrb[0].mxu0 %v9419
        %v9731 = vpop.f32.mrb[0].mxu0
        %v9732 = vadd.f32 %v9571, %v9731
        %v9733 = vpop.f32.mrb[0].mxu0
        %v9734 = vpop.f32.mrb[0].mxu0
        %v9735 = vadd.f32 %v9574, %v9734
        %v9736 = vpop.f32.mrb[0].mxu0
        %9737 = vmatprep.mubr.bf16.mxu0 0
        %9738 = vmatmul.mubr.bf16.gmra.mrb[0].mxu0 %v9422
        %v9739 = vpop.f32.mrb[0].mxu0
        %v9740 = vadd.f32 %v9579, %v9739
        %v9741 = vpop.f32.mrb[0].mxu0
        %v9742 = vpop.f32.mrb[0].mxu0
        %v9743 = vadd.f32 %v9582, %v9742
        %v9744 = vpop.f32.mrb[0].mxu0
        %9745 = vdwg.mxu0
        %v9746 = vtanh.pop %v9620
        %v9747 = vtanh.pop %v9623
        %v9748 = vtanh.pop %v9628
        %v9749 = vtanh.pop %v9631
        %v9750 = vtanh.pop %v9636
        %v9751 = vtanh.pop %v9639
        %v9752 = vtanh.pop %v9644
        %v9753 = vtanh.pop %v9647
        %v9754 = vtanh.pop %v9652
        %v9755 = vtanh.pop %v9655
        %v9756 = vtanh.pop %v9660
        %v9757 = vtanh.pop %v9663
        %v9758 = vtanh.pop %v9668
        %v9759 = vtanh.pop %v9671
        %v9760 = vtanh.pop %v9676
        %v9761 = vtanh.pop %v9679
        %v9762 = vtanh.pop %v9684
        %v9763 = vtanh.pop %v9687
        %v9764 = vtanh.pop %v9692
        %v9765 = vtanh.pop %v9695
        %v9766 = vtanh.pop %v9700
        %v9767 = vtanh.pop %v9703
        %v9768 = vtanh.pop %v9708
        %v9769 = vtanh.pop %v9711
        %v9770 = vtanh.pop %v9716
        %v9771 = vtanh.pop %v9719
        %v9772 = vtanh.pop %v9724
        %v9773 = vtanh.pop %v9727
        %v9774 = vtanh.pop %v9732
        %v9775 = vtanh.pop %v9735
        %v9776 = vtanh.pop %v9740
        %v9777 = vtanh.pop %v9743
        %v9778 = vxor.u32 %v9620, 2147483648
        %v9779 = vxor.u32 %v9623, 2147483648
        %v9780 = vxor.u32 %v9628, 2147483648
        %v9781 = vxor.u32 %v9631, 2147483648
        %v9782 = vxor.u32 %v9636, 2147483648
        %v9783 = vxor.u32 %v9639, 2147483648
        %v9784 = vxor.u32 %v9644, 2147483648
        %v9785 = vxor.u32 %v9647, 2147483648
        %v9786 = vxor.u32 %v9652, 2147483648
        %v9787 = vxor.u32 %v9655, 2147483648
        %v9788 = vxor.u32 %v9660, 2147483648
        %v9789 = vxor.u32 %v9663, 2147483648
        %v9790 = vxor.u32 %v9668, 2147483648
        %v9791 = vxor.u32 %v9671, 2147483648
        %v9792 = vxor.u32 %v9676, 2147483648
        %v9793 = vxor.u32 %v9679, 2147483648
        %v9794 = vxor.u32 %v9684, 2147483648
        %v9795 = vxor.u32 %v9687, 2147483648
        %v9796 = vxor.u32 %v9692, 2147483648
        %v9797 = vxor.u32 %v9695, 2147483648
        %v9798 = vxor.u32 %v9700, 2147483648
        %v9799 = vxor.u32 %v9703, 2147483648
        %v9800 = vxor.u32 %v9708, 2147483648
        %v9801 = vxor.u32 %v9711, 2147483648
        %v9802 = vxor.u32 %v9716, 2147483648
        %v9803 = vxor.u32 %v9719, 2147483648
        %v9804 = vxor.u32 %v9724, 2147483648
        %v9805 = vxor.u32 %v9727, 2147483648
        %v9806 = vxor.u32 %v9732, 2147483648
        %v9807 = vxor.u32 %v9735, 2147483648
        %v9808 = vxor.u32 %v9740, 2147483648
        %v9809 = vxor.u32 %v9743, 2147483648
        %v9810 = vmul.f32 %v9778, 1.442695
        %v9811 = vpow.pop %v9810
        %v9812 = vmul.f32 %v9779, 1.442695
        %v9813 = vpow.pop %v9812
        %v9814 = vmul.f32 %v9780, 1.442695
        %v9815 = vpow.pop %v9814
        %v9816 = vmul.f32 %v9781, 1.442695
        %v9817 = vpow.pop %v9816
        %v9818 = vmul.f32 %v9782, 1.442695
        %v9819 = vpow.pop %v9818
        %v9820 = vmul.f32 %v9783, 1.442695
        %v9821 = vpow.pop %v9820
        %v9822 = vmul.f32 %v9784, 1.442695
        %v9823 = vpow.pop %v9822
        %v9824 = vmul.f32 %v9785, 1.442695
        %v9825 = vpow.pop %v9824
        %v9826 = vmul.f32 %v9786, 1.442695
        %v9827 = vpow.pop %v9826
        %v9828 = vmul.f32 %v9787, 1.442695
        %v9829 = vpow.pop %v9828
        %v9830 = vmul.f32 %v9788, 1.442695
        %v9831 = vpow.pop %v9830
        %v9832 = vmul.f32 %v9789, 1.442695
        %v9833 = vpow.pop %v9832
        %v9834 = vmul.f32 %v9790, 1.442695
        %v9835 = vpow.pop %v9834
        %v9836 = vmul.f32 %v9791, 1.442695
        %v9837 = vpow.pop %v9836
        %v9838 = vmul.f32 %v9792, 1.442695
        %v9839 = vpow.pop %v9838
        %v9840 = vmul.f32 %v9793, 1.442695
        %v9841 = vpow.pop %v9840
        %v9842 = vmul.f32 %v9794, 1.442695
        %v9843 = vpow.pop %v9842
        %v9844 = vmul.f32 %v9795, 1.442695
        %v9845 = vpow.pop %v9844
        %v9846 = vmul.f32 %v9796, 1.442695
        %v9847 = vpow.pop %v9846
        %v9848 = vmul.f32 %v9797, 1.442695
        %v9849 = vpow.pop %v9848
        %v9850 = vmul.f32 %v9798, 1.442695
        %v9851 = vpow.pop %v9850
        %v9852 = vmul.f32 %v9799, 1.442695
        %v9853 = vpow.pop %v9852
        %v9854 = vmul.f32 %v9800, 1.442695
        %v9855 = vpow.pop %v9854
        %v9856 = vmul.f32 %v9801, 1.442695
        %v9857 = vpow.pop %v9856
        %v9858 = vmul.f32 %v9802, 1.442695
        %v9859 = vpow.pop %v9858
        %v9860 = vmul.f32 %v9803, 1.442695
        %v9861 = vpow.pop %v9860
        %v9862 = vmul.f32 %v9804, 1.442695
        %v9863 = vpow.pop %v9862
        %v9864 = vmul.f32 %v9805, 1.442695
        %v9865 = vpow.pop %v9864
        %v9866 = vmul.f32 %v9806, 1.442695
        %v9867 = vpow.pop %v9866
        %v9868 = vmul.f32 %v9807, 1.442695
        %v9869 = vpow.pop %v9868
        %v9870 = vmul.f32 %v9808, 1.442695
        %v9871 = vpow.pop %v9870
        %v9872 = vmul.f32 %v9809, 1.442695
        %v9873 = vpow.pop %v9872
        %v9874 = vadd.f32 %v9811, 1.0
        %v9875 = vadd.f32 %v9813, 1.0
        %v9876 = vadd.f32 %v9815, 1.0
        %v9877 = vadd.f32 %v9817, 1.0
        %v9878 = vadd.f32 %v9819, 1.0
        %v9879 = vadd.f32 %v9821, 1.0
        %v9880 = vadd.f32 %v9823, 1.0
        %v9881 = vadd.f32 %v9825, 1.0
        %v9882 = vadd.f32 %v9827, 1.0
        %v9883 = vadd.f32 %v9829, 1.0
        %v9884 = vadd.f32 %v9831, 1.0
        %v9885 = vadd.f32 %v9833, 1.0
        %v9886 = vadd.f32 %v9835, 1.0
        %v9887 = vadd.f32 %v9837, 1.0
        %v9888 = vadd.f32 %v9839, 1.0
        %v9889 = vadd.f32 %v9841, 1.0
        %v9890 = vadd.f32 %v9843, 1.0
        %v9891 = vadd.f32 %v9845, 1.0
        %v9892 = vadd.f32 %v9847, 1.0
        %v9893 = vadd.f32 %v9849, 1.0
        %v9894 = vadd.f32 %v9851, 1.0
        %v9895 = vadd.f32 %v9853, 1.0
        %v9896 = vadd.f32 %v9855, 1.0
        %v9897 = vadd.f32 %v9857, 1.0
        %v9898 = vadd.f32 %v9859, 1.0
        %v9899 = vadd.f32 %v9861, 1.0
        %v9900 = vadd.f32 %v9863, 1.0
        %v9901 = vadd.f32 %v9865, 1.0
        %v9902 = vadd.f32 %v9867, 1.0
        %v9903 = vadd.f32 %v9869, 1.0
        %v9904 = vadd.f32 %v9871, 1.0
        %v9905 = vadd.f32 %v9873, 1.0
        %v9906 = vrcp.pop %v9874
        %v9907 = vmul.f32 1.0, %v9906
        %v9908 = vrcp.pop %v9875
        %v9909 = vmul.f32 1.0, %v9908
        %v9910 = vrcp.pop %v9876
        %v9911 = vmul.f32 1.0, %v9910
        %v9912 = vrcp.pop %v9877
        %v9913 = vmul.f32 1.0, %v9912
        %v9914 = vrcp.pop %v9878
        %v9915 = vmul.f32 1.0, %v9914
        %v9916 = vrcp.pop %v9879
        %v9917 = vmul.f32 1.0, %v9916
        %v9918 = vrcp.pop %v9880
        %v9919 = vmul.f32 1.0, %v9918
        %v9920 = vrcp.pop %v9881
        %v9921 = vmul.f32 1.0, %v9920
        %v9922 = vrcp.pop %v9882
        %v9923 = vmul.f32 1.0, %v9922
        %v9924 = vrcp.pop %v9883
        %v9925 = vmul.f32 1.0, %v9924
        %v9926 = vrcp.pop %v9884
        %v9927 = vmul.f32 1.0, %v9926
        %v9928 = vrcp.pop %v9885
        %v9929 = vmul.f32 1.0, %v9928
        %v9930 = vrcp.pop %v9886
        %v9931 = vmul.f32 1.0, %v9930
        %v9932 = vrcp.pop %v9887
        %v9933 = vmul.f32 1.0, %v9932
        %v9934 = vrcp.pop %v9888
        %v9935 = vmul.f32 1.0, %v9934
        %v9936 = vrcp.pop %v9889
        %v9937 = vmul.f32 1.0, %v9936
        %v9938 = vrcp.pop %v9890
        %v9939 = vmul.f32 1.0, %v9938
        %v9940 = vrcp.pop %v9891
        %v9941 = vmul.f32 1.0, %v9940
        %v9942 = vrcp.pop %v9892
        %v9943 = vmul.f32 1.0, %v9942
        %v9944 = vrcp.pop %v9893
        %v9945 = vmul.f32 1.0, %v9944
        %v9946 = vrcp.pop %v9894
        %v9947 = vmul.f32 1.0, %v9946
        %v9948 = vrcp.pop %v9895
        %v9949 = vmul.f32 1.0, %v9948
        %v9950 = vrcp.pop %v9896
        %v9951 = vmul.f32 1.0, %v9950
        %v9952 = vrcp.pop %v9897
        %v9953 = vmul.f32 1.0, %v9952
        %v9954 = vrcp.pop %v9898
        %v9955 = vmul.f32 1.0, %v9954
        %v9956 = vrcp.pop %v9899
        %v9957 = vmul.f32 1.0, %v9956
        %v9958 = vrcp.pop %v9900
        %v9959 = vmul.f32 1.0, %v9958
        %v9960 = vrcp.pop %v9901
        %v9961 = vmul.f32 1.0, %v9960
        %v9962 = vrcp.pop %v9902
        %v9963 = vmul.f32 1.0, %v9962
        %v9964 = vrcp.pop %v9903
        %v9965 = vmul.f32 1.0, %v9964
        %v9966 = vrcp.pop %v9904
        %v9967 = vmul.f32 1.0, %v9966
        %v9968 = vrcp.pop %v9905
        %v9969 = vmul.f32 1.0, %v9968
        %10002 = vrot.lane.b32.xlu0 %v9907, 96
        %v10003 = vpop.permute.xlu0 %10002
        %10004 = vrot.lane.b32.xlu0 %v9909, 96
        %v10005 = vpop.permute.xlu0 %10004
        %10006 = vrot.lane.b32.xlu0 %v9911, 96
        %v10007 = vpop.permute.xlu0 %10006
        %10008 = vrot.lane.b32.xlu0 %v9913, 96
        %v10009 = vpop.permute.xlu0 %10008
        %10010 = vrot.lane.b32.xlu0 %v9915, 96
        %v10011 = vpop.permute.xlu0 %10010
        %10012 = vrot.lane.b32.xlu0 %v9917, 96
        %v10013 = vpop.permute.xlu0 %10012
        %10014 = vrot.lane.b32.xlu0 %v9919, 96
        %v10015 = vpop.permute.xlu0 %10014
        %10016 = vrot.lane.b32.xlu0 %v9921, 96
        %v10017 = vpop.permute.xlu0 %10016
        %10018 = vrot.lane.b32.xlu0 %v9923, 96
        %v10019 = vpop.permute.xlu0 %10018
        %10020 = vrot.lane.b32.xlu0 %v9925, 96
        %v10021 = vpop.permute.xlu0 %10020
        %10022 = vrot.lane.b32.xlu0 %v9927, 96
        %v10023 = vpop.permute.xlu0 %10022
        %10024 = vrot.lane.b32.xlu0 %v9929, 96
        %v10025 = vpop.permute.xlu0 %10024
        %10026 = vrot.lane.b32.xlu0 %v9931, 96
        %v10027 = vpop.permute.xlu0 %10026
        %10028 = vrot.lane.b32.xlu0 %v9933, 96
        %v10029 = vpop.permute.xlu0 %10028
        %10030 = vrot.lane.b32.xlu0 %v9935, 96
        %v10031 = vpop.permute.xlu0 %10030
        %10032 = vrot.lane.b32.xlu0 %v9937, 96
        %v10033 = vpop.permute.xlu0 %10032
        %10034 = vrot.lane.b32.xlu0 %v9939, 96
        %v10035 = vpop.permute.xlu0 %10034
        %10036 = vrot.lane.b32.xlu0 %v9941, 96
        %v10037 = vpop.permute.xlu0 %10036
        %10038 = vrot.lane.b32.xlu0 %v9943, 96
        %v10039 = vpop.permute.xlu0 %10038
        %10040 = vrot.lane.b32.xlu0 %v9945, 96
        %v10041 = vpop.permute.xlu0 %10040
        %10042 = vrot.lane.b32.xlu0 %v9947, 96
        %v10043 = vpop.permute.xlu0 %10042
        %10044 = vrot.lane.b32.xlu0 %v9949, 96
        %v10045 = vpop.permute.xlu0 %10044
        %10046 = vrot.lane.b32.xlu0 %v9951, 96
        %v10047 = vpop.permute.xlu0 %10046
        %10048 = vrot.lane.b32.xlu0 %v9953, 96
        %v10049 = vpop.permute.xlu0 %10048
        %10050 = vrot.lane.b32.xlu0 %v9955, 96
        %v10051 = vpop.permute.xlu0 %10050
        %10052 = vrot.lane.b32.xlu0 %v9957, 96
        %v10053 = vpop.permute.xlu0 %10052
        %10054 = vrot.lane.b32.xlu0 %v9959, 96
        %v10055 = vpop.permute.xlu0 %10054
        %10056 = vrot.lane.b32.xlu0 %v9961, 96
        %v10057 = vpop.permute.xlu0 %10056
        %10058 = vrot.lane.b32.xlu0 %v9963, 96
        %v10059 = vpop.permute.xlu0 %10058
        %10060 = vrot.lane.b32.xlu0 %v9965, 96
        %v10061 = vpop.permute.xlu0 %10060
        %10062 = vrot.lane.b32.xlu0 %v9967, 96
        %v10063 = vpop.permute.xlu0 %10062
        %10064 = vrot.lane.b32.xlu0 %v9969, 96
        %v10065 = vpop.permute.xlu0 %10064
        %v10098 = vmul.f32 %v9746, %v10003
        %v10099 = vmul.f32 %v9747, %v10005
        %v10100 = vmul.f32 %v9748, %v10007
        %v10101 = vmul.f32 %v9749, %v10009
        %v10102 = vmul.f32 %v9750, %v10011
        %v10103 = vmul.f32 %v9751, %v10013
        %v10104 = vmul.f32 %v9752, %v10015
        %v10105 = vmul.f32 %v9753, %v10017
        %v10106 = vmul.f32 %v9754, %v10019
        %v10107 = vmul.f32 %v9755, %v10021
        %v10108 = vmul.f32 %v9756, %v10023
        %v10109 = vmul.f32 %v9757, %v10025
        %v10110 = vmul.f32 %v9758, %v10027
        %v10111 = vmul.f32 %v9759, %v10029
        %v10112 = vmul.f32 %v9760, %v10031
        %v10113 = vmul.f32 %v9761, %v10033
        %v10114 = vmul.f32 %v9762, %v10035
        %v10115 = vmul.f32 %v9763, %v10037
        %v10116 = vmul.f32 %v9764, %v10039
        %v10117 = vmul.f32 %v9765, %v10041
        %v10118 = vmul.f32 %v9766, %v10043
        %v10119 = vmul.f32 %v9767, %v10045
        %v10120 = vmul.f32 %v9768, %v10047
        %v10121 = vmul.f32 %v9769, %v10049
        %v10122 = vmul.f32 %v9770, %v10051
        %v10123 = vmul.f32 %v9771, %v10053
        %v10124 = vmul.f32 %v9772, %v10055
        %v10125 = vmul.f32 %v9773, %v10057
        %v10126 = vmul.f32 %v9774, %v10059
        %v10127 = vmul.f32 %v9775, %v10061
        %v10128 = vmul.f32 %v9776, %v10063
        %v10129 = vmul.f32 %v9777, %v10065
        %v10130 = vpack.c.bf16 %v10099, %v10098
        %v10131 = vpack.c.bf16 %v10101, %v10100
        %v10132 = vpack.c.bf16 %v10103, %v10102
        %v10133 = vpack.c.bf16 %v10105, %v10104
        %v10134 = vpack.c.bf16 %v10107, %v10106
        %v10135 = vpack.c.bf16 %v10109, %v10108
        %v10136 = vpack.c.bf16 %v10111, %v10110
        %v10137 = vpack.c.bf16 %v10113, %v10112
        %v10138 = vpack.c.bf16 %v10115, %v10114
        %v10139 = vpack.c.bf16 %v10117, %v10116
        %v10140 = vpack.c.bf16 %v10119, %v10118
        %v10141 = vpack.c.bf16 %v10121, %v10120
        %v10142 = vpack.c.bf16 %v10123, %v10122
        %v10143 = vpack.c.bf16 %v10125, %v10124
        %v10144 = vpack.c.bf16 %v10127, %v10126
        %v10145 = vpack.c.bf16 %v10129, %v10128
        %s10146 = scalar_lea.vmem [#allocation15], 32
        %v10147 = vld [vmem:[%s10146] sm:$0xf]
        %v10148 = vld [vmem:[%s10146 + $0x4] sm:$0xf]
        %v10149 = vld [vmem:[%s10146 + $0x8] sm:$0xf]
        %v10150 = vld [vmem:[%s10146 + $0xc] sm:$0xf]
        %s10151 = scalar_lea.vmem [#allocation16], 2
        %v10152 = vld [vmem:[%s10151] sm:$0x1]
        %v10154 = vlaneseq
        %v10155 = vshrl.u32 %v10154, 7
        %v10156 = vsub.s32 0, %v10155
        %v10157 = vrot.slane %v10152, %v10156
        %v10163 = vunpack.c.l.b16 %v10147
        %v10164 = vunpack.c.l.b16 %v10148
        %v10165 = vunpack.c.l.b16 %v10149
        %v10166 = vunpack.c.l.b16 %v10150
        %v10167 = vpack.c.b16 %v10164, %v10163
        %v10168 = vpack.c.b16 %v10166, %v10165
        %v10172 = vsel %vm2326, %v10130, 0
        %v10175 = vsel %vm2326, %v10131, 0
        %v10178 = vsel %vm2326, %v10132, 0
        %v10181 = vsel %vm2326, %v10133, 0
        %v10184 = vsel %vm2326, %v10134, 0
        %v10187 = vsel %vm2326, %v10135, 0
        %v10190 = vsel %vm2326, %v10136, 0
        %v10193 = vsel %vm2326, %v10137, 0
        %v10196 = vsel %vm2326, %v10138, 0
        %v10199 = vsel %vm2326, %v10139, 0
        %v10202 = vsel %vm2326, %v10140, 0
        %v10205 = vsel %vm2326, %v10141, 0
        %v10208 = vsel %vm2326, %v10142, 0
        %v10211 = vsel %vm2326, %v10143, 0
        %v10214 = vsel %vm2326, %v10144, 0
        %v10217 = vsel %vm2326, %v10145, 0
        %10219 = vmatprep.subr.bf16.mxu0 0
        %10220 = vmatpush1.bf16.msra.mxu0 %v10167
        %10221 = vmatprep.subr.bf16.mxu0 0
        %10222 = vmatpush1.bf16.msra.mxu0 %v10168
        %10223 = vmatprep.subr.bf16.mxu0 0
        %10224 = vmatpush1.bf16.msra.mxu0 0
        %10225 = vmatprep.subr.bf16.mxu0 0
        %10226 = vmatpush1.bf16.msra.mxu0 0
        %10227 = vmatprep.subr.bf16.mxu0 0
        %10228 = vmatpush1.bf16.msra.mxu0 0
        %10229 = vmatprep.subr.bf16.mxu0 0
        %10230 = vmatpush1.bf16.msra.mxu0 0
        %10231 = vmatprep.subr.bf16.mxu0 0
        %10232 = vmatpush1.bf16.msra.mxu0 0
        %10233 = vmatprep.subr.bf16.mxu0 0
        %10234 = vmatpush1.bf16.msra.mxu0 0
        %10235 = vmatprep.subr.bf16.mxu0 0
        %10236 = vmatpush1.bf16.msra.mxu0 0
        %10237 = vmatprep.subr.bf16.mxu0 0
        %10238 = vmatpush1.bf16.msra.mxu0 0
        %10239 = vmatprep.subr.bf16.mxu0 0
        %10240 = vmatpush1.bf16.msra.mxu0 0
        %10241 = vmatprep.subr.bf16.mxu0 0
        %10242 = vmatpush1.bf16.msra.mxu0 0
        %10243 = vmatprep.subr.bf16.mxu0 0
        %10244 = vmatpush1.bf16.msra.mxu0 0
        %10245 = vmatprep.subr.bf16.mxu0 0
        %10246 = vmatpush1.bf16.msra.mxu0 0
        %10247 = vmatprep.subr.bf16.mxu0 0
        %10248 = vmatpush1.bf16.msra.mxu0 0
        %10249 = vmatprep.subr.bf16.mxu0 0
        %10250 = vmatpush1.bf16.msra.mxu0 0
        %10251 = vmatprep.mubr.bf16.mxu0 0
        %10252 = vmatmul.mubr.bf16.gmra.mrb[0].mxu0 %v10172
        %v10253 = vpop.f32.mrb[0].mxu0
        %v10254 = vadd.f32 %v10157, %v10253
        %v10255 = vpop.f32.mrb[0].mxu0
        %v10256 = vpop.f32.mrb[0].mxu0
        %v10257 = vadd.f32 %v10157, %v10256
        %v10258 = vpop.f32.mrb[0].mxu0
        %10259 = vmatprep.mubr.bf16.mxu0 0
        %10260 = vmatmul.mubr.bf16.gmra.mrb[0].mxu0 %v10175
        %v10261 = vpop.f32.mrb[0].mxu0
        %v10262 = vadd.f32 %v10157, %v10261
        %v10263 = vpop.f32.mrb[0].mxu0
        %v10264 = vpop.f32.mrb[0].mxu0
        %v10265 = vadd.f32 %v10157, %v10264
        %v10266 = vpop.f32.mrb[0].mxu0
        %10267 = vmatprep.mubr.bf16.mxu0 0
        %10268 = vmatmul.mubr.bf16.gmra.mrb[0].mxu0 %v10178
        %v10269 = vpop.f32.mrb[0].mxu0
        %v10270 = vadd.f32 %v10157, %v10269
        %v10271 = vpop.f32.mrb[0].mxu0
        %v10272 = vpop.f32.mrb[0].mxu0
        %v10273 = vadd.f32 %v10157, %v10272
        %v10274 = vpop.f32.mrb[0].mxu0
        %10275 = vmatprep.mubr.bf16.mxu0 0
        %10276 = vmatmul.mubr.bf16.gmra.mrb[0].mxu0 %v10181
        %v10277 = vpop.f32.mrb[0].mxu0
        %v10278 = vadd.f32 %v10157, %v10277
        %v10279 = vpop.f32.mrb[0].mxu0
        %v10280 = vpop.f32.mrb[0].mxu0
        %v10281 = vadd.f32 %v10157, %v10280
        %v10282 = vpop.f32.mrb[0].mxu0
        %10283 = vmatprep.mubr.bf16.mxu0 0
        %10284 = vmatmul.mubr.bf16.gmra.mrb[0].mxu0 %v10184
        %v10285 = vpop.f32.mrb[0].mxu0
        %v10286 = vadd.f32 %v10157, %v10285
        %v10287 = vpop.f32.mrb[0].mxu0
        %v10288 = vpop.f32.mrb[0].mxu0
        %v10289 = vadd.f32 %v10157, %v10288
        %v10290 = vpop.f32.mrb[0].mxu0
        %10291 = vmatprep.mubr.bf16.mxu0 0
        %10292 = vmatmul.mubr.bf16.gmra.mrb[0].mxu0 %v10187
        %v10293 = vpop.f32.mrb[0].mxu0
        %v10294 = vadd.f32 %v10157, %v10293
        %v10295 = vpop.f32.mrb[0].mxu0
        %v10296 = vpop.f32.mrb[0].mxu0
        %v10297 = vadd.f32 %v10157, %v10296
        %v10298 = vpop.f32.mrb[0].mxu0
        %10299 = vmatprep.mubr.bf16.mxu0 0
        %10300 = vmatmul.mubr.bf16.gmra.mrb[0].mxu0 %v10190
        %v10301 = vpop.f32.mrb[0].mxu0
        %v10302 = vadd.f32 %v10157, %v10301
        %v10303 = vpop.f32.mrb[0].mxu0
        %v10304 = vpop.f32.mrb[0].mxu0
        %v10305 = vadd.f32 %v10157, %v10304
        %v10306 = vpop.f32.mrb[0].mxu0
        %10307 = vmatprep.mubr.bf16.mxu0 0
        %10308 = vmatmul.mubr.bf16.gmra.mrb[0].mxu0 %v10193
        %v10309 = vpop.f32.mrb[0].mxu0
        %v10310 = vadd.f32 %v10157, %v10309
        %v10311 = vpop.f32.mrb[0].mxu0
        %v10312 = vpop.f32.mrb[0].mxu0
        %v10313 = vadd.f32 %v10157, %v10312
        %v10314 = vpop.f32.mrb[0].mxu0
        %10315 = vmatprep.mubr.bf16.mxu0 0
        %10316 = vmatmul.mubr.bf16.gmra.mrb[0].mxu0 %v10196
        %v10317 = vpop.f32.mrb[0].mxu0
        %v10318 = vadd.f32 %v10157, %v10317
        %v10319 = vpop.f32.mrb[0].mxu0
        %v10320 = vpop.f32.mrb[0].mxu0
        %v10321 = vadd.f32 %v10157, %v10320
        %v10322 = vpop.f32.mrb[0].mxu0
        %10323 = vmatprep.mubr.bf16.mxu0 0
        %10324 = vmatmul.mubr.bf16.gmra.mrb[0].mxu0 %v10199
        %v10325 = vpop.f32.mrb[0].mxu0
        %v10326 = vadd.f32 %v10157, %v10325
        %v10327 = vpop.f32.mrb[0].mxu0
        %v10328 = vpop.f32.mrb[0].mxu0
        %v10329 = vadd.f32 %v10157, %v10328
        %v10330 = vpop.f32.mrb[0].mxu0
        %10331 = vmatprep.mubr.bf16.mxu0 0
        %10332 = vmatmul.mubr.bf16.gmra.mrb[0].mxu0 %v10202
        %v10333 = vpop.f32.mrb[0].mxu0
        %v10334 = vadd.f32 %v10157, %v10333
        %v10335 = vpop.f32.mrb[0].mxu0
        %v10336 = vpop.f32.mrb[0].mxu0
        %v10337 = vadd.f32 %v10157, %v10336
        %v10338 = vpop.f32.mrb[0].mxu0
        %10339 = vmatprep.mubr.bf16.mxu0 0
        %10340 = vmatmul.mubr.bf16.gmra.mrb[0].mxu0 %v10205
        %v10341 = vpop.f32.mrb[0].mxu0
        %v10342 = vadd.f32 %v10157, %v10341
        %v10343 = vpop.f32.mrb[0].mxu0
        %v10344 = vpop.f32.mrb[0].mxu0
        %v10345 = vadd.f32 %v10157, %v10344
        %v10346 = vpop.f32.mrb[0].mxu0
        %10347 = vmatprep.mubr.bf16.mxu0 0
        %10348 = vmatmul.mubr.bf16.gmra.mrb[0].mxu0 %v10208
        %v10349 = vpop.f32.mrb[0].mxu0
        %v10350 = vadd.f32 %v10157, %v10349
        %v10351 = vpop.f32.mrb[0].mxu0
        %v10352 = vpop.f32.mrb[0].mxu0
        %v10353 = vadd.f32 %v10157, %v10352
        %v10354 = vpop.f32.mrb[0].mxu0
        %10355 = vmatprep.mubr.bf16.mxu0 0
        %10356 = vmatmul.mubr.bf16.gmra.mrb[0].mxu0 %v10211
        %v10357 = vpop.f32.mrb[0].mxu0
        %v10358 = vadd.f32 %v10157, %v10357
        %v10359 = vpop.f32.mrb[0].mxu0
        %v10360 = vpop.f32.mrb[0].mxu0
        %v10361 = vadd.f32 %v10157, %v10360
        %v10362 = vpop.f32.mrb[0].mxu0
        %10363 = vmatprep.mubr.bf16.mxu0 0
        %10364 = vmatmul.mubr.bf16.gmra.mrb[0].mxu0 %v10214
        %v10365 = vpop.f32.mrb[0].mxu0
        %v10366 = vadd.f32 %v10157, %v10365
        %v10367 = vpop.f32.mrb[0].mxu0
        %v10368 = vpop.f32.mrb[0].mxu0
        %v10369 = vadd.f32 %v10157, %v10368
        %v10370 = vpop.f32.mrb[0].mxu0
        %10371 = vmatprep.mubr.bf16.mxu0 0
        %10372 = vmatmul.mubr.bf16.gmra.mrb[0].mxu0 %v10217
        %v10373 = vpop.f32.mrb[0].mxu0
        %v10374 = vadd.f32 %v10157, %v10373
        %v10375 = vpop.f32.mrb[0].mxu0
        %v10376 = vpop.f32.mrb[0].mxu0
        %v10377 = vadd.f32 %v10157, %v10376
        %v10378 = vpop.f32.mrb[0].mxu0
        %10379 = vdwg.mxu0
        %v10380 = vadd.f32 %v7679, %v10254
        %v10381 = vadd.f32 %v7680, %v10257
        %v10382 = vadd.f32 %v7681, %v10262
        %v10383 = vadd.f32 %v7682, %v10265
        %v10384 = vadd.f32 %v7683, %v10270
        %v10385 = vadd.f32 %v7684, %v10273
        %v10386 = vadd.f32 %v7685, %v10278
        %v10387 = vadd.f32 %v7686, %v10281
        %v10388 = vadd.f32 %v7687, %v10286
        %v10389 = vadd.f32 %v7688, %v10289
        %v10390 = vadd.f32 %v7689, %v10294
        %v10391 = vadd.f32 %v7690, %v10297
        %v10392 = vadd.f32 %v7691, %v10302
        %v10393 = vadd.f32 %v7692, %v10305
        %v10394 = vadd.f32 %v7693, %v10310
        %v10395 = vadd.f32 %v7694, %v10313
        %v10396 = vadd.f32 %v7695, %v10318
        %v10397 = vadd.f32 %v7696, %v10321
        %v10398 = vadd.f32 %v7697, %v10326
        %v10399 = vadd.f32 %v7698, %v10329
        %v10400 = vadd.f32 %v7699, %v10334
        %v10401 = vadd.f32 %v7700, %v10337
        %v10402 = vadd.f32 %v7701, %v10342
        %v10403 = vadd.f32 %v7702, %v10345
        %v10404 = vadd.f32 %v7703, %v10350
        %v10405 = vadd.f32 %v7704, %v10353
        %v10406 = vadd.f32 %v7705, %v10358
        %v10407 = vadd.f32 %v7706, %v10361
        %v10408 = vadd.f32 %v7707, %v10366
        %v10409 = vadd.f32 %v7708, %v10369
        %v10410 = vadd.f32 %v7709, %v10374
        %v10411 = vadd.f32 %v7710, %v10377
        %v10412 = vld [vmem:[#allocation18] sm:$0x3]
        %v10413 = vmax.f32 %v10380, 0.0
        %v10414 = vmax.f32 %v10381, 0.0
        %v10415 = vmax.f32 %v10382, 0.0
        %v10416 = vmax.f32 %v10383, 0.0
        %v10417 = vmax.f32 %v10384, 0.0
        %v10418 = vmax.f32 %v10385, 0.0
        %v10419 = vmax.f32 %v10386, 0.0
        %v10420 = vmax.f32 %v10387, 0.0
        %v10421 = vmax.f32 %v10388, 0.0
        %v10422 = vmax.f32 %v10389, 0.0
        %v10423 = vmax.f32 %v10390, 0.0
        %v10424 = vmax.f32 %v10391, 0.0
        %v10425 = vmax.f32 %v10392, 0.0
        %v10426 = vmax.f32 %v10393, 0.0
        %v10427 = vmax.f32 %v10394, 0.0
        %v10428 = vmax.f32 %v10395, 0.0
        %v10429 = vmax.f32 %v10396, 0.0
        %v10430 = vmax.f32 %v10397, 0.0
        %v10431 = vmax.f32 %v10398, 0.0
        %v10432 = vmax.f32 %v10399, 0.0
        %v10433 = vmax.f32 %v10400, 0.0
        %v10434 = vmax.f32 %v10401, 0.0
        %v10435 = vmax.f32 %v10402, 0.0
        %v10436 = vmax.f32 %v10403, 0.0
        %v10437 = vmax.f32 %v10404, 0.0
        %v10438 = vmax.f32 %v10405, 0.0
        %v10439 = vmax.f32 %v10406, 0.0
        %v10440 = vmax.f32 %v10407, 0.0
        %v10441 = vmax.f32 %v10408, 0.0
        %v10442 = vmax.f32 %v10409, 0.0
        %v10443 = vmax.f32 %v10410, 0.0
        %v10444 = vmax.f32 %v10411, 0.0
        %v10445 = vpack.c.bf16 %v10414, %v10413
        %v10446 = vpack.c.bf16 %v10416, %v10415
        %v10447 = vpack.c.bf16 %v10418, %v10417
        %v10448 = vpack.c.bf16 %v10420, %v10419
        %v10449 = vpack.c.bf16 %v10422, %v10421
        %v10450 = vpack.c.bf16 %v10424, %v10423
        %v10451 = vpack.c.bf16 %v10426, %v10425
        %v10452 = vpack.c.bf16 %v10428, %v10427
        %v10453 = vpack.c.bf16 %v10430, %v10429
        %v10454 = vpack.c.bf16 %v10432, %v10431
        %v10455 = vpack.c.bf16 %v10434, %v10433
        %v10456 = vpack.c.bf16 %v10436, %v10435
        %v10457 = vpack.c.bf16 %v10438, %v10437
        %v10458 = vpack.c.bf16 %v10440, %v10439
        %v10459 = vpack.c.bf16 %v10442, %v10441
        %v10460 = vpack.c.bf16 %v10444, %v10443
        %v10461 = vld [vmem:[#allocation19] sm:$0xf]
        %10463 = vset.pattern.permute.xlu0 0
        %10464 = vperm.xlu0 %10463, %v10461
        %v10465 = vpop.permute.xlu0 %10464
        %10483 = vrot.lane.b32.xlu0 %v10445, 96
        %v10484 = vpop.permute.xlu0 %10483
        %10485 = vrot.lane.b32.xlu0 %v10446, 96
        %v10486 = vpop.permute.xlu0 %10485
        %10487 = vrot.lane.b32.xlu0 %v10447, 96
        %v10488 = vpop.permute.xlu0 %10487
        %10489 = vrot.lane.b32.xlu0 %v10448, 96
        %v10490 = vpop.permute.xlu0 %10489
        %10491 = vrot.lane.b32.xlu0 %v10449, 96
        %v10492 = vpop.permute.xlu0 %10491
        %10493 = vrot.lane.b32.xlu0 %v10450, 96
        %v10494 = vpop.permute.xlu0 %10493
        %10495 = vrot.lane.b32.xlu0 %v10451, 96
        %v10496 = vpop.permute.xlu0 %10495
        %10497 = vrot.lane.b32.xlu0 %v10452, 96
        %v10498 = vpop.permute.xlu0 %10497
        %10499 = vrot.lane.b32.xlu0 %v10453, 96
        %v10500 = vpop.permute.xlu0 %10499
        %10501 = vrot.lane.b32.xlu0 %v10454, 96
        %v10502 = vpop.permute.xlu0 %10501
        %10503 = vrot.lane.b32.xlu0 %v10455, 96
        %v10504 = vpop.permute.xlu0 %10503
        %10505 = vrot.lane.b32.xlu0 %v10456, 96
        %v10506 = vpop.permute.xlu0 %10505
        %10507 = vrot.lane.b32.xlu0 %v10457, 96
        %v10508 = vpop.permute.xlu0 %10507
        %10509 = vrot.lane.b32.xlu0 %v10458, 96
        %v10510 = vpop.permute.xlu0 %10509
        %10511 = vrot.lane.b32.xlu0 %v10459, 96
        %v10512 = vpop.permute.xlu0 %10511
        %10513 = vrot.lane.b32.xlu0 %v10460, 96
        %v10514 = vpop.permute.xlu0 %10513
        %v10516 = vsel %vm2326, %v10412, 0
        %v10519 = vsel %vm2326, %v10484, 0
        %v10522 = vsel %vm2326, %v10486, 0
        %v10525 = vsel %vm2326, %v10488, 0
        %v10528 = vsel %vm2326, %v10490, 0
        %v10531 = vsel %vm2326, %v10492, 0
        %v10534 = vsel %vm2326, %v10494, 0
        %v10537 = vsel %vm2326, %v10496, 0
        %v10540 = vsel %vm2326, %v10498, 0
        %v10543 = vsel %vm2326, %v10500, 0
        %v10546 = vsel %vm2326, %v10502, 0
        %v10549 = vsel %vm2326, %v10504, 0
        %v10552 = vsel %vm2326, %v10506, 0
        %v10555 = vsel %vm2326, %v10508, 0
        %v10558 = vsel %vm2326, %v10510, 0
        %v10561 = vsel %vm2326, %v10512, 0
        %v10564 = vsel %vm2326, %v10514, 0
        %10566 = vmatprep.subr.bf16.mxu0 0
        %10567 = vmatpush1.bf16.xpose.msra.mxu0 %v10519
        %10568 = vmatprep.subr.bf16.mxu0 0
        %10569 = vmatpush1.bf16.xpose.msra.mxu0 %v10522
        %10570 = vmatprep.subr.bf16.mxu0 0
        %10571 = vmatpush1.bf16.xpose.msra.mxu0 %v10525
        %10572 = vmatprep.subr.bf16.mxu0 0
        %10573 = vmatpush1.bf16.xpose.msra.mxu0 %v10528
        %10574 = vmatprep.subr.bf16.mxu0 0
        %10575 = vmatpush1.bf16.xpose.msra.mxu0 %v10531
        %10576 = vmatprep.subr.bf16.mxu0 0
        %10577 = vmatpush1.bf16.xpose.msra.mxu0 %v10534
        %10578 = vmatprep.subr.bf16.mxu0 0
        %10579 = vmatpush1.bf16.xpose.msra.mxu0 %v10537
        %10580 = vmatprep.subr.bf16.mxu0 0
        %10581 = vmatpush1.bf16.xpose.msra.mxu0 %v10540
        %10582 = vmatprep.subr.bf16.mxu0 0
        %10583 = vmatpush1.bf16.xpose.msra.mxu0 %v10543
        %10584 = vmatprep.subr.bf16.mxu0 0
        %10585 = vmatpush1.bf16.xpose.msra.mxu0 %v10546
        %10586 = vmatprep.subr.bf16.mxu0 0
        %10587 = vmatpush1.bf16.xpose.msra.mxu0 %v10549
        %10588 = vmatprep.subr.bf16.mxu0 0
        %10589 = vmatpush1.bf16.xpose.msra.mxu0 %v10552
        %10590 = vmatprep.subr.bf16.mxu0 0
        %10591 = vmatpush1.bf16.xpose.msra.mxu0 %v10555
        %10592 = vmatprep.subr.bf16.mxu0 0
        %10593 = vmatpush1.bf16.xpose.msra.mxu0 %v10558
        %10594 = vmatprep.subr.bf16.mxu0 0
        %10595 = vmatpush1.bf16.xpose.msra.mxu0 %v10561
        %10596 = vmatprep.subr.bf16.mxu0 0
        %10597 = vmatpush1.bf16.xpose.msra.mxu0 %v10564
        %10598 = vmatprep.mubr.bf16.mxu0 0
        %10599 = vmatmul.mubr.bf16.gmra.mrb[0].mxu0 %v10516
        %v10600 = vpop.f32.mrb[0].mxu0
        %v10601 = vadd.f32 %v10465, %v10600
        %v10602 = vpop.f32.mrb[0].mxu0
        %v10603 = vadd.f32 %v10465, %v10602
        %v10604 = vpop.f32.mrb[0].mxu0
        %v10605 = vpop.f32.mrb[0].mxu0
        %10606 = vdwg.mxu0
        %v10607 = vmax.f32 %v10601, 0.0
        %v10608 = vmax.f32 %v10603, 0.0
        %v10611 = vcombine.low %v10607, %v10608
        %10613 = vst [vmem:[%s525] sm:$0xff] %v10611
        %s10614 = sand.u32 %s262, 1
        %s10615 = scalar_lea.sflag [#allocation6], %s10614
        %s10616 = sand.u32 %s262, 1
        %s10617 = smul.addr %s10616, 8
        %s10618 = scalar_lea.vmem [#allocation21], %s10617
        // Predicated region
        $region101: #{wavenet2d_forward.1} parent=59 // pred_check
          %p10619 = pneg %p272
        $region102: #{wavenet2d_forward.1} parent=59 // pred_check_branch
          %10621 = sbr.rel (%p10619) target = $region104
        $region103: #{wavenet2d_forward.1} parent=59 // pred_region
          %s10623 = ssub.s32 128, 128
          %10624 = vsyncadd %s10615, %s10623
          %s10625 = smul.addr %s34, 2
          %s10626 = smul.addr %s10625, 64
          %s10627 = scalar_lea.hbm %s10, %s10626
          %s10629 = sshll.u32 %s10618, 4
          %s10630 = int_to_ptr.vmem [resolvable:$true] %s10629
          %10632 = dma.vmem_to_hbm [thread:$0]  %s10630, 128, %s10627, %s10615
        $region104: #{wavenet2d_forward.1} parent=59 // pred_fallthru
          _
      $region60: #{wavenet2d_forward.1} parent=5 // pred_fallthru
        _
      %p10633 = scmp.le.s32.totalorder 2, %s29
      // Predicated region
      $region105: #{wavenet2d_forward.1} parent=5 // pred_check
        %p10634 = pneg %p10633
      $region106: #{wavenet2d_forward.1} parent=5 // pred_check_branch
        %10636 = sbr.rel (%p10634) target = $region108
      $region107: #{wavenet2d_forward.1} parent=5 // pred_region
        %s10637 = ssub.s32 %s29, 2
        // Predicated region
        $region109: #{wavenet2d_forward.1} parent=107 // pred_check
          %p10638 = pneg %p278
        $region110: #{wavenet2d_forward.1} parent=107 // pred_check_branch
          %10640 = sbr.rel (%p10638) target = $region112
        $region111: #{wavenet2d_forward.1} parent=107 // pred_region
          %s10641 = sand.u32 %s263, 1
          %s10642 = scalar_lea.sflag [#allocation6], %s10641
          %s10643 = sand.u32 %s263, 1
          %s10644 = smul.addr %s10643, 8
          %s10645 = scalar_lea.vmem [#allocation21], %s10644
          %10646 = dma.done %s10642, 128
        $region112: #{wavenet2d_forward.1} parent=107 // pred_fallthru
          _
      $region108: #{wavenet2d_forward.1} parent=5 // pred_fallthru
        _
    $region6: #{wavenet2d_forward.1} parent=1 // loop_footer
      %s33 = sadd.s32 1, %s29
    $region7: #{wavenet2d_forward.1} parent=1 // loop_footer_branch
      %28 = sbr.rel target = $region3
    $region8: #{wavenet2d_forward.1} parent=1 // loop_exit
      _
    %10647 = vsyncpa [#allocation5], 1
    %s10648 = scalar_lea.sflag [#allocation5], 1
    %10649 = vsyncpa %s10648, 1
    %10650 = vsyncpa [#allocation8], 1
    %s10651 = scalar_lea.sflag [#allocation8], 1
    %10652 = vsyncpa %s10651, 1
    %10653 = vsyncpa [#allocation11], 1
    %10654 = vsyncpa [#allocation14], 1
    %10655 = vsyncpa [#allocation17], 1
    %10656 = vsyncpa [#allocation20], 1
    %10657 = vsyncpa [#allocation6], 1
    %s10658 = scalar_lea.sflag [#allocation6], 1
    %10659 = vsyncpa %s10658, 1

</llo_original>
